<compile_context>
chip_gen: v7x
topology: tpu7x:2x2x1
jax: 0.10.0
libtpu: 0.0.40
codegen_flags: <defaults>
</compile_context>

<pallas_src>
import numpy as np
import jax
import jax.numpy as jnp
from jax import lax
from jax.experimental import pallas as pl
from jax.experimental.pallas import tpu as pltpu

BN_EPS = 1e-5
_KS = 7          # spatial-attention kernel size
_PAD = 3         # spatial-attention conv padding
_OUT_SLOT = 32   # lane slot per head inside the packed output slab
_OUT_WIDTH = 128 # packed output lane width (single unmasked 128-wide store)


def _sigmoid(v):
    return 1.0 / (1.0 + jnp.exp(-v))


def _gelu_tanh(v):
    c = 0.7978845608028654  # sqrt(2/pi)
    return 0.5 * v * (1.0 + jnp.tanh(c * (v + 0.044715 * v * v * v)))


def _const_index_map(ndim):
    def imap(b):
        return (0,) * ndim
    return imap


# ---------------------------------------------------------------------------
# Fused kernel builder
# ---------------------------------------------------------------------------
def _make_fused_kernel(seg, with_attention):
    o1, o2, o3, o4 = seg  # cumulative widths of the fused layer-1 output

    def kernel(x_ref, aw1_ref, aw2_ref, kavg_ref, kmax_ref,
               w1_ref, b1_ref, cw2_ref, cb2_ref, gw2_ref, gb2_ref,
               wt_ref, bt_ref, *out_refs):
        if with_attention:
            out_ref, h_ref, att_ref = out_refs
        else:
            (out_ref,) = out_refs

        x = x_ref[...]
        if x.dtype != jnp.float32:
            x = x.astype(jnp.float32)      # activations stay f32 (v5e-safe)
        tb, HW, C = x.shape
        inv_hw = 1.0 / float(HW)
        inv_c = 1.0 / float(C)

        def mm(v, w):
            # MXU matmul; if weights are bf16, cast the activation at the dot
            # and accumulate in f32.
            if v.dtype != w.dtype:
                v = v.astype(w.dtype)
            return jnp.dot(v, w, preferred_element_type=jnp.float32)

        def lin(v, w_ref, b_ref):
            return mm(v, w_ref[...]) + b_ref[...]

        # ---- channel attention -------------------------------------------
        avg_vec = jnp.sum(x, axis=1) * inv_hw            # (tb, C)
        max_vec = jnp.max(x, axis=1)                     # (tb, C)
        aw1 = aw1_ref[...]
        # relu(a W1) W2 + relu(m W1) W2 == (relu(a W1) + relu(m W1)) W2
        hid = (jnp.maximum(mm(avg_vec, aw1), 0.0) +
               jnp.maximum(mm(max_vec, aw1), 0.0))       # (tb, C//r)
        ch_att = _sigmoid(mm(hid, aw2_ref[...]))         # (tb, C)
        x_ch = x * ch_att[:, None, :]                    # (tb, HW, C)

        # ---- spatial attention: 7x7 conv folded into two (HW,HW) matmuls ---
        avg_sp = jnp.sum(x_ch, axis=2) * inv_c           # (tb, HW)
        max_sp = jnp.max(x_ch, axis=2)                   # (tb, HW)
        sp_att = _sigmoid(mm(avg_sp, kavg_ref[...]) +
                          mm(max_sp, kmax_ref[...]))     # (tb, HW)

        if with_attention:
            attended = x_ch * sp_att[:, :, None]         # (tb, HW, C)
            att_ref[...] = attended.astype(att_ref.dtype)
            h = jnp.sum(attended, axis=1) * inv_hw       # (tb, C)
            h_ref[...] = h.astype(h_ref.dtype)
        else:
            # Fused weighted reduction; attended never hits HBM.
            h = jnp.sum(x_ch * sp_att[:, :, None], axis=1) * inv_hw

        # ---- heads: fused layer-1 / per-head layer-2 / fused packed layer-3
        z1 = lin(h, w1_ref, b1_ref)                      # (tb, 2048), BN folded
        zc = _gelu_tanh(z1[:, 0:o1])                     # classifier hidden
        zg = _gelu_tanh(z1[:, o1:o2])                    # grade hidden
        zo = _gelu_tanh(z1[:, o2:o3])                    # ordinal hidden
        zd = jnp.maximum(z1[:, o3:o4], 0.0)              # domain (GradRev = id)

        zc2 = _gelu_tanh(lin(zc, cw2_ref, cb2_ref))      # (tb, 512)
        zg2 = _gelu_tanh(lin(zg, gw2_ref, gb2_ref))      # (tb, 256)

        # Single block-diagonal final matmul -> one lane-dense (tb,128) slab.
        tail = jnp.concatenate([zc2, zg2, zo, zd], axis=1)   # (tb, 1280)
        out_ref[...] = lin(tail, wt_ref, bt_ref).astype(out_ref.dtype)

    return kernel


# ---------------------------------------------------------------------------
# Public forward wrapper
# ---------------------------------------------------------------------------
def enhanced_dr_classifier_forward(features_nhwc, params, alpha=0.0,
                                   get_attention=False, batch_tile=32):
    """Forward pass of the EnhancedDRClassifier heads on a backbone feature map.

    features_nhwc: (B, H, W, C) channels-last feature map (f32 or bf16; no
    wrapper-side cast - the kernel upcasts internally).
    Returns (logits, (grade_logits, ordinal), domain_logits[, h, attended]).
    """
    B, H, W, C = features_nhwc.shape
    meta = params['meta']
    assert (H, W) == meta['spatial_hw'], "prepare_params spatial_hw mismatch"
    nc, n_ord, n_dom = meta['num_classes'], meta['n_ord'], meta['n_dom']
    seg = meta['seg']
    HW = H * W
    with_attention = bool(get_attention)
    with_domain = alpha > 0

    x3 = features_nhwc.reshape(B, HW, C)   # free metadata reshape, no cast

    weight_names = ['att_w1', 'att_w2', 'k_avg', 'k_max', 'w1cat', 'b1cat',
                    'cls_w2f', 'cls_b2f', 'grd_w2f', 'grd_b2f',
                    'w_tail', 'b_tail']
    weights = [params[n] for n in weight_names]
    wbytes = sum(int(np.prod(a.shape)) * a.dtype.itemsize for a in weights)

    # Per-generation VMEM capacity -> tile selection + scoped limit.
    try:
        cap = int(pltpu.get_tpu_info().vmem_capacity_bytes)
    except Exception:
        cap = 64 * 2 ** 20   # conservative (v7x per-TensorCore)

    in_item = jnp.dtype(features_nhwc.dtype).itemsize

    def est_need(tb_):
        act_copies = 3 if with_attention else 2          # x(f32), x_ch (+attended)
        need = 2 * tb_ * HW * C * in_item                # double-buffered x block
        need += act_copies * tb_ * HW * C * 4
        need += 2 * tb_ * _OUT_WIDTH * 4
        if with_attention:
            need += 2 * tb_ * C * 4 + 2 * tb_ * HW * C * 4
        need += wbytes                                   # single-buffered weights
        need += 4 * tb_ * seg[-1] * 4                    # z1 + head tails
        return need

    tb = min(int(batch_tile), B)
    if tb >= 8:
        tb = (tb // 8) * 8
        # Prefer >=2 grid steps when the batch allows (v7x dual TensorCore).
        if B >= 16 and tb >= B:
            tb = max(8, ((B + 1) // 2 + 7) // 8 * 8)
    while tb > 8 and est_need(tb) > 0.75 * cap:
        tb = max(8, (tb // 2 + 7) // 8 * 8)

    Bp = pl.cdiv(B, tb) * tb
    if Bp != B:                                          # pad, never tb=B fallback
        x3 = jnp.pad(x3, ((0, Bp - B), (0, 0), (0, 0)))
    grid = (Bp // tb,)

    kernel = _make_fused_kernel(seg, with_attention)

    out_shape = [jax.ShapeDtypeStruct((Bp, _OUT_WIDTH), jnp.float32)]
    out_specs = [pl.BlockSpec((tb, _OUT_WIDTH), lambda b: (b, 0))]
    if with_attention:
        out_shape += [jax.ShapeDtypeStruct((Bp, C), jnp.float32),
                      jax.ShapeDtypeStruct((Bp, HW, C), jnp.float32)]
        out_specs += [pl.BlockSpec((tb, C), lambda b: (b, 0)),
                      pl.BlockSpec((tb, HW, C), lambda b: (b, 0, 0))]

    need = est_need(tb)
    vmem_limit = int(min(0.9 * cap, max(32 * 2 ** 20, 1.6 * need)))

    # Advisory cost estimate.
    Cr = params['att_w1'].shape[1]
    flops = (6 * Bp * C * Cr
             + 4 * Bp * HW * HW
             + 6 * Bp * HW * C
             + 2 * Bp * C * seg[-1]
             + 2 * Bp * (seg[0] * params['cls_w2f'].shape[1]
                         + (seg[1] - seg[0]) * params['grd_w2f'].shape[1])
             + 2 * Bp * params['w_tail'].shape[0] * _OUT_WIDTH)
    transcend = Bp * (C + HW + seg[-1]
                      + params['cls_w2f'].shape[1] + params['grd_w2f'].shape[1])
    bytes_acc = (int(np.prod(x3.shape)) * in_item + wbytes
                 + sum(int(np.prod(s.shape)) * 4 for s in out_shape))
    cost = pl.CostEstimate(flops=int(flops), transcendentals=int(transcend),
                           bytes_accessed=int(bytes_acc))

    def make_in_specs(single_buffer):
        def wspec(a):
            if single_buffer:
                return pl.BlockSpec(a.shape, _const_index_map(a.ndim),
                                    pipeline_mode=pl.Buffered(1))
            return pl.BlockSpec(a.shape, _const_index_map(a.ndim))
        specs = [pl.BlockSpec((tb, HW, C), lambda b: (b, 0, 0))]
        specs += [wspec(a) for a in weights]
        return specs

    def run(single_buffer):
        return pl.pallas_call(
            kernel,
            grid=grid,
            in_specs=make_in_specs(single_buffer),
            out_specs=tuple(out_specs),
            out_shape=tuple(out_shape),
            compiler_params=pltpu.CompilerParams(
                dimension_semantics=("parallel",),
                vmem_limit_bytes=vmem_limit),
            cost_estimate=cost,
        )(x3, *weights)

    try:
        # Grid-invariant weights single-buffered (halves resident weight VMEM).
        outs = run(True)
    except Exception:
        # Fallback for Pallas versions without pipeline_mode / Buffered(1).
        outs = run(False)

    slab = outs[0][:B]
    logits = slab[:, 0:nc]
    grade = slab[:, _OUT_SLOT:_OUT_SLOT + nc]
    ordinal = slab[:, 2 * _OUT_SLOT:2 * _OUT_SLOT + n_ord]
    domain_logits = slab[:, 3 * _OUT_SLOT:3 * _OUT_SLOT + n_dom] if with_domain else None

    if with_attention:
        h = outs[1][:B]
        attended = outs[2][:B].reshape(B, H, W, C)
        return logits, (grade, ordinal), domain_logits, h, attended
    return logits, (grade, ordinal), domain_logits


# ---------------------------------------------------------------------------
# Synthetic parameters (shapes defined by the module __init__) + prep/folding
# ---------------------------------------------------------------------------
def init_raw_params(key, feature_dim=32, num_classes=5, reduction_ratio=8):
    """Linear weights stored (in, out) so the kernel computes y = x @ W."""
    C, Cr = feature_dim, feature_dim // reduction_ratio
    ks = iter(jax.random.split(key, 48))

    def kaiming(k, fan_in, fan_out):
        return jax.random.normal(k, (fan_in, fan_out), jnp.float32) * np.sqrt(2.0 / fan_out)

    def bias(k, n):
        return 0.01 * jax.random.normal(k, (n,), jnp.float32)

    def bn(k, n):
        k1, k2, k3, k4 = jax.random.split(k, 4)
        gamma = 1.0 + 0.1 * jax.random.normal(k1, (n,), jnp.float32)
        beta = 0.05 * jax.random.normal(k2, (n,), jnp.float32)
        mean = 0.1 * jax.random.normal(k3, (n,), jnp.float32)
        var = 1.0 + 0.1 * jax.random.uniform(k4, (n,), jnp.float32)
        return gamma, beta, mean, var

    p = {}
    # LesionAttentionModule
    p['att_w1'] = kaiming(next(ks), C, Cr)
    p['att_w2'] = kaiming(next(ks), Cr, C)
    p['att_wsp'] = jax.random.normal(next(ks), (2, _KS, _KS), jnp.float32) * np.sqrt(2.0 / 98.0)
    # classifier
    p['cls_w1'] = kaiming(next(ks), C, 1024);   p['cls_b1'] = bias(next(ks), 1024)
    p['cls_bn1'] = bn(next(ks), 1024)
    p['cls_w2'] = kaiming(next(ks), 1024, 512); p['cls_b2'] = bias(next(ks), 512)
    p['cls_bn2'] = bn(next(ks), 512)
    p['cls_w3'] = kaiming(next(ks), 512, num_classes); p['cls_b3'] = bias(next(ks), num_classes)
    # grade_head.grade_predictor
    p['grd_w1'] = kaiming(next(ks), C, 512);    p['grd_b1'] = bias(next(ks), 512)
    p['grd_bn1'] = bn(next(ks), 512)
    p['grd_w2'] = kaiming(next(ks), 512, 256);  p['grd_b2'] = bias(next(ks), 256)
    p['grd_bn2'] = bn(next(ks), 256)
    p['grd_w3'] = kaiming(next(ks), 256, num_classes); p['grd_b3'] = bias(next(ks), num_classes)
    # grade_head.ordinal_encoder
    p['ord_w1'] = kaiming(next(ks), C, 256);    p['ord_b1'] = bias(next(ks), 256)
    p['ord_w2'] = kaiming(next(ks), 256, num_classes - 1)
    p['ord_b2'] = bias(next(ks), num_classes - 1)
    # domain_classifier
    p['dom_w1'] = kaiming(next(ks), C, 256);    p['dom_b1'] = bias(next(ks), 256)
    p['dom_w2'] = kaiming(next(ks), 256, 5);    p['dom_b2'] = bias(next(ks), 5)
    return p


def _conv_as_matmul(wsp, H, W):
    """Fold the 7x7 (2ch -> 1ch, pad 3) cross-correlation into two (HW, HW)
    matrices so the spatial-attention conv becomes two MXU matmuls."""
    wsp = np.asarray(wsp, np.float32)
    HW = H * W
    K = np.zeros((2, HW, HW), np.float32)
    for c in range(2):
        for i in range(H):
            for j in range(W):
                s = i * W + j
                for kh in range(_KS):
                    for kw in range(_KS):
                        p = i + kh - _PAD
                        q = j + kw - _PAD
                        if 0 <= p < H and 0 <= q < W:
                            K[c, p * W + q, s] = wsp[c, kh, kw]
    return jnp.asarray(K[0]), jnp.asarray(K[1])


def prepare_params(raw, spatial_hw, weights_dtype=jnp.float32):
    """Fold eval-mode BatchNorm1d into the preceding Linear, fuse first-layer
    head weights into one (C, 2048) matrix, fold the 7x7 spatial conv into
    (HW, HW) matrices, and pack all four final layers into one block-diagonal
    (1280, 128) weight so the kernel emits a single lane-dense output slab.
    Pass weights_dtype=jnp.bfloat16 on v6e/v7x to halve weight VMEM/DMA."""
    H, W = spatial_hw

    def fold(w, b, bnp):
        g, bt, m, v = bnp
        s = g / jnp.sqrt(v + BN_EPS)
        return w * s[None, :], (b - m) * s + bt

    cw1, cb1 = fold(raw['cls_w1'], raw['cls_b1'], raw['cls_bn1'])
    cw2, cb2 = fold(raw['cls_w2'], raw['cls_b2'], raw['cls_bn2'])
    gw1, gb1 = fold(raw['grd_w1'], raw['grd_b1'], raw['grd_bn1'])
    gw2, gb2 = fold(raw['grd_w2'], raw['grd_b2'], raw['grd_bn2'])

    wd = lambda w: w.astype(weights_dtype)
    row = lambda b: b.astype(jnp.float32)[None, :]

    k_avg, k_max = _conv_as_matmul(raw['att_wsp'], H, W)

    n1c, n1g = cw1.shape[1], gw1.shape[1]
    n1o, n1d = raw['ord_w1'].shape[1], raw['dom_w1'].shape[1]
    seg = (n1c, n1c + n1g, n1c + n1g + n1o, n1c + n1g + n1o + n1d)

    nc = raw['cls_w3'].shape[1]
    n_ord = raw['ord_w2'].shape[1]
    n_dom = raw['dom_w2'].shape[1]
    assert max(nc, n_ord, n_dom) <= _OUT_SLOT

    # Block-diagonal packed final layer:
    # slab lanes: [logits | grade | ordinal | domain] at 32-lane slots.
    n2c, n2g = raw['cls_w3'].shape[0], raw['grd_w3'].shape[0]
    n2o, n2d = raw['ord_w2'].shape[0], raw['dom_w2'].shape[0]
    wt = jnp.zeros((n2c + n2g + n2o + n2d, _OUT_WIDTH), jnp.float32)
    bt = jnp.zeros((_OUT_WIDTH,), jnp.float32)
    r = 0
    wt = wt.at[r:r + n2c, 0:nc].set(raw['cls_w3'])
    bt = bt.at[0:nc].set(raw['cls_b3']); r += n2c
    wt = wt.at[r:r + n2g, _OUT_SLOT:_OUT_SLOT + nc].set(raw['grd_w3'])
    bt = bt.at[_OUT_SLOT:_OUT_SLOT + nc].set(raw['grd_b3']); r += n2g
    wt = wt.at[r:r + n2o, 2 * _OUT_SLOT:2 * _OUT_SLOT + n_ord].set(raw['ord_w2'])
    bt = bt.at[2 * _OUT_SLOT:2 * _OUT_SLOT + n_ord].set(raw['ord_b2']); r += n2o
    wt = wt.at[r:r + n2d, 3 * _OUT_SLOT:3 * _OUT_SLOT + n_dom].set(raw['dom_w2'])
    bt = bt.at[3 * _OUT_SLOT:3 * _OUT_SLOT + n_dom].set(raw['dom_b2'])

    return {
        'att_w1': wd(raw['att_w1']),
        'att_w2': wd(raw['att_w2']),
        'k_avg': k_avg.astype(jnp.float32),
        'k_max': k_max.astype(jnp.float32),
        # [classifier(1024) | grade(512) | ordinal(256) | domain(256)]
        'w1cat': wd(jnp.concatenate([cw1, gw1, raw['ord_w1'], raw['dom_w1']], axis=1)),
        'b1cat': jnp.concatenate([cb1, gb1, raw['ord_b1'], raw['dom_b1']])[None, :].astype(jnp.float32),
        'cls_w2f': wd(cw2), 'cls_b2f': row(cb2),
        'grd_w2f': wd(gw2), 'grd_b2f': row(gb2),
        'w_tail': wd(wt), 'b_tail': row(bt),
        'meta': {'num_classes': nc, 'n_ord': n_ord, 'n_dom': n_dom,
                 'seg': seg, 'spatial_hw': (H, W)},
    }


# ---------------------------------------------------------------------------
# Pure-JAX reference (NHWC, un-folded params) for correctness
# ---------------------------------------------------------------------------
def reference_forward(x_nhwc, raw, alpha=0.0):
    x = x_nhwc.astype(jnp.float32)
    avg = jnp.mean(x, axis=(1, 2))
    mx = jnp.max(x, axis=(1, 2))

    def mlp(v):
        return jnp.maximum(v @ raw['att_w1'], 0.0) @ raw['att_w2']

    ch = _sigmoid(mlp(avg) + mlp(mx))
    x_ch = x * ch[:, None, None, :]
    sp_in = jnp.stack([jnp.mean(x_ch, axis=-1), jnp.max(x_ch, axis=-1)], axis=-1)
    w_hwio = jnp.transpose(raw['att_wsp'], (1, 2, 0))[:, :, :, None]
    conv = lax.conv_general_dilated(sp_in, w_hwio, (1, 1), [(3, 3), (3, 3)],
                                    dimension_numbers=('NHWC', 'HWIO', 'NHWC'))
    att = x_ch * _sigmoid(conv)
    h = jnp.mean(att, axis=(1, 2))

    def bn(v, bn_params):
        g, bt, m, var = bn_params
        return (v - m) / jnp.sqrt(var + BN_EPS) * g + bt

    z = _gelu_tanh(bn(h @ raw['cls_w1'] + raw['cls_b1'], raw['cls_bn1']))
    z = _gelu_tanh(bn(z @ raw['cls_w2'] + raw['cls_b2'], raw['cls_bn2']))
    logits = z @ raw['cls_w3'] + raw['cls_b3']
    gz = _gelu_tanh(bn(h @ raw['grd_w1'] + raw['grd_b1'], raw['grd_bn1']))
    gz = _gelu_tanh(bn(gz @ raw['grd_w2'] + raw['grd_b2'], raw['grd_bn2']))
    grade = gz @ raw['grd_w3'] + raw['grd_b3']
    oz = _gelu_tanh(h @ raw['ord_w1'] + raw['ord_b1'])
    ordi = oz @ raw['ord_w2'] + raw['ord_b2']
    dom = None
    if alpha > 0:
        dz = jnp.maximum(h @ raw['dom_w1'] + raw['dom_b1'], 0.0)
        dom = dz @ raw['dom_w2'] + raw['dom_b2']
    return logits, (grade, ordi), dom, h, att


if __name__ == "__main__":
    key = jax.random.PRNGKey(0)
    k_feat, k_param = jax.random.split(key)

    # Small NHWC backbone feature map (backbone itself is external).
    B, H, W, C = 2, 8, 8, 32
    num_classes = 5
    features = jax.random.normal(k_feat, (B, H, W, C), jnp.float32)
    raw = init_raw_params(k_param, feature_dim=C, num_classes=num_classes)
    # f32 weights here for a tight reference check; weights_dtype=jnp.bfloat16
    # is recommended on v6e/v7x.
    params = prepare_params(raw, spatial_hw=(H, W))

    alpha = 0.3  # exercise the domain-classifier branch

    # Common path: no attended-feature writeback.
    logits, (grade, ordinal), dom = enhanced_dr_classifier_forward(
        features, params, alpha=alpha, get_attention=False)
    jax.block_until_ready((logits, grade, ordinal, dom))

    assert logits.shape == (B, num_classes)
    assert grade.shape == (B, num_classes)
    assert ordinal.shape == (B, num_classes - 1)
    assert dom.shape == (B, 5)

    # Debug path: also return h and the attended feature map (NHWC).
    logits2, (grade2, ordinal2), dom2, h, attended = enhanced_dr_classifier_forward(
        features, params, alpha=alpha, get_attention=True)
    jax.block_until_ready((logits2, h, attended))
    assert h.shape == (B, C)
    assert attended.shape == (B, H, W, C)

    r_logits, (r_grade, r_ord), r_dom, r_h, r_att = reference_forward(
        features, raw, alpha=alpha)
    np.testing.assert_allclose(np.asarray(logits), np.asarray(r_logits), rtol=2e-2, atol=2e-3)
    np.testing.assert_allclose(np.asarray(grade), np.asarray(r_grade), rtol=2e-2, atol=2e-3)
    np.testing.assert_allclose(np.asarray(ordinal), np.asarray(r_ord), rtol=2e-2, atol=2e-3)
    np.testing.assert_allclose(np.asarray(dom), np.asarray(r_dom), rtol=2e-2, atol=2e-3)
    np.testing.assert_allclose(np.asarray(h), np.asarray(r_h), rtol=2e-2, atol=2e-3)
    np.testing.assert_allclose(np.asarray(attended), np.asarray(r_att), rtol=2e-2, atol=2e-3)
    np.testing.assert_allclose(np.asarray(logits2), np.asarray(logits), rtol=1e-5, atol=1e-5)

    print("KERNEL_OK")
</pallas_src>

<mosaic_0001>
module attributes {stable_mosaic.version = 11 : i64} {
  func.func @kernel(%arg0: i32, %arg1: memref<2x64x32xf32, #tpu.memory_space<vmem>>, %arg2: memref<32x4xf32, #tpu.memory_space<vmem>>, %arg3: memref<4x32xf32, #tpu.memory_space<vmem>>, %arg4: memref<64x64xf32, #tpu.memory_space<vmem>>, %arg5: memref<64x64xf32, #tpu.memory_space<vmem>>, %arg6: memref<32x2048xf32, #tpu.memory_space<vmem>>, %arg7: memref<1x2048xf32, #tpu.memory_space<vmem>>, %arg8: memref<1024x512xf32, #tpu.memory_space<vmem>>, %arg9: memref<1x512xf32, #tpu.memory_space<vmem>>, %arg10: memref<512x256xf32, #tpu.memory_space<vmem>>, %arg11: memref<1x256xf32, #tpu.memory_space<vmem>>, %arg12: memref<1280x128xf32, #tpu.memory_space<vmem>>, %arg13: memref<1x128xf32, #tpu.memory_space<vmem>>, %arg14: memref<2x128xf32, #tpu.memory_space<vmem>>) attributes {dimension_semantics = [#tpu.dimension_semantics<parallel>], iteration_bounds = array<i64: 1>, scalar_prefetch = 0 : i64, scratch_operands = 0 : i64, tpu.core_type = #tpu.core_type<tc>, window_params = [{transform_indices = @transform_0, window_bounds = array<i64: 2, 64, 32>}, {pipeline_mode = #tpu.pipeline_mode<synchronous>, transform_indices = @transform_1, window_bounds = array<i64: 32, 4>}, {pipeline_mode = #tpu.pipeline_mode<synchronous>, transform_indices = @transform_2, window_bounds = array<i64: 4, 32>}, {pipeline_mode = #tpu.pipeline_mode<synchronous>, transform_indices = @transform_3, window_bounds = array<i64: 64, 64>}, {pipeline_mode = #tpu.pipeline_mode<synchronous>, transform_indices = @transform_4, window_bounds = array<i64: 64, 64>}, {pipeline_mode = #tpu.pipeline_mode<synchronous>, transform_indices = @transform_5, window_bounds = array<i64: 32, 2048>}, {pipeline_mode = #tpu.pipeline_mode<synchronous>, transform_indices = @transform_6, window_bounds = array<i64: 1, 2048>}, {pipeline_mode = #tpu.pipeline_mode<synchronous>, transform_indices = @transform_7, window_bounds = array<i64: 1024, 512>}, {pipeline_mode = #tpu.pipeline_mode<synchronous>, transform_indices = @transform_8, window_bounds = array<i64: 1, 512>}, {pipeline_mode = #tpu.pipeline_mode<synchronous>, transform_indices = @transform_9, window_bounds = array<i64: 512, 256>}, {pipeline_mode = #tpu.pipeline_mode<synchronous>, transform_indices = @transform_10, window_bounds = array<i64: 1, 256>}, {pipeline_mode = #tpu.pipeline_mode<synchronous>, transform_indices = @transform_11, window_bounds = array<i64: 1280, 128>}, {pipeline_mode = #tpu.pipeline_mode<synchronous>, transform_indices = @transform_12, window_bounds = array<i64: 1, 128>}, {transform_indices = @transform_13, window_bounds = array<i64: 2, 128>}]} {
    %c0 = arith.constant 0 : index
    %c0_0 = arith.constant 0 : index
    %c0_1 = arith.constant 0 : index
    %0 = vector.load %arg1[%c0, %c0_0, %c0_1] : memref<2x64x32xf32, #tpu.memory_space<vmem>>, vector<2x64x32xf32>
    %cst = arith.constant dense<0.000000e+00> : vector<2x32xf32>
    %1 = vector.multi_reduction <add>, %0, %cst [1] : vector<2x64x32xf32> to vector<2x32xf32>
    %cst_2 = arith.constant 1.562500e-02 : f32
    %2 = vector.broadcast %cst_2 : f32 to vector<2x32xf32>
    %3 = arith.mulf %1, %2 : vector<2x32xf32>
    %cst_3 = arith.constant dense<0xFF800000> : vector<2x32xf32>
    %4 = vector.multi_reduction <maximumf>, %0, %cst_3 [1] : vector<2x64x32xf32> to vector<2x32xf32>
    %c0_4 = arith.constant 0 : index
    %c0_5 = arith.constant 0 : index
    %5 = vector.load %arg2[%c0_4, %c0_5] : memref<32x4xf32, #tpu.memory_space<vmem>>, vector<32x4xf32>
    %cst_6 = arith.constant dense<0.000000e+00> : vector<2x4xf32>
    %6 = tpu.matmul %3, %5, %cst_6 {dimension_numbers = #tpu.dot_dimension_numbers<[1], [0], [0], [1], [0, 0, 1, 1], [], []>} : vector<2x32xf32>, vector<32x4xf32>, vector<2x4xf32> -> vector<2x4xf32>
    %cst_7 = arith.constant 0.000000e+00 : f32
    %7 = vector.broadcast %cst_7 : f32 to vector<2x4xf32>
    %8 = arith.maximumf %6, %7 : vector<2x4xf32>
    %cst_8 = arith.constant dense<0.000000e+00> : vector<2x4xf32>
    %9 = tpu.matmul %4, %5, %cst_8 {dimension_numbers = #tpu.dot_dimension_numbers<[1], [0], [0], [1], [0, 0, 1, 1], [], []>} : vector<2x32xf32>, vector<32x4xf32>, vector<2x4xf32> -> vector<2x4xf32>
    %cst_9 = arith.constant 0.000000e+00 : f32
    %10 = vector.broadcast %cst_9 : f32 to vector<2x4xf32>
    %11 = arith.maximumf %9, %10 : vector<2x4xf32>
    %12 = arith.addf %8, %11 : vector<2x4xf32>
    %c0_10 = arith.constant 0 : index
    %c0_11 = arith.constant 0 : index
    %13 = vector.load %arg3[%c0_10, %c0_11] : memref<4x32xf32, #tpu.memory_space<vmem>>, vector<4x32xf32>
    %cst_12 = arith.constant dense<0.000000e+00> : vector<2x32xf32>
    %14 = tpu.matmul %12, %13, %cst_12 {dimension_numbers = #tpu.dot_dimension_numbers<[1], [0], [0], [1], [0, 0, 1, 1], [], []>} : vector<2x4xf32>, vector<4x32xf32>, vector<2x32xf32> -> vector<2x32xf32>
    %cst_13 = arith.constant 0.000000e+00 : f32
    %15 = vector.broadcast %cst_13 : f32 to vector<2x32xf32>
    %16 = arith.subf %15, %14 : vector<2x32xf32>
    %17 = math.exp %16 : vector<2x32xf32>
    %cst_14 = arith.constant 1.000000e+00 : f32
    %18 = vector.broadcast %cst_14 : f32 to vector<2x32xf32>
    %19 = arith.addf %18, %17 : vector<2x32xf32>
    %cst_15 = arith.constant 1.000000e+00 : f32
    %20 = vector.broadcast %cst_15 : f32 to vector<2x32xf32>
    %21 = arith.divf %20, %19 : vector<2x32xf32>
    %22 = vector.shape_cast %21 : vector<2x32xf32> to vector<2x1x32xf32>
    %23 = vector.broadcast %22 : vector<2x1x32xf32> to vector<2x64x32xf32>
    %24 = arith.mulf %0, %23 : vector<2x64x32xf32>
    %cst_16 = arith.constant dense<0.000000e+00> : vector<2x64xf32>
    %25 = vector.multi_reduction <add>, %24, %cst_16 [2] : vector<2x64x32xf32> to vector<2x64xf32>
    %cst_17 = arith.constant 3.125000e-02 : f32
    %26 = vector.broadcast %cst_17 : f32 to vector<2x64xf32>
    %27 = arith.mulf %25, %26 : vector<2x64xf32>
    %cst_18 = arith.constant dense<0xFF800000> : vector<2x64xf32>
    %28 = vector.multi_reduction <maximumf>, %24, %cst_18 [2] : vector<2x64x32xf32> to vector<2x64xf32>
    %c0_19 = arith.constant 0 : index
    %c0_20 = arith.constant 0 : index
    %29 = vector.load %arg4[%c0_19, %c0_20] : memref<64x64xf32, #tpu.memory_space<vmem>>, vector<64x64xf32>
    %cst_21 = arith.constant dense<0.000000e+00> : vector<2x64xf32>
    %30 = tpu.matmul %27, %29, %cst_21 {dimension_numbers = #tpu.dot_dimension_numbers<[1], [0], [0], [1], [0, 0, 1, 1], [], []>} : vector<2x64xf32>, vector<64x64xf32>, vector<2x64xf32> -> vector<2x64xf32>
    %c0_22 = arith.constant 0 : index
    %c0_23 = arith.constant 0 : index
    %31 = vector.load %arg5[%c0_22, %c0_23] : memref<64x64xf32, #tpu.memory_space<vmem>>, vector<64x64xf32>
    %cst_24 = arith.constant dense<0.000000e+00> : vector<2x64xf32>
    %32 = tpu.matmul %28, %31, %cst_24 {dimension_numbers = #tpu.dot_dimension_numbers<[1], [0], [0], [1], [0, 0, 1, 1], [], []>} : vector<2x64xf32>, vector<64x64xf32>, vector<2x64xf32> -> vector<2x64xf32>
    %33 = arith.addf %30, %32 : vector<2x64xf32>
    %cst_25 = arith.constant 0.000000e+00 : f32
    %34 = vector.broadcast %cst_25 : f32 to vector<2x64xf32>
    %35 = arith.subf %34, %33 : vector<2x64xf32>
    %36 = math.exp %35 : vector<2x64xf32>
    %cst_26 = arith.constant 1.000000e+00 : f32
    %37 = vector.broadcast %cst_26 : f32 to vector<2x64xf32>
    %38 = arith.addf %37, %36 : vector<2x64xf32>
    %cst_27 = arith.constant 1.000000e+00 : f32
    %39 = vector.broadcast %cst_27 : f32 to vector<2x64xf32>
    %40 = arith.divf %39, %38 : vector<2x64xf32>
    %41 = vector.shape_cast %40 : vector<2x64xf32> to vector<2x64x1xf32>
    %42 = vector.broadcast %41 : vector<2x64x1xf32> to vector<2x64x32xf32>
    %43 = arith.mulf %24, %42 : vector<2x64x32xf32>
    %cst_28 = arith.constant dense<0.000000e+00> : vector<2x32xf32>
    %44 = vector.multi_reduction <add>, %43, %cst_28 [1] : vector<2x64x32xf32> to vector<2x32xf32>
    %cst_29 = arith.constant 1.562500e-02 : f32
    %45 = vector.broadcast %cst_29 : f32 to vector<2x32xf32>
    %46 = arith.mulf %44, %45 : vector<2x32xf32>
    %c0_30 = arith.constant 0 : index
    %c0_31 = arith.constant 0 : index
    %47 = vector.load %arg6[%c0_30, %c0_31] : memref<32x2048xf32, #tpu.memory_space<vmem>>, vector<32x2048xf32>
    %cst_32 = arith.constant dense<0.000000e+00> : vector<2x2048xf32>
    %48 = tpu.matmul %46, %47, %cst_32 {dimension_numbers = #tpu.dot_dimension_numbers<[1], [0], [0], [1], [0, 0, 1, 1], [], []>} : vector<2x32xf32>, vector<32x2048xf32>, vector<2x2048xf32> -> vector<2x2048xf32>
    %c0_33 = arith.constant 0 : index
    %c0_34 = arith.constant 0 : index
    %49 = vector.load %arg7[%c0_33, %c0_34] : memref<1x2048xf32, #tpu.memory_space<vmem>>, vector<1x2048xf32>
    %50 = vector.broadcast %49 : vector<1x2048xf32> to vector<2x2048xf32>
    %51 = arith.addf %48, %50 : vector<2x2048xf32>
    %52 = vector.extract_strided_slice %51 {offsets = [0, 0], sizes = [2, 1024], strides = [1, 1]} : vector<2x2048xf32> to vector<2x1024xf32>
    %cst_35 = arith.constant 5.000000e-01 : f32
    %53 = vector.broadcast %cst_35 : f32 to vector<2x1024xf32>
    %54 = arith.mulf %53, %52 : vector<2x1024xf32>
    %cst_36 = arith.constant 4.471500e-02 : f32
    %55 = vector.broadcast %cst_36 : f32 to vector<2x1024xf32>
    %56 = arith.mulf %55, %52 : vector<2x1024xf32>
    %57 = arith.mulf %56, %52 : vector<2x1024xf32>
    %58 = arith.mulf %57, %52 : vector<2x1024xf32>
    %59 = arith.addf %52, %58 : vector<2x1024xf32>
    %cst_37 = arith.constant 0.797884583 : f32
    %60 = vector.broadcast %cst_37 : f32 to vector<2x1024xf32>
    %61 = arith.mulf %60, %59 : vector<2x1024xf32>
    %62 = math.tanh %61 : vector<2x1024xf32>
    %cst_38 = arith.constant 1.000000e+00 : f32
    %63 = vector.broadcast %cst_38 : f32 to vector<2x1024xf32>
    %64 = arith.addf %63, %62 : vector<2x1024xf32>
    %65 = arith.mulf %54, %64 : vector<2x1024xf32>
    %66 = vector.extract_strided_slice %51 {offsets = [0, 1024], sizes = [2, 512], strides = [1, 1]} : vector<2x2048xf32> to vector<2x512xf32>
    %cst_39 = arith.constant 5.000000e-01 : f32
    %67 = vector.broadcast %cst_39 : f32 to vector<2x512xf32>
    %68 = arith.mulf %67, %66 : vector<2x512xf32>
    %cst_40 = arith.constant 4.471500e-02 : f32
    %69 = vector.broadcast %cst_40 : f32 to vector<2x512xf32>
    %70 = arith.mulf %69, %66 : vector<2x512xf32>
    %71 = arith.mulf %70, %66 : vector<2x512xf32>
    %72 = arith.mulf %71, %66 : vector<2x512xf32>
    %73 = arith.addf %66, %72 : vector<2x512xf32>
    %cst_41 = arith.constant 0.797884583 : f32
    %74 = vector.broadcast %cst_41 : f32 to vector<2x512xf32>
    %75 = arith.mulf %74, %73 : vector<2x512xf32>
    %76 = math.tanh %75 : vector<2x512xf32>
    %cst_42 = arith.constant 1.000000e+00 : f32
    %77 = vector.broadcast %cst_42 : f32 to vector<2x512xf32>
    %78 = arith.addf %77, %76 : vector<2x512xf32>
    %79 = arith.mulf %68, %78 : vector<2x512xf32>
    %80 = vector.extract_strided_slice %51 {offsets = [0, 1536], sizes = [2, 256], strides = [1, 1]} : vector<2x2048xf32> to vector<2x256xf32>
    %cst_43 = arith.constant 5.000000e-01 : f32
    %81 = vector.broadcast %cst_43 : f32 to vector<2x256xf32>
    %82 = arith.mulf %81, %80 : vector<2x256xf32>
    %cst_44 = arith.constant 4.471500e-02 : f32
    %83 = vector.broadcast %cst_44 : f32 to vector<2x256xf32>
    %84 = arith.mulf %83, %80 : vector<2x256xf32>
    %85 = arith.mulf %84, %80 : vector<2x256xf32>
    %86 = arith.mulf %85, %80 : vector<2x256xf32>
    %87 = arith.addf %80, %86 : vector<2x256xf32>
    %cst_45 = arith.constant 0.797884583 : f32
    %88 = vector.broadcast %cst_45 : f32 to vector<2x256xf32>
    %89 = arith.mulf %88, %87 : vector<2x256xf32>
    %90 = math.tanh %89 : vector<2x256xf32>
    %cst_46 = arith.constant 1.000000e+00 : f32
    %91 = vector.broadcast %cst_46 : f32 to vector<2x256xf32>
    %92 = arith.addf %91, %90 : vector<2x256xf32>
    %93 = arith.mulf %82, %92 : vector<2x256xf32>
    %94 = vector.extract_strided_slice %51 {offsets = [0, 1792], sizes = [2, 256], strides = [1, 1]} : vector<2x2048xf32> to vector<2x256xf32>
    %cst_47 = arith.constant 0.000000e+00 : f32
    %95 = vector.broadcast %cst_47 : f32 to vector<2x256xf32>
    %96 = arith.maximumf %94, %95 : vector<2x256xf32>
    %c0_48 = arith.constant 0 : index
    %c0_49 = arith.constant 0 : index
    %97 = vector.load %arg8[%c0_48, %c0_49] : memref<1024x512xf32, #tpu.memory_space<vmem>>, vector<1024x512xf32>
    %cst_50 = arith.constant dense<0.000000e+00> : vector<2x512xf32>
    %98 = tpu.matmul %65, %97, %cst_50 {dimension_numbers = #tpu.dot_dimension_numbers<[1], [0], [0], [1], [0, 0, 1, 1], [], []>} : vector<2x1024xf32>, vector<1024x512xf32>, vector<2x512xf32> -> vector<2x512xf32>
    %c0_51 = arith.constant 0 : index
    %c0_52 = arith.constant 0 : index
    %99 = vector.load %arg9[%c0_51, %c0_52] : memref<1x512xf32, #tpu.memory_space<vmem>>, vector<1x512xf32>
    %100 = vector.broadcast %99 : vector<1x512xf32> to vector<2x512xf32>
    %101 = arith.addf %98, %100 : vector<2x512xf32>
    %cst_53 = arith.constant 5.000000e-01 : f32
    %102 = vector.broadcast %cst_53 : f32 to vector<2x512xf32>
    %103 = arith.mulf %102, %101 : vector<2x512xf32>
    %cst_54 = arith.constant 4.471500e-02 : f32
    %104 = vector.broadcast %cst_54 : f32 to vector<2x512xf32>
    %105 = arith.mulf %104, %101 : vector<2x512xf32>
    %106 = arith.mulf %105, %101 : vector<2x512xf32>
    %107 = arith.mulf %106, %101 : vector<2x512xf32>
    %108 = arith.addf %101, %107 : vector<2x512xf32>
    %cst_55 = arith.constant 0.797884583 : f32
    %109 = vector.broadcast %cst_55 : f32 to vector<2x512xf32>
    %110 = arith.mulf %109, %108 : vector<2x512xf32>
    %111 = math.tanh %110 : vector<2x512xf32>
    %cst_56 = arith.constant 1.000000e+00 : f32
    %112 = vector.broadcast %cst_56 : f32 to vector<2x512xf32>
    %113 = arith.addf %112, %111 : vector<2x512xf32>
    %114 = arith.mulf %103, %113 : vector<2x512xf32>
    %c0_57 = arith.constant 0 : index
    %c0_58 = arith.constant 0 : index
    %115 = vector.load %arg10[%c0_57, %c0_58] : memref<512x256xf32, #tpu.memory_space<vmem>>, vector<512x256xf32>
    %cst_59 = arith.constant dense<0.000000e+00> : vector<2x256xf32>
    %116 = tpu.matmul %79, %115, %cst_59 {dimension_numbers = #tpu.dot_dimension_numbers<[1], [0], [0], [1], [0, 0, 1, 1], [], []>} : vector<2x512xf32>, vector<512x256xf32>, vector<2x256xf32> -> vector<2x256xf32>
    %c0_60 = arith.constant 0 : index
    %c0_61 = arith.constant 0 : index
    %117 = vector.load %arg11[%c0_60, %c0_61] : memref<1x256xf32, #tpu.memory_space<vmem>>, vector<1x256xf32>
    %118 = vector.broadcast %117 : vector<1x256xf32> to vector<2x256xf32>
    %119 = arith.addf %116, %118 : vector<2x256xf32>
    %cst_62 = arith.constant 5.000000e-01 : f32
    %120 = vector.broadcast %cst_62 : f32 to vector<2x256xf32>
    %121 = arith.mulf %120, %119 : vector<2x256xf32>
    %cst_63 = arith.constant 4.471500e-02 : f32
    %122 = vector.broadcast %cst_63 : f32 to vector<2x256xf32>
    %123 = arith.mulf %122, %119 : vector<2x256xf32>
    %124 = arith.mulf %123, %119 : vector<2x256xf32>
    %125 = arith.mulf %124, %119 : vector<2x256xf32>
    %126 = arith.addf %119, %125 : vector<2x256xf32>
    %cst_64 = arith.constant 0.797884583 : f32
    %127 = vector.broadcast %cst_64 : f32 to vector<2x256xf32>
    %128 = arith.mulf %127, %126 : vector<2x256xf32>
    %129 = math.tanh %128 : vector<2x256xf32>
    %cst_65 = arith.constant 1.000000e+00 : f32
    %130 = vector.broadcast %cst_65 : f32 to vector<2x256xf32>
    %131 = arith.addf %130, %129 : vector<2x256xf32>
    %132 = arith.mulf %121, %131 : vector<2x256xf32>
    %133 = tpu.concatenate %114, %132, %93, %96 in 1 : vector<2x512xf32>, vector<2x256xf32>, vector<2x256xf32>, vector<2x256xf32> -> vector<2x1280xf32>
    %c0_66 = arith.constant 0 : index
    %c0_67 = arith.constant 0 : index
    %134 = vector.load %arg12[%c0_66, %c0_67] : memref<1280x128xf32, #tpu.memory_space<vmem>>, vector<1280x128xf32>
    %cst_68 = arith.constant dense<0.000000e+00> : vector<2x128xf32>
    %135 = tpu.matmul %133, %134, %cst_68 {dimension_numbers = #tpu.dot_dimension_numbers<[1], [0], [0], [1], [0, 0, 1, 1], [], []>} : vector<2x1280xf32>, vector<1280x128xf32>, vector<2x128xf32> -> vector<2x128xf32>
    %c0_69 = arith.constant 0 : index
    %c0_70 = arith.constant 0 : index
    %136 = vector.load %arg13[%c0_69, %c0_70] : memref<1x128xf32, #tpu.memory_space<vmem>>, vector<1x128xf32>
    %137 = vector.broadcast %136 : vector<1x128xf32> to vector<2x128xf32>
    %138 = arith.addf %135, %137 : vector<2x128xf32>
    %c0_71 = arith.constant 0 : index
    %c0_72 = arith.constant 0 : index
    %139 = vector.load %arg14[%c0_71, %c0_72] : memref<2x128xf32, #tpu.memory_space<vmem>>, vector<2x128xf32>
    tpu.vector_store %arg14[%c0_71, %c0_72], %138 {strides = array<i32>} : memref<2x128xf32, #tpu.memory_space<vmem>>, vector<2x128xf32>,
    return
  }
  func.func @transform_0(%arg0: i32) -> (i32, i32, i32) {
    %c0_i32 = arith.constant 0 : i32
    %c0_i32_0 = arith.constant 0 : i32
    %c0_i32_1 = arith.constant 0 : i32
    return %arg0, %c0_i32, %c0_i32_0 : i32, i32, i32
  }
  func.func @transform_1(%arg0: i32) -> (i32, i32) {
    %c0_i32 = arith.constant 0 : i32
    %c0_i32_0 = arith.constant 0 : i32
    %c0_i32_1 = arith.constant 0 : i32
    return %c0_i32, %c0_i32_0 : i32, i32
  }
  func.func @transform_2(%arg0: i32) -> (i32, i32) {
    %c0_i32 = arith.constant 0 : i32
    %c0_i32_0 = arith.constant 0 : i32
    %c0_i32_1 = arith.constant 0 : i32
    return %c0_i32, %c0_i32_0 : i32, i32
  }
  func.func @transform_3(%arg0: i32) -> (i32, i32) {
    %c0_i32 = arith.constant 0 : i32
    %c0_i32_0 = arith.constant 0 : i32
    %c0_i32_1 = arith.constant 0 : i32
    return %c0_i32, %c0_i32_0 : i32, i32
  }
  func.func @transform_4(%arg0: i32) -> (i32, i32) {
    %c0_i32 = arith.constant 0 : i32
    %c0_i32_0 = arith.constant 0 : i32
    %c0_i32_1 = arith.constant 0 : i32
    return %c0_i32, %c0_i32_0 : i32, i32
  }
  func.func @transform_5(%arg0: i32) -> (i32, i32) {
    %c0_i32 = arith.constant 0 : i32
    %c0_i32_0 = arith.constant 0 : i32
    %c0_i32_1 = arith.constant 0 : i32
    return %c0_i32, %c0_i32_0 : i32, i32
  }
  func.func @transform_6(%arg0: i32) -> (i32, i32) {
    %c0_i32 = arith.constant 0 : i32
    %c0_i32_0 = arith.constant 0 : i32
    %c0_i32_1 = arith.constant 0 : i32
    return %c0_i32, %c0_i32_0 : i32, i32
  }
  func.func @transform_7(%arg0: i32) -> (i32, i32) {
    %c0_i32 = arith.constant 0 : i32
    %c0_i32_0 = arith.constant 0 : i32
    %c0_i32_1 = arith.constant 0 : i32
    return %c0_i32, %c0_i32_0 : i32, i32
  }
  func.func @transform_8(%arg0: i32) -> (i32, i32) {
    %c0_i32 = arith.constant 0 : i32
    %c0_i32_0 = arith.constant 0 : i32
    %c0_i32_1 = arith.constant 0 : i32
    return %c0_i32, %c0_i32_0 : i32, i32
  }
  func.func @transform_9(%arg0: i32) -> (i32, i32) {
    %c0_i32 = arith.constant 0 : i32
    %c0_i32_0 = arith.constant 0 : i32
    %c0_i32_1 = arith.constant 0 : i32
    return %c0_i32, %c0_i32_0 : i32, i32
  }
  func.func @transform_10(%arg0: i32) -> (i32, i32) {
    %c0_i32 = arith.constant 0 : i32
    %c0_i32_0 = arith.constant 0 : i32
    %c0_i32_1 = arith.constant 0 : i32
    return %c0_i32, %c0_i32_0 : i32, i32
  }
  func.func @transform_11(%arg0: i32) -> (i32, i32) {
    %c0_i32 = arith.constant 0 : i32
    %c0_i32_0 = arith.constant 0 : i32
    %c0_i32_1 = arith.constant 0 : i32
    return %c0_i32, %c0_i32_0 : i32, i32
  }
  func.func @transform_12(%arg0: i32) -> (i32, i32) {
    %c0_i32 = arith.constant 0 : i32
    %c0_i32_0 = arith.constant 0 : i32
    %c0_i32_1 = arith.constant 0 : i32
    return %c0_i32, %c0_i32_0 : i32, i32
  }
  func.func @transform_13(%arg0: i32) -> (i32, i32) {
    %c0_i32 = arith.constant 0 : i32
    %c0_i32_0 = arith.constant 0 : i32
    return %arg0, %c0_i32 : i32, i32
  }
}

module attributes {stable_mosaic.version = 11 : i64} {
  func.func @kernel(%arg0: i32, %arg1: memref<2x64x32xf32, #tpu.memory_space<vmem>>, %arg2: memref<32x4xf32, #tpu.memory_space<vmem>>, %arg3: memref<4x32xf32, #tpu.memory_space<vmem>>, %arg4: memref<64x64xf32, #tpu.memory_space<vmem>>, %arg5: memref<64x64xf32, #tpu.memory_space<vmem>>, %arg6: memref<32x2048xf32, #tpu.memory_space<vmem>>, %arg7: memref<1x2048xf32, #tpu.memory_space<vmem>>, %arg8: memref<1024x512xf32, #tpu.memory_space<vmem>>, %arg9: memref<1x512xf32, #tpu.memory_space<vmem>>, %arg10: memref<512x256xf32, #tpu.memory_space<vmem>>, %arg11: memref<1x256xf32, #tpu.memory_space<vmem>>, %arg12: memref<1280x128xf32, #tpu.memory_space<vmem>>, %arg13: memref<1x128xf32, #tpu.memory_space<vmem>>, %arg14: memref<2x128xf32, #tpu.memory_space<vmem>>) attributes {dimension_semantics = [#tpu.dimension_semantics<parallel>], iteration_bounds = array<i64: 1>, scalar_prefetch = 0 : i64, scratch_operands = 0 : i64, tpu.core_type = #tpu.core_type<tc>, window_params = [{transform_indices = @transform_0, window_bounds = array<i64: 2, 64, 32>}, {pipeline_mode = #tpu.pipeline_mode<synchronous>, transform_indices = @transform_1, window_bounds = array<i64: 32, 4>}, {pipeline_mode = #tpu.pipeline_mode<synchronous>, transform_indices = @transform_2, window_bounds = array<i64: 4, 32>}, {pipeline_mode = #tpu.pipeline_mode<synchronous>, transform_indices = @transform_3, window_bounds = array<i64: 64, 64>}, {pipeline_mode = #tpu.pipeline_mode<synchronous>, transform_indices = @transform_4, window_bounds = array<i64: 64, 64>}, {pipeline_mode = #tpu.pipeline_mode<synchronous>, transform_indices = @transform_5, window_bounds = array<i64: 32, 2048>}, {pipeline_mode = #tpu.pipeline_mode<synchronous>, transform_indices = @transform_6, window_bounds = array<i64: 1, 2048>}, {pipeline_mode = #tpu.pipeline_mode<synchronous>, transform_indices = @transform_7, window_bounds = array<i64: 1024, 512>}, {pipeline_mode = #tpu.pipeline_mode<synchronous>, transform_indices = @transform_8, window_bounds = array<i64: 1, 512>}, {pipeline_mode = #tpu.pipeline_mode<synchronous>, transform_indices = @transform_9, window_bounds = array<i64: 512, 256>}, {pipeline_mode = #tpu.pipeline_mode<synchronous>, transform_indices = @transform_10, window_bounds = array<i64: 1, 256>}, {pipeline_mode = #tpu.pipeline_mode<synchronous>, transform_indices = @transform_11, window_bounds = array<i64: 1280, 128>}, {pipeline_mode = #tpu.pipeline_mode<synchronous>, transform_indices = @transform_12, window_bounds = array<i64: 1, 128>}, {transform_indices = @transform_13, window_bounds = array<i64: 2, 128>}]} {
    %c0 = arith.constant 0 : index
    %c0_0 = arith.constant 0 : index
    %c0_1 = arith.constant 0 : index
    %0 = vector.load %arg1[%c0, %c0_0, %c0_1] : memref<2x64x32xf32, #tpu.memory_space<vmem>>, vector<2x64x32xf32>
    %cst = arith.constant dense<0.000000e+00> : vector<2x32xf32>
    %1 = vector.multi_reduction <add>, %0, %cst [1] : vector<2x64x32xf32> to vector<2x32xf32>
    %cst_2 = arith.constant 1.562500e-02 : f32
    %2 = vector.broadcast %cst_2 : f32 to vector<2x32xf32>
    %3 = arith.mulf %1, %2 : vector<2x32xf32>
    %cst_3 = arith.constant dense<0xFF800000> : vector<2x32xf32>
    %4 = vector.multi_reduction <maximumf>, %0, %cst_3 [1] : vector<2x64x32xf32> to vector<2x32xf32>
    %c0_4 = arith.constant 0 : index
    %c0_5 = arith.constant 0 : index
    %5 = vector.load %arg2[%c0_4, %c0_5] : memref<32x4xf32, #tpu.memory_space<vmem>>, vector<32x4xf32>
    %cst_6 = arith.constant dense<0.000000e+00> : vector<2x4xf32>
    %6 = tpu.matmul %3, %5, %cst_6 {dimension_numbers = #tpu.dot_dimension_numbers<[1], [0], [0], [1], [0, 0, 1, 1], [], []>} : vector<2x32xf32>, vector<32x4xf32>, vector<2x4xf32> -> vector<2x4xf32>
    %cst_7 = arith.constant 0.000000e+00 : f32
    %7 = vector.broadcast %cst_7 : f32 to vector<2x4xf32>
    %8 = arith.maximumf %6, %7 : vector<2x4xf32>
    %cst_8 = arith.constant dense<0.000000e+00> : vector<2x4xf32>
    %9 = tpu.matmul %4, %5, %cst_8 {dimension_numbers = #tpu.dot_dimension_numbers<[1], [0], [0], [1], [0, 0, 1, 1], [], []>} : vector<2x32xf32>, vector<32x4xf32>, vector<2x4xf32> -> vector<2x4xf32>
    %cst_9 = arith.constant 0.000000e+00 : f32
    %10 = vector.broadcast %cst_9 : f32 to vector<2x4xf32>
    %11 = arith.maximumf %9, %10 : vector<2x4xf32>
    %12 = arith.addf %8, %11 : vector<2x4xf32>
    %c0_10 = arith.constant 0 : index
    %c0_11 = arith.constant 0 : index
    %13 = vector.load %arg3[%c0_10, %c0_11] : memref<4x32xf32, #tpu.memory_space<vmem>>, vector<4x32xf32>
    %cst_12 = arith.constant dense<0.000000e+00> : vector<2x32xf32>
    %14 = tpu.matmul %12, %13, %cst_12 {dimension_numbers = #tpu.dot_dimension_numbers<[1], [0], [0], [1], [0, 0, 1, 1], [], []>} : vector<2x4xf32>, vector<4x32xf32>, vector<2x32xf32> -> vector<2x32xf32>
    %cst_13 = arith.constant 0.000000e+00 : f32
    %15 = vector.broadcast %cst_13 : f32 to vector<2x32xf32>
    %16 = arith.subf %15, %14 : vector<2x32xf32>
    %17 = math.exp %16 : vector<2x32xf32>
    %cst_14 = arith.constant 1.000000e+00 : f32
    %18 = vector.broadcast %cst_14 : f32 to vector<2x32xf32>
    %19 = arith.addf %18, %17 : vector<2x32xf32>
    %cst_15 = arith.constant 1.000000e+00 : f32
    %20 = vector.broadcast %cst_15 : f32 to vector<2x32xf32>
    %21 = arith.divf %20, %19 : vector<2x32xf32>
    %22 = vector.shape_cast %21 : vector<2x32xf32> to vector<2x1x32xf32>
    %23 = vector.broadcast %22 : vector<2x1x32xf32> to vector<2x64x32xf32>
    %24 = arith.mulf %0, %23 : vector<2x64x32xf32>
    %cst_16 = arith.constant dense<0.000000e+00> : vector<2x64xf32>
    %25 = vector.multi_reduction <add>, %24, %cst_16 [2] : vector<2x64x32xf32> to vector<2x64xf32>
    %cst_17 = arith.constant 3.125000e-02 : f32
    %26 = vector.broadcast %cst_17 : f32 to vector<2x64xf32>
    %27 = arith.mulf %25, %26 : vector<2x64xf32>
    %cst_18 = arith.constant dense<0xFF800000> : vector<2x64xf32>
    %28 = vector.multi_reduction <maximumf>, %24, %cst_18 [2] : vector<2x64x32xf32> to vector<2x64xf32>
    %c0_19 = arith.constant 0 : index
    %c0_20 = arith.constant 0 : index
    %29 = vector.load %arg4[%c0_19, %c0_20] : memref<64x64xf32, #tpu.memory_space<vmem>>, vector<64x64xf32>
    %cst_21 = arith.constant dense<0.000000e+00> : vector<2x64xf32>
    %30 = tpu.matmul %27, %29, %cst_21 {dimension_numbers = #tpu.dot_dimension_numbers<[1], [0], [0], [1], [0, 0, 1, 1], [], []>} : vector<2x64xf32>, vector<64x64xf32>, vector<2x64xf32> -> vector<2x64xf32>
    %c0_22 = arith.constant 0 : index
    %c0_23 = arith.constant 0 : index
    %31 = vector.load %arg5[%c0_22, %c0_23] : memref<64x64xf32, #tpu.memory_space<vmem>>, vector<64x64xf32>
    %cst_24 = arith.constant dense<0.000000e+00> : vector<2x64xf32>
    %32 = tpu.matmul %28, %31, %cst_24 {dimension_numbers = #tpu.dot_dimension_numbers<[1], [0], [0], [1], [0, 0, 1, 1], [], []>} : vector<2x64xf32>, vector<64x64xf32>, vector<2x64xf32> -> vector<2x64xf32>
    %33 = arith.addf %30, %32 : vector<2x64xf32>
    %cst_25 = arith.constant 0.000000e+00 : f32
    %34 = vector.broadcast %cst_25 : f32 to vector<2x64xf32>
    %35 = arith.subf %34, %33 : vector<2x64xf32>
    %36 = math.exp %35 : vector<2x64xf32>
    %cst_26 = arith.constant 1.000000e+00 : f32
    %37 = vector.broadcast %cst_26 : f32 to vector<2x64xf32>
    %38 = arith.addf %37, %36 : vector<2x64xf32>
    %cst_27 = arith.constant 1.000000e+00 : f32
    %39 = vector.broadcast %cst_27 : f32 to vector<2x64xf32>
    %40 = arith.divf %39, %38 : vector<2x64xf32>
    %41 = vector.shape_cast %40 : vector<2x64xf32> to vector<2x64x1xf32>
    %42 = vector.broadcast %41 : vector<2x64x1xf32> to vector<2x64x32xf32>
    %43 = arith.mulf %24, %42 : vector<2x64x32xf32>
    %cst_28 = arith.constant dense<0.000000e+00> : vector<2x32xf32>
    %44 = vector.multi_reduction <add>, %43, %cst_28 [1] : vector<2x64x32xf32> to vector<2x32xf32>
    %cst_29 = arith.constant 1.562500e-02 : f32
    %45 = vector.broadcast %cst_29 : f32 to vector<2x32xf32>
    %46 = arith.mulf %44, %45 : vector<2x32xf32>
    %c0_30 = arith.constant 0 : index
    %c0_31 = arith.constant 0 : index
    %47 = vector.load %arg6[%c0_30, %c0_31] : memref<32x2048xf32, #tpu.memory_space<vmem>>, vector<32x2048xf32>
    %cst_32 = arith.constant dense<0.000000e+00> : vector<2x2048xf32>
    %48 = tpu.matmul %46, %47, %cst_32 {dimension_numbers = #tpu.dot_dimension_numbers<[1], [0], [0], [1], [0, 0, 1, 1], [], []>} : vector<2x32xf32>, vector<32x2048xf32>, vector<2x2048xf32> -> vector<2x2048xf32>
    %c0_33 = arith.constant 0 : index
    %c0_34 = arith.constant 0 : index
    %49 = vector.load %arg7[%c0_33, %c0_34] : memref<1x2048xf32, #tpu.memory_space<vmem>>, vector<1x2048xf32>
    %50 = vector.broadcast %49 : vector<1x2048xf32> to vector<2x2048xf32>
    %51 = arith.addf %48, %50 : vector<2x2048xf32>
    %52 = vector.extract_strided_slice %51 {offsets = [0, 0], sizes = [2, 1024], strides = [1, 1]} : vector<2x2048xf32> to vector<2x1024xf32>
    %cst_35 = arith.constant 5.000000e-01 : f32
    %53 = vector.broadcast %cst_35 : f32 to vector<2x1024xf32>
    %54 = arith.mulf %53, %52 : vector<2x1024xf32>
    %cst_36 = arith.constant 4.471500e-02 : f32
    %55 = vector.broadcast %cst_36 : f32 to vector<2x1024xf32>
    %56 = arith.mulf %55, %52 : vector<2x1024xf32>
    %57 = arith.mulf %56, %52 : vector<2x1024xf32>
    %58 = arith.mulf %57, %52 : vector<2x1024xf32>
    %59 = arith.addf %52, %58 : vector<2x1024xf32>
    %cst_37 = arith.constant 0.797884583 : f32
    %60 = vector.broadcast %cst_37 : f32 to vector<2x1024xf32>
    %61 = arith.mulf %60, %59 : vector<2x1024xf32>
    %62 = math.tanh %61 : vector<2x1024xf32>
    %cst_38 = arith.constant 1.000000e+00 : f32
    %63 = vector.broadcast %cst_38 : f32 to vector<2x1024xf32>
    %64 = arith.addf %63, %62 : vector<2x1024xf32>
    %65 = arith.mulf %54, %64 : vector<2x1024xf32>
    %66 = vector.extract_strided_slice %51 {offsets = [0, 1024], sizes = [2, 512], strides = [1, 1]} : vector<2x2048xf32> to vector<2x512xf32>
    %cst_39 = arith.constant 5.000000e-01 : f32
    %67 = vector.broadcast %cst_39 : f32 to vector<2x512xf32>
    %68 = arith.mulf %67, %66 : vector<2x512xf32>
    %cst_40 = arith.constant 4.471500e-02 : f32
    %69 = vector.broadcast %cst_40 : f32 to vector<2x512xf32>
    %70 = arith.mulf %69, %66 : vector<2x512xf32>
    %71 = arith.mulf %70, %66 : vector<2x512xf32>
    %72 = arith.mulf %71, %66 : vector<2x512xf32>
    %73 = arith.addf %66, %72 : vector<2x512xf32>
    %cst_41 = arith.constant 0.797884583 : f32
    %74 = vector.broadcast %cst_41 : f32 to vector<2x512xf32>
    %75 = arith.mulf %74, %73 : vector<2x512xf32>
    %76 = math.tanh %75 : vector<2x512xf32>
    %cst_42 = arith.constant 1.000000e+00 : f32
    %77 = vector.broadcast %cst_42 : f32 to vector<2x512xf32>
    %78 = arith.addf %77, %76 : vector<2x512xf32>
    %79 = arith.mulf %68, %78 : vector<2x512xf32>
    %80 = vector.extract_strided_slice %51 {offsets = [0, 1536], sizes = [2, 256], strides = [1, 1]} : vector<2x2048xf32> to vector<2x256xf32>
    %cst_43 = arith.constant 5.000000e-01 : f32
    %81 = vector.broadcast %cst_43 : f32 to vector<2x256xf32>
    %82 = arith.mulf %81, %80 : vector<2x256xf32>
    %cst_44 = arith.constant 4.471500e-02 : f32
    %83 = vector.broadcast %cst_44 : f32 to vector<2x256xf32>
    %84 = arith.mulf %83, %80 : vector<2x256xf32>
    %85 = arith.mulf %84, %80 : vector<2x256xf32>
    %86 = arith.mulf %85, %80 : vector<2x256xf32>
    %87 = arith.addf %80, %86 : vector<2x256xf32>
    %cst_45 = arith.constant 0.797884583 : f32
    %88 = vector.broadcast %cst_45 : f32 to vector<2x256xf32>
    %89 = arith.mulf %88, %87 : vector<2x256xf32>
    %90 = math.tanh %89 : vector<2x256xf32>
    %cst_46 = arith.constant 1.000000e+00 : f32
    %91 = vector.broadcast %cst_46 : f32 to vector<2x256xf32>
    %92 = arith.addf %91, %90 : vector<2x256xf32>
    %93 = arith.mulf %82, %92 : vector<2x256xf32>
    %94 = vector.extract_strided_slice %51 {offsets = [0, 1792], sizes = [2, 256], strides = [1, 1]} : vector<2x2048xf32> to vector<2x256xf32>
    %cst_47 = arith.constant 0.000000e+00 : f32
    %95 = vector.broadcast %cst_47 : f32 to vector<2x256xf32>
    %96 = arith.maximumf %94, %95 : vector<2x256xf32>
    %c0_48 = arith.constant 0 : index
    %c0_49 = arith.constant 0 : index
    %97 = vector.load %arg8[%c0_48, %c0_49] : memref<1024x512xf32, #tpu.memory_space<vmem>>, vector<1024x512xf32>
    %cst_50 = arith.constant dense<0.000000e+00> : vector<2x512xf32>
    %98 = tpu.matmul %65, %97, %cst_50 {dimension_numbers = #tpu.dot_dimension_numbers<[1], [0], [0], [1], [0, 0, 1, 1], [], []>} : vector<2x1024xf32>, vector<1024x512xf32>, vector<2x512xf32> -> vector<2x512xf32>
    %c0_51 = arith.constant 0 : index
    %c0_52 = arith.constant 0 : index
    %99 = vector.load %arg9[%c0_51, %c0_52] : memref<1x512xf32, #tpu.memory_space<vmem>>, vector<1x512xf32>
    %100 = vector.broadcast %99 : vector<1x512xf32> to vector<2x512xf32>
    %101 = arith.addf %98, %100 : vector<2x512xf32>
    %cst_53 = arith.constant 5.000000e-01 : f32
    %102 = vector.broadcast %cst_53 : f32 to vector<2x512xf32>
    %103 = arith.mulf %102, %101 : vector<2x512xf32>
    %cst_54 = arith.constant 4.471500e-02 : f32
    %104 = vector.broadcast %cst_54 : f32 to vector<2x512xf32>
    %105 = arith.mulf %104, %101 : vector<2x512xf32>
    %106 = arith.mulf %105, %101 : vector<2x512xf32>
    %107 = arith.mulf %106, %101 : vector<2x512xf32>
    %108 = arith.addf %101, %107 : vector<2x512xf32>
    %cst_55 = arith.constant 0.797884583 : f32
    %109 = vector.broadcast %cst_55 : f32 to vector<2x512xf32>
    %110 = arith.mulf %109, %108 : vector<2x512xf32>
    %111 = math.tanh %110 : vector<2x512xf32>
    %cst_56 = arith.constant 1.000000e+00 : f32
    %112 = vector.broadcast %cst_56 : f32 to vector<2x512xf32>
    %113 = arith.addf %112, %111 : vector<2x512xf32>
    %114 = arith.mulf %103, %113 : vector<2x512xf32>
    %c0_57 = arith.constant 0 : index
    %c0_58 = arith.constant 0 : index
    %115 = vector.load %arg10[%c0_57, %c0_58] : memref<512x256xf32, #tpu.memory_space<vmem>>, vector<512x256xf32>
    %cst_59 = arith.constant dense<0.000000e+00> : vector<2x256xf32>
    %116 = tpu.matmul %79, %115, %cst_59 {dimension_numbers = #tpu.dot_dimension_numbers<[1], [0], [0], [1], [0, 0, 1, 1], [], []>} : vector<2x512xf32>, vector<512x256xf32>, vector<2x256xf32> -> vector<2x256xf32>
    %c0_60 = arith.constant 0 : index
    %c0_61 = arith.constant 0 : index
    %117 = vector.load %arg11[%c0_60, %c0_61] : memref<1x256xf32, #tpu.memory_space<vmem>>, vector<1x256xf32>
    %118 = vector.broadcast %117 : vector<1x256xf32> to vector<2x256xf32>
    %119 = arith.addf %116, %118 : vector<2x256xf32>
    %cst_62 = arith.constant 5.000000e-01 : f32
    %120 = vector.broadcast %cst_62 : f32 to vector<2x256xf32>
    %121 = arith.mulf %120, %119 : vector<2x256xf32>
    %cst_63 = arith.constant 4.471500e-02 : f32
    %122 = vector.broadcast %cst_63 : f32 to vector<2x256xf32>
    %123 = arith.mulf %122, %119 : vector<2x256xf32>
    %124 = arith.mulf %123, %119 : vector<2x256xf32>
    %125 = arith.mulf %124, %119 : vector<2x256xf32>
    %126 = arith.addf %119, %125 : vector<2x256xf32>
    %cst_64 = arith.constant 0.797884583 : f32
    %127 = vector.broadcast %cst_64 : f32 to vector<2x256xf32>
    %128 = arith.mulf %127, %126 : vector<2x256xf32>
    %129 = math.tanh %128 : vector<2x256xf32>
    %cst_65 = arith.constant 1.000000e+00 : f32
    %130 = vector.broadcast %cst_65 : f32 to vector<2x256xf32>
    %131 = arith.addf %130, %129 : vector<2x256xf32>
    %132 = arith.mulf %121, %131 : vector<2x256xf32>
    %133 = tpu.concatenate %114, %132, %93, %96 in 1 : vector<2x512xf32>, vector<2x256xf32>, vector<2x256xf32>, vector<2x256xf32> -> vector<2x1280xf32>
    %c0_66 = arith.constant 0 : index
    %c0_67 = arith.constant 0 : index
    %134 = vector.load %arg12[%c0_66, %c0_67] : memref<1280x128xf32, #tpu.memory_space<vmem>>, vector<1280x128xf32>
    %cst_68 = arith.constant dense<0.000000e+00> : vector<2x128xf32>
    %135 = tpu.matmul %133, %134, %cst_68 {dimension_numbers = #tpu.dot_dimension_numbers<[1], [0], [0], [1], [0, 0, 1, 1], [], []>} : vector<2x1280xf32>, vector<1280x128xf32>, vector<2x128xf32> -> vector<2x128xf32>
    %c0_69 = arith.constant 0 : index
    %c0_70 = arith.constant 0 : index
    %136 = vector.load %arg13[%c0_69, %c0_70] : memref<1x128xf32, #tpu.memory_space<vmem>>, vector<1x128xf32>
    %137 = vector.broadcast %136 : vector<1x128xf32> to vector<2x128xf32>
    %138 = arith.addf %135, %137 : vector<2x128xf32>
    %c0_71 = arith.constant 0 : index
    %c0_72 = arith.constant 0 : index
    %139 = vector.load %arg14[%c0_71, %c0_72] : memref<2x128xf32, #tpu.memory_space<vmem>>, vector<2x128xf32>
    tpu.vector_store %arg14[%c0_71, %c0_72], %138 {strides = array<i32>} : memref<2x128xf32, #tpu.memory_space<vmem>>, vector<2x128xf32>,
    return
  }
  func.func @transform_0(%arg0: i32) -> (i32, i32, i32) {
    %c0_i32 = arith.constant 0 : i32
    %c0_i32_0 = arith.constant 0 : i32
    %c0_i32_1 = arith.constant 0 : i32
    return %arg0, %c0_i32, %c0_i32_0 : i32, i32, i32
  }
  func.func @transform_1(%arg0: i32) -> (i32, i32) {
    %c0_i32 = arith.constant 0 : i32
    %c0_i32_0 = arith.constant 0 : i32
    %c0_i32_1 = arith.constant 0 : i32
    return %c0_i32, %c0_i32_0 : i32, i32
  }
  func.func @transform_2(%arg0: i32) -> (i32, i32) {
    %c0_i32 = arith.constant 0 : i32
    %c0_i32_0 = arith.constant 0 : i32
    %c0_i32_1 = arith.constant 0 : i32
    return %c0_i32, %c0_i32_0 : i32, i32
  }
  func.func @transform_3(%arg0: i32) -> (i32, i32) {
    %c0_i32 = arith.constant 0 : i32
    %c0_i32_0 = arith.constant 0 : i32
    %c0_i32_1 = arith.constant 0 : i32
    return %c0_i32, %c0_i32_0 : i32, i32
  }
  func.func @transform_4(%arg0: i32) -> (i32, i32) {
    %c0_i32 = arith.constant 0 : i32
    %c0_i32_0 = arith.constant 0 : i32
    %c0_i32_1 = arith.constant 0 : i32
    return %c0_i32, %c0_i32_0 : i32, i32
  }
  func.func @transform_5(%arg0: i32) -> (i32, i32) {
    %c0_i32 = arith.constant 0 : i32
    %c0_i32_0 = arith.constant 0 : i32
    %c0_i32_1 = arith.constant 0 : i32
    return %c0_i32, %c0_i32_0 : i32, i32
  }
  func.func @transform_6(%arg0: i32) -> (i32, i32) {
    %c0_i32 = arith.constant 0 : i32
    %c0_i32_0 = arith.constant 0 : i32
    %c0_i32_1 = arith.constant 0 : i32
    return %c0_i32, %c0_i32_0 : i32, i32
  }
  func.func @transform_7(%arg0: i32) -> (i32, i32) {
    %c0_i32 = arith.constant 0 : i32
    %c0_i32_0 = arith.constant 0 : i32
    %c0_i32_1 = arith.constant 0 : i32
    return %c0_i32, %c0_i32_0 : i32, i32
  }
  func.func @transform_8(%arg0: i32) -> (i32, i32) {
    %c0_i32 = arith.constant 0 : i32
    %c0_i32_0 = arith.constant 0 : i32
    %c0_i32_1 = arith.constant 0 : i32
    return %c0_i32, %c0_i32_0 : i32, i32
  }
  func.func @transform_9(%arg0: i32) -> (i32, i32) {
    %c0_i32 = arith.constant 0 : i32
    %c0_i32_0 = arith.constant 0 : i32
    %c0_i32_1 = arith.constant 0 : i32
    return %c0_i32, %c0_i32_0 : i32, i32
  }
  func.func @transform_10(%arg0: i32) -> (i32, i32) {
    %c0_i32 = arith.constant 0 : i32
    %c0_i32_0 = arith.constant 0 : i32
    %c0_i32_1 = arith.constant 0 : i32
    return %c0_i32, %c0_i32_0 : i32, i32
  }
  func.func @transform_11(%arg0: i32) -> (i32, i32) {
    %c0_i32 = arith.constant 0 : i32
    %c0_i32_0 = arith.constant 0 : i32
    %c0_i32_1 = arith.constant 0 : i32
    return %c0_i32, %c0_i32_0 : i32, i32
  }
  func.func @transform_12(%arg0: i32) -> (i32, i32) {
    %c0_i32 = arith.constant 0 : i32
    %c0_i32_0 = arith.constant 0 : i32
    %c0_i32_1 = arith.constant 0 : i32
    return %c0_i32, %c0_i32_0 : i32, i32
  }
  func.func @transform_13(%arg0: i32) -> (i32, i32) {
    %c0_i32 = arith.constant 0 : i32
    %c0_i32_0 = arith.constant 0 : i32
    return %arg0, %c0_i32 : i32, i32
  }
}

</mosaic_0001>

<llo_original>
// kernel: tpu_custom_call.1
$region0: #{tpu_custom_call.1}
  #allocation0 [shape = 'u32[]', space=smem, size = 0x4, offset = 0x4, fixed_abs, tag = 'smem constant byte address 0x4 - core index']
  #allocation1 [shape = 'u32[144,128]{1,0:T(1,128)}', space=vmem, size = 0x12000, scoped, tag = 'internal scratch']
  %s0 = inlined_call_operand.vmem [shape: f32[2,64,32], index: 0, kind: input, shape index: {}]
  %s1 = inlined_call_operand.vmem [shape: f32[32,4], index: 1, kind: input, shape index: {}]
  %s2 = inlined_call_operand.hbm [shape: f32[4,32], index: 2, kind: input, shape index: {}]
  %s3 = inlined_call_operand.hbm [shape: f32[64,64], index: 3, kind: input, shape index: {}]
  %s4 = inlined_call_operand.hbm [shape: f32[64,64], index: 4, kind: input, shape index: {}]
  %s5 = inlined_call_operand.hbm [shape: f32[32,2048], index: 5, kind: input, shape index: {}]
  %s6 = inlined_call_operand.hbm [shape: f32[1,2048], index: 6, kind: input, shape index: {}]
  %s7 = inlined_call_operand.hbm [shape: f32[1024,512], index: 7, kind: input, shape index: {}]
  %s8 = inlined_call_operand.hbm [shape: f32[1,512], index: 8, kind: input, shape index: {}]
  %s9 = inlined_call_operand.hbm [shape: f32[512,256], index: 9, kind: input, shape index: {}]
  %s10 = inlined_call_operand.hbm [shape: f32[1,256], index: 10, kind: input, shape index: {}]
  %s11 = inlined_call_operand.hbm [shape: f32[1280,128], index: 11, kind: input, shape index: {}]
  %s12 = inlined_call_operand.hbm [shape: f32[1,128], index: 12, kind: input, shape index: {}]
  %s13 = inlined_call_operand.hbm [shape: f32[2,128], index: 13, kind: output, shape index: {}]
  %s14 = sld [smem:[#allocation0]]
  $region106: #{tpu_custom_call.1} parent=0
    _
  %s16 = ssub.s32 1, %s14
  %s17 = scalar_select 0, %s16, %s14
  $region1: #{tpu_custom_call.1} parent=0
    #allocation2 [shape = 'u8[2048]{0}', space=vmem, size = 0x800, scoped, tag = 'input window, operand 2, single buffered']
    #allocation3 [shape = 's32[1]{0}', space=sflag, size = 0x4, scoped, tag = 'scoped memory for tpu_custom_call.1']
    #allocation4 [shape = 's32[1]{0}', space=sflag, size = 0x4, scoped, tag = 'scoped memory for tpu_custom_call.1']
    #allocation5 [shape = 'u8[32768]{0}', space=vmem, size = 0x8000, scoped, tag = 'input window, operand 3, single buffered']
    #allocation6 [shape = 's32[1]{0}', space=sflag, size = 0x4, scoped, tag = 'scoped memory for tpu_custom_call.1']
    #allocation7 [shape = 'u8[32768]{0}', space=vmem, size = 0x8000, scoped, tag = 'input window, operand 4, single buffered']
    #allocation8 [shape = 'u8[262144]{0}', space=vmem, size = 0x40000, scoped, tag = 'input window, operand 5, single buffered']
    #allocation9 [shape = 's32[1]{0}', space=sflag, size = 0x4, scoped, tag = 'scoped memory for tpu_custom_call.1']
    #allocation10 [shape = 'u8[8192]{0}', space=vmem, size = 0x2000, scoped, tag = 'input window, operand 6, single buffered']
    #allocation11 [shape = 'u8[2097152]{0}', space=vmem, size = 0x200000, scoped, tag = 'input window, operand 7, single buffered']
    #allocation12 [shape = 's32[1]{0}', space=sflag, size = 0x4, scoped, tag = 'scoped memory for tpu_custom_call.1']
    #allocation13 [shape = 'u8[2048]{0}', space=vmem, size = 0x800, scoped, tag = 'input window, operand 8, single buffered']
    #allocation14 [shape = 'u8[524288]{0}', space=vmem, size = 0x80000, scoped, tag = 'input window, operand 9, single buffered']
    #allocation15 [shape = 's32[1]{0}', space=sflag, size = 0x4, scoped, tag = 'scoped memory for tpu_custom_call.1']
    #allocation16 [shape = 'u8[1024]{0}', space=vmem, size = 0x400, scoped, tag = 'input window, operand 10, single buffered']
    #allocation17 [shape = 'u8[655360]{0}', space=vmem, size = 0xa0000, scoped, tag = 'input window, operand 11, single buffered']
    #allocation18 [shape = 's32[1]{0}', space=sflag, size = 0x4, scoped, tag = 'scoped memory for tpu_custom_call.1']
    #allocation19 [shape = 'u8[512]{0}', space=vmem, size = 0x400, scoped, tag = 'input window, operand 12, single buffered']
    #allocation20 [shape = 'u8[1024]{0}', space=vmem, size = 0x400, scoped, tag = 'output window, operand 0, single buffered']
    %18 = vsyncpa [#allocation3], 0
    %19 = vsyncpa [#allocation6], 0
    %20 = vsyncpa [#allocation9], 0
    %21 = vsyncpa [#allocation12], 0
    %22 = vsyncpa [#allocation15], 0
    %23 = vsyncpa [#allocation18], 0
    %24 = vsyncpa [#allocation4], 0
    // Predicated region
    $region2: #{tpu_custom_call.1} parent=1 // pred_check
      _
    $region3: #{tpu_custom_call.1} parent=1 // pred_check_branch
      %26 = sbr.rel (0) target = $region5
    $region4: #{tpu_custom_call.1} parent=1 // pred_region
      _
    $region5: #{tpu_custom_call.1} parent=1 // pred_fallthru
      _
    // Predicated region
    $region6: #{tpu_custom_call.1} parent=1 // pred_check
      _
    $region7: #{tpu_custom_call.1} parent=1 // pred_check_branch
      %28 = sbr.rel (0) target = $region9
    $region8: #{tpu_custom_call.1} parent=1 // pred_region
      _
    $region9: #{tpu_custom_call.1} parent=1 // pred_fallthru
      _
    // Predicated region
    $region10: #{tpu_custom_call.1} parent=1 // pred_check
      _
    $region11: #{tpu_custom_call.1} parent=1 // pred_check_branch
      %30 = sbr.rel (0) target = $region13
    $region12: #{tpu_custom_call.1} parent=1 // pred_region
      %s32 = ssub.s32 64, 64
      %33 = vsyncadd [#allocation3], %s32
      %s35 = sshll.u32 [#allocation2], 4
      %s36 = int_to_ptr.vmem [resolvable:$true] %s35
      %38 = dma.hbm_to_vmem [thread:$0]  %s2, 64, %s36, [#allocation3]
    $region13: #{tpu_custom_call.1} parent=1 // pred_fallthru
      _
    // Predicated region
    $region14: #{tpu_custom_call.1} parent=1 // pred_check
      _
    $region15: #{tpu_custom_call.1} parent=1 // pred_check_branch
      %40 = sbr.rel (0) target = $region17
    $region16: #{tpu_custom_call.1} parent=1 // pred_region
      %s42 = ssub.s32 1024, 1024
      %43 = vsyncadd [#allocation6], %s42
      %s44 = sshll.u32 [#allocation5], 4
      %s45 = int_to_ptr.vmem [resolvable:$true] %s44
      %50 = dma.hbm_to_vmem [thread:$0]  %s3, 1024, %s45, [#allocation6], 128, 128, 8
    $region17: #{tpu_custom_call.1} parent=1 // pred_fallthru
      _
    // Predicated region
    $region18: #{tpu_custom_call.1} parent=1 // pred_check
      _
    $region19: #{tpu_custom_call.1} parent=1 // pred_check_branch
      %52 = sbr.rel (0) target = $region21
    $region20: #{tpu_custom_call.1} parent=1 // pred_region
      %s54 = ssub.s32 1024, 1024
      %55 = vsyncadd [#allocation6], %s54
      %s56 = sshll.u32 [#allocation7], 4
      %s57 = int_to_ptr.vmem [resolvable:$true] %s56
      %62 = dma.hbm_to_vmem [thread:$0]  %s4, 1024, %s57, [#allocation6], 128, 128, 8
    $region21: #{tpu_custom_call.1} parent=1 // pred_fallthru
      _
    // Predicated region
    $region22: #{tpu_custom_call.1} parent=1 // pred_check
      _
    $region23: #{tpu_custom_call.1} parent=1 // pred_check_branch
      %64 = sbr.rel (0) target = $region25
    $region24: #{tpu_custom_call.1} parent=1 // pred_region
      %s66 = ssub.s32 8192, 8192
      %67 = vsyncadd [#allocation9], %s66
      %s68 = sshll.u32 [#allocation8], 4
      %s69 = int_to_ptr.vmem [resolvable:$true] %s68
      %74 = dma.hbm_to_vmem [thread:$0]  %s5, 8192, %s69, [#allocation9], 2048, 2048, 128
    $region25: #{tpu_custom_call.1} parent=1 // pred_fallthru
      _
    // Predicated region
    $region26: #{tpu_custom_call.1} parent=1 // pred_check
      _
    $region27: #{tpu_custom_call.1} parent=1 // pred_check_branch
      %76 = sbr.rel (0) target = $region29
    $region28: #{tpu_custom_call.1} parent=1 // pred_region
      %s78 = ssub.s32 256, 256
      %79 = vsyncadd [#allocation9], %s78
      %s81 = sshll.u32 [#allocation10], 4
      %s82 = int_to_ptr.vmem [resolvable:$true] %s81
      %84 = dma.hbm_to_vmem [thread:$0]  %s6, 256, %s82, [#allocation9]
    $region29: #{tpu_custom_call.1} parent=1 // pred_fallthru
      _
    // Predicated region
    $region30: #{tpu_custom_call.1} parent=1 // pred_check
      _
    $region31: #{tpu_custom_call.1} parent=1 // pred_check_branch
      %86 = sbr.rel (0) target = $region33
    $region32: #{tpu_custom_call.1} parent=1 // pred_region
      %s88 = ssub.s32 65536, 65536
      %89 = vsyncadd [#allocation12], %s88
      %s90 = sshll.u32 [#allocation11], 4
      %s91 = int_to_ptr.vmem [resolvable:$true] %s90
      %96 = dma.hbm_to_vmem [thread:$0]  %s7, 65536, %s91, [#allocation12], 512, 512, 32
    $region33: #{tpu_custom_call.1} parent=1 // pred_fallthru
      _
    // Predicated region
    $region34: #{tpu_custom_call.1} parent=1 // pred_check
      _
    $region35: #{tpu_custom_call.1} parent=1 // pred_check_branch
      %98 = sbr.rel (0) target = $region37
    $region36: #{tpu_custom_call.1} parent=1 // pred_region
      %s100 = ssub.s32 64, 64
      %101 = vsyncadd [#allocation12], %s100
      %s103 = sshll.u32 [#allocation13], 4
      %s104 = int_to_ptr.vmem [resolvable:$true] %s103
      %106 = dma.hbm_to_vmem [thread:$0]  %s8, 64, %s104, [#allocation12]
    $region37: #{tpu_custom_call.1} parent=1 // pred_fallthru
      _
    // Predicated region
    $region38: #{tpu_custom_call.1} parent=1 // pred_check
      _
    $region39: #{tpu_custom_call.1} parent=1 // pred_check_branch
      %108 = sbr.rel (0) target = $region41
    $region40: #{tpu_custom_call.1} parent=1 // pred_region
      %s110 = ssub.s32 16384, 16384
      %111 = vsyncadd [#allocation15], %s110
      %s112 = sshll.u32 [#allocation14], 4
      %s113 = int_to_ptr.vmem [resolvable:$true] %s112
      %118 = dma.hbm_to_vmem [thread:$0]  %s9, 16384, %s113, [#allocation15], 256, 256, 16
    $region41: #{tpu_custom_call.1} parent=1 // pred_fallthru
      _
    // Predicated region
    $region42: #{tpu_custom_call.1} parent=1 // pred_check
      _
    $region43: #{tpu_custom_call.1} parent=1 // pred_check_branch
      %120 = sbr.rel (0) target = $region45
    $region44: #{tpu_custom_call.1} parent=1 // pred_region
      %s122 = ssub.s32 32, 32
      %123 = vsyncadd [#allocation15], %s122
      %s125 = sshll.u32 [#allocation16], 4
      %s126 = int_to_ptr.vmem [resolvable:$true] %s125
      %128 = dma.hbm_to_vmem [thread:$0]  %s10, 32, %s126, [#allocation15]
    $region45: #{tpu_custom_call.1} parent=1 // pred_fallthru
      _
    // Predicated region
    $region46: #{tpu_custom_call.1} parent=1 // pred_check
      _
    $region47: #{tpu_custom_call.1} parent=1 // pred_check_branch
      %130 = sbr.rel (0) target = $region49
    $region48: #{tpu_custom_call.1} parent=1 // pred_region
      %s132 = ssub.s32 20480, 20480
      %133 = vsyncadd [#allocation18], %s132
      %s134 = sshll.u32 [#allocation17], 4
      %s135 = int_to_ptr.vmem [resolvable:$true] %s134
      %140 = dma.hbm_to_vmem [thread:$0]  %s11, 20480, %s135, [#allocation18], 128, 128, 8
    $region49: #{tpu_custom_call.1} parent=1 // pred_fallthru
      _
    // Predicated region
    $region50: #{tpu_custom_call.1} parent=1 // pred_check
      _
    $region51: #{tpu_custom_call.1} parent=1 // pred_check_branch
      %142 = sbr.rel (0) target = $region53
    $region52: #{tpu_custom_call.1} parent=1 // pred_region
      %s144 = ssub.s32 16, 16
      %145 = vsyncadd [#allocation18], %s144
      %s147 = sshll.u32 [#allocation19], 4
      %s148 = int_to_ptr.vmem [resolvable:$true] %s147
      %150 = dma.hbm_to_vmem [thread:$0]  %s12, 16, %s148, [#allocation18]
    $region53: #{tpu_custom_call.1} parent=1 // pred_fallthru
      _
    // Predicated region
    $region54: #{tpu_custom_call.1} parent=1 // pred_check
      _
    $region55: #{tpu_custom_call.1} parent=1 // pred_check_branch
      %152 = sbr.rel (0) target = $region57
    $region56: #{tpu_custom_call.1} parent=1 // pred_region
      %153 = dma.done [#allocation3], 64
    $region57: #{tpu_custom_call.1} parent=1 // pred_fallthru
      _
    // Predicated region
    $region58: #{tpu_custom_call.1} parent=1 // pred_check
      _
    $region59: #{tpu_custom_call.1} parent=1 // pred_check_branch
      %155 = sbr.rel (0) target = $region61
    $region60: #{tpu_custom_call.1} parent=1 // pred_region
      %156 = dma.done [#allocation6], 1024
    $region61: #{tpu_custom_call.1} parent=1 // pred_fallthru
      _
    // Predicated region
    $region62: #{tpu_custom_call.1} parent=1 // pred_check
      _
    $region63: #{tpu_custom_call.1} parent=1 // pred_check_branch
      %158 = sbr.rel (0) target = $region65
    $region64: #{tpu_custom_call.1} parent=1 // pred_region
      %159 = dma.done [#allocation6], 1024
    $region65: #{tpu_custom_call.1} parent=1 // pred_fallthru
      _
    // Predicated region
    $region66: #{tpu_custom_call.1} parent=1 // pred_check
      _
    $region67: #{tpu_custom_call.1} parent=1 // pred_check_branch
      %161 = sbr.rel (0) target = $region69
    $region68: #{tpu_custom_call.1} parent=1 // pred_region
      %162 = dma.done [#allocation9], 8192
    $region69: #{tpu_custom_call.1} parent=1 // pred_fallthru
      _
    // Predicated region
    $region70: #{tpu_custom_call.1} parent=1 // pred_check
      _
    $region71: #{tpu_custom_call.1} parent=1 // pred_check_branch
      %164 = sbr.rel (0) target = $region73
    $region72: #{tpu_custom_call.1} parent=1 // pred_region
      %165 = dma.done [#allocation9], 256
    $region73: #{tpu_custom_call.1} parent=1 // pred_fallthru
      _
    // Predicated region
    $region74: #{tpu_custom_call.1} parent=1 // pred_check
      _
    $region75: #{tpu_custom_call.1} parent=1 // pred_check_branch
      %167 = sbr.rel (0) target = $region77
    $region76: #{tpu_custom_call.1} parent=1 // pred_region
      %168 = dma.done [#allocation12], 65536
    $region77: #{tpu_custom_call.1} parent=1 // pred_fallthru
      _
    // Predicated region
    $region78: #{tpu_custom_call.1} parent=1 // pred_check
      _
    $region79: #{tpu_custom_call.1} parent=1 // pred_check_branch
      %170 = sbr.rel (0) target = $region81
    $region80: #{tpu_custom_call.1} parent=1 // pred_region
      %171 = dma.done [#allocation12], 64
    $region81: #{tpu_custom_call.1} parent=1 // pred_fallthru
      _
    // Predicated region
    $region82: #{tpu_custom_call.1} parent=1 // pred_check
      _
    $region83: #{tpu_custom_call.1} parent=1 // pred_check_branch
      %173 = sbr.rel (0) target = $region85
    $region84: #{tpu_custom_call.1} parent=1 // pred_region
      %174 = dma.done [#allocation15], 16384
    $region85: #{tpu_custom_call.1} parent=1 // pred_fallthru
      _
    // Predicated region
    $region86: #{tpu_custom_call.1} parent=1 // pred_check
      _
    $region87: #{tpu_custom_call.1} parent=1 // pred_check_branch
      %176 = sbr.rel (0) target = $region89
    $region88: #{tpu_custom_call.1} parent=1 // pred_region
      %177 = dma.done [#allocation15], 32
    $region89: #{tpu_custom_call.1} parent=1 // pred_fallthru
      _
    // Predicated region
    $region90: #{tpu_custom_call.1} parent=1 // pred_check
      _
    $region91: #{tpu_custom_call.1} parent=1 // pred_check_branch
      %179 = sbr.rel (0) target = $region93
    $region92: #{tpu_custom_call.1} parent=1 // pred_region
      %180 = dma.done [#allocation18], 20480
    $region93: #{tpu_custom_call.1} parent=1 // pred_fallthru
      _
    // Predicated region
    $region94: #{tpu_custom_call.1} parent=1 // pred_check
      _
    $region95: #{tpu_custom_call.1} parent=1 // pred_check_branch
      %182 = sbr.rel (0) target = $region97
    $region96: #{tpu_custom_call.1} parent=1 // pred_region
      %183 = dma.done [#allocation18], 16
    $region97: #{tpu_custom_call.1} parent=1 // pred_fallthru
      _
    %v184 = vld [vmem:[%s0] sm:$0xff]
    %v185 = vld [vmem:[%s0 + $0x8] sm:$0xff]
    %v186 = vld [vmem:[%s0 + $0x10] sm:$0xff]
    %v187 = vld [vmem:[%s0 + $0x18] sm:$0xff]
    %v188 = vld [vmem:[%s0 + $0x20] sm:$0xff]
    %v189 = vld [vmem:[%s0 + $0x28] sm:$0xff]
    %v190 = vld [vmem:[%s0 + $0x30] sm:$0xff]
    %v191 = vld [vmem:[%s0 + $0x38] sm:$0xff]
    %v192 = vld [vmem:[%s0 + $0x40] sm:$0xff]
    %v193 = vld [vmem:[%s0 + $0x48] sm:$0xff]
    %v194 = vld [vmem:[%s0 + $0x50] sm:$0xff]
    %v195 = vld [vmem:[%s0 + $0x58] sm:$0xff]
    %v196 = vld [vmem:[%s0 + $0x60] sm:$0xff]
    %v197 = vld [vmem:[%s0 + $0x68] sm:$0xff]
    %v198 = vld [vmem:[%s0 + $0x70] sm:$0xff]
    %v199 = vld [vmem:[%s0 + $0x78] sm:$0xff]
    %vm200 = vcmask 261120
    %v201 = vsel %vm200, %v184, 0.0
    %v202 = vsel %vm200, %v185, 0.0
    %v203 = vadd.f32 %v201, %v202
    %v204 = vsel %vm200, %v186, 0.0
    %v205 = vadd.f32 %v203, %v204
    %v206 = vsel %vm200, %v187, 0.0
    %v207 = vadd.f32 %v205, %v206
    %v208 = vsel %vm200, %v188, 0.0
    %v209 = vadd.f32 %v207, %v208
    %v210 = vsel %vm200, %v189, 0.0
    %v211 = vadd.f32 %v209, %v210
    %v212 = vsel %vm200, %v190, 0.0
    %v213 = vadd.f32 %v211, %v212
    %v214 = vsel %vm200, %v191, 0.0
    %v215 = vadd.f32 %v213, %v214
    %v216 = vrot.slane %v215, 4
    %v217 = vadd.f32 %v215, %v216
    %v218 = vrot.slane %v217, 2
    %v219 = vadd.f32 %v217, %v218
    %v220 = vrot.slane %v219, 1
    %v221 = vadd.f32 %v219, %v220
    %v222 = vsel %vm200, %v192, 0.0
    %v223 = vsel %vm200, %v193, 0.0
    %v224 = vadd.f32 %v222, %v223
    %v225 = vsel %vm200, %v194, 0.0
    %v226 = vadd.f32 %v224, %v225
    %v227 = vsel %vm200, %v195, 0.0
    %v228 = vadd.f32 %v226, %v227
    %v229 = vsel %vm200, %v196, 0.0
    %v230 = vadd.f32 %v228, %v229
    %v231 = vsel %vm200, %v197, 0.0
    %v232 = vadd.f32 %v230, %v231
    %v233 = vsel %vm200, %v198, 0.0
    %v234 = vadd.f32 %v232, %v233
    %v235 = vsel %vm200, %v199, 0.0
    %v236 = vadd.f32 %v234, %v235
    %v237 = vrot.slane %v236, 4
    %v238 = vadd.f32 %v236, %v237
    %v239 = vrot.slane %v238, 2
    %v240 = vadd.f32 %v238, %v239
    %v241 = vrot.slane %v240, 1
    %v242 = vadd.f32 %v240, %v241
    %v243 = vmul.f32 %v221, 0.015625
    %v244 = vmul.f32 %v242, 0.015625
    %v245 = vsel %vm200, %v184, -inf
    %v246 = vsel %vm200, %v185, -inf
    %v247 = vsel %vm200, %v186, -inf
    %v248 = vmax.f32 %v245, %v247
    %v249 = vsel %vm200, %v187, -inf
    %v250 = vmax.f32 %v246, %v249
    %v251 = vsel %vm200, %v188, -inf
    %v252 = vmax.f32 %v248, %v251
    %v253 = vsel %vm200, %v189, -inf
    %v254 = vmax.f32 %v250, %v253
    %v255 = vsel %vm200, %v190, -inf
    %v256 = vmax.f32 %v252, %v255
    %v257 = vsel %vm200, %v191, -inf
    %v258 = vmax.f32 %v254, %v257
    %v259 = vmax.f32 %v256, %v258
    %v260 = vrot.slane %v259, 4
    %v261 = vmax.f32 %v259, %v260
    %v262 = vrot.slane %v261, 2
    %v263 = vmax.f32 %v261, %v262
    %v264 = vrot.slane %v263, 1
    %v265 = vmax.f32 %v263, %v264
    %v266 = vsel %vm200, %v192, -inf
    %v267 = vsel %vm200, %v193, -inf
    %v268 = vsel %vm200, %v194, -inf
    %v269 = vmax.f32 %v266, %v268
    %v270 = vsel %vm200, %v195, -inf
    %v271 = vmax.f32 %v267, %v270
    %v272 = vsel %vm200, %v196, -inf
    %v273 = vmax.f32 %v269, %v272
    %v274 = vsel %vm200, %v197, -inf
    %v275 = vmax.f32 %v271, %v274
    %v276 = vsel %vm200, %v198, -inf
    %v277 = vmax.f32 %v273, %v276
    %v278 = vsel %vm200, %v199, -inf
    %v279 = vmax.f32 %v275, %v278
    %v280 = vmax.f32 %v277, %v279
    %v281 = vrot.slane %v280, 4
    %v282 = vmax.f32 %v280, %v281
    %v283 = vrot.slane %v282, 2
    %v284 = vmax.f32 %v282, %v283
    %v285 = vrot.slane %v284, 1
    %v286 = vmax.f32 %v284, %v285
    %v287 = vld [vmem:[%s1] sm:$0xff]
    %v288 = vld [vmem:[%s1 + $0x8] sm:$0xff]
    %v289 = vld [vmem:[%s1 + $0x10] sm:$0xff]
    %v290 = vld [vmem:[%s1 + $0x18] sm:$0xff]
    %vm293 = vcmask 1041409
    %v294 = vsel %vm293, %v244, %v243
    %v295 = vsel %vm200, %v294, 0
    %297 = vmatprep.subr.mxu0 0.0
    %298 = vmatpush1.msra.mxu0 %v287
    %299 = vmatprep.subr.mxu0 0.0
    %300 = vmatpush1.msra.mxu0 %v288
    %301 = vmatprep.subr.mxu0 0.0
    %302 = vmatpush1.msra.mxu0 %v289
    %303 = vmatprep.subr.mxu0 0.0
    %304 = vmatpush1.msra.mxu0 %v290
    %305 = vmatprep.subr.mxu0 0.0
    %306 = vmatpush1.msra.mxu0 0.0
    %307 = vmatprep.subr.mxu0 0.0
    %308 = vmatpush1.msra.mxu0 0.0
    %309 = vmatprep.subr.mxu0 0.0
    %310 = vmatpush1.msra.mxu0 0.0
    %311 = vmatprep.subr.mxu0 0.0
    %312 = vmatpush1.msra.mxu0 0.0
    %313 = vmatprep.subr.mxu0 0.0
    %314 = vmatpush1.msra.mxu0 0.0
    %315 = vmatprep.subr.mxu0 0.0
    %316 = vmatpush1.msra.mxu0 0.0
    %317 = vmatprep.subr.mxu0 0.0
    %318 = vmatpush1.msra.mxu0 0.0
    %319 = vmatprep.subr.mxu0 0.0
    %320 = vmatpush1.msra.mxu0 0.0
    %321 = vmatprep.subr.mxu0 0.0
    %322 = vmatpush1.msra.mxu0 0.0
    %323 = vmatprep.subr.mxu0 0.0
    %324 = vmatpush1.msra.mxu0 0.0
    %325 = vmatprep.subr.mxu0 0.0
    %326 = vmatpush1.msra.mxu0 0.0
    %327 = vmatprep.subr.mxu0 0.0
    %328 = vmatpush1.msra.mxu0 0.0
    %329 = vmatprep.subr.mxu0 0.0
    %330 = vmatpush1.msra.mxu0 0.0
    %331 = vmatprep.subr.mxu0 0.0
    %332 = vmatpush1.msra.mxu0 0.0
    %333 = vmatprep.subr.mxu0 0.0
    %334 = vmatpush1.msra.mxu0 0.0
    %335 = vmatprep.subr.mxu0 0.0
    %336 = vmatpush1.msra.mxu0 0.0
    %337 = vmatprep.subr.mxu0 0.0
    %338 = vmatpush1.msra.mxu0 0.0
    %339 = vmatprep.subr.mxu0 0.0
    %340 = vmatpush1.msra.mxu0 0.0
    %341 = vmatprep.subr.mxu0 0.0
    %342 = vmatpush1.msra.mxu0 0.0
    %343 = vmatprep.subr.mxu0 0.0
    %344 = vmatpush1.msra.mxu0 0.0
    %345 = vmatprep.subr.mxu0 0.0
    %346 = vmatpush1.msra.mxu0 0.0
    %347 = vmatprep.subr.mxu0 0.0
    %348 = vmatpush1.msra.mxu0 0.0
    %349 = vmatprep.subr.mxu0 0.0
    %350 = vmatpush1.msra.mxu0 0.0
    %351 = vmatprep.subr.mxu0 0.0
    %352 = vmatpush1.msra.mxu0 0.0
    %353 = vmatprep.subr.mxu0 0.0
    %354 = vmatpush1.msra.mxu0 0.0
    %355 = vmatprep.subr.mxu0 0.0
    %356 = vmatpush1.msra.mxu0 0.0
    %357 = vmatprep.subr.mxu0 0.0
    %358 = vmatpush1.msra.mxu0 0.0
    %359 = vmatprep.subr.mxu0 0.0
    %360 = vmatpush1.msra.mxu0 0.0
    %361 = vmatprep.mubr.f32.mxu0 0.0
    %362 = vmatmul.mubr.f32.gmra.mrb[0].mxu0 %v295
    %v363 = vpop.f32.mrb[0].mxu0
    %v364 = vadd.f32 0.0, %v363
    %v365 = vpop.f32.mrb[0].mxu0
    %366 = vdwg.mxu0
    %v367 = vmax.f32 %v364, 0.0
    %v370 = vsel %vm293, %v286, %v265
    %v371 = vsel %vm200, %v370, 0
    %373 = vmatprep.subr.mxu0 0.0
    %374 = vmatpush1.msra.mxu0 %v287
    %375 = vmatprep.subr.mxu0 0.0
    %376 = vmatpush1.msra.mxu0 %v288
    %377 = vmatprep.subr.mxu0 0.0
    %378 = vmatpush1.msra.mxu0 %v289
    %379 = vmatprep.subr.mxu0 0.0
    %380 = vmatpush1.msra.mxu0 %v290
    %381 = vmatprep.subr.mxu0 0.0
    %382 = vmatpush1.msra.mxu0 0.0
    %383 = vmatprep.subr.mxu0 0.0
    %384 = vmatpush1.msra.mxu0 0.0
    %385 = vmatprep.subr.mxu0 0.0
    %386 = vmatpush1.msra.mxu0 0.0
    %387 = vmatprep.subr.mxu0 0.0
    %388 = vmatpush1.msra.mxu0 0.0
    %389 = vmatprep.subr.mxu0 0.0
    %390 = vmatpush1.msra.mxu0 0.0
    %391 = vmatprep.subr.mxu0 0.0
    %392 = vmatpush1.msra.mxu0 0.0
    %393 = vmatprep.subr.mxu0 0.0
    %394 = vmatpush1.msra.mxu0 0.0
    %395 = vmatprep.subr.mxu0 0.0
    %396 = vmatpush1.msra.mxu0 0.0
    %397 = vmatprep.subr.mxu0 0.0
    %398 = vmatpush1.msra.mxu0 0.0
    %399 = vmatprep.subr.mxu0 0.0
    %400 = vmatpush1.msra.mxu0 0.0
    %401 = vmatprep.subr.mxu0 0.0
    %402 = vmatpush1.msra.mxu0 0.0
    %403 = vmatprep.subr.mxu0 0.0
    %404 = vmatpush1.msra.mxu0 0.0
    %405 = vmatprep.subr.mxu0 0.0
    %406 = vmatpush1.msra.mxu0 0.0
    %407 = vmatprep.subr.mxu0 0.0
    %408 = vmatpush1.msra.mxu0 0.0
    %409 = vmatprep.subr.mxu0 0.0
    %410 = vmatpush1.msra.mxu0 0.0
    %411 = vmatprep.subr.mxu0 0.0
    %412 = vmatpush1.msra.mxu0 0.0
    %413 = vmatprep.subr.mxu0 0.0
    %414 = vmatpush1.msra.mxu0 0.0
    %415 = vmatprep.subr.mxu0 0.0
    %416 = vmatpush1.msra.mxu0 0.0
    %417 = vmatprep.subr.mxu0 0.0
    %418 = vmatpush1.msra.mxu0 0.0
    %419 = vmatprep.subr.mxu0 0.0
    %420 = vmatpush1.msra.mxu0 0.0
    %421 = vmatprep.subr.mxu0 0.0
    %422 = vmatpush1.msra.mxu0 0.0
    %423 = vmatprep.subr.mxu0 0.0
    %424 = vmatpush1.msra.mxu0 0.0
    %425 = vmatprep.subr.mxu0 0.0
    %426 = vmatpush1.msra.mxu0 0.0
    %427 = vmatprep.subr.mxu0 0.0
    %428 = vmatpush1.msra.mxu0 0.0
    %429 = vmatprep.subr.mxu0 0.0
    %430 = vmatpush1.msra.mxu0 0.0
    %431 = vmatprep.subr.mxu0 0.0
    %432 = vmatpush1.msra.mxu0 0.0
    %433 = vmatprep.subr.mxu0 0.0
    %434 = vmatpush1.msra.mxu0 0.0
    %435 = vmatprep.subr.mxu0 0.0
    %436 = vmatpush1.msra.mxu0 0.0
    %437 = vmatprep.mubr.f32.mxu0 0.0
    %438 = vmatmul.mubr.f32.gmra.mrb[0].mxu0 %v371
    %v439 = vpop.f32.mrb[0].mxu0
    %v440 = vadd.f32 0.0, %v439
    %v441 = vpop.f32.mrb[0].mxu0
    %442 = vdwg.mxu0
    %v443 = vmax.f32 %v440, 0.0
    %v444 = vadd.f32 %v367, %v443
    %v445 = vld [vmem:[#allocation2] sm:$0xf]
    %vm446 = vcmask 31744
    %v448 = vsel %vm446, %v444, 0
    %vm450 = vcmask 1043456
    %v452 = vsel %vm450, %v445, 0
    %454 = vmatprep.subr.mxu0 0.0
    %455 = vmatpush1.msra.mxu0 %v452
    %456 = vmatprep.subr.mxu0 0.0
    %457 = vmatpush1.msra.mxu0 0.0
    %458 = vmatprep.subr.mxu0 0.0
    %459 = vmatpush1.msra.mxu0 0.0
    %460 = vmatprep.subr.mxu0 0.0
    %461 = vmatpush1.msra.mxu0 0.0
    %462 = vmatprep.subr.mxu0 0.0
    %463 = vmatpush1.msra.mxu0 0.0
    %464 = vmatprep.subr.mxu0 0.0
    %465 = vmatpush1.msra.mxu0 0.0
    %466 = vmatprep.subr.mxu0 0.0
    %467 = vmatpush1.msra.mxu0 0.0
    %468 = vmatprep.subr.mxu0 0.0
    %469 = vmatpush1.msra.mxu0 0.0
    %470 = vmatprep.subr.mxu0 0.0
    %471 = vmatpush1.msra.mxu0 0.0
    %472 = vmatprep.subr.mxu0 0.0
    %473 = vmatpush1.msra.mxu0 0.0
    %474 = vmatprep.subr.mxu0 0.0
    %475 = vmatpush1.msra.mxu0 0.0
    %476 = vmatprep.subr.mxu0 0.0
    %477 = vmatpush1.msra.mxu0 0.0
    %478 = vmatprep.subr.mxu0 0.0
    %479 = vmatpush1.msra.mxu0 0.0
    %480 = vmatprep.subr.mxu0 0.0
    %481 = vmatpush1.msra.mxu0 0.0
    %482 = vmatprep.subr.mxu0 0.0
    %483 = vmatpush1.msra.mxu0 0.0
    %484 = vmatprep.subr.mxu0 0.0
    %485 = vmatpush1.msra.mxu0 0.0
    %486 = vmatprep.subr.mxu0 0.0
    %487 = vmatpush1.msra.mxu0 0.0
    %488 = vmatprep.subr.mxu0 0.0
    %489 = vmatpush1.msra.mxu0 0.0
    %490 = vmatprep.subr.mxu0 0.0
    %491 = vmatpush1.msra.mxu0 0.0
    %492 = vmatprep.subr.mxu0 0.0
    %493 = vmatpush1.msra.mxu0 0.0
    %494 = vmatprep.subr.mxu0 0.0
    %495 = vmatpush1.msra.mxu0 0.0
    %496 = vmatprep.subr.mxu0 0.0
    %497 = vmatpush1.msra.mxu0 0.0
    %498 = vmatprep.subr.mxu0 0.0
    %499 = vmatpush1.msra.mxu0 0.0
    %500 = vmatprep.subr.mxu0 0.0
    %501 = vmatpush1.msra.mxu0 0.0
    %502 = vmatprep.subr.mxu0 0.0
    %503 = vmatpush1.msra.mxu0 0.0
    %504 = vmatprep.subr.mxu0 0.0
    %505 = vmatpush1.msra.mxu0 0.0
    %506 = vmatprep.subr.mxu0 0.0
    %507 = vmatpush1.msra.mxu0 0.0
    %508 = vmatprep.subr.mxu0 0.0
    %509 = vmatpush1.msra.mxu0 0.0
    %510 = vmatprep.subr.mxu0 0.0
    %511 = vmatpush1.msra.mxu0 0.0
    %512 = vmatprep.subr.mxu0 0.0
    %513 = vmatpush1.msra.mxu0 0.0
    %514 = vmatprep.subr.mxu0 0.0
    %515 = vmatpush1.msra.mxu0 0.0
    %516 = vmatprep.subr.mxu0 0.0
    %517 = vmatpush1.msra.mxu0 0.0
    %518 = vmatprep.mubr.f32.mxu0 0.0
    %519 = vmatmul.mubr.f32.gmra.mrb[0].mxu0 %v448
    %v520 = vpop.f32.mrb[0].mxu0
    %v521 = vadd.f32 0.0, %v520
    %v522 = vpop.f32.mrb[0].mxu0
    %523 = vdwg.mxu0
    %v524 = vsub.f32 0.0, %v521
    %v525 = vmul.f32 %v524, 1.442695
    %v526 = vpow.pop %v525
    %v527 = vadd.f32 %v526, 1.0
    %v528 = vrcp.pop %v527
    %v529 = vmul.f32 1.0, %v528
    %v532 = vunpack.c.l.s4 1966171168
    %v533 = vunpack.c.0.s8 %v532
    %v534 = vlaneseq
    %v535 = vshrl.u32 %v534, 7
    %v536 = vsub.s32 %v533, %v535
    %v537 = vrot.slane %v529, %v536
    %v538 = vcombine.high %v537, %v537
    %v540 = vunpack.c.l.s4 1966171168
    %v541 = vunpack.c.0.s8 %v540
    %v542 = vlaneseq
    %v543 = vshrl.u32 %v542, 7
    %v544 = vsub.s32 %v541, %v543
    %v545 = vrot.slane %v537, %v544
    %v547 = vunpack.c.l.s4 1966171168
    %v548 = vunpack.c.0.s8 %v547
    %v549 = vlaneseq
    %v550 = vshrl.u32 %v549, 7
    %v551 = vsub.s32 %v548, %v550
    %v552 = vrot.slane %v538, %v551
    %v553 = vlaneseq
    %v554 = vshrl.u32 %v553, 7
    %v555 = vsub.s32 0, %v554
    %v556 = vrot.slane %v545, %v555
    %v557 = vlaneseq
    %v558 = vshrl.u32 %v557, 7
    %v559 = vsub.s32 0, %v558
    %v560 = vrot.slane %v552, %v559
    %v563 = vmul.f32 %v184, %v556
    %v564 = vmul.f32 %v185, %v556
    %v565 = vmul.f32 %v186, %v556
    %v566 = vmul.f32 %v187, %v556
    %v567 = vmul.f32 %v188, %v556
    %v568 = vmul.f32 %v189, %v556
    %v569 = vmul.f32 %v190, %v556
    %v570 = vmul.f32 %v191, %v556
    %v571 = vmul.f32 %v192, %v560
    %v572 = vmul.f32 %v193, %v560
    %v573 = vmul.f32 %v194, %v560
    %v574 = vmul.f32 %v195, %v560
    %v575 = vmul.f32 %v196, %v560
    %v576 = vmul.f32 %v197, %v560
    %v577 = vmul.f32 %v198, %v560
    %v578 = vmul.f32 %v199, %v560
    %v579 = vsel %vm200, %v563, 0.0
    %580 = vadd.xlane.f32.xlu0 %v579
    %v581 = vpop.xlane.xlu0 %580
    %v582 = vsel %vm200, %v564, 0.0
    %583 = vadd.xlane.f32.xlu0 %v582
    %v584 = vpop.xlane.xlu0 %583
    %v585 = vsel %vm200, %v565, 0.0
    %586 = vadd.xlane.f32.xlu0 %v585
    %v587 = vpop.xlane.xlu0 %586
    %v588 = vsel %vm200, %v566, 0.0
    %589 = vadd.xlane.f32.xlu0 %v588
    %v590 = vpop.xlane.xlu0 %589
    %v591 = vsel %vm200, %v567, 0.0
    %592 = vadd.xlane.f32.xlu0 %v591
    %v593 = vpop.xlane.xlu0 %592
    %v594 = vsel %vm200, %v568, 0.0
    %595 = vadd.xlane.f32.xlu0 %v594
    %v596 = vpop.xlane.xlu0 %595
    %v597 = vsel %vm200, %v569, 0.0
    %598 = vadd.xlane.f32.xlu0 %v597
    %v599 = vpop.xlane.xlu0 %598
    %v600 = vsel %vm200, %v570, 0.0
    %601 = vadd.xlane.f32.xlu0 %v600
    %v602 = vpop.xlane.xlu0 %601
    %v603 = vsel %vm200, %v571, 0.0
    %604 = vadd.xlane.f32.xlu0 %v603
    %v605 = vpop.xlane.xlu0 %604
    %v606 = vsel %vm200, %v572, 0.0
    %607 = vadd.xlane.f32.xlu0 %v606
    %v608 = vpop.xlane.xlu0 %607
    %v609 = vsel %vm200, %v573, 0.0
    %610 = vadd.xlane.f32.xlu0 %v609
    %v611 = vpop.xlane.xlu0 %610
    %v612 = vsel %vm200, %v574, 0.0
    %613 = vadd.xlane.f32.xlu0 %v612
    %v614 = vpop.xlane.xlu0 %613
    %v615 = vsel %vm200, %v575, 0.0
    %616 = vadd.xlane.f32.xlu0 %v615
    %v617 = vpop.xlane.xlu0 %616
    %v618 = vsel %vm200, %v576, 0.0
    %619 = vadd.xlane.f32.xlu0 %v618
    %v620 = vpop.xlane.xlu0 %619
    %v621 = vsel %vm200, %v577, 0.0
    %622 = vadd.xlane.f32.xlu0 %v621
    %v623 = vpop.xlane.xlu0 %622
    %v624 = vsel %vm200, %v578, 0.0
    %625 = vadd.xlane.f32.xlu0 %v624
    %v626 = vpop.xlane.xlu0 %625
    %v627 = vmul.f32 %v581, 0.03125
    %v628 = vmul.f32 %v584, 0.03125
    %v629 = vmul.f32 %v587, 0.03125
    %v630 = vmul.f32 %v590, 0.03125
    %v631 = vmul.f32 %v593, 0.03125
    %v632 = vmul.f32 %v596, 0.03125
    %v633 = vmul.f32 %v599, 0.03125
    %v634 = vmul.f32 %v602, 0.03125
    %v635 = vmul.f32 %v605, 0.03125
    %v636 = vmul.f32 %v608, 0.03125
    %v637 = vmul.f32 %v611, 0.03125
    %v638 = vmul.f32 %v614, 0.03125
    %v639 = vmul.f32 %v617, 0.03125
    %v640 = vmul.f32 %v620, 0.03125
    %v641 = vmul.f32 %v623, 0.03125
    %v642 = vmul.f32 %v626, 0.03125
    %v643 = vsel %vm200, %v563, -inf
    %644 = vmax.xlane.f32.xlu0 %v643
    %v645 = vpop.xlane.xlu0 %644
    %v646 = vsel %vm200, %v564, -inf
    %647 = vmax.xlane.f32.xlu0 %v646
    %v648 = vpop.xlane.xlu0 %647
    %v649 = vsel %vm200, %v565, -inf
    %650 = vmax.xlane.f32.xlu0 %v649
    %v651 = vpop.xlane.xlu0 %650
    %v652 = vsel %vm200, %v566, -inf
    %653 = vmax.xlane.f32.xlu0 %v652
    %v654 = vpop.xlane.xlu0 %653
    %v655 = vsel %vm200, %v567, -inf
    %656 = vmax.xlane.f32.xlu0 %v655
    %v657 = vpop.xlane.xlu0 %656
    %v658 = vsel %vm200, %v568, -inf
    %659 = vmax.xlane.f32.xlu0 %v658
    %v660 = vpop.xlane.xlu0 %659
    %v661 = vsel %vm200, %v569, -inf
    %662 = vmax.xlane.f32.xlu0 %v661
    %v663 = vpop.xlane.xlu0 %662
    %v664 = vsel %vm200, %v570, -inf
    %665 = vmax.xlane.f32.xlu0 %v664
    %v666 = vpop.xlane.xlu0 %665
    %v667 = vsel %vm200, %v571, -inf
    %668 = vmax.xlane.f32.xlu0 %v667
    %v669 = vpop.xlane.xlu0 %668
    %v670 = vsel %vm200, %v572, -inf
    %671 = vmax.xlane.f32.xlu0 %v670
    %v672 = vpop.xlane.xlu0 %671
    %v673 = vsel %vm200, %v573, -inf
    %674 = vmax.xlane.f32.xlu0 %v673
    %v675 = vpop.xlane.xlu0 %674
    %v676 = vsel %vm200, %v574, -inf
    %677 = vmax.xlane.f32.xlu0 %v676
    %v678 = vpop.xlane.xlu0 %677
    %v679 = vsel %vm200, %v575, -inf
    %680 = vmax.xlane.f32.xlu0 %v679
    %v681 = vpop.xlane.xlu0 %680
    %v682 = vsel %vm200, %v576, -inf
    %683 = vmax.xlane.f32.xlu0 %v682
    %v684 = vpop.xlane.xlu0 %683
    %v685 = vsel %vm200, %v577, -inf
    %686 = vmax.xlane.f32.xlu0 %v685
    %v687 = vpop.xlane.xlu0 %686
    %v688 = vsel %vm200, %v578, -inf
    %689 = vmax.xlane.f32.xlu0 %v688
    %v690 = vpop.xlane.xlu0 %689
    %v691 = vld [vmem:[#allocation5] sm:$0xff]
    %v692 = vld [vmem:[#allocation5 + $0x8] sm:$0xff]
    %v693 = vld [vmem:[#allocation5 + $0x10] sm:$0xff]
    %v694 = vld [vmem:[#allocation5 + $0x18] sm:$0xff]
    %v695 = vld [vmem:[#allocation5 + $0x20] sm:$0xff]
    %v696 = vld [vmem:[#allocation5 + $0x28] sm:$0xff]
    %v697 = vld [vmem:[#allocation5 + $0x30] sm:$0xff]
    %v698 = vld [vmem:[#allocation5 + $0x38] sm:$0xff]
    %v699 = vld [vmem:[#allocation7] sm:$0xff]
    %v700 = vld [vmem:[#allocation7 + $0x8] sm:$0xff]
    %v701 = vld [vmem:[#allocation7 + $0x10] sm:$0xff]
    %v702 = vld [vmem:[#allocation7 + $0x18] sm:$0xff]
    %v703 = vld [vmem:[#allocation7 + $0x20] sm:$0xff]
    %v704 = vld [vmem:[#allocation7 + $0x28] sm:$0xff]
    %v705 = vld [vmem:[#allocation7 + $0x30] sm:$0xff]
    %v706 = vld [vmem:[#allocation7 + $0x38] sm:$0xff]
    %v723 = vlaneseq
    %v724 = vand.u32 %v723, 127
    %v725 = vlaneseq
    %v726 = vshrl.u32 %v725, 7
    %v727 = vsub.s32 %v724, %v726
    %v728 = vrot.slane %v645, %v727
    %v729 = vadd.s32 %v724, 4294967288
    %v730 = vlaneseq
    %v731 = vshrl.u32 %v730, 7
    %v732 = vsub.s32 %v729, %v731
    %v733 = vrot.slane %v648, %v732
    %vm734 = vcmask 130112
    %v735 = vsel %vm734, %v733, %v728
    %v736 = vadd.s32 %v724, 4294967280
    %v737 = vlaneseq
    %v738 = vshrl.u32 %v737, 7
    %v739 = vsub.s32 %v736, %v738
    %v740 = vrot.slane %v651, %v739
    %vm741 = vcmask 195712
    %v742 = vsel %vm741, %v740, %v735
    %v743 = vadd.s32 %v724, 4294967272
    %v744 = vlaneseq
    %v745 = vshrl.u32 %v744, 7
    %v746 = vsub.s32 %v743, %v745
    %v747 = vrot.slane %v654, %v746
    %vm748 = vcmask 261312
    %v749 = vsel %vm748, %v747, %v742
    %v750 = vadd.s32 %v724, 4294967264
    %v751 = vlaneseq
    %v752 = vshrl.u32 %v751, 7
    %v753 = vsub.s32 %v750, %v752
    %v754 = vrot.slane %v657, %v753
    %vm755 = vcmask 326912
    %v756 = vsel %vm755, %v754, %v749
    %v757 = vadd.s32 %v724, 4294967256
    %v758 = vlaneseq
    %v759 = vshrl.u32 %v758, 7
    %v760 = vsub.s32 %v757, %v759
    %v761 = vrot.slane %v660, %v760
    %vm762 = vcmask 392512
    %v763 = vsel %vm762, %v761, %v756
    %v764 = vadd.s32 %v724, 4294967248
    %v765 = vlaneseq
    %v766 = vshrl.u32 %v765, 7
    %v767 = vsub.s32 %v764, %v766
    %v768 = vrot.slane %v663, %v767
    %vm769 = vcmask 458112
    %v770 = vsel %vm769, %v768, %v763
    %v771 = vadd.s32 %v724, 4294967240
    %v772 = vlaneseq
    %v773 = vshrl.u32 %v772, 7
    %v774 = vsub.s32 %v771, %v773
    %v775 = vrot.slane %v666, %v774
    %vm776 = vcmask 523712
    %v777 = vsel %vm776, %v775, %v770
    %v778 = vlaneseq
    %v779 = vshrl.u32 %v778, 7
    %v780 = vsub.s32 %v724, %v779
    %v781 = vrot.slane %v669, %v780
    %v782 = vlaneseq
    %v783 = vshrl.u32 %v782, 7
    %v784 = vsub.s32 %v729, %v783
    %v785 = vrot.slane %v672, %v784
    %v786 = vsel %vm734, %v785, %v781
    %v787 = vlaneseq
    %v788 = vshrl.u32 %v787, 7
    %v789 = vsub.s32 %v736, %v788
    %v790 = vrot.slane %v675, %v789
    %v791 = vsel %vm741, %v790, %v786
    %v792 = vlaneseq
    %v793 = vshrl.u32 %v792, 7
    %v794 = vsub.s32 %v743, %v793
    %v795 = vrot.slane %v678, %v794
    %v796 = vsel %vm748, %v795, %v791
    %v797 = vlaneseq
    %v798 = vshrl.u32 %v797, 7
    %v799 = vsub.s32 %v750, %v798
    %v800 = vrot.slane %v681, %v799
    %v801 = vsel %vm755, %v800, %v796
    %v802 = vlaneseq
    %v803 = vshrl.u32 %v802, 7
    %v804 = vsub.s32 %v757, %v803
    %v805 = vrot.slane %v684, %v804
    %v806 = vsel %vm762, %v805, %v801
    %v807 = vlaneseq
    %v808 = vshrl.u32 %v807, 7
    %v809 = vsub.s32 %v764, %v808
    %v810 = vrot.slane %v687, %v809
    %v811 = vsel %vm769, %v810, %v806
    %v812 = vlaneseq
    %v813 = vshrl.u32 %v812, 7
    %v814 = vsub.s32 %v771, %v813
    %v815 = vrot.slane %v690, %v814
    %v816 = vsel %vm776, %v815, %v811
    %v817 = vsel %vm293, %v816, %v777
    %vm818 = vcmask 523264
    %v819 = vsel %vm818, %v817, 0
    %821 = vmatprep.subr.mxu0 0.0
    %822 = vmatpush1.msra.mxu0 %v699
    %823 = vmatprep.subr.mxu0 0.0
    %824 = vmatpush1.msra.mxu0 %v700
    %825 = vmatprep.subr.mxu0 0.0
    %826 = vmatpush1.msra.mxu0 %v701
    %827 = vmatprep.subr.mxu0 0.0
    %828 = vmatpush1.msra.mxu0 %v702
    %829 = vmatprep.subr.mxu0 0.0
    %830 = vmatpush1.msra.mxu0 %v703
    %831 = vmatprep.subr.mxu0 0.0
    %832 = vmatpush1.msra.mxu0 %v704
    %833 = vmatprep.subr.mxu0 0.0
    %834 = vmatpush1.msra.mxu0 %v705
    %835 = vmatprep.subr.mxu0 0.0
    %836 = vmatpush1.msra.mxu0 %v706
    %837 = vmatprep.subr.mxu0 0.0
    %838 = vmatpush1.msra.mxu0 0.0
    %839 = vmatprep.subr.mxu0 0.0
    %840 = vmatpush1.msra.mxu0 0.0
    %841 = vmatprep.subr.mxu0 0.0
    %842 = vmatpush1.msra.mxu0 0.0
    %843 = vmatprep.subr.mxu0 0.0
    %844 = vmatpush1.msra.mxu0 0.0
    %845 = vmatprep.subr.mxu0 0.0
    %846 = vmatpush1.msra.mxu0 0.0
    %847 = vmatprep.subr.mxu0 0.0
    %848 = vmatpush1.msra.mxu0 0.0
    %849 = vmatprep.subr.mxu0 0.0
    %850 = vmatpush1.msra.mxu0 0.0
    %851 = vmatprep.subr.mxu0 0.0
    %852 = vmatpush1.msra.mxu0 0.0
    %853 = vmatprep.subr.mxu0 0.0
    %854 = vmatpush1.msra.mxu0 0.0
    %855 = vmatprep.subr.mxu0 0.0
    %856 = vmatpush1.msra.mxu0 0.0
    %857 = vmatprep.subr.mxu0 0.0
    %858 = vmatpush1.msra.mxu0 0.0
    %859 = vmatprep.subr.mxu0 0.0
    %860 = vmatpush1.msra.mxu0 0.0
    %861 = vmatprep.subr.mxu0 0.0
    %862 = vmatpush1.msra.mxu0 0.0
    %863 = vmatprep.subr.mxu0 0.0
    %864 = vmatpush1.msra.mxu0 0.0
    %865 = vmatprep.subr.mxu0 0.0
    %866 = vmatpush1.msra.mxu0 0.0
    %867 = vmatprep.subr.mxu0 0.0
    %868 = vmatpush1.msra.mxu0 0.0
    %869 = vmatprep.subr.mxu0 0.0
    %870 = vmatpush1.msra.mxu0 0.0
    %871 = vmatprep.subr.mxu0 0.0
    %872 = vmatpush1.msra.mxu0 0.0
    %873 = vmatprep.subr.mxu0 0.0
    %874 = vmatpush1.msra.mxu0 0.0
    %875 = vmatprep.subr.mxu0 0.0
    %876 = vmatpush1.msra.mxu0 0.0
    %877 = vmatprep.subr.mxu0 0.0
    %878 = vmatpush1.msra.mxu0 0.0
    %879 = vmatprep.subr.mxu0 0.0
    %880 = vmatpush1.msra.mxu0 0.0
    %881 = vmatprep.subr.mxu0 0.0
    %882 = vmatpush1.msra.mxu0 0.0
    %883 = vmatprep.subr.mxu0 0.0
    %884 = vmatpush1.msra.mxu0 0.0
    %885 = vmatprep.mubr.f32.mxu0 0.0
    %886 = vmatmul.mubr.f32.gmra.mrb[0].mxu0 %v819
    %v887 = vpop.f32.mrb[0].mxu0
    %v888 = vadd.f32 0.0, %v887
    %v889 = vpop.f32.mrb[0].mxu0
    %890 = vdwg.mxu0
    %v907 = vlaneseq
    %v908 = vshrl.u32 %v907, 7
    %v909 = vsub.s32 %v724, %v908
    %v910 = vrot.slane %v627, %v909
    %v911 = vlaneseq
    %v912 = vshrl.u32 %v911, 7
    %v913 = vsub.s32 %v729, %v912
    %v914 = vrot.slane %v628, %v913
    %v915 = vsel %vm734, %v914, %v910
    %v916 = vlaneseq
    %v917 = vshrl.u32 %v916, 7
    %v918 = vsub.s32 %v736, %v917
    %v919 = vrot.slane %v629, %v918
    %v920 = vsel %vm741, %v919, %v915
    %v921 = vlaneseq
    %v922 = vshrl.u32 %v921, 7
    %v923 = vsub.s32 %v743, %v922
    %v924 = vrot.slane %v630, %v923
    %v925 = vsel %vm748, %v924, %v920
    %v926 = vlaneseq
    %v927 = vshrl.u32 %v926, 7
    %v928 = vsub.s32 %v750, %v927
    %v929 = vrot.slane %v631, %v928
    %v930 = vsel %vm755, %v929, %v925
    %v931 = vlaneseq
    %v932 = vshrl.u32 %v931, 7
    %v933 = vsub.s32 %v757, %v932
    %v934 = vrot.slane %v632, %v933
    %v935 = vsel %vm762, %v934, %v930
    %v936 = vlaneseq
    %v937 = vshrl.u32 %v936, 7
    %v938 = vsub.s32 %v764, %v937
    %v939 = vrot.slane %v633, %v938
    %v940 = vsel %vm769, %v939, %v935
    %v941 = vlaneseq
    %v942 = vshrl.u32 %v941, 7
    %v943 = vsub.s32 %v771, %v942
    %v944 = vrot.slane %v634, %v943
    %v945 = vsel %vm776, %v944, %v940
    %v946 = vlaneseq
    %v947 = vshrl.u32 %v946, 7
    %v948 = vsub.s32 %v724, %v947
    %v949 = vrot.slane %v635, %v948
    %v950 = vlaneseq
    %v951 = vshrl.u32 %v950, 7
    %v952 = vsub.s32 %v729, %v951
    %v953 = vrot.slane %v636, %v952
    %v954 = vsel %vm734, %v953, %v949
    %v955 = vlaneseq
    %v956 = vshrl.u32 %v955, 7
    %v957 = vsub.s32 %v736, %v956
    %v958 = vrot.slane %v637, %v957
    %v959 = vsel %vm741, %v958, %v954
    %v960 = vlaneseq
    %v961 = vshrl.u32 %v960, 7
    %v962 = vsub.s32 %v743, %v961
    %v963 = vrot.slane %v638, %v962
    %v964 = vsel %vm748, %v963, %v959
    %v965 = vlaneseq
    %v966 = vshrl.u32 %v965, 7
    %v967 = vsub.s32 %v750, %v966
    %v968 = vrot.slane %v639, %v967
    %v969 = vsel %vm755, %v968, %v964
    %v970 = vlaneseq
    %v971 = vshrl.u32 %v970, 7
    %v972 = vsub.s32 %v757, %v971
    %v973 = vrot.slane %v640, %v972
    %v974 = vsel %vm762, %v973, %v969
    %v975 = vlaneseq
    %v976 = vshrl.u32 %v975, 7
    %v977 = vsub.s32 %v764, %v976
    %v978 = vrot.slane %v641, %v977
    %v979 = vsel %vm769, %v978, %v974
    %v980 = vlaneseq
    %v981 = vshrl.u32 %v980, 7
    %v982 = vsub.s32 %v771, %v981
    %v983 = vrot.slane %v642, %v982
    %v984 = vsel %vm776, %v983, %v979
    %v985 = vsel %vm293, %v984, %v945
    %v986 = vsel %vm818, %v985, 0
    %988 = vmatprep.subr.mxu0 0.0
    %989 = vmatpush1.msra.mxu0 %v691
    %990 = vmatprep.subr.mxu0 0.0
    %991 = vmatpush1.msra.mxu0 %v692
    %992 = vmatprep.subr.mxu0 0.0
    %993 = vmatpush1.msra.mxu0 %v693
    %994 = vmatprep.subr.mxu0 0.0
    %995 = vmatpush1.msra.mxu0 %v694
    %996 = vmatprep.subr.mxu0 0.0
    %997 = vmatpush1.msra.mxu0 %v695
    %998 = vmatprep.subr.mxu0 0.0
    %999 = vmatpush1.msra.mxu0 %v696
    %1000 = vmatprep.subr.mxu0 0.0
    %1001 = vmatpush1.msra.mxu0 %v697
    %1002 = vmatprep.subr.mxu0 0.0
    %1003 = vmatpush1.msra.mxu0 %v698
    %1004 = vmatprep.subr.mxu0 0.0
    %1005 = vmatpush1.msra.mxu0 0.0
    %1006 = vmatprep.subr.mxu0 0.0
    %1007 = vmatpush1.msra.mxu0 0.0
    %1008 = vmatprep.subr.mxu0 0.0
    %1009 = vmatpush1.msra.mxu0 0.0
    %1010 = vmatprep.subr.mxu0 0.0
    %1011 = vmatpush1.msra.mxu0 0.0
    %1012 = vmatprep.subr.mxu0 0.0
    %1013 = vmatpush1.msra.mxu0 0.0
    %1014 = vmatprep.subr.mxu0 0.0
    %1015 = vmatpush1.msra.mxu0 0.0
    %1016 = vmatprep.subr.mxu0 0.0
    %1017 = vmatpush1.msra.mxu0 0.0
    %1018 = vmatprep.subr.mxu0 0.0
    %1019 = vmatpush1.msra.mxu0 0.0
    %1020 = vmatprep.subr.mxu0 0.0
    %1021 = vmatpush1.msra.mxu0 0.0
    %1022 = vmatprep.subr.mxu0 0.0
    %1023 = vmatpush1.msra.mxu0 0.0
    %1024 = vmatprep.subr.mxu0 0.0
    %1025 = vmatpush1.msra.mxu0 0.0
    %1026 = vmatprep.subr.mxu0 0.0
    %1027 = vmatpush1.msra.mxu0 0.0
    %1028 = vmatprep.subr.mxu0 0.0
    %1029 = vmatpush1.msra.mxu0 0.0
    %1030 = vmatprep.subr.mxu0 0.0
    %1031 = vmatpush1.msra.mxu0 0.0
    %1032 = vmatprep.subr.mxu0 0.0
    %1033 = vmatpush1.msra.mxu0 0.0
    %1034 = vmatprep.subr.mxu0 0.0
    %1035 = vmatpush1.msra.mxu0 0.0
    %1036 = vmatprep.subr.mxu0 0.0
    %1037 = vmatpush1.msra.mxu0 0.0
    %1038 = vmatprep.subr.mxu0 0.0
    %1039 = vmatpush1.msra.mxu0 0.0
    %1040 = vmatprep.subr.mxu0 0.0
    %1041 = vmatpush1.msra.mxu0 0.0
    %1042 = vmatprep.subr.mxu0 0.0
    %1043 = vmatpush1.msra.mxu0 0.0
    %1044 = vmatprep.subr.mxu0 0.0
    %1045 = vmatpush1.msra.mxu0 0.0
    %1046 = vmatprep.subr.mxu0 0.0
    %1047 = vmatpush1.msra.mxu0 0.0
    %1048 = vmatprep.subr.mxu0 0.0
    %1049 = vmatpush1.msra.mxu0 0.0
    %1050 = vmatprep.subr.mxu0 0.0
    %1051 = vmatpush1.msra.mxu0 0.0
    %1052 = vmatprep.mubr.f32.mxu0 0.0
    %1053 = vmatmul.mubr.f32.gmra.mrb[0].mxu0 %v986
    %v1054 = vpop.f32.mrb[0].mxu0
    %v1055 = vadd.f32 %v888, %v1054
    %v1056 = vpop.f32.mrb[0].mxu0
    %1057 = vdwg.mxu0
    %v1058 = vsub.f32 0.0, %v1055
    %v1059 = vmul.f32 %v1058, 1.442695
    %v1060 = vpow.pop %v1059
    %v1061 = vadd.f32 %v1060, 1.0
    %v1062 = vrcp.pop %v1061
    %v1063 = vmul.f32 1.0, %v1062
    %v1064 = vlaneseq
    %v1065 = vshrl.u32 %v1064, 7
    %v1066 = vsub.s32 0, %v1065
    %v1067 = vrot.slane %v1063, %v1066
    %1069 = vbcast.lane.b32.xlu0 %v1067, 256
    %v1070 = vpop.permute.xlu0 %1069
    %s1072 = sor.u32 256, 8
    %1073 = vbcast.lane.b32.xlu0 %v1067, %s1072
    %v1074 = vpop.permute.xlu0 %1073
    %s1076 = sor.u32 256, 16
    %1077 = vbcast.lane.b32.xlu0 %v1067, %s1076
    %v1078 = vpop.permute.xlu0 %1077
    %s1080 = sor.u32 256, 24
    %1081 = vbcast.lane.b32.xlu0 %v1067, %s1080
    %v1082 = vpop.permute.xlu0 %1081
    %s1084 = sor.u32 256, 32
    %1085 = vbcast.lane.b32.xlu0 %v1067, %s1084
    %v1086 = vpop.permute.xlu0 %1085
    %s1088 = sor.u32 256, 40
    %1089 = vbcast.lane.b32.xlu0 %v1067, %s1088
    %v1090 = vpop.permute.xlu0 %1089
    %s1092 = sor.u32 256, 48
    %1093 = vbcast.lane.b32.xlu0 %v1067, %s1092
    %v1094 = vpop.permute.xlu0 %1093
    %s1096 = sor.u32 256, 56
    %1097 = vbcast.lane.b32.xlu0 %v1067, %s1096
    %v1098 = vpop.permute.xlu0 %1097
    %v1099 = vlaneseq
    %v1100 = vshrl.u32 %v1099, 7
    %v1101 = vsub.s32 1, %v1100
    %v1102 = vrot.slane %v1063, %v1101
    %1104 = vbcast.lane.b32.xlu0 %v1102, 256
    %v1105 = vpop.permute.xlu0 %1104
    %s1107 = sor.u32 256, 8
    %1108 = vbcast.lane.b32.xlu0 %v1102, %s1107
    %v1109 = vpop.permute.xlu0 %1108
    %s1111 = sor.u32 256, 16
    %1112 = vbcast.lane.b32.xlu0 %v1102, %s1111
    %v1113 = vpop.permute.xlu0 %1112
    %s1115 = sor.u32 256, 24
    %1116 = vbcast.lane.b32.xlu0 %v1102, %s1115
    %v1117 = vpop.permute.xlu0 %1116
    %s1119 = sor.u32 256, 32
    %1120 = vbcast.lane.b32.xlu0 %v1102, %s1119
    %v1121 = vpop.permute.xlu0 %1120
    %s1123 = sor.u32 256, 40
    %1124 = vbcast.lane.b32.xlu0 %v1102, %s1123
    %v1125 = vpop.permute.xlu0 %1124
    %s1127 = sor.u32 256, 48
    %1128 = vbcast.lane.b32.xlu0 %v1102, %s1127
    %v1129 = vpop.permute.xlu0 %1128
    %s1131 = sor.u32 256, 56
    %1132 = vbcast.lane.b32.xlu0 %v1102, %s1131
    %v1133 = vpop.permute.xlu0 %1132
    %v1134 = vmul.f32 %v563, %v1070
    %v1135 = vmul.f32 %v564, %v1074
    %v1136 = vmul.f32 %v565, %v1078
    %v1137 = vmul.f32 %v566, %v1082
    %v1138 = vmul.f32 %v567, %v1086
    %v1139 = vmul.f32 %v568, %v1090
    %v1140 = vmul.f32 %v569, %v1094
    %v1141 = vmul.f32 %v570, %v1098
    %v1142 = vmul.f32 %v571, %v1105
    %v1143 = vmul.f32 %v572, %v1109
    %v1144 = vmul.f32 %v573, %v1113
    %v1145 = vmul.f32 %v574, %v1117
    %v1146 = vmul.f32 %v575, %v1121
    %v1147 = vmul.f32 %v576, %v1125
    %v1148 = vmul.f32 %v577, %v1129
    %v1149 = vmul.f32 %v578, %v1133
    %v1150 = vsel %vm200, %v1134, 0.0
    %v1151 = vsel %vm200, %v1135, 0.0
    %v1152 = vadd.f32 %v1150, %v1151
    %v1153 = vsel %vm200, %v1136, 0.0
    %v1154 = vadd.f32 %v1152, %v1153
    %v1155 = vsel %vm200, %v1137, 0.0
    %v1156 = vadd.f32 %v1154, %v1155
    %v1157 = vsel %vm200, %v1138, 0.0
    %v1158 = vadd.f32 %v1156, %v1157
    %v1159 = vsel %vm200, %v1139, 0.0
    %v1160 = vadd.f32 %v1158, %v1159
    %v1161 = vsel %vm200, %v1140, 0.0
    %v1162 = vadd.f32 %v1160, %v1161
    %v1163 = vsel %vm200, %v1141, 0.0
    %v1164 = vadd.f32 %v1162, %v1163
    %v1165 = vrot.slane %v1164, 4
    %v1166 = vadd.f32 %v1164, %v1165
    %v1167 = vrot.slane %v1166, 2
    %v1168 = vadd.f32 %v1166, %v1167
    %v1169 = vrot.slane %v1168, 1
    %v1170 = vadd.f32 %v1168, %v1169
    %v1171 = vsel %vm200, %v1142, 0.0
    %v1172 = vsel %vm200, %v1143, 0.0
    %v1173 = vadd.f32 %v1171, %v1172
    %v1174 = vsel %vm200, %v1144, 0.0
    %v1175 = vadd.f32 %v1173, %v1174
    %v1176 = vsel %vm200, %v1145, 0.0
    %v1177 = vadd.f32 %v1175, %v1176
    %v1178 = vsel %vm200, %v1146, 0.0
    %v1179 = vadd.f32 %v1177, %v1178
    %v1180 = vsel %vm200, %v1147, 0.0
    %v1181 = vadd.f32 %v1179, %v1180
    %v1182 = vsel %vm200, %v1148, 0.0
    %v1183 = vadd.f32 %v1181, %v1182
    %v1184 = vsel %vm200, %v1149, 0.0
    %v1185 = vadd.f32 %v1183, %v1184
    %v1186 = vrot.slane %v1185, 4
    %v1187 = vadd.f32 %v1185, %v1186
    %v1188 = vrot.slane %v1187, 2
    %v1189 = vadd.f32 %v1187, %v1188
    %v1190 = vrot.slane %v1189, 1
    %v1191 = vadd.f32 %v1189, %v1190
    %v1192 = vmul.f32 %v1170, 0.015625
    %v1193 = vmul.f32 %v1191, 0.015625
    %v1194 = vld [vmem:[#allocation8] sm:$0xff]
    %v1195 = vld [vmem:[#allocation8 + $0x8] sm:$0xff]
    %v1196 = vld [vmem:[#allocation8 + $0x10] sm:$0xff]
    %v1197 = vld [vmem:[#allocation8 + $0x18] sm:$0xff]
    %v1198 = vld [vmem:[#allocation8 + $0x20] sm:$0xff]
    %v1199 = vld [vmem:[#allocation8 + $0x28] sm:$0xff]
    %v1200 = vld [vmem:[#allocation8 + $0x30] sm:$0xff]
    %v1201 = vld [vmem:[#allocation8 + $0x38] sm:$0xff]
    %v1202 = vld [vmem:[#allocation8 + $0x40] sm:$0xff]
    %v1203 = vld [vmem:[#allocation8 + $0x48] sm:$0xff]
    %v1204 = vld [vmem:[#allocation8 + $0x50] sm:$0xff]
    %v1205 = vld [vmem:[#allocation8 + $0x58] sm:$0xff]
    %v1206 = vld [vmem:[#allocation8 + $0x60] sm:$0xff]
    %v1207 = vld [vmem:[#allocation8 + $0x68] sm:$0xff]
    %v1208 = vld [vmem:[#allocation8 + $0x70] sm:$0xff]
    %v1209 = vld [vmem:[#allocation8 + $0x78] sm:$0xff]
    %v1210 = vld [vmem:[#allocation8 + $0x80] sm:$0xff]
    %v1211 = vld [vmem:[#allocation8 + $0x88] sm:$0xff]
    %v1212 = vld [vmem:[#allocation8 + $0x90] sm:$0xff]
    %v1213 = vld [vmem:[#allocation8 + $0x98] sm:$0xff]
    %v1214 = vld [vmem:[#allocation8 + $0xa0] sm:$0xff]
    %v1215 = vld [vmem:[#allocation8 + $0xa8] sm:$0xff]
    %v1216 = vld [vmem:[#allocation8 + $0xb0] sm:$0xff]
    %v1217 = vld [vmem:[#allocation8 + $0xb8] sm:$0xff]
    %v1218 = vld [vmem:[#allocation8 + $0xc0] sm:$0xff]
    %v1219 = vld [vmem:[#allocation8 + $0xc8] sm:$0xff]
    %v1220 = vld [vmem:[#allocation8 + $0xd0] sm:$0xff]
    %v1221 = vld [vmem:[#allocation8 + $0xd8] sm:$0xff]
    %v1222 = vld [vmem:[#allocation8 + $0xe0] sm:$0xff]
    %v1223 = vld [vmem:[#allocation8 + $0xe8] sm:$0xff]
    %v1224 = vld [vmem:[#allocation8 + $0xf0] sm:$0xff]
    %v1225 = vld [vmem:[#allocation8 + $0xf8] sm:$0xff]
    %v1226 = vld [vmem:[#allocation8 + $0x100] sm:$0xff]
    %v1227 = vld [vmem:[#allocation8 + $0x108] sm:$0xff]
    %v1228 = vld [vmem:[#allocation8 + $0x110] sm:$0xff]
    %v1229 = vld [vmem:[#allocation8 + $0x118] sm:$0xff]
    %v1230 = vld [vmem:[#allocation8 + $0x120] sm:$0xff]
    %v1231 = vld [vmem:[#allocation8 + $0x128] sm:$0xff]
    %v1232 = vld [vmem:[#allocation8 + $0x130] sm:$0xff]
    %v1233 = vld [vmem:[#allocation8 + $0x138] sm:$0xff]
    %v1234 = vld [vmem:[#allocation8 + $0x140] sm:$0xff]
    %v1235 = vld [vmem:[#allocation8 + $0x148] sm:$0xff]
    %v1236 = vld [vmem:[#allocation8 + $0x150] sm:$0xff]
    %v1237 = vld [vmem:[#allocation8 + $0x158] sm:$0xff]
    %v1238 = vld [vmem:[#allocation8 + $0x160] sm:$0xff]
    %v1239 = vld [vmem:[#allocation8 + $0x168] sm:$0xff]
    %v1240 = vld [vmem:[#allocation8 + $0x170] sm:$0xff]
    %v1241 = vld [vmem:[#allocation8 + $0x178] sm:$0xff]
    %v1242 = vld [vmem:[#allocation8 + $0x180] sm:$0xff]
    %v1243 = vld [vmem:[#allocation8 + $0x188] sm:$0xff]
    %v1244 = vld [vmem:[#allocation8 + $0x190] sm:$0xff]
    %v1245 = vld [vmem:[#allocation8 + $0x198] sm:$0xff]
    %v1246 = vld [vmem:[#allocation8 + $0x1a0] sm:$0xff]
    %v1247 = vld [vmem:[#allocation8 + $0x1a8] sm:$0xff]
    %v1248 = vld [vmem:[#allocation8 + $0x1b0] sm:$0xff]
    %v1249 = vld [vmem:[#allocation8 + $0x1b8] sm:$0xff]
    %v1250 = vld [vmem:[#allocation8 + $0x1c0] sm:$0xff]
    %v1251 = vld [vmem:[#allocation8 + $0x1c8] sm:$0xff]
    %v1252 = vld [vmem:[#allocation8 + $0x1d0] sm:$0xff]
    %v1253 = vld [vmem:[#allocation8 + $0x1d8] sm:$0xff]
    %v1254 = vld [vmem:[#allocation8 + $0x1e0] sm:$0xff]
    %v1255 = vld [vmem:[#allocation8 + $0x1e8] sm:$0xff]
    %v1256 = vld [vmem:[#allocation8 + $0x1f0] sm:$0xff]
    %v1257 = vld [vmem:[#allocation8 + $0x1f8] sm:$0xff]
    %v1258 = vld [vmem:[#allocation10] sm:$0xff]
    %v1259 = vld [vmem:[#allocation10 + $0x8] sm:$0xff]
    %v1262 = vlaneseq
    %v1263 = vshrl.u32 %v1262, 7
    %v1264 = vsub.s32 0, %v1263
    %v1265 = vrot.slane %v1258, %v1264
    %v1266 = vlaneseq
    %v1267 = vshrl.u32 %v1266, 7
    %v1268 = vsub.s32 1, %v1267
    %v1269 = vrot.slane %v1258, %v1268
    %v1270 = vlaneseq
    %v1271 = vshrl.u32 %v1270, 7
    %v1272 = vsub.s32 2, %v1271
    %v1273 = vrot.slane %v1258, %v1272
    %v1274 = vlaneseq
    %v1275 = vshrl.u32 %v1274, 7
    %v1276 = vsub.s32 3, %v1275
    %v1277 = vrot.slane %v1258, %v1276
    %v1278 = vlaneseq
    %v1279 = vshrl.u32 %v1278, 7
    %v1280 = vsub.s32 4, %v1279
    %v1281 = vrot.slane %v1258, %v1280
    %v1282 = vlaneseq
    %v1283 = vshrl.u32 %v1282, 7
    %v1284 = vsub.s32 5, %v1283
    %v1285 = vrot.slane %v1258, %v1284
    %v1286 = vlaneseq
    %v1287 = vshrl.u32 %v1286, 7
    %v1288 = vsub.s32 6, %v1287
    %v1289 = vrot.slane %v1258, %v1288
    %v1290 = vlaneseq
    %v1291 = vshrl.u32 %v1290, 7
    %v1292 = vsub.s32 7, %v1291
    %v1293 = vrot.slane %v1258, %v1292
    %v1294 = vlaneseq
    %v1295 = vshrl.u32 %v1294, 7
    %v1296 = vsub.s32 0, %v1295
    %v1297 = vrot.slane %v1259, %v1296
    %v1298 = vlaneseq
    %v1299 = vshrl.u32 %v1298, 7
    %v1300 = vsub.s32 1, %v1299
    %v1301 = vrot.slane %v1259, %v1300
    %v1302 = vlaneseq
    %v1303 = vshrl.u32 %v1302, 7
    %v1304 = vsub.s32 2, %v1303
    %v1305 = vrot.slane %v1259, %v1304
    %v1306 = vlaneseq
    %v1307 = vshrl.u32 %v1306, 7
    %v1308 = vsub.s32 3, %v1307
    %v1309 = vrot.slane %v1259, %v1308
    %v1310 = vlaneseq
    %v1311 = vshrl.u32 %v1310, 7
    %v1312 = vsub.s32 4, %v1311
    %v1313 = vrot.slane %v1259, %v1312
    %v1314 = vlaneseq
    %v1315 = vshrl.u32 %v1314, 7
    %v1316 = vsub.s32 5, %v1315
    %v1317 = vrot.slane %v1259, %v1316
    %v1318 = vlaneseq
    %v1319 = vshrl.u32 %v1318, 7
    %v1320 = vsub.s32 6, %v1319
    %v1321 = vrot.slane %v1259, %v1320
    %v1322 = vlaneseq
    %v1323 = vshrl.u32 %v1322, 7
    %v1324 = vsub.s32 7, %v1323
    %v1325 = vrot.slane %v1259, %v1324
    %v1344 = vsel %vm293, %v1193, %v1192
    %v1345 = vsel %vm200, %v1344, 0
    %1347 = vmatprep.subr.mxu0 %v1195
    %1348 = vmatpush1.msra.mxu0 %v1194
    %1349 = vmatprep.subr.mxu0 %v1211
    %1350 = vmatpush1.msra.mxu0 %v1210
    %1351 = vmatprep.subr.mxu0 %v1227
    %1352 = vmatpush1.msra.mxu0 %v1226
    %1353 = vmatprep.subr.mxu0 %v1243
    %1354 = vmatpush1.msra.mxu0 %v1242
    %1355 = vmatprep.subr.mxu0 0.0
    %1356 = vmatpush1.msra.mxu0 0.0
    %1357 = vmatprep.subr.mxu0 0.0
    %1358 = vmatpush1.msra.mxu0 0.0
    %1359 = vmatprep.subr.mxu0 0.0
    %1360 = vmatpush1.msra.mxu0 0.0
    %1361 = vmatprep.subr.mxu0 0.0
    %1362 = vmatpush1.msra.mxu0 0.0
    %1363 = vmatprep.subr.mxu0 0.0
    %1364 = vmatpush1.msra.mxu0 0.0
    %1365 = vmatprep.subr.mxu0 0.0
    %1366 = vmatpush1.msra.mxu0 0.0
    %1367 = vmatprep.subr.mxu0 0.0
    %1368 = vmatpush1.msra.mxu0 0.0
    %1369 = vmatprep.subr.mxu0 0.0
    %1370 = vmatpush1.msra.mxu0 0.0
    %1371 = vmatprep.subr.mxu0 0.0
    %1372 = vmatpush1.msra.mxu0 0.0
    %1373 = vmatprep.subr.mxu0 0.0
    %1374 = vmatpush1.msra.mxu0 0.0
    %1375 = vmatprep.subr.mxu0 0.0
    %1376 = vmatpush1.msra.mxu0 0.0
    %1377 = vmatprep.subr.mxu0 0.0
    %1378 = vmatpush1.msra.mxu0 0.0
    %1379 = vmatprep.subr.mxu0 0.0
    %1380 = vmatpush1.msra.mxu0 0.0
    %1381 = vmatprep.subr.mxu0 0.0
    %1382 = vmatpush1.msra.mxu0 0.0
    %1383 = vmatprep.subr.mxu0 0.0
    %1384 = vmatpush1.msra.mxu0 0.0
    %1385 = vmatprep.subr.mxu0 0.0
    %1386 = vmatpush1.msra.mxu0 0.0
    %1387 = vmatprep.subr.mxu0 0.0
    %1388 = vmatpush1.msra.mxu0 0.0
    %1389 = vmatprep.subr.mxu0 0.0
    %1390 = vmatpush1.msra.mxu0 0.0
    %1391 = vmatprep.subr.mxu0 0.0
    %1392 = vmatpush1.msra.mxu0 0.0
    %1393 = vmatprep.subr.mxu0 0.0
    %1394 = vmatpush1.msra.mxu0 0.0
    %1395 = vmatprep.subr.mxu0 0.0
    %1396 = vmatpush1.msra.mxu0 0.0
    %1397 = vmatprep.subr.mxu0 0.0
    %1398 = vmatpush1.msra.mxu0 0.0
    %1399 = vmatprep.subr.mxu0 0.0
    %1400 = vmatpush1.msra.mxu0 0.0
    %1401 = vmatprep.subr.mxu0 0.0
    %1402 = vmatpush1.msra.mxu0 0.0
    %1403 = vmatprep.subr.mxu0 0.0
    %1404 = vmatpush1.msra.mxu0 0.0
    %1405 = vmatprep.subr.mxu0 0.0
    %1406 = vmatpush1.msra.mxu0 0.0
    %1407 = vmatprep.subr.mxu0 0.0
    %1408 = vmatpush1.msra.mxu0 0.0
    %1409 = vmatprep.subr.mxu0 0.0
    %1410 = vmatpush1.msra.mxu0 0.0
    %1411 = vmatprep.mubr.f32.mxu0 0.0
    %1412 = vmatmul.mubr.f32.gmra.mrb[0].mxu0 %v1345
    %v1413 = vpop.f32.mrb[0].mxu0
    %v1414 = vadd.f32 %v1265, %v1413
    %v1415 = vpop.f32.mrb[0].mxu0
    %v1416 = vadd.f32 %v1269, %v1415
    %1417 = vdwg.mxu0
    %1418 = vmatprep.subr.mxu0 %v1197
    %1419 = vmatpush1.msra.mxu0 %v1196
    %1420 = vmatprep.subr.mxu0 %v1213
    %1421 = vmatpush1.msra.mxu0 %v1212
    %1422 = vmatprep.subr.mxu0 %v1229
    %1423 = vmatpush1.msra.mxu0 %v1228
    %1424 = vmatprep.subr.mxu0 %v1245
    %1425 = vmatpush1.msra.mxu0 %v1244
    %1426 = vmatprep.subr.mxu0 0.0
    %1427 = vmatpush1.msra.mxu0 0.0
    %1428 = vmatprep.subr.mxu0 0.0
    %1429 = vmatpush1.msra.mxu0 0.0
    %1430 = vmatprep.subr.mxu0 0.0
    %1431 = vmatpush1.msra.mxu0 0.0
    %1432 = vmatprep.subr.mxu0 0.0
    %1433 = vmatpush1.msra.mxu0 0.0
    %1434 = vmatprep.subr.mxu0 0.0
    %1435 = vmatpush1.msra.mxu0 0.0
    %1436 = vmatprep.subr.mxu0 0.0
    %1437 = vmatpush1.msra.mxu0 0.0
    %1438 = vmatprep.subr.mxu0 0.0
    %1439 = vmatpush1.msra.mxu0 0.0
    %1440 = vmatprep.subr.mxu0 0.0
    %1441 = vmatpush1.msra.mxu0 0.0
    %1442 = vmatprep.subr.mxu0 0.0
    %1443 = vmatpush1.msra.mxu0 0.0
    %1444 = vmatprep.subr.mxu0 0.0
    %1445 = vmatpush1.msra.mxu0 0.0
    %1446 = vmatprep.subr.mxu0 0.0
    %1447 = vmatpush1.msra.mxu0 0.0
    %1448 = vmatprep.subr.mxu0 0.0
    %1449 = vmatpush1.msra.mxu0 0.0
    %1450 = vmatprep.subr.mxu0 0.0
    %1451 = vmatpush1.msra.mxu0 0.0
    %1452 = vmatprep.subr.mxu0 0.0
    %1453 = vmatpush1.msra.mxu0 0.0
    %1454 = vmatprep.subr.mxu0 0.0
    %1455 = vmatpush1.msra.mxu0 0.0
    %1456 = vmatprep.subr.mxu0 0.0
    %1457 = vmatpush1.msra.mxu0 0.0
    %1458 = vmatprep.subr.mxu0 0.0
    %1459 = vmatpush1.msra.mxu0 0.0
    %1460 = vmatprep.subr.mxu0 0.0
    %1461 = vmatpush1.msra.mxu0 0.0
    %1462 = vmatprep.subr.mxu0 0.0
    %1463 = vmatpush1.msra.mxu0 0.0
    %1464 = vmatprep.subr.mxu0 0.0
    %1465 = vmatpush1.msra.mxu0 0.0
    %1466 = vmatprep.subr.mxu0 0.0
    %1467 = vmatpush1.msra.mxu0 0.0
    %1468 = vmatprep.subr.mxu0 0.0
    %1469 = vmatpush1.msra.mxu0 0.0
    %1470 = vmatprep.subr.mxu0 0.0
    %1471 = vmatpush1.msra.mxu0 0.0
    %1472 = vmatprep.subr.mxu0 0.0
    %1473 = vmatpush1.msra.mxu0 0.0
    %1474 = vmatprep.subr.mxu0 0.0
    %1475 = vmatpush1.msra.mxu0 0.0
    %1476 = vmatprep.subr.mxu0 0.0
    %1477 = vmatpush1.msra.mxu0 0.0
    %1478 = vmatprep.subr.mxu0 0.0
    %1479 = vmatpush1.msra.mxu0 0.0
    %1480 = vmatprep.subr.mxu0 0.0
    %1481 = vmatpush1.msra.mxu0 0.0
    %1482 = vmatprep.mubr.f32.mxu0 0.0
    %1483 = vmatmul.mubr.f32.gmra.mrb[0].mxu0 %v1345
    %v1484 = vpop.f32.mrb[0].mxu0
    %v1485 = vadd.f32 %v1273, %v1484
    %v1486 = vpop.f32.mrb[0].mxu0
    %v1487 = vadd.f32 %v1277, %v1486
    %1488 = vdwg.mxu0
    %1489 = vmatprep.subr.mxu0 %v1199
    %1490 = vmatpush1.msra.mxu0 %v1198
    %1491 = vmatprep.subr.mxu0 %v1215
    %1492 = vmatpush1.msra.mxu0 %v1214
    %1493 = vmatprep.subr.mxu0 %v1231
    %1494 = vmatpush1.msra.mxu0 %v1230
    %1495 = vmatprep.subr.mxu0 %v1247
    %1496 = vmatpush1.msra.mxu0 %v1246
    %1497 = vmatprep.subr.mxu0 0.0
    %1498 = vmatpush1.msra.mxu0 0.0
    %1499 = vmatprep.subr.mxu0 0.0
    %1500 = vmatpush1.msra.mxu0 0.0
    %1501 = vmatprep.subr.mxu0 0.0
    %1502 = vmatpush1.msra.mxu0 0.0
    %1503 = vmatprep.subr.mxu0 0.0
    %1504 = vmatpush1.msra.mxu0 0.0
    %1505 = vmatprep.subr.mxu0 0.0
    %1506 = vmatpush1.msra.mxu0 0.0
    %1507 = vmatprep.subr.mxu0 0.0
    %1508 = vmatpush1.msra.mxu0 0.0
    %1509 = vmatprep.subr.mxu0 0.0
    %1510 = vmatpush1.msra.mxu0 0.0
    %1511 = vmatprep.subr.mxu0 0.0
    %1512 = vmatpush1.msra.mxu0 0.0
    %1513 = vmatprep.subr.mxu0 0.0
    %1514 = vmatpush1.msra.mxu0 0.0
    %1515 = vmatprep.subr.mxu0 0.0
    %1516 = vmatpush1.msra.mxu0 0.0
    %1517 = vmatprep.subr.mxu0 0.0
    %1518 = vmatpush1.msra.mxu0 0.0
    %1519 = vmatprep.subr.mxu0 0.0
    %1520 = vmatpush1.msra.mxu0 0.0
    %1521 = vmatprep.subr.mxu0 0.0
    %1522 = vmatpush1.msra.mxu0 0.0
    %1523 = vmatprep.subr.mxu0 0.0
    %1524 = vmatpush1.msra.mxu0 0.0
    %1525 = vmatprep.subr.mxu0 0.0
    %1526 = vmatpush1.msra.mxu0 0.0
    %1527 = vmatprep.subr.mxu0 0.0
    %1528 = vmatpush1.msra.mxu0 0.0
    %1529 = vmatprep.subr.mxu0 0.0
    %1530 = vmatpush1.msra.mxu0 0.0
    %1531 = vmatprep.subr.mxu0 0.0
    %1532 = vmatpush1.msra.mxu0 0.0
    %1533 = vmatprep.subr.mxu0 0.0
    %1534 = vmatpush1.msra.mxu0 0.0
    %1535 = vmatprep.subr.mxu0 0.0
    %1536 = vmatpush1.msra.mxu0 0.0
    %1537 = vmatprep.subr.mxu0 0.0
    %1538 = vmatpush1.msra.mxu0 0.0
    %1539 = vmatprep.subr.mxu0 0.0
    %1540 = vmatpush1.msra.mxu0 0.0
    %1541 = vmatprep.subr.mxu0 0.0
    %1542 = vmatpush1.msra.mxu0 0.0
    %1543 = vmatprep.subr.mxu0 0.0
    %1544 = vmatpush1.msra.mxu0 0.0
    %1545 = vmatprep.subr.mxu0 0.0
    %1546 = vmatpush1.msra.mxu0 0.0
    %1547 = vmatprep.subr.mxu0 0.0
    %1548 = vmatpush1.msra.mxu0 0.0
    %1549 = vmatprep.subr.mxu0 0.0
    %1550 = vmatpush1.msra.mxu0 0.0
    %1551 = vmatprep.subr.mxu0 0.0
    %1552 = vmatpush1.msra.mxu0 0.0
    %1553 = vmatprep.mubr.f32.mxu0 0.0
    %1554 = vmatmul.mubr.f32.gmra.mrb[0].mxu0 %v1345
    %v1555 = vpop.f32.mrb[0].mxu0
    %v1556 = vadd.f32 %v1281, %v1555
    %v1557 = vpop.f32.mrb[0].mxu0
    %v1558 = vadd.f32 %v1285, %v1557
    %1559 = vdwg.mxu0
    %1560 = vmatprep.subr.mxu0 %v1201
    %1561 = vmatpush1.msra.mxu0 %v1200
    %1562 = vmatprep.subr.mxu0 %v1217
    %1563 = vmatpush1.msra.mxu0 %v1216
    %1564 = vmatprep.subr.mxu0 %v1233
    %1565 = vmatpush1.msra.mxu0 %v1232
    %1566 = vmatprep.subr.mxu0 %v1249
    %1567 = vmatpush1.msra.mxu0 %v1248
    %1568 = vmatprep.subr.mxu0 0.0
    %1569 = vmatpush1.msra.mxu0 0.0
    %1570 = vmatprep.subr.mxu0 0.0
    %1571 = vmatpush1.msra.mxu0 0.0
    %1572 = vmatprep.subr.mxu0 0.0
    %1573 = vmatpush1.msra.mxu0 0.0
    %1574 = vmatprep.subr.mxu0 0.0
    %1575 = vmatpush1.msra.mxu0 0.0
    %1576 = vmatprep.subr.mxu0 0.0
    %1577 = vmatpush1.msra.mxu0 0.0
    %1578 = vmatprep.subr.mxu0 0.0
    %1579 = vmatpush1.msra.mxu0 0.0
    %1580 = vmatprep.subr.mxu0 0.0
    %1581 = vmatpush1.msra.mxu0 0.0
    %1582 = vmatprep.subr.mxu0 0.0
    %1583 = vmatpush1.msra.mxu0 0.0
    %1584 = vmatprep.subr.mxu0 0.0
    %1585 = vmatpush1.msra.mxu0 0.0
    %1586 = vmatprep.subr.mxu0 0.0
    %1587 = vmatpush1.msra.mxu0 0.0
    %1588 = vmatprep.subr.mxu0 0.0
    %1589 = vmatpush1.msra.mxu0 0.0
    %1590 = vmatprep.subr.mxu0 0.0
    %1591 = vmatpush1.msra.mxu0 0.0
    %1592 = vmatprep.subr.mxu0 0.0
    %1593 = vmatpush1.msra.mxu0 0.0
    %1594 = vmatprep.subr.mxu0 0.0
    %1595 = vmatpush1.msra.mxu0 0.0
    %1596 = vmatprep.subr.mxu0 0.0
    %1597 = vmatpush1.msra.mxu0 0.0
    %1598 = vmatprep.subr.mxu0 0.0
    %1599 = vmatpush1.msra.mxu0 0.0
    %1600 = vmatprep.subr.mxu0 0.0
    %1601 = vmatpush1.msra.mxu0 0.0
    %1602 = vmatprep.subr.mxu0 0.0
    %1603 = vmatpush1.msra.mxu0 0.0
    %1604 = vmatprep.subr.mxu0 0.0
    %1605 = vmatpush1.msra.mxu0 0.0
    %1606 = vmatprep.subr.mxu0 0.0
    %1607 = vmatpush1.msra.mxu0 0.0
    %1608 = vmatprep.subr.mxu0 0.0
    %1609 = vmatpush1.msra.mxu0 0.0
    %1610 = vmatprep.subr.mxu0 0.0
    %1611 = vmatpush1.msra.mxu0 0.0
    %1612 = vmatprep.subr.mxu0 0.0
    %1613 = vmatpush1.msra.mxu0 0.0
    %1614 = vmatprep.subr.mxu0 0.0
    %1615 = vmatpush1.msra.mxu0 0.0
    %1616 = vmatprep.subr.mxu0 0.0
    %1617 = vmatpush1.msra.mxu0 0.0
    %1618 = vmatprep.subr.mxu0 0.0
    %1619 = vmatpush1.msra.mxu0 0.0
    %1620 = vmatprep.subr.mxu0 0.0
    %1621 = vmatpush1.msra.mxu0 0.0
    %1622 = vmatprep.subr.mxu0 0.0
    %1623 = vmatpush1.msra.mxu0 0.0
    %1624 = vmatprep.mubr.f32.mxu0 0.0
    %1625 = vmatmul.mubr.f32.gmra.mrb[0].mxu0 %v1345
    %v1626 = vpop.f32.mrb[0].mxu0
    %v1627 = vadd.f32 %v1289, %v1626
    %v1628 = vpop.f32.mrb[0].mxu0
    %v1629 = vadd.f32 %v1293, %v1628
    %1630 = vdwg.mxu0
    %1631 = vmatprep.subr.mxu0 %v1203
    %1632 = vmatpush1.msra.mxu0 %v1202
    %1633 = vmatprep.subr.mxu0 %v1219
    %1634 = vmatpush1.msra.mxu0 %v1218
    %1635 = vmatprep.subr.mxu0 %v1235
    %1636 = vmatpush1.msra.mxu0 %v1234
    %1637 = vmatprep.subr.mxu0 %v1251
    %1638 = vmatpush1.msra.mxu0 %v1250
    %1639 = vmatprep.subr.mxu0 0.0
    %1640 = vmatpush1.msra.mxu0 0.0
    %1641 = vmatprep.subr.mxu0 0.0
    %1642 = vmatpush1.msra.mxu0 0.0
    %1643 = vmatprep.subr.mxu0 0.0
    %1644 = vmatpush1.msra.mxu0 0.0
    %1645 = vmatprep.subr.mxu0 0.0
    %1646 = vmatpush1.msra.mxu0 0.0
    %1647 = vmatprep.subr.mxu0 0.0
    %1648 = vmatpush1.msra.mxu0 0.0
    %1649 = vmatprep.subr.mxu0 0.0
    %1650 = vmatpush1.msra.mxu0 0.0
    %1651 = vmatprep.subr.mxu0 0.0
    %1652 = vmatpush1.msra.mxu0 0.0
    %1653 = vmatprep.subr.mxu0 0.0
    %1654 = vmatpush1.msra.mxu0 0.0
    %1655 = vmatprep.subr.mxu0 0.0
    %1656 = vmatpush1.msra.mxu0 0.0
    %1657 = vmatprep.subr.mxu0 0.0
    %1658 = vmatpush1.msra.mxu0 0.0
    %1659 = vmatprep.subr.mxu0 0.0
    %1660 = vmatpush1.msra.mxu0 0.0
    %1661 = vmatprep.subr.mxu0 0.0
    %1662 = vmatpush1.msra.mxu0 0.0
    %1663 = vmatprep.subr.mxu0 0.0
    %1664 = vmatpush1.msra.mxu0 0.0
    %1665 = vmatprep.subr.mxu0 0.0
    %1666 = vmatpush1.msra.mxu0 0.0
    %1667 = vmatprep.subr.mxu0 0.0
    %1668 = vmatpush1.msra.mxu0 0.0
    %1669 = vmatprep.subr.mxu0 0.0
    %1670 = vmatpush1.msra.mxu0 0.0
    %1671 = vmatprep.subr.mxu0 0.0
    %1672 = vmatpush1.msra.mxu0 0.0
    %1673 = vmatprep.subr.mxu0 0.0
    %1674 = vmatpush1.msra.mxu0 0.0
    %1675 = vmatprep.subr.mxu0 0.0
    %1676 = vmatpush1.msra.mxu0 0.0
    %1677 = vmatprep.subr.mxu0 0.0
    %1678 = vmatpush1.msra.mxu0 0.0
    %1679 = vmatprep.subr.mxu0 0.0
    %1680 = vmatpush1.msra.mxu0 0.0
    %1681 = vmatprep.subr.mxu0 0.0
    %1682 = vmatpush1.msra.mxu0 0.0
    %1683 = vmatprep.subr.mxu0 0.0
    %1684 = vmatpush1.msra.mxu0 0.0
    %1685 = vmatprep.subr.mxu0 0.0
    %1686 = vmatpush1.msra.mxu0 0.0
    %1687 = vmatprep.subr.mxu0 0.0
    %1688 = vmatpush1.msra.mxu0 0.0
    %1689 = vmatprep.subr.mxu0 0.0
    %1690 = vmatpush1.msra.mxu0 0.0
    %1691 = vmatprep.subr.mxu0 0.0
    %1692 = vmatpush1.msra.mxu0 0.0
    %1693 = vmatprep.subr.mxu0 0.0
    %1694 = vmatpush1.msra.mxu0 0.0
    %1695 = vmatprep.mubr.f32.mxu0 0.0
    %1696 = vmatmul.mubr.f32.gmra.mrb[0].mxu0 %v1345
    %v1697 = vpop.f32.mrb[0].mxu0
    %v1698 = vadd.f32 %v1297, %v1697
    %v1699 = vpop.f32.mrb[0].mxu0
    %v1700 = vadd.f32 %v1301, %v1699
    %1701 = vdwg.mxu0
    %1702 = vmatprep.subr.mxu0 %v1205
    %1703 = vmatpush1.msra.mxu0 %v1204
    %1704 = vmatprep.subr.mxu0 %v1221
    %1705 = vmatpush1.msra.mxu0 %v1220
    %1706 = vmatprep.subr.mxu0 %v1237
    %1707 = vmatpush1.msra.mxu0 %v1236
    %1708 = vmatprep.subr.mxu0 %v1253
    %1709 = vmatpush1.msra.mxu0 %v1252
    %1710 = vmatprep.subr.mxu0 0.0
    %1711 = vmatpush1.msra.mxu0 0.0
    %1712 = vmatprep.subr.mxu0 0.0
    %1713 = vmatpush1.msra.mxu0 0.0
    %1714 = vmatprep.subr.mxu0 0.0
    %1715 = vmatpush1.msra.mxu0 0.0
    %1716 = vmatprep.subr.mxu0 0.0
    %1717 = vmatpush1.msra.mxu0 0.0
    %1718 = vmatprep.subr.mxu0 0.0
    %1719 = vmatpush1.msra.mxu0 0.0
    %1720 = vmatprep.subr.mxu0 0.0
    %1721 = vmatpush1.msra.mxu0 0.0
    %1722 = vmatprep.subr.mxu0 0.0
    %1723 = vmatpush1.msra.mxu0 0.0
    %1724 = vmatprep.subr.mxu0 0.0
    %1725 = vmatpush1.msra.mxu0 0.0
    %1726 = vmatprep.subr.mxu0 0.0
    %1727 = vmatpush1.msra.mxu0 0.0
    %1728 = vmatprep.subr.mxu0 0.0
    %1729 = vmatpush1.msra.mxu0 0.0
    %1730 = vmatprep.subr.mxu0 0.0
    %1731 = vmatpush1.msra.mxu0 0.0
    %1732 = vmatprep.subr.mxu0 0.0
    %1733 = vmatpush1.msra.mxu0 0.0
    %1734 = vmatprep.subr.mxu0 0.0
    %1735 = vmatpush1.msra.mxu0 0.0
    %1736 = vmatprep.subr.mxu0 0.0
    %1737 = vmatpush1.msra.mxu0 0.0
    %1738 = vmatprep.subr.mxu0 0.0
    %1739 = vmatpush1.msra.mxu0 0.0
    %1740 = vmatprep.subr.mxu0 0.0
    %1741 = vmatpush1.msra.mxu0 0.0
    %1742 = vmatprep.subr.mxu0 0.0
    %1743 = vmatpush1.msra.mxu0 0.0
    %1744 = vmatprep.subr.mxu0 0.0
    %1745 = vmatpush1.msra.mxu0 0.0
    %1746 = vmatprep.subr.mxu0 0.0
    %1747 = vmatpush1.msra.mxu0 0.0
    %1748 = vmatprep.subr.mxu0 0.0
    %1749 = vmatpush1.msra.mxu0 0.0
    %1750 = vmatprep.subr.mxu0 0.0
    %1751 = vmatpush1.msra.mxu0 0.0
    %1752 = vmatprep.subr.mxu0 0.0
    %1753 = vmatpush1.msra.mxu0 0.0
    %1754 = vmatprep.subr.mxu0 0.0
    %1755 = vmatpush1.msra.mxu0 0.0
    %1756 = vmatprep.subr.mxu0 0.0
    %1757 = vmatpush1.msra.mxu0 0.0
    %1758 = vmatprep.subr.mxu0 0.0
    %1759 = vmatpush1.msra.mxu0 0.0
    %1760 = vmatprep.subr.mxu0 0.0
    %1761 = vmatpush1.msra.mxu0 0.0
    %1762 = vmatprep.subr.mxu0 0.0
    %1763 = vmatpush1.msra.mxu0 0.0
    %1764 = vmatprep.subr.mxu0 0.0
    %1765 = vmatpush1.msra.mxu0 0.0
    %1766 = vmatprep.mubr.f32.mxu0 0.0
    %1767 = vmatmul.mubr.f32.gmra.mrb[0].mxu0 %v1345
    %v1768 = vpop.f32.mrb[0].mxu0
    %v1769 = vadd.f32 %v1305, %v1768
    %v1770 = vpop.f32.mrb[0].mxu0
    %v1771 = vadd.f32 %v1309, %v1770
    %1772 = vdwg.mxu0
    %1773 = vmatprep.subr.mxu0 %v1207
    %1774 = vmatpush1.msra.mxu0 %v1206
    %1775 = vmatprep.subr.mxu0 %v1223
    %1776 = vmatpush1.msra.mxu0 %v1222
    %1777 = vmatprep.subr.mxu0 %v1239
    %1778 = vmatpush1.msra.mxu0 %v1238
    %1779 = vmatprep.subr.mxu0 %v1255
    %1780 = vmatpush1.msra.mxu0 %v1254
    %1781 = vmatprep.subr.mxu0 0.0
    %1782 = vmatpush1.msra.mxu0 0.0
    %1783 = vmatprep.subr.mxu0 0.0
    %1784 = vmatpush1.msra.mxu0 0.0
    %1785 = vmatprep.subr.mxu0 0.0
    %1786 = vmatpush1.msra.mxu0 0.0
    %1787 = vmatprep.subr.mxu0 0.0
    %1788 = vmatpush1.msra.mxu0 0.0
    %1789 = vmatprep.subr.mxu0 0.0
    %1790 = vmatpush1.msra.mxu0 0.0
    %1791 = vmatprep.subr.mxu0 0.0
    %1792 = vmatpush1.msra.mxu0 0.0
    %1793 = vmatprep.subr.mxu0 0.0
    %1794 = vmatpush1.msra.mxu0 0.0
    %1795 = vmatprep.subr.mxu0 0.0
    %1796 = vmatpush1.msra.mxu0 0.0
    %1797 = vmatprep.subr.mxu0 0.0
    %1798 = vmatpush1.msra.mxu0 0.0
    %1799 = vmatprep.subr.mxu0 0.0
    %1800 = vmatpush1.msra.mxu0 0.0
    %1801 = vmatprep.subr.mxu0 0.0
    %1802 = vmatpush1.msra.mxu0 0.0
    %1803 = vmatprep.subr.mxu0 0.0
    %1804 = vmatpush1.msra.mxu0 0.0
    %1805 = vmatprep.subr.mxu0 0.0
    %1806 = vmatpush1.msra.mxu0 0.0
    %1807 = vmatprep.subr.mxu0 0.0
    %1808 = vmatpush1.msra.mxu0 0.0
    %1809 = vmatprep.subr.mxu0 0.0
    %1810 = vmatpush1.msra.mxu0 0.0
    %1811 = vmatprep.subr.mxu0 0.0
    %1812 = vmatpush1.msra.mxu0 0.0
    %1813 = vmatprep.subr.mxu0 0.0
    %1814 = vmatpush1.msra.mxu0 0.0
    %1815 = vmatprep.subr.mxu0 0.0
    %1816 = vmatpush1.msra.mxu0 0.0
    %1817 = vmatprep.subr.mxu0 0.0
    %1818 = vmatpush1.msra.mxu0 0.0
    %1819 = vmatprep.subr.mxu0 0.0
    %1820 = vmatpush1.msra.mxu0 0.0
    %1821 = vmatprep.subr.mxu0 0.0
    %1822 = vmatpush1.msra.mxu0 0.0
    %1823 = vmatprep.subr.mxu0 0.0
    %1824 = vmatpush1.msra.mxu0 0.0
    %1825 = vmatprep.subr.mxu0 0.0
    %1826 = vmatpush1.msra.mxu0 0.0
    %1827 = vmatprep.subr.mxu0 0.0
    %1828 = vmatpush1.msra.mxu0 0.0
    %1829 = vmatprep.subr.mxu0 0.0
    %1830 = vmatpush1.msra.mxu0 0.0
    %1831 = vmatprep.subr.mxu0 0.0
    %1832 = vmatpush1.msra.mxu0 0.0
    %1833 = vmatprep.subr.mxu0 0.0
    %1834 = vmatpush1.msra.mxu0 0.0
    %1835 = vmatprep.subr.mxu0 0.0
    %1836 = vmatpush1.msra.mxu0 0.0
    %1837 = vmatprep.mubr.f32.mxu0 0.0
    %1838 = vmatmul.mubr.f32.gmra.mrb[0].mxu0 %v1345
    %v1839 = vpop.f32.mrb[0].mxu0
    %v1840 = vadd.f32 %v1313, %v1839
    %v1841 = vpop.f32.mrb[0].mxu0
    %v1842 = vadd.f32 %v1317, %v1841
    %1843 = vdwg.mxu0
    %1844 = vmatprep.subr.mxu0 %v1209
    %1845 = vmatpush1.msra.mxu0 %v1208
    %1846 = vmatprep.subr.mxu0 %v1225
    %1847 = vmatpush1.msra.mxu0 %v1224
    %1848 = vmatprep.subr.mxu0 %v1241
    %1849 = vmatpush1.msra.mxu0 %v1240
    %1850 = vmatprep.subr.mxu0 %v1257
    %1851 = vmatpush1.msra.mxu0 %v1256
    %1852 = vmatprep.subr.mxu0 0.0
    %1853 = vmatpush1.msra.mxu0 0.0
    %1854 = vmatprep.subr.mxu0 0.0
    %1855 = vmatpush1.msra.mxu0 0.0
    %1856 = vmatprep.subr.mxu0 0.0
    %1857 = vmatpush1.msra.mxu0 0.0
    %1858 = vmatprep.subr.mxu0 0.0
    %1859 = vmatpush1.msra.mxu0 0.0
    %1860 = vmatprep.subr.mxu0 0.0
    %1861 = vmatpush1.msra.mxu0 0.0
    %1862 = vmatprep.subr.mxu0 0.0
    %1863 = vmatpush1.msra.mxu0 0.0
    %1864 = vmatprep.subr.mxu0 0.0
    %1865 = vmatpush1.msra.mxu0 0.0
    %1866 = vmatprep.subr.mxu0 0.0
    %1867 = vmatpush1.msra.mxu0 0.0
    %1868 = vmatprep.subr.mxu0 0.0
    %1869 = vmatpush1.msra.mxu0 0.0
    %1870 = vmatprep.subr.mxu0 0.0
    %1871 = vmatpush1.msra.mxu0 0.0
    %1872 = vmatprep.subr.mxu0 0.0
    %1873 = vmatpush1.msra.mxu0 0.0
    %1874 = vmatprep.subr.mxu0 0.0
    %1875 = vmatpush1.msra.mxu0 0.0
    %1876 = vmatprep.subr.mxu0 0.0
    %1877 = vmatpush1.msra.mxu0 0.0
    %1878 = vmatprep.subr.mxu0 0.0
    %1879 = vmatpush1.msra.mxu0 0.0
    %1880 = vmatprep.subr.mxu0 0.0
    %1881 = vmatpush1.msra.mxu0 0.0
    %1882 = vmatprep.subr.mxu0 0.0
    %1883 = vmatpush1.msra.mxu0 0.0
    %1884 = vmatprep.subr.mxu0 0.0
    %1885 = vmatpush1.msra.mxu0 0.0
    %1886 = vmatprep.subr.mxu0 0.0
    %1887 = vmatpush1.msra.mxu0 0.0
    %1888 = vmatprep.subr.mxu0 0.0
    %1889 = vmatpush1.msra.mxu0 0.0
    %1890 = vmatprep.subr.mxu0 0.0
    %1891 = vmatpush1.msra.mxu0 0.0
    %1892 = vmatprep.subr.mxu0 0.0
    %1893 = vmatpush1.msra.mxu0 0.0
    %1894 = vmatprep.subr.mxu0 0.0
    %1895 = vmatpush1.msra.mxu0 0.0
    %1896 = vmatprep.subr.mxu0 0.0
    %1897 = vmatpush1.msra.mxu0 0.0
    %1898 = vmatprep.subr.mxu0 0.0
    %1899 = vmatpush1.msra.mxu0 0.0
    %1900 = vmatprep.subr.mxu0 0.0
    %1901 = vmatpush1.msra.mxu0 0.0
    %1902 = vmatprep.subr.mxu0 0.0
    %1903 = vmatpush1.msra.mxu0 0.0
    %1904 = vmatprep.subr.mxu0 0.0
    %1905 = vmatpush1.msra.mxu0 0.0
    %1906 = vmatprep.subr.mxu0 0.0
    %1907 = vmatpush1.msra.mxu0 0.0
    %1908 = vmatprep.mubr.f32.mxu0 0.0
    %1909 = vmatmul.mubr.f32.gmra.mrb[0].mxu0 %v1345
    %v1910 = vpop.f32.mrb[0].mxu0
    %v1911 = vadd.f32 %v1321, %v1910
    %v1912 = vpop.f32.mrb[0].mxu0
    %v1913 = vadd.f32 %v1325, %v1912
    %1914 = vdwg.mxu0
    %v1915 = vmul.f32 %v1414, 0.5
    %v1916 = vmul.f32 %v1416, 0.5
    %v1917 = vmul.f32 %v1485, 0.5
    %v1918 = vmul.f32 %v1487, 0.5
    %v1919 = vmul.f32 %v1556, 0.5
    %v1920 = vmul.f32 %v1558, 0.5
    %v1921 = vmul.f32 %v1627, 0.5
    %v1922 = vmul.f32 %v1629, 0.5
    %v1923 = vmul.f32 %v1414, 0.044715
    %v1924 = vmul.f32 %v1416, 0.044715
    %v1925 = vmul.f32 %v1485, 0.044715
    %v1926 = vmul.f32 %v1487, 0.044715
    %v1927 = vmul.f32 %v1556, 0.044715
    %v1928 = vmul.f32 %v1558, 0.044715
    %v1929 = vmul.f32 %v1627, 0.044715
    %v1930 = vmul.f32 %v1629, 0.044715
    %v1931 = vmul.f32 %v1923, %v1414
    %v1932 = vmul.f32 %v1924, %v1416
    %v1933 = vmul.f32 %v1925, %v1485
    %v1934 = vmul.f32 %v1926, %v1487
    %v1935 = vmul.f32 %v1927, %v1556
    %v1936 = vmul.f32 %v1928, %v1558
    %v1937 = vmul.f32 %v1929, %v1627
    %v1938 = vmul.f32 %v1930, %v1629
    %v1939 = vmul.f32 %v1931, %v1414
    %v1940 = vmul.f32 %v1932, %v1416
    %v1941 = vmul.f32 %v1933, %v1485
    %v1942 = vmul.f32 %v1934, %v1487
    %v1943 = vmul.f32 %v1935, %v1556
    %v1944 = vmul.f32 %v1936, %v1558
    %v1945 = vmul.f32 %v1937, %v1627
    %v1946 = vmul.f32 %v1938, %v1629
    %v1947 = vadd.f32 %v1414, %v1939
    %v1948 = vadd.f32 %v1416, %v1940
    %v1949 = vadd.f32 %v1485, %v1941
    %v1950 = vadd.f32 %v1487, %v1942
    %v1951 = vadd.f32 %v1556, %v1943
    %v1952 = vadd.f32 %v1558, %v1944
    %v1953 = vadd.f32 %v1627, %v1945
    %v1954 = vadd.f32 %v1629, %v1946
    %v1955 = vmul.f32 %v1947, 0.7978846
    %v1956 = vmul.f32 %v1948, 0.7978846
    %v1957 = vmul.f32 %v1949, 0.7978846
    %v1958 = vmul.f32 %v1950, 0.7978846
    %v1959 = vmul.f32 %v1951, 0.7978846
    %v1960 = vmul.f32 %v1952, 0.7978846
    %v1961 = vmul.f32 %v1953, 0.7978846
    %v1962 = vmul.f32 %v1954, 0.7978846
    %v1963 = vtanh.pop %v1955
    %v1964 = vtanh.pop %v1956
    %v1965 = vtanh.pop %v1957
    %v1966 = vtanh.pop %v1958
    %v1967 = vtanh.pop %v1959
    %v1968 = vtanh.pop %v1960
    %v1969 = vtanh.pop %v1961
    %v1970 = vtanh.pop %v1962
    %v1971 = vadd.f32 %v1963, 1.0
    %v1972 = vadd.f32 %v1964, 1.0
    %v1973 = vadd.f32 %v1965, 1.0
    %v1974 = vadd.f32 %v1966, 1.0
    %v1975 = vadd.f32 %v1967, 1.0
    %v1976 = vadd.f32 %v1968, 1.0
    %v1977 = vadd.f32 %v1969, 1.0
    %v1978 = vadd.f32 %v1970, 1.0
    %v1979 = vmul.f32 %v1915, %v1971
    %v1980 = vmul.f32 %v1916, %v1972
    %v1981 = vmul.f32 %v1917, %v1973
    %v1982 = vmul.f32 %v1918, %v1974
    %v1983 = vmul.f32 %v1919, %v1975
    %v1984 = vmul.f32 %v1920, %v1976
    %v1985 = vmul.f32 %v1921, %v1977
    %v1986 = vmul.f32 %v1922, %v1978
    %v1987 = vmul.f32 %v1698, 0.5
    %v1988 = vmul.f32 %v1700, 0.5
    %v1989 = vmul.f32 %v1769, 0.5
    %v1990 = vmul.f32 %v1771, 0.5
    %v1991 = vmul.f32 %v1698, 0.044715
    %v1992 = vmul.f32 %v1700, 0.044715
    %v1993 = vmul.f32 %v1769, 0.044715
    %v1994 = vmul.f32 %v1771, 0.044715
    %v1995 = vmul.f32 %v1991, %v1698
    %v1996 = vmul.f32 %v1992, %v1700
    %v1997 = vmul.f32 %v1993, %v1769
    %v1998 = vmul.f32 %v1994, %v1771
    %v1999 = vmul.f32 %v1995, %v1698
    %v2000 = vmul.f32 %v1996, %v1700
    %v2001 = vmul.f32 %v1997, %v1769
    %v2002 = vmul.f32 %v1998, %v1771
    %v2003 = vadd.f32 %v1698, %v1999
    %v2004 = vadd.f32 %v1700, %v2000
    %v2005 = vadd.f32 %v1769, %v2001
    %v2006 = vadd.f32 %v1771, %v2002
    %v2007 = vmul.f32 %v2003, 0.7978846
    %v2008 = vmul.f32 %v2004, 0.7978846
    %v2009 = vmul.f32 %v2005, 0.7978846
    %v2010 = vmul.f32 %v2006, 0.7978846
    %v2011 = vtanh.pop %v2007
    %v2012 = vtanh.pop %v2008
    %v2013 = vtanh.pop %v2009
    %v2014 = vtanh.pop %v2010
    %v2015 = vadd.f32 %v2011, 1.0
    %v2016 = vadd.f32 %v2012, 1.0
    %v2017 = vadd.f32 %v2013, 1.0
    %v2018 = vadd.f32 %v2014, 1.0
    %v2019 = vmul.f32 %v1987, %v2015
    %v2020 = vmul.f32 %v1988, %v2016
    %v2021 = vmul.f32 %v1989, %v2017
    %v2022 = vmul.f32 %v1990, %v2018
    %v2023 = vmul.f32 %v1840, 0.5
    %v2024 = vmul.f32 %v1842, 0.5
    %v2025 = vmul.f32 %v1840, 0.044715
    %v2026 = vmul.f32 %v1842, 0.044715
    %v2027 = vmul.f32 %v2025, %v1840
    %v2028 = vmul.f32 %v2026, %v1842
    %v2029 = vmul.f32 %v2027, %v1840
    %v2030 = vmul.f32 %v2028, %v1842
    %v2031 = vadd.f32 %v1840, %v2029
    %v2032 = vadd.f32 %v1842, %v2030
    %v2033 = vmul.f32 %v2031, 0.7978846
    %v2034 = vmul.f32 %v2032, 0.7978846
    %v2035 = vtanh.pop %v2033
    %v2036 = vtanh.pop %v2034
    %v2037 = vadd.f32 %v2035, 1.0
    %v2038 = vadd.f32 %v2036, 1.0
    %v2039 = vmul.f32 %v2023, %v2037
    %v2040 = vmul.f32 %v2024, %v2038
    %v2041 = vmax.f32 %v1911, 0.0
    %v2042 = vmax.f32 %v1913, 0.0
    %v2043 = vld [vmem:[#allocation11] sm:$0xff]
    %v2044 = vld [vmem:[#allocation11 + $0x8] sm:$0xff]
    %v2045 = vld [vmem:[#allocation11 + $0x10] sm:$0xff]
    %v2046 = vld [vmem:[#allocation11 + $0x18] sm:$0xff]
    %v2047 = vld [vmem:[#allocation11 + $0x20] sm:$0xff]
    %v2048 = vld [vmem:[#allocation11 + $0x28] sm:$0xff]
    %v2049 = vld [vmem:[#allocation11 + $0x30] sm:$0xff]
    %v2050 = vld [vmem:[#allocation11 + $0x38] sm:$0xff]
    %v2051 = vld [vmem:[#allocation11 + $0x40] sm:$0xff]
    %v2052 = vld [vmem:[#allocation11 + $0x48] sm:$0xff]
    %v2053 = vld [vmem:[#allocation11 + $0x50] sm:$0xff]
    %v2054 = vld [vmem:[#allocation11 + $0x58] sm:$0xff]
    %v2055 = vld [vmem:[#allocation11 + $0x60] sm:$0xff]
    %v2056 = vld [vmem:[#allocation11 + $0x68] sm:$0xff]
    %v2057 = vld [vmem:[#allocation11 + $0x70] sm:$0xff]
    %v2058 = vld [vmem:[#allocation11 + $0x78] sm:$0xff]
    %v2059 = vld [vmem:[#allocation11 + $0x80] sm:$0xff]
    %v2060 = vld [vmem:[#allocation11 + $0x88] sm:$0xff]
    %v2061 = vld [vmem:[#allocation11 + $0x90] sm:$0xff]
    %v2062 = vld [vmem:[#allocation11 + $0x98] sm:$0xff]
    %v2063 = vld [vmem:[#allocation11 + $0xa0] sm:$0xff]
    %v2064 = vld [vmem:[#allocation11 + $0xa8] sm:$0xff]
    %v2065 = vld [vmem:[#allocation11 + $0xb0] sm:$0xff]
    %v2066 = vld [vmem:[#allocation11 + $0xb8] sm:$0xff]
    %v2067 = vld [vmem:[#allocation11 + $0xc0] sm:$0xff]
    %v2068 = vld [vmem:[#allocation11 + $0xc8] sm:$0xff]
    %v2069 = vld [vmem:[#allocation11 + $0xd0] sm:$0xff]
    %v2070 = vld [vmem:[#allocation11 + $0xd8] sm:$0xff]
    %v2071 = vld [vmem:[#allocation11 + $0xe0] sm:$0xff]
    %v2072 = vld [vmem:[#allocation11 + $0xe8] sm:$0xff]
    %v2073 = vld [vmem:[#allocation11 + $0xf0] sm:$0xff]
    %v2074 = vld [vmem:[#allocation11 + $0xf8] sm:$0xff]
    %v2075 = vld [vmem:[#allocation11 + $0x100] sm:$0xff]
    %v2076 = vld [vmem:[#allocation11 + $0x108] sm:$0xff]
    %v2077 = vld [vmem:[#allocation11 + $0x110] sm:$0xff]
    %v2078 = vld [vmem:[#allocation11 + $0x118] sm:$0xff]
    %v2079 = vld [vmem:[#allocation11 + $0x120] sm:$0xff]
    %v2080 = vld [vmem:[#allocation11 + $0x128] sm:$0xff]
    %v2081 = vld [vmem:[#allocation11 + $0x130] sm:$0xff]
    %v2082 = vld [vmem:[#allocation11 + $0x138] sm:$0xff]
    %v2083 = vld [vmem:[#allocation11 + $0x140] sm:$0xff]
    %v2084 = vld [vmem:[#allocation11 + $0x148] sm:$0xff]
    %v2085 = vld [vmem:[#allocation11 + $0x150] sm:$0xff]
    %v2086 = vld [vmem:[#allocation11 + $0x158] sm:$0xff]
    %v2087 = vld [vmem:[#allocation11 + $0x160] sm:$0xff]
    %v2088 = vld [vmem:[#allocation11 + $0x168] sm:$0xff]
    %v2089 = vld [vmem:[#allocation11 + $0x170] sm:$0xff]
    %v2090 = vld [vmem:[#allocation11 + $0x178] sm:$0xff]
    %v2091 = vld [vmem:[#allocation11 + $0x180] sm:$0xff]
    %v2092 = vld [vmem:[#allocation11 + $0x188] sm:$0xff]
    %v2093 = vld [vmem:[#allocation11 + $0x190] sm:$0xff]
    %v2094 = vld [vmem:[#allocation11 + $0x198] sm:$0xff]
    %v2095 = vld [vmem:[#allocation11 + $0x1a0] sm:$0xff]
    %v2096 = vld [vmem:[#allocation11 + $0x1a8] sm:$0xff]
    %v2097 = vld [vmem:[#allocation11 + $0x1b0] sm:$0xff]
    %v2098 = vld [vmem:[#allocation11 + $0x1b8] sm:$0xff]
    %v2099 = vld [vmem:[#allocation11 + $0x1c0] sm:$0xff]
    %v2100 = vld [vmem:[#allocation11 + $0x1c8] sm:$0xff]
    %v2101 = vld [vmem:[#allocation11 + $0x1d0] sm:$0xff]
    %v2102 = vld [vmem:[#allocation11 + $0x1d8] sm:$0xff]
    %v2103 = vld [vmem:[#allocation11 + $0x1e0] sm:$0xff]
    %v2104 = vld [vmem:[#allocation11 + $0x1e8] sm:$0xff]
    %v2105 = vld [vmem:[#allocation11 + $0x1f0] sm:$0xff]
    %v2106 = vld [vmem:[#allocation11 + $0x1f8] sm:$0xff]
    %v2107 = vld [vmem:[#allocation11 + $0x200] sm:$0xff]
    %v2108 = vld [vmem:[#allocation11 + $0x208] sm:$0xff]
    %v2109 = vld [vmem:[#allocation11 + $0x210] sm:$0xff]
    %v2110 = vld [vmem:[#allocation11 + $0x218] sm:$0xff]
    %v2111 = vld [vmem:[#allocation11 + $0x220] sm:$0xff]
    %v2112 = vld [vmem:[#allocation11 + $0x228] sm:$0xff]
    %v2113 = vld [vmem:[#allocation11 + $0x230] sm:$0xff]
    %v2114 = vld [vmem:[#allocation11 + $0x238] sm:$0xff]
    %v2115 = vld [vmem:[#allocation11 + $0x240] sm:$0xff]
    %v2116 = vld [vmem:[#allocation11 + $0x248] sm:$0xff]
    %v2117 = vld [vmem:[#allocation11 + $0x250] sm:$0xff]
    %v2118 = vld [vmem:[#allocation11 + $0x258] sm:$0xff]
    %v2119 = vld [vmem:[#allocation11 + $0x260] sm:$0xff]
    %v2120 = vld [vmem:[#allocation11 + $0x268] sm:$0xff]
    %v2121 = vld [vmem:[#allocation11 + $0x270] sm:$0xff]
    %v2122 = vld [vmem:[#allocation11 + $0x278] sm:$0xff]
    %v2123 = vld [vmem:[#allocation11 + $0x280] sm:$0xff]
    %v2124 = vld [vmem:[#allocation11 + $0x288] sm:$0xff]
    %v2125 = vld [vmem:[#allocation11 + $0x290] sm:$0xff]
    %v2126 = vld [vmem:[#allocation11 + $0x298] sm:$0xff]
    %v2127 = vld [vmem:[#allocation11 + $0x2a0] sm:$0xff]
    %v2128 = vld [vmem:[#allocation11 + $0x2a8] sm:$0xff]
    %v2129 = vld [vmem:[#allocation11 + $0x2b0] sm:$0xff]
    %v2130 = vld [vmem:[#allocation11 + $0x2b8] sm:$0xff]
    %v2131 = vld [vmem:[#allocation11 + $0x2c0] sm:$0xff]
    %v2132 = vld [vmem:[#allocation11 + $0x2c8] sm:$0xff]
    %v2133 = vld [vmem:[#allocation11 + $0x2d0] sm:$0xff]
    %v2134 = vld [vmem:[#allocation11 + $0x2d8] sm:$0xff]
    %v2135 = vld [vmem:[#allocation11 + $0x2e0] sm:$0xff]
    %v2136 = vld [vmem:[#allocation11 + $0x2e8] sm:$0xff]
    %v2137 = vld [vmem:[#allocation11 + $0x2f0] sm:$0xff]
    %v2138 = vld [vmem:[#allocation11 + $0x2f8] sm:$0xff]
    %v2139 = vld [vmem:[#allocation11 + $0x300] sm:$0xff]
    %v2140 = vld [vmem:[#allocation11 + $0x308] sm:$0xff]
    %v2141 = vld [vmem:[#allocation11 + $0x310] sm:$0xff]
    %v2142 = vld [vmem:[#allocation11 + $0x318] sm:$0xff]
    %v2143 = vld [vmem:[#allocation11 + $0x320] sm:$0xff]
    %v2144 = vld [vmem:[#allocation11 + $0x328] sm:$0xff]
    %v2145 = vld [vmem:[#allocation11 + $0x330] sm:$0xff]
    %v2146 = vld [vmem:[#allocation11 + $0x338] sm:$0xff]
    %v2147 = vld [vmem:[#allocation11 + $0x340] sm:$0xff]
    %v2148 = vld [vmem:[#allocation11 + $0x348] sm:$0xff]
    %v2149 = vld [vmem:[#allocation11 + $0x350] sm:$0xff]
    %v2150 = vld [vmem:[#allocation11 + $0x358] sm:$0xff]
    %v2151 = vld [vmem:[#allocation11 + $0x360] sm:$0xff]
    %v2152 = vld [vmem:[#allocation11 + $0x368] sm:$0xff]
    %v2153 = vld [vmem:[#allocation11 + $0x370] sm:$0xff]
    %v2154 = vld [vmem:[#allocation11 + $0x378] sm:$0xff]
    %v2155 = vld [vmem:[#allocation11 + $0x380] sm:$0xff]
    %v2156 = vld [vmem:[#allocation11 + $0x388] sm:$0xff]
    %v2157 = vld [vmem:[#allocation11 + $0x390] sm:$0xff]
    %v2158 = vld [vmem:[#allocation11 + $0x398] sm:$0xff]
    %v2159 = vld [vmem:[#allocation11 + $0x3a0] sm:$0xff]
    %v2160 = vld [vmem:[#allocation11 + $0x3a8] sm:$0xff]
    %v2161 = vld [vmem:[#allocation11 + $0x3b0] sm:$0xff]
    %v2162 = vld [vmem:[#allocation11 + $0x3b8] sm:$0xff]
    %v2163 = vld [vmem:[#allocation11 + $0x3c0] sm:$0xff]
    %v2164 = vld [vmem:[#allocation11 + $0x3c8] sm:$0xff]
    %v2165 = vld [vmem:[#allocation11 + $0x3d0] sm:$0xff]
    %v2166 = vld [vmem:[#allocation11 + $0x3d8] sm:$0xff]
    %v2167 = vld [vmem:[#allocation11 + $0x3e0] sm:$0xff]
    %v2168 = vld [vmem:[#allocation11 + $0x3e8] sm:$0xff]
    %v2169 = vld [vmem:[#allocation11 + $0x3f0] sm:$0xff]
    %v2170 = vld [vmem:[#allocation11 + $0x3f8] sm:$0xff]
    %v2171 = vld [vmem:[#allocation11 + $0x400] sm:$0xff]
    %v2172 = vld [vmem:[#allocation11 + $0x408] sm:$0xff]
    %v2173 = vld [vmem:[#allocation11 + $0x410] sm:$0xff]
    %v2174 = vld [vmem:[#allocation11 + $0x418] sm:$0xff]
    %v2175 = vld [vmem:[#allocation11 + $0x420] sm:$0xff]
    %v2176 = vld [vmem:[#allocation11 + $0x428] sm:$0xff]
    %v2177 = vld [vmem:[#allocation11 + $0x430] sm:$0xff]
    %v2178 = vld [vmem:[#allocation11 + $0x438] sm:$0xff]
    %v2179 = vld [vmem:[#allocation11 + $0x440] sm:$0xff]
    %v2180 = vld [vmem:[#allocation11 + $0x448] sm:$0xff]
    %v2181 = vld [vmem:[#allocation11 + $0x450] sm:$0xff]
    %v2182 = vld [vmem:[#allocation11 + $0x458] sm:$0xff]
    %v2183 = vld [vmem:[#allocation11 + $0x460] sm:$0xff]
    %v2184 = vld [vmem:[#allocation11 + $0x468] sm:$0xff]
    %v2185 = vld [vmem:[#allocation11 + $0x470] sm:$0xff]
    %v2186 = vld [vmem:[#allocation11 + $0x478] sm:$0xff]
    %v2187 = vld [vmem:[#allocation11 + $0x480] sm:$0xff]
    %v2188 = vld [vmem:[#allocation11 + $0x488] sm:$0xff]
    %v2189 = vld [vmem:[#allocation11 + $0x490] sm:$0xff]
    %v2190 = vld [vmem:[#allocation11 + $0x498] sm:$0xff]
    %v2191 = vld [vmem:[#allocation11 + $0x4a0] sm:$0xff]
    %v2192 = vld [vmem:[#allocation11 + $0x4a8] sm:$0xff]
    %v2193 = vld [vmem:[#allocation11 + $0x4b0] sm:$0xff]
    %v2194 = vld [vmem:[#allocation11 + $0x4b8] sm:$0xff]
    %v2195 = vld [vmem:[#allocation11 + $0x4c0] sm:$0xff]
    %v2196 = vld [vmem:[#allocation11 + $0x4c8] sm:$0xff]
    %v2197 = vld [vmem:[#allocation11 + $0x4d0] sm:$0xff]
    %v2198 = vld [vmem:[#allocation11 + $0x4d8] sm:$0xff]
    %v2199 = vld [vmem:[#allocation11 + $0x4e0] sm:$0xff]
    %v2200 = vld [vmem:[#allocation11 + $0x4e8] sm:$0xff]
    %v2201 = vld [vmem:[#allocation11 + $0x4f0] sm:$0xff]
    %v2202 = vld [vmem:[#allocation11 + $0x4f8] sm:$0xff]
    %v2203 = vld [vmem:[#allocation11 + $0x500] sm:$0xff]
    %v2204 = vld [vmem:[#allocation11 + $0x508] sm:$0xff]
    %v2205 = vld [vmem:[#allocation11 + $0x510] sm:$0xff]
    %v2206 = vld [vmem:[#allocation11 + $0x518] sm:$0xff]
    %v2207 = vld [vmem:[#allocation11 + $0x520] sm:$0xff]
    %v2208 = vld [vmem:[#allocation11 + $0x528] sm:$0xff]
    %v2209 = vld [vmem:[#allocation11 + $0x530] sm:$0xff]
    %v2210 = vld [vmem:[#allocation11 + $0x538] sm:$0xff]
    %v2211 = vld [vmem:[#allocation11 + $0x540] sm:$0xff]
    %v2212 = vld [vmem:[#allocation11 + $0x548] sm:$0xff]
    %v2213 = vld [vmem:[#allocation11 + $0x550] sm:$0xff]
    %v2214 = vld [vmem:[#allocation11 + $0x558] sm:$0xff]
    %v2215 = vld [vmem:[#allocation11 + $0x560] sm:$0xff]
    %v2216 = vld [vmem:[#allocation11 + $0x568] sm:$0xff]
    %v2217 = vld [vmem:[#allocation11 + $0x570] sm:$0xff]
    %v2218 = vld [vmem:[#allocation11 + $0x578] sm:$0xff]
    %v2219 = vld [vmem:[#allocation11 + $0x580] sm:$0xff]
    %v2220 = vld [vmem:[#allocation11 + $0x588] sm:$0xff]
    %v2221 = vld [vmem:[#allocation11 + $0x590] sm:$0xff]
    %v2222 = vld [vmem:[#allocation11 + $0x598] sm:$0xff]
    %v2223 = vld [vmem:[#allocation11 + $0x5a0] sm:$0xff]
    %v2224 = vld [vmem:[#allocation11 + $0x5a8] sm:$0xff]
    %v2225 = vld [vmem:[#allocation11 + $0x5b0] sm:$0xff]
    %v2226 = vld [vmem:[#allocation11 + $0x5b8] sm:$0xff]
    %v2227 = vld [vmem:[#allocation11 + $0x5c0] sm:$0xff]
    %v2228 = vld [vmem:[#allocation11 + $0x5c8] sm:$0xff]
    %v2229 = vld [vmem:[#allocation11 + $0x5d0] sm:$0xff]
    %v2230 = vld [vmem:[#allocation11 + $0x5d8] sm:$0xff]
    %v2231 = vld [vmem:[#allocation11 + $0x5e0] sm:$0xff]
    %v2232 = vld [vmem:[#allocation11 + $0x5e8] sm:$0xff]
    %v2233 = vld [vmem:[#allocation11 + $0x5f0] sm:$0xff]
    %v2234 = vld [vmem:[#allocation11 + $0x5f8] sm:$0xff]
    %v2235 = vld [vmem:[#allocation11 + $0x600] sm:$0xff]
    %v2236 = vld [vmem:[#allocation11 + $0x608] sm:$0xff]
    %v2237 = vld [vmem:[#allocation11 + $0x610] sm:$0xff]
    %v2238 = vld [vmem:[#allocation11 + $0x618] sm:$0xff]
    %v2239 = vld [vmem:[#allocation11 + $0x620] sm:$0xff]
    %v2240 = vld [vmem:[#allocation11 + $0x628] sm:$0xff]
    %v2241 = vld [vmem:[#allocation11 + $0x630] sm:$0xff]
    %v2242 = vld [vmem:[#allocation11 + $0x638] sm:$0xff]
    %v2243 = vld [vmem:[#allocation11 + $0x640] sm:$0xff]
    %v2244 = vld [vmem:[#allocation11 + $0x648] sm:$0xff]
    %v2245 = vld [vmem:[#allocation11 + $0x650] sm:$0xff]
    %v2246 = vld [vmem:[#allocation11 + $0x658] sm:$0xff]
    %v2247 = vld [vmem:[#allocation11 + $0x660] sm:$0xff]
    %v2248 = vld [vmem:[#allocation11 + $0x668] sm:$0xff]
    %v2249 = vld [vmem:[#allocation11 + $0x670] sm:$0xff]
    %v2250 = vld [vmem:[#allocation11 + $0x678] sm:$0xff]
    %v2251 = vld [vmem:[#allocation11 + $0x680] sm:$0xff]
    %v2252 = vld [vmem:[#allocation11 + $0x688] sm:$0xff]
    %v2253 = vld [vmem:[#allocation11 + $0x690] sm:$0xff]
    %v2254 = vld [vmem:[#allocation11 + $0x698] sm:$0xff]
    %v2255 = vld [vmem:[#allocation11 + $0x6a0] sm:$0xff]
    %v2256 = vld [vmem:[#allocation11 + $0x6a8] sm:$0xff]
    %v2257 = vld [vmem:[#allocation11 + $0x6b0] sm:$0xff]
    %v2258 = vld [vmem:[#allocation11 + $0x6b8] sm:$0xff]
    %v2259 = vld [vmem:[#allocation11 + $0x6c0] sm:$0xff]
    %v2260 = vld [vmem:[#allocation11 + $0x6c8] sm:$0xff]
    %v2261 = vld [vmem:[#allocation11 + $0x6d0] sm:$0xff]
    %v2262 = vld [vmem:[#allocation11 + $0x6d8] sm:$0xff]
    %v2263 = vld [vmem:[#allocation11 + $0x6e0] sm:$0xff]
    %v2264 = vld [vmem:[#allocation11 + $0x6e8] sm:$0xff]
    %v2265 = vld [vmem:[#allocation11 + $0x6f0] sm:$0xff]
    %v2266 = vld [vmem:[#allocation11 + $0x6f8] sm:$0xff]
    %v2267 = vld [vmem:[#allocation11 + $0x700] sm:$0xff]
    %v2268 = vld [vmem:[#allocation11 + $0x708] sm:$0xff]
    %v2269 = vld [vmem:[#allocation11 + $0x710] sm:$0xff]
    %v2270 = vld [vmem:[#allocation11 + $0x718] sm:$0xff]
    %v2271 = vld [vmem:[#allocation11 + $0x720] sm:$0xff]
    %v2272 = vld [vmem:[#allocation11 + $0x728] sm:$0xff]
    %v2273 = vld [vmem:[#allocation11 + $0x730] sm:$0xff]
    %v2274 = vld [vmem:[#allocation11 + $0x738] sm:$0xff]
    %v2275 = vld [vmem:[#allocation11 + $0x740] sm:$0xff]
    %v2276 = vld [vmem:[#allocation11 + $0x748] sm:$0xff]
    %v2277 = vld [vmem:[#allocation11 + $0x750] sm:$0xff]
    %v2278 = vld [vmem:[#allocation11 + $0x758] sm:$0xff]
    %v2279 = vld [vmem:[#allocation11 + $0x760] sm:$0xff]
    %v2280 = vld [vmem:[#allocation11 + $0x768] sm:$0xff]
    %v2281 = vld [vmem:[#allocation11 + $0x770] sm:$0xff]
    %v2282 = vld [vmem:[#allocation11 + $0x778] sm:$0xff]
    %v2283 = vld [vmem:[#allocation11 + $0x780] sm:$0xff]
    %v2284 = vld [vmem:[#allocation11 + $0x788] sm:$0xff]
    %v2285 = vld [vmem:[#allocation11 + $0x790] sm:$0xff]
    %v2286 = vld [vmem:[#allocation11 + $0x798] sm:$0xff]
    %v2287 = vld [vmem:[#allocation11 + $0x7a0] sm:$0xff]
    %v2288 = vld [vmem:[#allocation11 + $0x7a8] sm:$0xff]
    %v2289 = vld [vmem:[#allocation11 + $0x7b0] sm:$0xff]
    %v2290 = vld [vmem:[#allocation11 + $0x7b8] sm:$0xff]
    %v2291 = vld [vmem:[#allocation11 + $0x7c0] sm:$0xff]
    %v2292 = vld [vmem:[#allocation11 + $0x7c8] sm:$0xff]
    %v2293 = vld [vmem:[#allocation11 + $0x7d0] sm:$0xff]
    %v2294 = vld [vmem:[#allocation11 + $0x7d8] sm:$0xff]
    %v2295 = vld [vmem:[#allocation11 + $0x7e0] sm:$0xff]
    %v2296 = vld [vmem:[#allocation11 + $0x7e8] sm:$0xff]
    %v2297 = vld [vmem:[#allocation11 + $0x7f0] sm:$0xff]
    %v2298 = vld [vmem:[#allocation11 + $0x7f8] sm:$0xff]
    %v2299 = vld [vmem:[#allocation11 + $0x800] sm:$0xff]
    %v2300 = vld [vmem:[#allocation11 + $0x808] sm:$0xff]
    %v2301 = vld [vmem:[#allocation11 + $0x810] sm:$0xff]
    %v2302 = vld [vmem:[#allocation11 + $0x818] sm:$0xff]
    %v2303 = vld [vmem:[#allocation11 + $0x820] sm:$0xff]
    %v2304 = vld [vmem:[#allocation11 + $0x828] sm:$0xff]
    %v2305 = vld [vmem:[#allocation11 + $0x830] sm:$0xff]
    %v2306 = vld [vmem:[#allocation11 + $0x838] sm:$0xff]
    %v2307 = vld [vmem:[#allocation11 + $0x840] sm:$0xff]
    %v2308 = vld [vmem:[#allocation11 + $0x848] sm:$0xff]
    %v2309 = vld [vmem:[#allocation11 + $0x850] sm:$0xff]
    %v2310 = vld [vmem:[#allocation11 + $0x858] sm:$0xff]
    %v2311 = vld [vmem:[#allocation11 + $0x860] sm:$0xff]
    %v2312 = vld [vmem:[#allocation11 + $0x868] sm:$0xff]
    %v2313 = vld [vmem:[#allocation11 + $0x870] sm:$0xff]
    %v2314 = vld [vmem:[#allocation11 + $0x878] sm:$0xff]
    %v2315 = vld [vmem:[#allocation11 + $0x880] sm:$0xff]
    %v2316 = vld [vmem:[#allocation11 + $0x888] sm:$0xff]
    %v2317 = vld [vmem:[#allocation11 + $0x890] sm:$0xff]
    %v2318 = vld [vmem:[#allocation11 + $0x898] sm:$0xff]
    %v2319 = vld [vmem:[#allocation11 + $0x8a0] sm:$0xff]
    %v2320 = vld [vmem:[#allocation11 + $0x8a8] sm:$0xff]
    %v2321 = vld [vmem:[#allocation11 + $0x8b0] sm:$0xff]
    %v2322 = vld [vmem:[#allocation11 + $0x8b8] sm:$0xff]
    %v2323 = vld [vmem:[#allocation11 + $0x8c0] sm:$0xff]
    %v2324 = vld [vmem:[#allocation11 + $0x8c8] sm:$0xff]
    %v2325 = vld [vmem:[#allocation11 + $0x8d0] sm:$0xff]
    %v2326 = vld [vmem:[#allocation11 + $0x8d8] sm:$0xff]
    %v2327 = vld [vmem:[#allocation11 + $0x8e0] sm:$0xff]
    %v2328 = vld [vmem:[#allocation11 + $0x8e8] sm:$0xff]
    %v2329 = vld [vmem:[#allocation11 + $0x8f0] sm:$0xff]
    %v2330 = vld [vmem:[#allocation11 + $0x8f8] sm:$0xff]
    %v2331 = vld [vmem:[#allocation11 + $0x900] sm:$0xff]
    %v2332 = vld [vmem:[#allocation11 + $0x908] sm:$0xff]
    %v2333 = vld [vmem:[#allocation11 + $0x910] sm:$0xff]
    %v2334 = vld [vmem:[#allocation11 + $0x918] sm:$0xff]
    %v2335 = vld [vmem:[#allocation11 + $0x920] sm:$0xff]
    %v2336 = vld [vmem:[#allocation11 + $0x928] sm:$0xff]
    %v2337 = vld [vmem:[#allocation11 + $0x930] sm:$0xff]
    %v2338 = vld [vmem:[#allocation11 + $0x938] sm:$0xff]
    %v2339 = vld [vmem:[#allocation11 + $0x940] sm:$0xff]
    %v2340 = vld [vmem:[#allocation11 + $0x948] sm:$0xff]
    %v2341 = vld [vmem:[#allocation11 + $0x950] sm:$0xff]
    %v2342 = vld [vmem:[#allocation11 + $0x958] sm:$0xff]
    %v2343 = vld [vmem:[#allocation11 + $0x960] sm:$0xff]
    %v2344 = vld [vmem:[#allocation11 + $0x968] sm:$0xff]
    %v2345 = vld [vmem:[#allocation11 + $0x970] sm:$0xff]
    %v2346 = vld [vmem:[#allocation11 + $0x978] sm:$0xff]
    %v2347 = vld [vmem:[#allocation11 + $0x980] sm:$0xff]
    %v2348 = vld [vmem:[#allocation11 + $0x988] sm:$0xff]
    %v2349 = vld [vmem:[#allocation11 + $0x990] sm:$0xff]
    %v2350 = vld [vmem:[#allocation11 + $0x998] sm:$0xff]
    %v2351 = vld [vmem:[#allocation11 + $0x9a0] sm:$0xff]
    %v2352 = vld [vmem:[#allocation11 + $0x9a8] sm:$0xff]
    %v2353 = vld [vmem:[#allocation11 + $0x9b0] sm:$0xff]
    %v2354 = vld [vmem:[#allocation11 + $0x9b8] sm:$0xff]
    %v2355 = vld [vmem:[#allocation11 + $0x9c0] sm:$0xff]
    %v2356 = vld [vmem:[#allocation11 + $0x9c8] sm:$0xff]
    %v2357 = vld [vmem:[#allocation11 + $0x9d0] sm:$0xff]
    %v2358 = vld [vmem:[#allocation11 + $0x9d8] sm:$0xff]
    %v2359 = vld [vmem:[#allocation11 + $0x9e0] sm:$0xff]
    %v2360 = vld [vmem:[#allocation11 + $0x9e8] sm:$0xff]
    %v2361 = vld [vmem:[#allocation11 + $0x9f0] sm:$0xff]
    %v2362 = vld [vmem:[#allocation11 + $0x9f8] sm:$0xff]
    %v2363 = vld [vmem:[#allocation11 + $0xa00] sm:$0xff]
    %v2364 = vld [vmem:[#allocation11 + $0xa08] sm:$0xff]
    %v2365 = vld [vmem:[#allocation11 + $0xa10] sm:$0xff]
    %v2366 = vld [vmem:[#allocation11 + $0xa18] sm:$0xff]
    %v2367 = vld [vmem:[#allocation11 + $0xa20] sm:$0xff]
    %v2368 = vld [vmem:[#allocation11 + $0xa28] sm:$0xff]
    %v2369 = vld [vmem:[#allocation11 + $0xa30] sm:$0xff]
    %v2370 = vld [vmem:[#allocation11 + $0xa38] sm:$0xff]
    %v2371 = vld [vmem:[#allocation11 + $0xa40] sm:$0xff]
    %v2372 = vld [vmem:[#allocation11 + $0xa48] sm:$0xff]
    %v2373 = vld [vmem:[#allocation11 + $0xa50] sm:$0xff]
    %v2374 = vld [vmem:[#allocation11 + $0xa58] sm:$0xff]
    %v2375 = vld [vmem:[#allocation11 + $0xa60] sm:$0xff]
    %v2376 = vld [vmem:[#allocation11 + $0xa68] sm:$0xff]
    %v2377 = vld [vmem:[#allocation11 + $0xa70] sm:$0xff]
    %v2378 = vld [vmem:[#allocation11 + $0xa78] sm:$0xff]
    %v2379 = vld [vmem:[#allocation11 + $0xa80] sm:$0xff]
    %v2380 = vld [vmem:[#allocation11 + $0xa88] sm:$0xff]
    %v2381 = vld [vmem:[#allocation11 + $0xa90] sm:$0xff]
    %v2382 = vld [vmem:[#allocation11 + $0xa98] sm:$0xff]
    %v2383 = vld [vmem:[#allocation11 + $0xaa0] sm:$0xff]
    %v2384 = vld [vmem:[#allocation11 + $0xaa8] sm:$0xff]
    %v2385 = vld [vmem:[#allocation11 + $0xab0] sm:$0xff]
    %v2386 = vld [vmem:[#allocation11 + $0xab8] sm:$0xff]
    %v2387 = vld [vmem:[#allocation11 + $0xac0] sm:$0xff]
    %v2388 = vld [vmem:[#allocation11 + $0xac8] sm:$0xff]
    %v2389 = vld [vmem:[#allocation11 + $0xad0] sm:$0xff]
    %v2390 = vld [vmem:[#allocation11 + $0xad8] sm:$0xff]
    %v2391 = vld [vmem:[#allocation11 + $0xae0] sm:$0xff]
    %v2392 = vld [vmem:[#allocation11 + $0xae8] sm:$0xff]
    %v2393 = vld [vmem:[#allocation11 + $0xaf0] sm:$0xff]
    %v2394 = vld [vmem:[#allocation11 + $0xaf8] sm:$0xff]
    %v2395 = vld [vmem:[#allocation11 + $0xb00] sm:$0xff]
    %v2396 = vld [vmem:[#allocation11 + $0xb08] sm:$0xff]
    %v2397 = vld [vmem:[#allocation11 + $0xb10] sm:$0xff]
    %v2398 = vld [vmem:[#allocation11 + $0xb18] sm:$0xff]
    %v2399 = vld [vmem:[#allocation11 + $0xb20] sm:$0xff]
    %v2400 = vld [vmem:[#allocation11 + $0xb28] sm:$0xff]
    %v2401 = vld [vmem:[#allocation11 + $0xb30] sm:$0xff]
    %v2402 = vld [vmem:[#allocation11 + $0xb38] sm:$0xff]
    %v2403 = vld [vmem:[#allocation11 + $0xb40] sm:$0xff]
    %v2404 = vld [vmem:[#allocation11 + $0xb48] sm:$0xff]
    %v2405 = vld [vmem:[#allocation11 + $0xb50] sm:$0xff]
    %v2406 = vld [vmem:[#allocation11 + $0xb58] sm:$0xff]
    %v2407 = vld [vmem:[#allocation11 + $0xb60] sm:$0xff]
    %v2408 = vld [vmem:[#allocation11 + $0xb68] sm:$0xff]
    %v2409 = vld [vmem:[#allocation11 + $0xb70] sm:$0xff]
    %v2410 = vld [vmem:[#allocation11 + $0xb78] sm:$0xff]
    %v2411 = vld [vmem:[#allocation11 + $0xb80] sm:$0xff]
    %v2412 = vld [vmem:[#allocation11 + $0xb88] sm:$0xff]
    %v2413 = vld [vmem:[#allocation11 + $0xb90] sm:$0xff]
    %v2414 = vld [vmem:[#allocation11 + $0xb98] sm:$0xff]
    %v2415 = vld [vmem:[#allocation11 + $0xba0] sm:$0xff]
    %v2416 = vld [vmem:[#allocation11 + $0xba8] sm:$0xff]
    %v2417 = vld [vmem:[#allocation11 + $0xbb0] sm:$0xff]
    %v2418 = vld [vmem:[#allocation11 + $0xbb8] sm:$0xff]
    %v2419 = vld [vmem:[#allocation11 + $0xbc0] sm:$0xff]
    %v2420 = vld [vmem:[#allocation11 + $0xbc8] sm:$0xff]
    %v2421 = vld [vmem:[#allocation11 + $0xbd0] sm:$0xff]
    %v2422 = vld [vmem:[#allocation11 + $0xbd8] sm:$0xff]
    %v2423 = vld [vmem:[#allocation11 + $0xbe0] sm:$0xff]
    %v2424 = vld [vmem:[#allocation11 + $0xbe8] sm:$0xff]
    %v2425 = vld [vmem:[#allocation11 + $0xbf0] sm:$0xff]
    %v2426 = vld [vmem:[#allocation11 + $0xbf8] sm:$0xff]
    %v2427 = vld [vmem:[#allocation11 + $0xc00] sm:$0xff]
    %v2428 = vld [vmem:[#allocation11 + $0xc08] sm:$0xff]
    %v2429 = vld [vmem:[#allocation11 + $0xc10] sm:$0xff]
    %v2430 = vld [vmem:[#allocation11 + $0xc18] sm:$0xff]
    %v2431 = vld [vmem:[#allocation11 + $0xc20] sm:$0xff]
    %v2432 = vld [vmem:[#allocation11 + $0xc28] sm:$0xff]
    %v2433 = vld [vmem:[#allocation11 + $0xc30] sm:$0xff]
    %v2434 = vld [vmem:[#allocation11 + $0xc38] sm:$0xff]
    %v2435 = vld [vmem:[#allocation11 + $0xc40] sm:$0xff]
    %v2436 = vld [vmem:[#allocation11 + $0xc48] sm:$0xff]
    %v2437 = vld [vmem:[#allocation11 + $0xc50] sm:$0xff]
    %v2438 = vld [vmem:[#allocation11 + $0xc58] sm:$0xff]
    %v2439 = vld [vmem:[#allocation11 + $0xc60] sm:$0xff]
    %v2440 = vld [vmem:[#allocation11 + $0xc68] sm:$0xff]
    %v2441 = vld [vmem:[#allocation11 + $0xc70] sm:$0xff]
    %v2442 = vld [vmem:[#allocation11 + $0xc78] sm:$0xff]
    %v2443 = vld [vmem:[#allocation11 + $0xc80] sm:$0xff]
    %v2444 = vld [vmem:[#allocation11 + $0xc88] sm:$0xff]
    %v2445 = vld [vmem:[#allocation11 + $0xc90] sm:$0xff]
    %v2446 = vld [vmem:[#allocation11 + $0xc98] sm:$0xff]
    %v2447 = vld [vmem:[#allocation11 + $0xca0] sm:$0xff]
    %v2448 = vld [vmem:[#allocation11 + $0xca8] sm:$0xff]
    %v2449 = vld [vmem:[#allocation11 + $0xcb0] sm:$0xff]
    %v2450 = vld [vmem:[#allocation11 + $0xcb8] sm:$0xff]
    %v2451 = vld [vmem:[#allocation11 + $0xcc0] sm:$0xff]
    %v2452 = vld [vmem:[#allocation11 + $0xcc8] sm:$0xff]
    %v2453 = vld [vmem:[#allocation11 + $0xcd0] sm:$0xff]
    %v2454 = vld [vmem:[#allocation11 + $0xcd8] sm:$0xff]
    %v2455 = vld [vmem:[#allocation11 + $0xce0] sm:$0xff]
    %v2456 = vld [vmem:[#allocation11 + $0xce8] sm:$0xff]
    %v2457 = vld [vmem:[#allocation11 + $0xcf0] sm:$0xff]
    %v2458 = vld [vmem:[#allocation11 + $0xcf8] sm:$0xff]
    %v2459 = vld [vmem:[#allocation11 + $0xd00] sm:$0xff]
    %v2460 = vld [vmem:[#allocation11 + $0xd08] sm:$0xff]
    %v2461 = vld [vmem:[#allocation11 + $0xd10] sm:$0xff]
    %v2462 = vld [vmem:[#allocation11 + $0xd18] sm:$0xff]
    %v2463 = vld [vmem:[#allocation11 + $0xd20] sm:$0xff]
    %v2464 = vld [vmem:[#allocation11 + $0xd28] sm:$0xff]
    %v2465 = vld [vmem:[#allocation11 + $0xd30] sm:$0xff]
    %v2466 = vld [vmem:[#allocation11 + $0xd38] sm:$0xff]
    %v2467 = vld [vmem:[#allocation11 + $0xd40] sm:$0xff]
    %v2468 = vld [vmem:[#allocation11 + $0xd48] sm:$0xff]
    %v2469 = vld [vmem:[#allocation11 + $0xd50] sm:$0xff]
    %v2470 = vld [vmem:[#allocation11 + $0xd58] sm:$0xff]
    %v2471 = vld [vmem:[#allocation11 + $0xd60] sm:$0xff]
    %v2472 = vld [vmem:[#allocation11 + $0xd68] sm:$0xff]
    %v2473 = vld [vmem:[#allocation11 + $0xd70] sm:$0xff]
    %v2474 = vld [vmem:[#allocation11 + $0xd78] sm:$0xff]
    %v2475 = vld [vmem:[#allocation11 + $0xd80] sm:$0xff]
    %v2476 = vld [vmem:[#allocation11 + $0xd88] sm:$0xff]
    %v2477 = vld [vmem:[#allocation11 + $0xd90] sm:$0xff]
    %v2478 = vld [vmem:[#allocation11 + $0xd98] sm:$0xff]
    %v2479 = vld [vmem:[#allocation11 + $0xda0] sm:$0xff]
    %v2480 = vld [vmem:[#allocation11 + $0xda8] sm:$0xff]
    %v2481 = vld [vmem:[#allocation11 + $0xdb0] sm:$0xff]
    %v2482 = vld [vmem:[#allocation11 + $0xdb8] sm:$0xff]
    %v2483 = vld [vmem:[#allocation11 + $0xdc0] sm:$0xff]
    %v2484 = vld [vmem:[#allocation11 + $0xdc8] sm:$0xff]
    %v2485 = vld [vmem:[#allocation11 + $0xdd0] sm:$0xff]
    %v2486 = vld [vmem:[#allocation11 + $0xdd8] sm:$0xff]
    %v2487 = vld [vmem:[#allocation11 + $0xde0] sm:$0xff]
    %v2488 = vld [vmem:[#allocation11 + $0xde8] sm:$0xff]
    %v2489 = vld [vmem:[#allocation11 + $0xdf0] sm:$0xff]
    %v2490 = vld [vmem:[#allocation11 + $0xdf8] sm:$0xff]
    %v2491 = vld [vmem:[#allocation11 + $0xe00] sm:$0xff]
    %v2492 = vld [vmem:[#allocation11 + $0xe08] sm:$0xff]
    %v2493 = vld [vmem:[#allocation11 + $0xe10] sm:$0xff]
    %v2494 = vld [vmem:[#allocation11 + $0xe18] sm:$0xff]
    %v2495 = vld [vmem:[#allocation11 + $0xe20] sm:$0xff]
    %v2496 = vld [vmem:[#allocation11 + $0xe28] sm:$0xff]
    %v2497 = vld [vmem:[#allocation11 + $0xe30] sm:$0xff]
    %v2498 = vld [vmem:[#allocation11 + $0xe38] sm:$0xff]
    %v2499 = vld [vmem:[#allocation11 + $0xe40] sm:$0xff]
    %v2500 = vld [vmem:[#allocation11 + $0xe48] sm:$0xff]
    %v2501 = vld [vmem:[#allocation11 + $0xe50] sm:$0xff]
    %v2502 = vld [vmem:[#allocation11 + $0xe58] sm:$0xff]
    %v2503 = vld [vmem:[#allocation11 + $0xe60] sm:$0xff]
    %v2504 = vld [vmem:[#allocation11 + $0xe68] sm:$0xff]
    %v2505 = vld [vmem:[#allocation11 + $0xe70] sm:$0xff]
    %v2506 = vld [vmem:[#allocation11 + $0xe78] sm:$0xff]
    %v2507 = vld [vmem:[#allocation11 + $0xe80] sm:$0xff]
    %v2508 = vld [vmem:[#allocation11 + $0xe88] sm:$0xff]
    %v2509 = vld [vmem:[#allocation11 + $0xe90] sm:$0xff]
    %v2510 = vld [vmem:[#allocation11 + $0xe98] sm:$0xff]
    %v2511 = vld [vmem:[#allocation11 + $0xea0] sm:$0xff]
    %v2512 = vld [vmem:[#allocation11 + $0xea8] sm:$0xff]
    %v2513 = vld [vmem:[#allocation11 + $0xeb0] sm:$0xff]
    %v2514 = vld [vmem:[#allocation11 + $0xeb8] sm:$0xff]
    %v2515 = vld [vmem:[#allocation11 + $0xec0] sm:$0xff]
    %v2516 = vld [vmem:[#allocation11 + $0xec8] sm:$0xff]
    %v2517 = vld [vmem:[#allocation11 + $0xed0] sm:$0xff]
    %v2518 = vld [vmem:[#allocation11 + $0xed8] sm:$0xff]
    %v2519 = vld [vmem:[#allocation11 + $0xee0] sm:$0xff]
    %v2520 = vld [vmem:[#allocation11 + $0xee8] sm:$0xff]
    %v2521 = vld [vmem:[#allocation11 + $0xef0] sm:$0xff]
    %v2522 = vld [vmem:[#allocation11 + $0xef8] sm:$0xff]
    %v2523 = vld [vmem:[#allocation11 + $0xf00] sm:$0xff]
    %v2524 = vld [vmem:[#allocation11 + $0xf08] sm:$0xff]
    %v2525 = vld [vmem:[#allocation11 + $0xf10] sm:$0xff]
    %v2526 = vld [vmem:[#allocation11 + $0xf18] sm:$0xff]
    %v2527 = vld [vmem:[#allocation11 + $0xf20] sm:$0xff]
    %v2528 = vld [vmem:[#allocation11 + $0xf28] sm:$0xff]
    %v2529 = vld [vmem:[#allocation11 + $0xf30] sm:$0xff]
    %v2530 = vld [vmem:[#allocation11 + $0xf38] sm:$0xff]
    %v2531 = vld [vmem:[#allocation11 + $0xf40] sm:$0xff]
    %v2532 = vld [vmem:[#allocation11 + $0xf48] sm:$0xff]
    %v2533 = vld [vmem:[#allocation11 + $0xf50] sm:$0xff]
    %v2534 = vld [vmem:[#allocation11 + $0xf58] sm:$0xff]
    %v2535 = vld [vmem:[#allocation11 + $0xf60] sm:$0xff]
    %v2536 = vld [vmem:[#allocation11 + $0xf68] sm:$0xff]
    %v2537 = vld [vmem:[#allocation11 + $0xf70] sm:$0xff]
    %v2538 = vld [vmem:[#allocation11 + $0xf78] sm:$0xff]
    %v2539 = vld [vmem:[#allocation11 + $0xf80] sm:$0xff]
    %v2540 = vld [vmem:[#allocation11 + $0xf88] sm:$0xff]
    %v2541 = vld [vmem:[#allocation11 + $0xf90] sm:$0xff]
    %v2542 = vld [vmem:[#allocation11 + $0xf98] sm:$0xff]
    %v2543 = vld [vmem:[#allocation11 + $0xfa0] sm:$0xff]
    %v2544 = vld [vmem:[#allocation11 + $0xfa8] sm:$0xff]
    %v2545 = vld [vmem:[#allocation11 + $0xfb0] sm:$0xff]
    %v2546 = vld [vmem:[#allocation11 + $0xfb8] sm:$0xff]
    %v2547 = vld [vmem:[#allocation11 + $0xfc0] sm:$0xff]
    %v2548 = vld [vmem:[#allocation11 + $0xfc8] sm:$0xff]
    %v2549 = vld [vmem:[#allocation11 + $0xfd0] sm:$0xff]
    %v2550 = vld [vmem:[#allocation11 + $0xfd8] sm:$0xff]
    %v2551 = vld [vmem:[#allocation11 + $0xfe0] sm:$0xff]
    %v2552 = vld [vmem:[#allocation11 + $0xfe8] sm:$0xff]
    %v2553 = vld [vmem:[#allocation11 + $0xff0] sm:$0xff]
    %v2554 = vld [vmem:[#allocation11 + $0xff8] sm:$0xff]
    %v2555 = vld [vmem:[#allocation13] sm:$0xf]
    %v2557 = vlaneseq
    %v2558 = vshrl.u32 %v2557, 7
    %v2559 = vsub.s32 0, %v2558
    %v2560 = vrot.slane %v2555, %v2559
    %v2561 = vlaneseq
    %v2562 = vshrl.u32 %v2561, 7
    %v2563 = vsub.s32 1, %v2562
    %v2564 = vrot.slane %v2555, %v2563
    %v2565 = vlaneseq
    %v2566 = vshrl.u32 %v2565, 7
    %v2567 = vsub.s32 2, %v2566
    %v2568 = vrot.slane %v2555, %v2567
    %v2569 = vlaneseq
    %v2570 = vshrl.u32 %v2569, 7
    %v2571 = vsub.s32 3, %v2570
    %v2572 = vrot.slane %v2555, %v2571
    %2577 = vmatprep.subr.mxu0 %v2044
    %2578 = vmatpush1.msra.mxu0 %v2043
    %2579 = vmatprep.subr.mxu0 %v2048
    %2580 = vmatpush1.msra.mxu0 %v2047
    %2581 = vmatprep.subr.mxu0 %v2052
    %2582 = vmatpush1.msra.mxu0 %v2051
    %2583 = vmatprep.subr.mxu0 %v2056
    %2584 = vmatpush1.msra.mxu0 %v2055
    %2585 = vmatprep.subr.mxu0 %v2060
    %2586 = vmatpush1.msra.mxu0 %v2059
    %2587 = vmatprep.subr.mxu0 %v2064
    %2588 = vmatpush1.msra.mxu0 %v2063
    %2589 = vmatprep.subr.mxu0 %v2068
    %2590 = vmatpush1.msra.mxu0 %v2067
    %2591 = vmatprep.subr.mxu0 %v2072
    %2592 = vmatpush1.msra.mxu0 %v2071
    %2593 = vmatprep.subr.mxu0 %v2076
    %2594 = vmatpush1.msra.mxu0 %v2075
    %2595 = vmatprep.subr.mxu0 %v2080
    %2596 = vmatpush1.msra.mxu0 %v2079
    %2597 = vmatprep.subr.mxu0 %v2084
    %2598 = vmatpush1.msra.mxu0 %v2083
    %2599 = vmatprep.subr.mxu0 %v2088
    %2600 = vmatpush1.msra.mxu0 %v2087
    %2601 = vmatprep.subr.mxu0 %v2092
    %2602 = vmatpush1.msra.mxu0 %v2091
    %2603 = vmatprep.subr.mxu0 %v2096
    %2604 = vmatpush1.msra.mxu0 %v2095
    %2605 = vmatprep.subr.mxu0 %v2100
    %2606 = vmatpush1.msra.mxu0 %v2099
    %2607 = vmatprep.subr.mxu0 %v2104
    %2608 = vmatpush1.msra.mxu0 %v2103
    %2609 = vmatprep.subr.mxu0 %v2108
    %2610 = vmatpush1.msra.mxu0 %v2107
    %2611 = vmatprep.subr.mxu0 %v2112
    %2612 = vmatpush1.msra.mxu0 %v2111
    %2613 = vmatprep.subr.mxu0 %v2116
    %2614 = vmatpush1.msra.mxu0 %v2115
    %2615 = vmatprep.subr.mxu0 %v2120
    %2616 = vmatpush1.msra.mxu0 %v2119
    %2617 = vmatprep.subr.mxu0 %v2124
    %2618 = vmatpush1.msra.mxu0 %v2123
    %2619 = vmatprep.subr.mxu0 %v2128
    %2620 = vmatpush1.msra.mxu0 %v2127
    %2621 = vmatprep.subr.mxu0 %v2132
    %2622 = vmatpush1.msra.mxu0 %v2131
    %2623 = vmatprep.subr.mxu0 %v2136
    %2624 = vmatpush1.msra.mxu0 %v2135
    %2625 = vmatprep.subr.mxu0 %v2140
    %2626 = vmatpush1.msra.mxu0 %v2139
    %2627 = vmatprep.subr.mxu0 %v2144
    %2628 = vmatpush1.msra.mxu0 %v2143
    %2629 = vmatprep.subr.mxu0 %v2148
    %2630 = vmatpush1.msra.mxu0 %v2147
    %2631 = vmatprep.subr.mxu0 %v2152
    %2632 = vmatpush1.msra.mxu0 %v2151
    %2633 = vmatprep.subr.mxu0 %v2156
    %2634 = vmatpush1.msra.mxu0 %v2155
    %2635 = vmatprep.subr.mxu0 %v2160
    %2636 = vmatpush1.msra.mxu0 %v2159
    %2637 = vmatprep.subr.mxu0 %v2164
    %2638 = vmatpush1.msra.mxu0 %v2163
    %2639 = vmatprep.subr.mxu0 %v2168
    %2640 = vmatpush1.msra.mxu0 %v2167
    %2641 = vmatprep.mubr.f32.mxu0 %v1980
    %2642 = vmatmul.mubr.f32.gmra.mrb[0].mxu0 %v1979
    %v2643 = vpop.f32.mrb[0].mxu0
    %v2644 = vadd.f32 %v2560, %v2643
    %v2645 = vpop.f32.mrb[0].mxu0
    %v2646 = vadd.f32 %v2564, %v2645
    %2647 = vdwg.mxu0
    %2648 = vmatprep.subr.mxu0 %v2172
    %2649 = vmatpush1.msra.mxu0 %v2171
    %2650 = vmatprep.subr.mxu0 %v2176
    %2651 = vmatpush1.msra.mxu0 %v2175
    %2652 = vmatprep.subr.mxu0 %v2180
    %2653 = vmatpush1.msra.mxu0 %v2179
    %2654 = vmatprep.subr.mxu0 %v2184
    %2655 = vmatpush1.msra.mxu0 %v2183
    %2656 = vmatprep.subr.mxu0 %v2188
    %2657 = vmatpush1.msra.mxu0 %v2187
    %2658 = vmatprep.subr.mxu0 %v2192
    %2659 = vmatpush1.msra.mxu0 %v2191
    %2660 = vmatprep.subr.mxu0 %v2196
    %2661 = vmatpush1.msra.mxu0 %v2195
    %2662 = vmatprep.subr.mxu0 %v2200
    %2663 = vmatpush1.msra.mxu0 %v2199
    %2664 = vmatprep.subr.mxu0 %v2204
    %2665 = vmatpush1.msra.mxu0 %v2203
    %2666 = vmatprep.subr.mxu0 %v2208
    %2667 = vmatpush1.msra.mxu0 %v2207
    %2668 = vmatprep.subr.mxu0 %v2212
    %2669 = vmatpush1.msra.mxu0 %v2211
    %2670 = vmatprep.subr.mxu0 %v2216
    %2671 = vmatpush1.msra.mxu0 %v2215
    %2672 = vmatprep.subr.mxu0 %v2220
    %2673 = vmatpush1.msra.mxu0 %v2219
    %2674 = vmatprep.subr.mxu0 %v2224
    %2675 = vmatpush1.msra.mxu0 %v2223
    %2676 = vmatprep.subr.mxu0 %v2228
    %2677 = vmatpush1.msra.mxu0 %v2227
    %2678 = vmatprep.subr.mxu0 %v2232
    %2679 = vmatpush1.msra.mxu0 %v2231
    %2680 = vmatprep.subr.mxu0 %v2236
    %2681 = vmatpush1.msra.mxu0 %v2235
    %2682 = vmatprep.subr.mxu0 %v2240
    %2683 = vmatpush1.msra.mxu0 %v2239
    %2684 = vmatprep.subr.mxu0 %v2244
    %2685 = vmatpush1.msra.mxu0 %v2243
    %2686 = vmatprep.subr.mxu0 %v2248
    %2687 = vmatpush1.msra.mxu0 %v2247
    %2688 = vmatprep.subr.mxu0 %v2252
    %2689 = vmatpush1.msra.mxu0 %v2251
    %2690 = vmatprep.subr.mxu0 %v2256
    %2691 = vmatpush1.msra.mxu0 %v2255
    %2692 = vmatprep.subr.mxu0 %v2260
    %2693 = vmatpush1.msra.mxu0 %v2259
    %2694 = vmatprep.subr.mxu0 %v2264
    %2695 = vmatpush1.msra.mxu0 %v2263
    %2696 = vmatprep.subr.mxu0 %v2268
    %2697 = vmatpush1.msra.mxu0 %v2267
    %2698 = vmatprep.subr.mxu0 %v2272
    %2699 = vmatpush1.msra.mxu0 %v2271
    %2700 = vmatprep.subr.mxu0 %v2276
    %2701 = vmatpush1.msra.mxu0 %v2275
    %2702 = vmatprep.subr.mxu0 %v2280
    %2703 = vmatpush1.msra.mxu0 %v2279
    %2704 = vmatprep.subr.mxu0 %v2284
    %2705 = vmatpush1.msra.mxu0 %v2283
    %2706 = vmatprep.subr.mxu0 %v2288
    %2707 = vmatpush1.msra.mxu0 %v2287
    %2708 = vmatprep.subr.mxu0 %v2292
    %2709 = vmatpush1.msra.mxu0 %v2291
    %2710 = vmatprep.subr.mxu0 %v2296
    %2711 = vmatpush1.msra.mxu0 %v2295
    %2712 = vmatprep.mubr.f32.mxu0 %v1982
    %2713 = vmatmul.mubr.f32.gmra.mrb[0].mxu0 %v1981
    %v2714 = vpop.f32.mrb[0].mxu0
    %v2715 = vadd.f32 %v2644, %v2714
    %v2716 = vpop.f32.mrb[0].mxu0
    %v2717 = vadd.f32 %v2646, %v2716
    %2718 = vdwg.mxu0
    %2719 = vmatprep.subr.mxu0 %v2300
    %2720 = vmatpush1.msra.mxu0 %v2299
    %2721 = vmatprep.subr.mxu0 %v2304
    %2722 = vmatpush1.msra.mxu0 %v2303
    %2723 = vmatprep.subr.mxu0 %v2308
    %2724 = vmatpush1.msra.mxu0 %v2307
    %2725 = vmatprep.subr.mxu0 %v2312
    %2726 = vmatpush1.msra.mxu0 %v2311
    %2727 = vmatprep.subr.mxu0 %v2316
    %2728 = vmatpush1.msra.mxu0 %v2315
    %2729 = vmatprep.subr.mxu0 %v2320
    %2730 = vmatpush1.msra.mxu0 %v2319
    %2731 = vmatprep.subr.mxu0 %v2324
    %2732 = vmatpush1.msra.mxu0 %v2323
    %2733 = vmatprep.subr.mxu0 %v2328
    %2734 = vmatpush1.msra.mxu0 %v2327
    %2735 = vmatprep.subr.mxu0 %v2332
    %2736 = vmatpush1.msra.mxu0 %v2331
    %2737 = vmatprep.subr.mxu0 %v2336
    %2738 = vmatpush1.msra.mxu0 %v2335
    %2739 = vmatprep.subr.mxu0 %v2340
    %2740 = vmatpush1.msra.mxu0 %v2339
    %2741 = vmatprep.subr.mxu0 %v2344
    %2742 = vmatpush1.msra.mxu0 %v2343
    %2743 = vmatprep.subr.mxu0 %v2348
    %2744 = vmatpush1.msra.mxu0 %v2347
    %2745 = vmatprep.subr.mxu0 %v2352
    %2746 = vmatpush1.msra.mxu0 %v2351
    %2747 = vmatprep.subr.mxu0 %v2356
    %2748 = vmatpush1.msra.mxu0 %v2355
    %2749 = vmatprep.subr.mxu0 %v2360
    %2750 = vmatpush1.msra.mxu0 %v2359
    %2751 = vmatprep.subr.mxu0 %v2364
    %2752 = vmatpush1.msra.mxu0 %v2363
    %2753 = vmatprep.subr.mxu0 %v2368
    %2754 = vmatpush1.msra.mxu0 %v2367
    %2755 = vmatprep.subr.mxu0 %v2372
    %2756 = vmatpush1.msra.mxu0 %v2371
    %2757 = vmatprep.subr.mxu0 %v2376
    %2758 = vmatpush1.msra.mxu0 %v2375
    %2759 = vmatprep.subr.mxu0 %v2380
    %2760 = vmatpush1.msra.mxu0 %v2379
    %2761 = vmatprep.subr.mxu0 %v2384
    %2762 = vmatpush1.msra.mxu0 %v2383
    %2763 = vmatprep.subr.mxu0 %v2388
    %2764 = vmatpush1.msra.mxu0 %v2387
    %2765 = vmatprep.subr.mxu0 %v2392
    %2766 = vmatpush1.msra.mxu0 %v2391
    %2767 = vmatprep.subr.mxu0 %v2396
    %2768 = vmatpush1.msra.mxu0 %v2395
    %2769 = vmatprep.subr.mxu0 %v2400
    %2770 = vmatpush1.msra.mxu0 %v2399
    %2771 = vmatprep.subr.mxu0 %v2404
    %2772 = vmatpush1.msra.mxu0 %v2403
    %2773 = vmatprep.subr.mxu0 %v2408
    %2774 = vmatpush1.msra.mxu0 %v2407
    %2775 = vmatprep.subr.mxu0 %v2412
    %2776 = vmatpush1.msra.mxu0 %v2411
    %2777 = vmatprep.subr.mxu0 %v2416
    %2778 = vmatpush1.msra.mxu0 %v2415
    %2779 = vmatprep.subr.mxu0 %v2420
    %2780 = vmatpush1.msra.mxu0 %v2419
    %2781 = vmatprep.subr.mxu0 %v2424
    %2782 = vmatpush1.msra.mxu0 %v2423
    %2783 = vmatprep.mubr.f32.mxu0 %v1984
    %2784 = vmatmul.mubr.f32.gmra.mrb[0].mxu0 %v1983
    %v2785 = vpop.f32.mrb[0].mxu0
    %v2786 = vadd.f32 %v2715, %v2785
    %v2787 = vpop.f32.mrb[0].mxu0
    %v2788 = vadd.f32 %v2717, %v2787
    %2789 = vdwg.mxu0
    %2790 = vmatprep.subr.mxu0 %v2428
    %2791 = vmatpush1.msra.mxu0 %v2427
    %2792 = vmatprep.subr.mxu0 %v2432
    %2793 = vmatpush1.msra.mxu0 %v2431
    %2794 = vmatprep.subr.mxu0 %v2436
    %2795 = vmatpush1.msra.mxu0 %v2435
    %2796 = vmatprep.subr.mxu0 %v2440
    %2797 = vmatpush1.msra.mxu0 %v2439
    %2798 = vmatprep.subr.mxu0 %v2444
    %2799 = vmatpush1.msra.mxu0 %v2443
    %2800 = vmatprep.subr.mxu0 %v2448
    %2801 = vmatpush1.msra.mxu0 %v2447
    %2802 = vmatprep.subr.mxu0 %v2452
    %2803 = vmatpush1.msra.mxu0 %v2451
    %2804 = vmatprep.subr.mxu0 %v2456
    %2805 = vmatpush1.msra.mxu0 %v2455
    %2806 = vmatprep.subr.mxu0 %v2460
    %2807 = vmatpush1.msra.mxu0 %v2459
    %2808 = vmatprep.subr.mxu0 %v2464
    %2809 = vmatpush1.msra.mxu0 %v2463
    %2810 = vmatprep.subr.mxu0 %v2468
    %2811 = vmatpush1.msra.mxu0 %v2467
    %2812 = vmatprep.subr.mxu0 %v2472
    %2813 = vmatpush1.msra.mxu0 %v2471
    %2814 = vmatprep.subr.mxu0 %v2476
    %2815 = vmatpush1.msra.mxu0 %v2475
    %2816 = vmatprep.subr.mxu0 %v2480
    %2817 = vmatpush1.msra.mxu0 %v2479
    %2818 = vmatprep.subr.mxu0 %v2484
    %2819 = vmatpush1.msra.mxu0 %v2483
    %2820 = vmatprep.subr.mxu0 %v2488
    %2821 = vmatpush1.msra.mxu0 %v2487
    %2822 = vmatprep.subr.mxu0 %v2492
    %2823 = vmatpush1.msra.mxu0 %v2491
    %2824 = vmatprep.subr.mxu0 %v2496
    %2825 = vmatpush1.msra.mxu0 %v2495
    %2826 = vmatprep.subr.mxu0 %v2500
    %2827 = vmatpush1.msra.mxu0 %v2499
    %2828 = vmatprep.subr.mxu0 %v2504
    %2829 = vmatpush1.msra.mxu0 %v2503
    %2830 = vmatprep.subr.mxu0 %v2508
    %2831 = vmatpush1.msra.mxu0 %v2507
    %2832 = vmatprep.subr.mxu0 %v2512
    %2833 = vmatpush1.msra.mxu0 %v2511
    %2834 = vmatprep.subr.mxu0 %v2516
    %2835 = vmatpush1.msra.mxu0 %v2515
    %2836 = vmatprep.subr.mxu0 %v2520
    %2837 = vmatpush1.msra.mxu0 %v2519
    %2838 = vmatprep.subr.mxu0 %v2524
    %2839 = vmatpush1.msra.mxu0 %v2523
    %2840 = vmatprep.subr.mxu0 %v2528
    %2841 = vmatpush1.msra.mxu0 %v2527
    %2842 = vmatprep.subr.mxu0 %v2532
    %2843 = vmatpush1.msra.mxu0 %v2531
    %2844 = vmatprep.subr.mxu0 %v2536
    %2845 = vmatpush1.msra.mxu0 %v2535
    %2846 = vmatprep.subr.mxu0 %v2540
    %2847 = vmatpush1.msra.mxu0 %v2539
    %2848 = vmatprep.subr.mxu0 %v2544
    %2849 = vmatpush1.msra.mxu0 %v2543
    %2850 = vmatprep.subr.mxu0 %v2548
    %2851 = vmatpush1.msra.mxu0 %v2547
    %2852 = vmatprep.subr.mxu0 %v2552
    %2853 = vmatpush1.msra.mxu0 %v2551
    %2854 = vmatprep.mubr.f32.mxu0 %v1986
    %2855 = vmatmul.mubr.f32.gmra.mrb[0].mxu0 %v1985
    %v2856 = vpop.f32.mrb[0].mxu0
    %v2857 = vadd.f32 %v2786, %v2856
    %v2858 = vpop.f32.mrb[0].mxu0
    %v2859 = vadd.f32 %v2788, %v2858
    %2860 = vdwg.mxu0
    %2861 = vmatprep.subr.mxu0 %v2046
    %2862 = vmatpush1.msra.mxu0 %v2045
    %2863 = vmatprep.subr.mxu0 %v2050
    %2864 = vmatpush1.msra.mxu0 %v2049
    %2865 = vmatprep.subr.mxu0 %v2054
    %2866 = vmatpush1.msra.mxu0 %v2053
    %2867 = vmatprep.subr.mxu0 %v2058
    %2868 = vmatpush1.msra.mxu0 %v2057
    %2869 = vmatprep.subr.mxu0 %v2062
    %2870 = vmatpush1.msra.mxu0 %v2061
    %2871 = vmatprep.subr.mxu0 %v2066
    %2872 = vmatpush1.msra.mxu0 %v2065
    %2873 = vmatprep.subr.mxu0 %v2070
    %2874 = vmatpush1.msra.mxu0 %v2069
    %2875 = vmatprep.subr.mxu0 %v2074
    %2876 = vmatpush1.msra.mxu0 %v2073
    %2877 = vmatprep.subr.mxu0 %v2078
    %2878 = vmatpush1.msra.mxu0 %v2077
    %2879 = vmatprep.subr.mxu0 %v2082
    %2880 = vmatpush1.msra.mxu0 %v2081
    %2881 = vmatprep.subr.mxu0 %v2086
    %2882 = vmatpush1.msra.mxu0 %v2085
    %2883 = vmatprep.subr.mxu0 %v2090
    %2884 = vmatpush1.msra.mxu0 %v2089
    %2885 = vmatprep.subr.mxu0 %v2094
    %2886 = vmatpush1.msra.mxu0 %v2093
    %2887 = vmatprep.subr.mxu0 %v2098
    %2888 = vmatpush1.msra.mxu0 %v2097
    %2889 = vmatprep.subr.mxu0 %v2102
    %2890 = vmatpush1.msra.mxu0 %v2101
    %2891 = vmatprep.subr.mxu0 %v2106
    %2892 = vmatpush1.msra.mxu0 %v2105
    %2893 = vmatprep.subr.mxu0 %v2110
    %2894 = vmatpush1.msra.mxu0 %v2109
    %2895 = vmatprep.subr.mxu0 %v2114
    %2896 = vmatpush1.msra.mxu0 %v2113
    %2897 = vmatprep.subr.mxu0 %v2118
    %2898 = vmatpush1.msra.mxu0 %v2117
    %2899 = vmatprep.subr.mxu0 %v2122
    %2900 = vmatpush1.msra.mxu0 %v2121
    %2901 = vmatprep.subr.mxu0 %v2126
    %2902 = vmatpush1.msra.mxu0 %v2125
    %2903 = vmatprep.subr.mxu0 %v2130
    %2904 = vmatpush1.msra.mxu0 %v2129
    %2905 = vmatprep.subr.mxu0 %v2134
    %2906 = vmatpush1.msra.mxu0 %v2133
    %2907 = vmatprep.subr.mxu0 %v2138
    %2908 = vmatpush1.msra.mxu0 %v2137
    %2909 = vmatprep.subr.mxu0 %v2142
    %2910 = vmatpush1.msra.mxu0 %v2141
    %2911 = vmatprep.subr.mxu0 %v2146
    %2912 = vmatpush1.msra.mxu0 %v2145
    %2913 = vmatprep.subr.mxu0 %v2150
    %2914 = vmatpush1.msra.mxu0 %v2149
    %2915 = vmatprep.subr.mxu0 %v2154
    %2916 = vmatpush1.msra.mxu0 %v2153
    %2917 = vmatprep.subr.mxu0 %v2158
    %2918 = vmatpush1.msra.mxu0 %v2157
    %2919 = vmatprep.subr.mxu0 %v2162
    %2920 = vmatpush1.msra.mxu0 %v2161
    %2921 = vmatprep.subr.mxu0 %v2166
    %2922 = vmatpush1.msra.mxu0 %v2165
    %2923 = vmatprep.subr.mxu0 %v2170
    %2924 = vmatpush1.msra.mxu0 %v2169
    %2925 = vmatprep.mubr.f32.mxu0 %v1980
    %2926 = vmatmul.mubr.f32.gmra.mrb[0].mxu0 %v1979
    %v2927 = vpop.f32.mrb[0].mxu0
    %v2928 = vadd.f32 %v2568, %v2927
    %v2929 = vpop.f32.mrb[0].mxu0
    %v2930 = vadd.f32 %v2572, %v2929
    %2931 = vdwg.mxu0
    %2932 = vmatprep.subr.mxu0 %v2174
    %2933 = vmatpush1.msra.mxu0 %v2173
    %2934 = vmatprep.subr.mxu0 %v2178
    %2935 = vmatpush1.msra.mxu0 %v2177
    %2936 = vmatprep.subr.mxu0 %v2182
    %2937 = vmatpush1.msra.mxu0 %v2181
    %2938 = vmatprep.subr.mxu0 %v2186
    %2939 = vmatpush1.msra.mxu0 %v2185
    %2940 = vmatprep.subr.mxu0 %v2190
    %2941 = vmatpush1.msra.mxu0 %v2189
    %2942 = vmatprep.subr.mxu0 %v2194
    %2943 = vmatpush1.msra.mxu0 %v2193
    %2944 = vmatprep.subr.mxu0 %v2198
    %2945 = vmatpush1.msra.mxu0 %v2197
    %2946 = vmatprep.subr.mxu0 %v2202
    %2947 = vmatpush1.msra.mxu0 %v2201
    %2948 = vmatprep.subr.mxu0 %v2206
    %2949 = vmatpush1.msra.mxu0 %v2205
    %2950 = vmatprep.subr.mxu0 %v2210
    %2951 = vmatpush1.msra.mxu0 %v2209
    %2952 = vmatprep.subr.mxu0 %v2214
    %2953 = vmatpush1.msra.mxu0 %v2213
    %2954 = vmatprep.subr.mxu0 %v2218
    %2955 = vmatpush1.msra.mxu0 %v2217
    %2956 = vmatprep.subr.mxu0 %v2222
    %2957 = vmatpush1.msra.mxu0 %v2221
    %2958 = vmatprep.subr.mxu0 %v2226
    %2959 = vmatpush1.msra.mxu0 %v2225
    %2960 = vmatprep.subr.mxu0 %v2230
    %2961 = vmatpush1.msra.mxu0 %v2229
    %2962 = vmatprep.subr.mxu0 %v2234
    %2963 = vmatpush1.msra.mxu0 %v2233
    %2964 = vmatprep.subr.mxu0 %v2238
    %2965 = vmatpush1.msra.mxu0 %v2237
    %2966 = vmatprep.subr.mxu0 %v2242
    %2967 = vmatpush1.msra.mxu0 %v2241
    %2968 = vmatprep.subr.mxu0 %v2246
    %2969 = vmatpush1.msra.mxu0 %v2245
    %2970 = vmatprep.subr.mxu0 %v2250
    %2971 = vmatpush1.msra.mxu0 %v2249
    %2972 = vmatprep.subr.mxu0 %v2254
    %2973 = vmatpush1.msra.mxu0 %v2253
    %2974 = vmatprep.subr.mxu0 %v2258
    %2975 = vmatpush1.msra.mxu0 %v2257
    %2976 = vmatprep.subr.mxu0 %v2262
    %2977 = vmatpush1.msra.mxu0 %v2261
    %2978 = vmatprep.subr.mxu0 %v2266
    %2979 = vmatpush1.msra.mxu0 %v2265
    %2980 = vmatprep.subr.mxu0 %v2270
    %2981 = vmatpush1.msra.mxu0 %v2269
    %2982 = vmatprep.subr.mxu0 %v2274
    %2983 = vmatpush1.msra.mxu0 %v2273
    %2984 = vmatprep.subr.mxu0 %v2278
    %2985 = vmatpush1.msra.mxu0 %v2277
    %2986 = vmatprep.subr.mxu0 %v2282
    %2987 = vmatpush1.msra.mxu0 %v2281
    %2988 = vmatprep.subr.mxu0 %v2286
    %2989 = vmatpush1.msra.mxu0 %v2285
    %2990 = vmatprep.subr.mxu0 %v2290
    %2991 = vmatpush1.msra.mxu0 %v2289
    %2992 = vmatprep.subr.mxu0 %v2294
    %2993 = vmatpush1.msra.mxu0 %v2293
    %2994 = vmatprep.subr.mxu0 %v2298
    %2995 = vmatpush1.msra.mxu0 %v2297
    %2996 = vmatprep.mubr.f32.mxu0 %v1982
    %2997 = vmatmul.mubr.f32.gmra.mrb[0].mxu0 %v1981
    %v2998 = vpop.f32.mrb[0].mxu0
    %v2999 = vadd.f32 %v2928, %v2998
    %v3000 = vpop.f32.mrb[0].mxu0
    %v3001 = vadd.f32 %v2930, %v3000
    %3002 = vdwg.mxu0
    %3003 = vmatprep.subr.mxu0 %v2302
    %3004 = vmatpush1.msra.mxu0 %v2301
    %3005 = vmatprep.subr.mxu0 %v2306
    %3006 = vmatpush1.msra.mxu0 %v2305
    %3007 = vmatprep.subr.mxu0 %v2310
    %3008 = vmatpush1.msra.mxu0 %v2309
    %3009 = vmatprep.subr.mxu0 %v2314
    %3010 = vmatpush1.msra.mxu0 %v2313
    %3011 = vmatprep.subr.mxu0 %v2318
    %3012 = vmatpush1.msra.mxu0 %v2317
    %3013 = vmatprep.subr.mxu0 %v2322
    %3014 = vmatpush1.msra.mxu0 %v2321
    %3015 = vmatprep.subr.mxu0 %v2326
    %3016 = vmatpush1.msra.mxu0 %v2325
    %3017 = vmatprep.subr.mxu0 %v2330
    %3018 = vmatpush1.msra.mxu0 %v2329
    %3019 = vmatprep.subr.mxu0 %v2334
    %3020 = vmatpush1.msra.mxu0 %v2333
    %3021 = vmatprep.subr.mxu0 %v2338
    %3022 = vmatpush1.msra.mxu0 %v2337
    %3023 = vmatprep.subr.mxu0 %v2342
    %3024 = vmatpush1.msra.mxu0 %v2341
    %3025 = vmatprep.subr.mxu0 %v2346
    %3026 = vmatpush1.msra.mxu0 %v2345
    %3027 = vmatprep.subr.mxu0 %v2350
    %3028 = vmatpush1.msra.mxu0 %v2349
    %3029 = vmatprep.subr.mxu0 %v2354
    %3030 = vmatpush1.msra.mxu0 %v2353
    %3031 = vmatprep.subr.mxu0 %v2358
    %3032 = vmatpush1.msra.mxu0 %v2357
    %3033 = vmatprep.subr.mxu0 %v2362
    %3034 = vmatpush1.msra.mxu0 %v2361
    %3035 = vmatprep.subr.mxu0 %v2366
    %3036 = vmatpush1.msra.mxu0 %v2365
    %3037 = vmatprep.subr.mxu0 %v2370
    %3038 = vmatpush1.msra.mxu0 %v2369
    %3039 = vmatprep.subr.mxu0 %v2374
    %3040 = vmatpush1.msra.mxu0 %v2373
    %3041 = vmatprep.subr.mxu0 %v2378
    %3042 = vmatpush1.msra.mxu0 %v2377
    %3043 = vmatprep.subr.mxu0 %v2382
    %3044 = vmatpush1.msra.mxu0 %v2381
    %3045 = vmatprep.subr.mxu0 %v2386
    %3046 = vmatpush1.msra.mxu0 %v2385
    %3047 = vmatprep.subr.mxu0 %v2390
    %3048 = vmatpush1.msra.mxu0 %v2389
    %3049 = vmatprep.subr.mxu0 %v2394
    %3050 = vmatpush1.msra.mxu0 %v2393
    %3051 = vmatprep.subr.mxu0 %v2398
    %3052 = vmatpush1.msra.mxu0 %v2397
    %3053 = vmatprep.subr.mxu0 %v2402
    %3054 = vmatpush1.msra.mxu0 %v2401
    %3055 = vmatprep.subr.mxu0 %v2406
    %3056 = vmatpush1.msra.mxu0 %v2405
    %3057 = vmatprep.subr.mxu0 %v2410
    %3058 = vmatpush1.msra.mxu0 %v2409
    %3059 = vmatprep.subr.mxu0 %v2414
    %3060 = vmatpush1.msra.mxu0 %v2413
    %3061 = vmatprep.subr.mxu0 %v2418
    %3062 = vmatpush1.msra.mxu0 %v2417
    %3063 = vmatprep.subr.mxu0 %v2422
    %3064 = vmatpush1.msra.mxu0 %v2421
    %3065 = vmatprep.subr.mxu0 %v2426
    %3066 = vmatpush1.msra.mxu0 %v2425
    %3067 = vmatprep.mubr.f32.mxu0 %v1984
    %3068 = vmatmul.mubr.f32.gmra.mrb[0].mxu0 %v1983
    %v3069 = vpop.f32.mrb[0].mxu0
    %v3070 = vadd.f32 %v2999, %v3069
    %v3071 = vpop.f32.mrb[0].mxu0
    %v3072 = vadd.f32 %v3001, %v3071
    %3073 = vdwg.mxu0
    %3074 = vmatprep.subr.mxu0 %v2430
    %3075 = vmatpush1.msra.mxu0 %v2429
    %3076 = vmatprep.subr.mxu0 %v2434
    %3077 = vmatpush1.msra.mxu0 %v2433
    %3078 = vmatprep.subr.mxu0 %v2438
    %3079 = vmatpush1.msra.mxu0 %v2437
    %3080 = vmatprep.subr.mxu0 %v2442
    %3081 = vmatpush1.msra.mxu0 %v2441
    %3082 = vmatprep.subr.mxu0 %v2446
    %3083 = vmatpush1.msra.mxu0 %v2445
    %3084 = vmatprep.subr.mxu0 %v2450
    %3085 = vmatpush1.msra.mxu0 %v2449
    %3086 = vmatprep.subr.mxu0 %v2454
    %3087 = vmatpush1.msra.mxu0 %v2453
    %3088 = vmatprep.subr.mxu0 %v2458
    %3089 = vmatpush1.msra.mxu0 %v2457
    %3090 = vmatprep.subr.mxu0 %v2462
    %3091 = vmatpush1.msra.mxu0 %v2461
    %3092 = vmatprep.subr.mxu0 %v2466
    %3093 = vmatpush1.msra.mxu0 %v2465
    %3094 = vmatprep.subr.mxu0 %v2470
    %3095 = vmatpush1.msra.mxu0 %v2469
    %3096 = vmatprep.subr.mxu0 %v2474
    %3097 = vmatpush1.msra.mxu0 %v2473
    %3098 = vmatprep.subr.mxu0 %v2478
    %3099 = vmatpush1.msra.mxu0 %v2477
    %3100 = vmatprep.subr.mxu0 %v2482
    %3101 = vmatpush1.msra.mxu0 %v2481
    %3102 = vmatprep.subr.mxu0 %v2486
    %3103 = vmatpush1.msra.mxu0 %v2485
    %3104 = vmatprep.subr.mxu0 %v2490
    %3105 = vmatpush1.msra.mxu0 %v2489
    %3106 = vmatprep.subr.mxu0 %v2494
    %3107 = vmatpush1.msra.mxu0 %v2493
    %3108 = vmatprep.subr.mxu0 %v2498
    %3109 = vmatpush1.msra.mxu0 %v2497
    %3110 = vmatprep.subr.mxu0 %v2502
    %3111 = vmatpush1.msra.mxu0 %v2501
    %3112 = vmatprep.subr.mxu0 %v2506
    %3113 = vmatpush1.msra.mxu0 %v2505
    %3114 = vmatprep.subr.mxu0 %v2510
    %3115 = vmatpush1.msra.mxu0 %v2509
    %3116 = vmatprep.subr.mxu0 %v2514
    %3117 = vmatpush1.msra.mxu0 %v2513
    %3118 = vmatprep.subr.mxu0 %v2518
    %3119 = vmatpush1.msra.mxu0 %v2517
    %3120 = vmatprep.subr.mxu0 %v2522
    %3121 = vmatpush1.msra.mxu0 %v2521
    %3122 = vmatprep.subr.mxu0 %v2526
    %3123 = vmatpush1.msra.mxu0 %v2525
    %3124 = vmatprep.subr.mxu0 %v2530
    %3125 = vmatpush1.msra.mxu0 %v2529
    %3126 = vmatprep.subr.mxu0 %v2534
    %3127 = vmatpush1.msra.mxu0 %v2533
    %3128 = vmatprep.subr.mxu0 %v2538
    %3129 = vmatpush1.msra.mxu0 %v2537
    %3130 = vmatprep.subr.mxu0 %v2542
    %3131 = vmatpush1.msra.mxu0 %v2541
    %3132 = vmatprep.subr.mxu0 %v2546
    %3133 = vmatpush1.msra.mxu0 %v2545
    %3134 = vmatprep.subr.mxu0 %v2550
    %3135 = vmatpush1.msra.mxu0 %v2549
    %3136 = vmatprep.subr.mxu0 %v2554
    %3137 = vmatpush1.msra.mxu0 %v2553
    %3138 = vmatprep.mubr.f32.mxu0 %v1986
    %3139 = vmatmul.mubr.f32.gmra.mrb[0].mxu0 %v1985
    %v3140 = vpop.f32.mrb[0].mxu0
    %v3141 = vadd.f32 %v3070, %v3140
    %v3142 = vpop.f32.mrb[0].mxu0
    %v3143 = vadd.f32 %v3072, %v3142
    %3144 = vdwg.mxu0
    %v3145 = vmul.f32 %v2857, 0.5
    %v3146 = vmul.f32 %v2859, 0.5
    %v3147 = vmul.f32 %v3141, 0.5
    %v3148 = vmul.f32 %v3143, 0.5
    %v3149 = vmul.f32 %v2857, 0.044715
    %v3150 = vmul.f32 %v2859, 0.044715
    %v3151 = vmul.f32 %v3141, 0.044715
    %v3152 = vmul.f32 %v3143, 0.044715
    %v3153 = vmul.f32 %v3149, %v2857
    %v3154 = vmul.f32 %v3150, %v2859
    %v3155 = vmul.f32 %v3151, %v3141
    %v3156 = vmul.f32 %v3152, %v3143
    %v3157 = vmul.f32 %v3153, %v2857
    %v3158 = vmul.f32 %v3154, %v2859
    %v3159 = vmul.f32 %v3155, %v3141
    %v3160 = vmul.f32 %v3156, %v3143
    %v3161 = vadd.f32 %v2857, %v3157
    %v3162 = vadd.f32 %v2859, %v3158
    %v3163 = vadd.f32 %v3141, %v3159
    %v3164 = vadd.f32 %v3143, %v3160
    %v3165 = vmul.f32 %v3161, 0.7978846
    %v3166 = vmul.f32 %v3162, 0.7978846
    %v3167 = vmul.f32 %v3163, 0.7978846
    %v3168 = vmul.f32 %v3164, 0.7978846
    %v3169 = vtanh.pop %v3165
    %v3170 = vtanh.pop %v3166
    %v3171 = vtanh.pop %v3167
    %v3172 = vtanh.pop %v3168
    %v3173 = vadd.f32 %v3169, 1.0
    %v3174 = vadd.f32 %v3170, 1.0
    %v3175 = vadd.f32 %v3171, 1.0
    %v3176 = vadd.f32 %v3172, 1.0
    %v3177 = vmul.f32 %v3145, %v3173
    %v3178 = vmul.f32 %v3146, %v3174
    %v3179 = vmul.f32 %v3147, %v3175
    %v3180 = vmul.f32 %v3148, %v3176
    %v3181 = vld [vmem:[#allocation14] sm:$0xff]
    %v3182 = vld [vmem:[#allocation14 + $0x8] sm:$0xff]
    %v3183 = vld [vmem:[#allocation14 + $0x10] sm:$0xff]
    %v3184 = vld [vmem:[#allocation14 + $0x18] sm:$0xff]
    %v3185 = vld [vmem:[#allocation14 + $0x20] sm:$0xff]
    %v3186 = vld [vmem:[#allocation14 + $0x28] sm:$0xff]
    %v3187 = vld [vmem:[#allocation14 + $0x30] sm:$0xff]
    %v3188 = vld [vmem:[#allocation14 + $0x38] sm:$0xff]
    %v3189 = vld [vmem:[#allocation14 + $0x40] sm:$0xff]
    %v3190 = vld [vmem:[#allocation14 + $0x48] sm:$0xff]
    %v3191 = vld [vmem:[#allocation14 + $0x50] sm:$0xff]
    %v3192 = vld [vmem:[#allocation14 + $0x58] sm:$0xff]
    %v3193 = vld [vmem:[#allocation14 + $0x60] sm:$0xff]
    %v3194 = vld [vmem:[#allocation14 + $0x68] sm:$0xff]
    %v3195 = vld [vmem:[#allocation14 + $0x70] sm:$0xff]
    %v3196 = vld [vmem:[#allocation14 + $0x78] sm:$0xff]
    %v3197 = vld [vmem:[#allocation14 + $0x80] sm:$0xff]
    %v3198 = vld [vmem:[#allocation14 + $0x88] sm:$0xff]
    %v3199 = vld [vmem:[#allocation14 + $0x90] sm:$0xff]
    %v3200 = vld [vmem:[#allocation14 + $0x98] sm:$0xff]
    %v3201 = vld [vmem:[#allocation14 + $0xa0] sm:$0xff]
    %v3202 = vld [vmem:[#allocation14 + $0xa8] sm:$0xff]
    %v3203 = vld [vmem:[#allocation14 + $0xb0] sm:$0xff]
    %v3204 = vld [vmem:[#allocation14 + $0xb8] sm:$0xff]
    %v3205 = vld [vmem:[#allocation14 + $0xc0] sm:$0xff]
    %v3206 = vld [vmem:[#allocation14 + $0xc8] sm:$0xff]
    %v3207 = vld [vmem:[#allocation14 + $0xd0] sm:$0xff]
    %v3208 = vld [vmem:[#allocation14 + $0xd8] sm:$0xff]
    %v3209 = vld [vmem:[#allocation14 + $0xe0] sm:$0xff]
    %v3210 = vld [vmem:[#allocation14 + $0xe8] sm:$0xff]
    %v3211 = vld [vmem:[#allocation14 + $0xf0] sm:$0xff]
    %v3212 = vld [vmem:[#allocation14 + $0xf8] sm:$0xff]
    %v3213 = vld [vmem:[#allocation14 + $0x100] sm:$0xff]
    %v3214 = vld [vmem:[#allocation14 + $0x108] sm:$0xff]
    %v3215 = vld [vmem:[#allocation14 + $0x110] sm:$0xff]
    %v3216 = vld [vmem:[#allocation14 + $0x118] sm:$0xff]
    %v3217 = vld [vmem:[#allocation14 + $0x120] sm:$0xff]
    %v3218 = vld [vmem:[#allocation14 + $0x128] sm:$0xff]
    %v3219 = vld [vmem:[#allocation14 + $0x130] sm:$0xff]
    %v3220 = vld [vmem:[#allocation14 + $0x138] sm:$0xff]
    %v3221 = vld [vmem:[#allocation14 + $0x140] sm:$0xff]
    %v3222 = vld [vmem:[#allocation14 + $0x148] sm:$0xff]
    %v3223 = vld [vmem:[#allocation14 + $0x150] sm:$0xff]
    %v3224 = vld [vmem:[#allocation14 + $0x158] sm:$0xff]
    %v3225 = vld [vmem:[#allocation14 + $0x160] sm:$0xff]
    %v3226 = vld [vmem:[#allocation14 + $0x168] sm:$0xff]
    %v3227 = vld [vmem:[#allocation14 + $0x170] sm:$0xff]
    %v3228 = vld [vmem:[#allocation14 + $0x178] sm:$0xff]
    %v3229 = vld [vmem:[#allocation14 + $0x180] sm:$0xff]
    %v3230 = vld [vmem:[#allocation14 + $0x188] sm:$0xff]
    %v3231 = vld [vmem:[#allocation14 + $0x190] sm:$0xff]
    %v3232 = vld [vmem:[#allocation14 + $0x198] sm:$0xff]
    %v3233 = vld [vmem:[#allocation14 + $0x1a0] sm:$0xff]
    %v3234 = vld [vmem:[#allocation14 + $0x1a8] sm:$0xff]
    %v3235 = vld [vmem:[#allocation14 + $0x1b0] sm:$0xff]
    %v3236 = vld [vmem:[#allocation14 + $0x1b8] sm:$0xff]
    %v3237 = vld [vmem:[#allocation14 + $0x1c0] sm:$0xff]
    %v3238 = vld [vmem:[#allocation14 + $0x1c8] sm:$0xff]
    %v3239 = vld [vmem:[#allocation14 + $0x1d0] sm:$0xff]
    %v3240 = vld [vmem:[#allocation14 + $0x1d8] sm:$0xff]
    %v3241 = vld [vmem:[#allocation14 + $0x1e0] sm:$0xff]
    %v3242 = vld [vmem:[#allocation14 + $0x1e8] sm:$0xff]
    %v3243 = vld [vmem:[#allocation14 + $0x1f0] sm:$0xff]
    %v3244 = vld [vmem:[#allocation14 + $0x1f8] sm:$0xff]
    %v3245 = vld [vmem:[#allocation14 + $0x200] sm:$0xff]
    %v3246 = vld [vmem:[#allocation14 + $0x208] sm:$0xff]
    %v3247 = vld [vmem:[#allocation14 + $0x210] sm:$0xff]
    %v3248 = vld [vmem:[#allocation14 + $0x218] sm:$0xff]
    %v3249 = vld [vmem:[#allocation14 + $0x220] sm:$0xff]
    %v3250 = vld [vmem:[#allocation14 + $0x228] sm:$0xff]
    %v3251 = vld [vmem:[#allocation14 + $0x230] sm:$0xff]
    %v3252 = vld [vmem:[#allocation14 + $0x238] sm:$0xff]
    %v3253 = vld [vmem:[#allocation14 + $0x240] sm:$0xff]
    %v3254 = vld [vmem:[#allocation14 + $0x248] sm:$0xff]
    %v3255 = vld [vmem:[#allocation14 + $0x250] sm:$0xff]
    %v3256 = vld [vmem:[#allocation14 + $0x258] sm:$0xff]
    %v3257 = vld [vmem:[#allocation14 + $0x260] sm:$0xff]
    %v3258 = vld [vmem:[#allocation14 + $0x268] sm:$0xff]
    %v3259 = vld [vmem:[#allocation14 + $0x270] sm:$0xff]
    %v3260 = vld [vmem:[#allocation14 + $0x278] sm:$0xff]
    %v3261 = vld [vmem:[#allocation14 + $0x280] sm:$0xff]
    %v3262 = vld [vmem:[#allocation14 + $0x288] sm:$0xff]
    %v3263 = vld [vmem:[#allocation14 + $0x290] sm:$0xff]
    %v3264 = vld [vmem:[#allocation14 + $0x298] sm:$0xff]
    %v3265 = vld [vmem:[#allocation14 + $0x2a0] sm:$0xff]
    %v3266 = vld [vmem:[#allocation14 + $0x2a8] sm:$0xff]
    %v3267 = vld [vmem:[#allocation14 + $0x2b0] sm:$0xff]
    %v3268 = vld [vmem:[#allocation14 + $0x2b8] sm:$0xff]
    %v3269 = vld [vmem:[#allocation14 + $0x2c0] sm:$0xff]
    %v3270 = vld [vmem:[#allocation14 + $0x2c8] sm:$0xff]
    %v3271 = vld [vmem:[#allocation14 + $0x2d0] sm:$0xff]
    %v3272 = vld [vmem:[#allocation14 + $0x2d8] sm:$0xff]
    %v3273 = vld [vmem:[#allocation14 + $0x2e0] sm:$0xff]
    %v3274 = vld [vmem:[#allocation14 + $0x2e8] sm:$0xff]
    %v3275 = vld [vmem:[#allocation14 + $0x2f0] sm:$0xff]
    %v3276 = vld [vmem:[#allocation14 + $0x2f8] sm:$0xff]
    %v3277 = vld [vmem:[#allocation14 + $0x300] sm:$0xff]
    %v3278 = vld [vmem:[#allocation14 + $0x308] sm:$0xff]
    %v3279 = vld [vmem:[#allocation14 + $0x310] sm:$0xff]
    %v3280 = vld [vmem:[#allocation14 + $0x318] sm:$0xff]
    %v3281 = vld [vmem:[#allocation14 + $0x320] sm:$0xff]
    %v3282 = vld [vmem:[#allocation14 + $0x328] sm:$0xff]
    %v3283 = vld [vmem:[#allocation14 + $0x330] sm:$0xff]
    %v3284 = vld [vmem:[#allocation14 + $0x338] sm:$0xff]
    %v3285 = vld [vmem:[#allocation14 + $0x340] sm:$0xff]
    %v3286 = vld [vmem:[#allocation14 + $0x348] sm:$0xff]
    %v3287 = vld [vmem:[#allocation14 + $0x350] sm:$0xff]
    %v3288 = vld [vmem:[#allocation14 + $0x358] sm:$0xff]
    %v3289 = vld [vmem:[#allocation14 + $0x360] sm:$0xff]
    %v3290 = vld [vmem:[#allocation14 + $0x368] sm:$0xff]
    %v3291 = vld [vmem:[#allocation14 + $0x370] sm:$0xff]
    %v3292 = vld [vmem:[#allocation14 + $0x378] sm:$0xff]
    %v3293 = vld [vmem:[#allocation14 + $0x380] sm:$0xff]
    %v3294 = vld [vmem:[#allocation14 + $0x388] sm:$0xff]
    %v3295 = vld [vmem:[#allocation14 + $0x390] sm:$0xff]
    %v3296 = vld [vmem:[#allocation14 + $0x398] sm:$0xff]
    %v3297 = vld [vmem:[#allocation14 + $0x3a0] sm:$0xff]
    %v3298 = vld [vmem:[#allocation14 + $0x3a8] sm:$0xff]
    %v3299 = vld [vmem:[#allocation14 + $0x3b0] sm:$0xff]
    %v3300 = vld [vmem:[#allocation14 + $0x3b8] sm:$0xff]
    %v3301 = vld [vmem:[#allocation14 + $0x3c0] sm:$0xff]
    %v3302 = vld [vmem:[#allocation14 + $0x3c8] sm:$0xff]
    %v3303 = vld [vmem:[#allocation14 + $0x3d0] sm:$0xff]
    %v3304 = vld [vmem:[#allocation14 + $0x3d8] sm:$0xff]
    %v3305 = vld [vmem:[#allocation14 + $0x3e0] sm:$0xff]
    %v3306 = vld [vmem:[#allocation14 + $0x3e8] sm:$0xff]
    %v3307 = vld [vmem:[#allocation14 + $0x3f0] sm:$0xff]
    %v3308 = vld [vmem:[#allocation14 + $0x3f8] sm:$0xff]
    %v3309 = vld [vmem:[#allocation16] sm:$0x3]
    %v3311 = vlaneseq
    %v3312 = vshrl.u32 %v3311, 7
    %v3313 = vsub.s32 0, %v3312
    %v3314 = vrot.slane %v3309, %v3313
    %v3315 = vlaneseq
    %v3316 = vshrl.u32 %v3315, 7
    %v3317 = vsub.s32 1, %v3316
    %v3318 = vrot.slane %v3309, %v3317
    %3321 = vmatprep.subr.mxu0 %v3182
    %3322 = vmatpush1.msra.mxu0 %v3181
    %3323 = vmatprep.subr.mxu0 %v3184
    %3324 = vmatpush1.msra.mxu0 %v3183
    %3325 = vmatprep.subr.mxu0 %v3186
    %3326 = vmatpush1.msra.mxu0 %v3185
    %3327 = vmatprep.subr.mxu0 %v3188
    %3328 = vmatpush1.msra.mxu0 %v3187
    %3329 = vmatprep.subr.mxu0 %v3190
    %3330 = vmatpush1.msra.mxu0 %v3189
    %3331 = vmatprep.subr.mxu0 %v3192
    %3332 = vmatpush1.msra.mxu0 %v3191
    %3333 = vmatprep.subr.mxu0 %v3194
    %3334 = vmatpush1.msra.mxu0 %v3193
    %3335 = vmatprep.subr.mxu0 %v3196
    %3336 = vmatpush1.msra.mxu0 %v3195
    %3337 = vmatprep.subr.mxu0 %v3198
    %3338 = vmatpush1.msra.mxu0 %v3197
    %3339 = vmatprep.subr.mxu0 %v3200
    %3340 = vmatpush1.msra.mxu0 %v3199
    %3341 = vmatprep.subr.mxu0 %v3202
    %3342 = vmatpush1.msra.mxu0 %v3201
    %3343 = vmatprep.subr.mxu0 %v3204
    %3344 = vmatpush1.msra.mxu0 %v3203
    %3345 = vmatprep.subr.mxu0 %v3206
    %3346 = vmatpush1.msra.mxu0 %v3205
    %3347 = vmatprep.subr.mxu0 %v3208
    %3348 = vmatpush1.msra.mxu0 %v3207
    %3349 = vmatprep.subr.mxu0 %v3210
    %3350 = vmatpush1.msra.mxu0 %v3209
    %3351 = vmatprep.subr.mxu0 %v3212
    %3352 = vmatpush1.msra.mxu0 %v3211
    %3353 = vmatprep.subr.mxu0 %v3214
    %3354 = vmatpush1.msra.mxu0 %v3213
    %3355 = vmatprep.subr.mxu0 %v3216
    %3356 = vmatpush1.msra.mxu0 %v3215
    %3357 = vmatprep.subr.mxu0 %v3218
    %3358 = vmatpush1.msra.mxu0 %v3217
    %3359 = vmatprep.subr.mxu0 %v3220
    %3360 = vmatpush1.msra.mxu0 %v3219
    %3361 = vmatprep.subr.mxu0 %v3222
    %3362 = vmatpush1.msra.mxu0 %v3221
    %3363 = vmatprep.subr.mxu0 %v3224
    %3364 = vmatpush1.msra.mxu0 %v3223
    %3365 = vmatprep.subr.mxu0 %v3226
    %3366 = vmatpush1.msra.mxu0 %v3225
    %3367 = vmatprep.subr.mxu0 %v3228
    %3368 = vmatpush1.msra.mxu0 %v3227
    %3369 = vmatprep.subr.mxu0 %v3230
    %3370 = vmatpush1.msra.mxu0 %v3229
    %3371 = vmatprep.subr.mxu0 %v3232
    %3372 = vmatpush1.msra.mxu0 %v3231
    %3373 = vmatprep.subr.mxu0 %v3234
    %3374 = vmatpush1.msra.mxu0 %v3233
    %3375 = vmatprep.subr.mxu0 %v3236
    %3376 = vmatpush1.msra.mxu0 %v3235
    %3377 = vmatprep.subr.mxu0 %v3238
    %3378 = vmatpush1.msra.mxu0 %v3237
    %3379 = vmatprep.subr.mxu0 %v3240
    %3380 = vmatpush1.msra.mxu0 %v3239
    %3381 = vmatprep.subr.mxu0 %v3242
    %3382 = vmatpush1.msra.mxu0 %v3241
    %3383 = vmatprep.subr.mxu0 %v3244
    %3384 = vmatpush1.msra.mxu0 %v3243
    %3385 = vmatprep.mubr.f32.mxu0 %v2020
    %3386 = vmatmul.mubr.f32.gmra.mrb[0].mxu0 %v2019
    %v3387 = vpop.f32.mrb[0].mxu0
    %v3388 = vadd.f32 %v3314, %v3387
    %v3389 = vpop.f32.mrb[0].mxu0
    %v3390 = vadd.f32 %v3318, %v3389
    %3391 = vdwg.mxu0
    %3392 = vmatprep.subr.mxu0 %v3246
    %3393 = vmatpush1.msra.mxu0 %v3245
    %3394 = vmatprep.subr.mxu0 %v3248
    %3395 = vmatpush1.msra.mxu0 %v3247
    %3396 = vmatprep.subr.mxu0 %v3250
    %3397 = vmatpush1.msra.mxu0 %v3249
    %3398 = vmatprep.subr.mxu0 %v3252
    %3399 = vmatpush1.msra.mxu0 %v3251
    %3400 = vmatprep.subr.mxu0 %v3254
    %3401 = vmatpush1.msra.mxu0 %v3253
    %3402 = vmatprep.subr.mxu0 %v3256
    %3403 = vmatpush1.msra.mxu0 %v3255
    %3404 = vmatprep.subr.mxu0 %v3258
    %3405 = vmatpush1.msra.mxu0 %v3257
    %3406 = vmatprep.subr.mxu0 %v3260
    %3407 = vmatpush1.msra.mxu0 %v3259
    %3408 = vmatprep.subr.mxu0 %v3262
    %3409 = vmatpush1.msra.mxu0 %v3261
    %3410 = vmatprep.subr.mxu0 %v3264
    %3411 = vmatpush1.msra.mxu0 %v3263
    %3412 = vmatprep.subr.mxu0 %v3266
    %3413 = vmatpush1.msra.mxu0 %v3265
    %3414 = vmatprep.subr.mxu0 %v3268
    %3415 = vmatpush1.msra.mxu0 %v3267
    %3416 = vmatprep.subr.mxu0 %v3270
    %3417 = vmatpush1.msra.mxu0 %v3269
    %3418 = vmatprep.subr.mxu0 %v3272
    %3419 = vmatpush1.msra.mxu0 %v3271
    %3420 = vmatprep.subr.mxu0 %v3274
    %3421 = vmatpush1.msra.mxu0 %v3273
    %3422 = vmatprep.subr.mxu0 %v3276
    %3423 = vmatpush1.msra.mxu0 %v3275
    %3424 = vmatprep.subr.mxu0 %v3278
    %3425 = vmatpush1.msra.mxu0 %v3277
    %3426 = vmatprep.subr.mxu0 %v3280
    %3427 = vmatpush1.msra.mxu0 %v3279
    %3428 = vmatprep.subr.mxu0 %v3282
    %3429 = vmatpush1.msra.mxu0 %v3281
    %3430 = vmatprep.subr.mxu0 %v3284
    %3431 = vmatpush1.msra.mxu0 %v3283
    %3432 = vmatprep.subr.mxu0 %v3286
    %3433 = vmatpush1.msra.mxu0 %v3285
    %3434 = vmatprep.subr.mxu0 %v3288
    %3435 = vmatpush1.msra.mxu0 %v3287
    %3436 = vmatprep.subr.mxu0 %v3290
    %3437 = vmatpush1.msra.mxu0 %v3289
    %3438 = vmatprep.subr.mxu0 %v3292
    %3439 = vmatpush1.msra.mxu0 %v3291
    %3440 = vmatprep.subr.mxu0 %v3294
    %3441 = vmatpush1.msra.mxu0 %v3293
    %3442 = vmatprep.subr.mxu0 %v3296
    %3443 = vmatpush1.msra.mxu0 %v3295
    %3444 = vmatprep.subr.mxu0 %v3298
    %3445 = vmatpush1.msra.mxu0 %v3297
    %3446 = vmatprep.subr.mxu0 %v3300
    %3447 = vmatpush1.msra.mxu0 %v3299
    %3448 = vmatprep.subr.mxu0 %v3302
    %3449 = vmatpush1.msra.mxu0 %v3301
    %3450 = vmatprep.subr.mxu0 %v3304
    %3451 = vmatpush1.msra.mxu0 %v3303
    %3452 = vmatprep.subr.mxu0 %v3306
    %3453 = vmatpush1.msra.mxu0 %v3305
    %3454 = vmatprep.subr.mxu0 %v3308
    %3455 = vmatpush1.msra.mxu0 %v3307
    %3456 = vmatprep.mubr.f32.mxu0 %v2022
    %3457 = vmatmul.mubr.f32.gmra.mrb[0].mxu0 %v2021
    %v3458 = vpop.f32.mrb[0].mxu0
    %v3459 = vadd.f32 %v3388, %v3458
    %v3460 = vpop.f32.mrb[0].mxu0
    %v3461 = vadd.f32 %v3390, %v3460
    %3462 = vdwg.mxu0
    %v3463 = vmul.f32 %v3459, 0.5
    %v3464 = vmul.f32 %v3461, 0.5
    %v3465 = vmul.f32 %v3459, 0.044715
    %v3466 = vmul.f32 %v3461, 0.044715
    %v3467 = vmul.f32 %v3465, %v3459
    %v3468 = vmul.f32 %v3466, %v3461
    %v3469 = vmul.f32 %v3467, %v3459
    %v3470 = vmul.f32 %v3468, %v3461
    %v3471 = vadd.f32 %v3459, %v3469
    %v3472 = vadd.f32 %v3461, %v3470
    %v3473 = vmul.f32 %v3471, 0.7978846
    %v3474 = vmul.f32 %v3472, 0.7978846
    %v3475 = vtanh.pop %v3473
    %v3476 = vtanh.pop %v3474
    %v3477 = vadd.f32 %v3475, 1.0
    %v3478 = vadd.f32 %v3476, 1.0
    %v3479 = vmul.f32 %v3463, %v3477
    %v3480 = vmul.f32 %v3464, %v3478
    %v3481 = vld [vmem:[#allocation17] sm:$0xff]
    %v3482 = vld [vmem:[#allocation17 + $0x8] sm:$0xff]
    %v3483 = vld [vmem:[#allocation17 + $0x10] sm:$0xff]
    %v3484 = vld [vmem:[#allocation17 + $0x18] sm:$0xff]
    %v3485 = vld [vmem:[#allocation17 + $0x20] sm:$0xff]
    %v3486 = vld [vmem:[#allocation17 + $0x28] sm:$0xff]
    %v3487 = vld [vmem:[#allocation17 + $0x30] sm:$0xff]
    %v3488 = vld [vmem:[#allocation17 + $0x38] sm:$0xff]
    %v3489 = vld [vmem:[#allocation17 + $0x40] sm:$0xff]
    %v3490 = vld [vmem:[#allocation17 + $0x48] sm:$0xff]
    %v3491 = vld [vmem:[#allocation17 + $0x50] sm:$0xff]
    %v3492 = vld [vmem:[#allocation17 + $0x58] sm:$0xff]
    %v3493 = vld [vmem:[#allocation17 + $0x60] sm:$0xff]
    %v3494 = vld [vmem:[#allocation17 + $0x68] sm:$0xff]
    %v3495 = vld [vmem:[#allocation17 + $0x70] sm:$0xff]
    %v3496 = vld [vmem:[#allocation17 + $0x78] sm:$0xff]
    %v3497 = vld [vmem:[#allocation17 + $0x80] sm:$0xff]
    %v3498 = vld [vmem:[#allocation17 + $0x88] sm:$0xff]
    %v3499 = vld [vmem:[#allocation17 + $0x90] sm:$0xff]
    %v3500 = vld [vmem:[#allocation17 + $0x98] sm:$0xff]
    %v3501 = vld [vmem:[#allocation17 + $0xa0] sm:$0xff]
    %v3502 = vld [vmem:[#allocation17 + $0xa8] sm:$0xff]
    %v3503 = vld [vmem:[#allocation17 + $0xb0] sm:$0xff]
    %v3504 = vld [vmem:[#allocation17 + $0xb8] sm:$0xff]
    %v3505 = vld [vmem:[#allocation17 + $0xc0] sm:$0xff]
    %v3506 = vld [vmem:[#allocation17 + $0xc8] sm:$0xff]
    %v3507 = vld [vmem:[#allocation17 + $0xd0] sm:$0xff]
    %v3508 = vld [vmem:[#allocation17 + $0xd8] sm:$0xff]
    %v3509 = vld [vmem:[#allocation17 + $0xe0] sm:$0xff]
    %v3510 = vld [vmem:[#allocation17 + $0xe8] sm:$0xff]
    %v3511 = vld [vmem:[#allocation17 + $0xf0] sm:$0xff]
    %v3512 = vld [vmem:[#allocation17 + $0xf8] sm:$0xff]
    %v3513 = vld [vmem:[#allocation17 + $0x100] sm:$0xff]
    %v3514 = vld [vmem:[#allocation17 + $0x108] sm:$0xff]
    %v3515 = vld [vmem:[#allocation17 + $0x110] sm:$0xff]
    %v3516 = vld [vmem:[#allocation17 + $0x118] sm:$0xff]
    %v3517 = vld [vmem:[#allocation17 + $0x120] sm:$0xff]
    %v3518 = vld [vmem:[#allocation17 + $0x128] sm:$0xff]
    %v3519 = vld [vmem:[#allocation17 + $0x130] sm:$0xff]
    %v3520 = vld [vmem:[#allocation17 + $0x138] sm:$0xff]
    %v3521 = vld [vmem:[#allocation17 + $0x140] sm:$0xff]
    %v3522 = vld [vmem:[#allocation17 + $0x148] sm:$0xff]
    %v3523 = vld [vmem:[#allocation17 + $0x150] sm:$0xff]
    %v3524 = vld [vmem:[#allocation17 + $0x158] sm:$0xff]
    %v3525 = vld [vmem:[#allocation17 + $0x160] sm:$0xff]
    %v3526 = vld [vmem:[#allocation17 + $0x168] sm:$0xff]
    %v3527 = vld [vmem:[#allocation17 + $0x170] sm:$0xff]
    %v3528 = vld [vmem:[#allocation17 + $0x178] sm:$0xff]
    %v3529 = vld [vmem:[#allocation17 + $0x180] sm:$0xff]
    %v3530 = vld [vmem:[#allocation17 + $0x188] sm:$0xff]
    %v3531 = vld [vmem:[#allocation17 + $0x190] sm:$0xff]
    %v3532 = vld [vmem:[#allocation17 + $0x198] sm:$0xff]
    %v3533 = vld [vmem:[#allocation17 + $0x1a0] sm:$0xff]
    %v3534 = vld [vmem:[#allocation17 + $0x1a8] sm:$0xff]
    %v3535 = vld [vmem:[#allocation17 + $0x1b0] sm:$0xff]
    %v3536 = vld [vmem:[#allocation17 + $0x1b8] sm:$0xff]
    %v3537 = vld [vmem:[#allocation17 + $0x1c0] sm:$0xff]
    %v3538 = vld [vmem:[#allocation17 + $0x1c8] sm:$0xff]
    %v3539 = vld [vmem:[#allocation17 + $0x1d0] sm:$0xff]
    %v3540 = vld [vmem:[#allocation17 + $0x1d8] sm:$0xff]
    %v3541 = vld [vmem:[#allocation17 + $0x1e0] sm:$0xff]
    %v3542 = vld [vmem:[#allocation17 + $0x1e8] sm:$0xff]
    %v3543 = vld [vmem:[#allocation17 + $0x1f0] sm:$0xff]
    %v3544 = vld [vmem:[#allocation17 + $0x1f8] sm:$0xff]
    %v3545 = vld [vmem:[#allocation17 + $0x200] sm:$0xff]
    %v3546 = vld [vmem:[#allocation17 + $0x208] sm:$0xff]
    %v3547 = vld [vmem:[#allocation17 + $0x210] sm:$0xff]
    %v3548 = vld [vmem:[#allocation17 + $0x218] sm:$0xff]
    %v3549 = vld [vmem:[#allocation17 + $0x220] sm:$0xff]
    %v3550 = vld [vmem:[#allocation17 + $0x228] sm:$0xff]
    %v3551 = vld [vmem:[#allocation17 + $0x230] sm:$0xff]
    %v3552 = vld [vmem:[#allocation17 + $0x238] sm:$0xff]
    %v3553 = vld [vmem:[#allocation17 + $0x240] sm:$0xff]
    %v3554 = vld [vmem:[#allocation17 + $0x248] sm:$0xff]
    %v3555 = vld [vmem:[#allocation17 + $0x250] sm:$0xff]
    %v3556 = vld [vmem:[#allocation17 + $0x258] sm:$0xff]
    %v3557 = vld [vmem:[#allocation17 + $0x260] sm:$0xff]
    %v3558 = vld [vmem:[#allocation17 + $0x268] sm:$0xff]
    %v3559 = vld [vmem:[#allocation17 + $0x270] sm:$0xff]
    %v3560 = vld [vmem:[#allocation17 + $0x278] sm:$0xff]
    %v3561 = vld [vmem:[#allocation17 + $0x280] sm:$0xff]
    %v3562 = vld [vmem:[#allocation17 + $0x288] sm:$0xff]
    %v3563 = vld [vmem:[#allocation17 + $0x290] sm:$0xff]
    %v3564 = vld [vmem:[#allocation17 + $0x298] sm:$0xff]
    %v3565 = vld [vmem:[#allocation17 + $0x2a0] sm:$0xff]
    %v3566 = vld [vmem:[#allocation17 + $0x2a8] sm:$0xff]
    %v3567 = vld [vmem:[#allocation17 + $0x2b0] sm:$0xff]
    %v3568 = vld [vmem:[#allocation17 + $0x2b8] sm:$0xff]
    %v3569 = vld [vmem:[#allocation17 + $0x2c0] sm:$0xff]
    %v3570 = vld [vmem:[#allocation17 + $0x2c8] sm:$0xff]
    %v3571 = vld [vmem:[#allocation17 + $0x2d0] sm:$0xff]
    %v3572 = vld [vmem:[#allocation17 + $0x2d8] sm:$0xff]
    %v3573 = vld [vmem:[#allocation17 + $0x2e0] sm:$0xff]
    %v3574 = vld [vmem:[#allocation17 + $0x2e8] sm:$0xff]
    %v3575 = vld [vmem:[#allocation17 + $0x2f0] sm:$0xff]
    %v3576 = vld [vmem:[#allocation17 + $0x2f8] sm:$0xff]
    %v3577 = vld [vmem:[#allocation17 + $0x300] sm:$0xff]
    %v3578 = vld [vmem:[#allocation17 + $0x308] sm:$0xff]
    %v3579 = vld [vmem:[#allocation17 + $0x310] sm:$0xff]
    %v3580 = vld [vmem:[#allocation17 + $0x318] sm:$0xff]
    %v3581 = vld [vmem:[#allocation17 + $0x320] sm:$0xff]
    %v3582 = vld [vmem:[#allocation17 + $0x328] sm:$0xff]
    %v3583 = vld [vmem:[#allocation17 + $0x330] sm:$0xff]
    %v3584 = vld [vmem:[#allocation17 + $0x338] sm:$0xff]
    %v3585 = vld [vmem:[#allocation17 + $0x340] sm:$0xff]
    %v3586 = vld [vmem:[#allocation17 + $0x348] sm:$0xff]
    %v3587 = vld [vmem:[#allocation17 + $0x350] sm:$0xff]
    %v3588 = vld [vmem:[#allocation17 + $0x358] sm:$0xff]
    %v3589 = vld [vmem:[#allocation17 + $0x360] sm:$0xff]
    %v3590 = vld [vmem:[#allocation17 + $0x368] sm:$0xff]
    %v3591 = vld [vmem:[#allocation17 + $0x370] sm:$0xff]
    %v3592 = vld [vmem:[#allocation17 + $0x378] sm:$0xff]
    %v3593 = vld [vmem:[#allocation17 + $0x380] sm:$0xff]
    %v3594 = vld [vmem:[#allocation17 + $0x388] sm:$0xff]
    %v3595 = vld [vmem:[#allocation17 + $0x390] sm:$0xff]
    %v3596 = vld [vmem:[#allocation17 + $0x398] sm:$0xff]
    %v3597 = vld [vmem:[#allocation17 + $0x3a0] sm:$0xff]
    %v3598 = vld [vmem:[#allocation17 + $0x3a8] sm:$0xff]
    %v3599 = vld [vmem:[#allocation17 + $0x3b0] sm:$0xff]
    %v3600 = vld [vmem:[#allocation17 + $0x3b8] sm:$0xff]
    %v3601 = vld [vmem:[#allocation17 + $0x3c0] sm:$0xff]
    %v3602 = vld [vmem:[#allocation17 + $0x3c8] sm:$0xff]
    %v3603 = vld [vmem:[#allocation17 + $0x3d0] sm:$0xff]
    %v3604 = vld [vmem:[#allocation17 + $0x3d8] sm:$0xff]
    %v3605 = vld [vmem:[#allocation17 + $0x3e0] sm:$0xff]
    %v3606 = vld [vmem:[#allocation17 + $0x3e8] sm:$0xff]
    %v3607 = vld [vmem:[#allocation17 + $0x3f0] sm:$0xff]
    %v3608 = vld [vmem:[#allocation17 + $0x3f8] sm:$0xff]
    %v3609 = vld [vmem:[#allocation17 + $0x400] sm:$0xff]
    %v3610 = vld [vmem:[#allocation17 + $0x408] sm:$0xff]
    %v3611 = vld [vmem:[#allocation17 + $0x410] sm:$0xff]
    %v3612 = vld [vmem:[#allocation17 + $0x418] sm:$0xff]
    %v3613 = vld [vmem:[#allocation17 + $0x420] sm:$0xff]
    %v3614 = vld [vmem:[#allocation17 + $0x428] sm:$0xff]
    %v3615 = vld [vmem:[#allocation17 + $0x430] sm:$0xff]
    %v3616 = vld [vmem:[#allocation17 + $0x438] sm:$0xff]
    %v3617 = vld [vmem:[#allocation17 + $0x440] sm:$0xff]
    %v3618 = vld [vmem:[#allocation17 + $0x448] sm:$0xff]
    %v3619 = vld [vmem:[#allocation17 + $0x450] sm:$0xff]
    %v3620 = vld [vmem:[#allocation17 + $0x458] sm:$0xff]
    %v3621 = vld [vmem:[#allocation17 + $0x460] sm:$0xff]
    %v3622 = vld [vmem:[#allocation17 + $0x468] sm:$0xff]
    %v3623 = vld [vmem:[#allocation17 + $0x470] sm:$0xff]
    %v3624 = vld [vmem:[#allocation17 + $0x478] sm:$0xff]
    %v3625 = vld [vmem:[#allocation17 + $0x480] sm:$0xff]
    %v3626 = vld [vmem:[#allocation17 + $0x488] sm:$0xff]
    %v3627 = vld [vmem:[#allocation17 + $0x490] sm:$0xff]
    %v3628 = vld [vmem:[#allocation17 + $0x498] sm:$0xff]
    %v3629 = vld [vmem:[#allocation17 + $0x4a0] sm:$0xff]
    %v3630 = vld [vmem:[#allocation17 + $0x4a8] sm:$0xff]
    %v3631 = vld [vmem:[#allocation17 + $0x4b0] sm:$0xff]
    %v3632 = vld [vmem:[#allocation17 + $0x4b8] sm:$0xff]
    %v3633 = vld [vmem:[#allocation17 + $0x4c0] sm:$0xff]
    %v3634 = vld [vmem:[#allocation17 + $0x4c8] sm:$0xff]
    %v3635 = vld [vmem:[#allocation17 + $0x4d0] sm:$0xff]
    %v3636 = vld [vmem:[#allocation17 + $0x4d8] sm:$0xff]
    %v3637 = vld [vmem:[#allocation17 + $0x4e0] sm:$0xff]
    %v3638 = vld [vmem:[#allocation17 + $0x4e8] sm:$0xff]
    %v3639 = vld [vmem:[#allocation17 + $0x4f0] sm:$0xff]
    %v3640 = vld [vmem:[#allocation17 + $0x4f8] sm:$0xff]
    %v3641 = vld [vmem:[#allocation19] sm:$0x1]
    %v3643 = vlaneseq
    %v3644 = vshrl.u32 %v3643, 7
    %v3645 = vsub.s32 0, %v3644
    %v3646 = vrot.slane %v3641, %v3645
    %3648 = vmatprep.subr.mxu0 0.0
    %3649 = vmatpush1.msra.mxu0 %v3481
    %3650 = vmatprep.subr.mxu0 0.0
    %3651 = vmatpush1.msra.mxu0 %v3482
    %3652 = vmatprep.subr.mxu0 0.0
    %3653 = vmatpush1.msra.mxu0 %v3483
    %3654 = vmatprep.subr.mxu0 0.0
    %3655 = vmatpush1.msra.mxu0 %v3484
    %3656 = vmatprep.subr.mxu0 0.0
    %3657 = vmatpush1.msra.mxu0 %v3485
    %3658 = vmatprep.subr.mxu0 0.0
    %3659 = vmatpush1.msra.mxu0 %v3486
    %3660 = vmatprep.subr.mxu0 0.0
    %3661 = vmatpush1.msra.mxu0 %v3487
    %3662 = vmatprep.subr.mxu0 0.0
    %3663 = vmatpush1.msra.mxu0 %v3488
    %3664 = vmatprep.subr.mxu0 0.0
    %3665 = vmatpush1.msra.mxu0 %v3489
    %3666 = vmatprep.subr.mxu0 0.0
    %3667 = vmatpush1.msra.mxu0 %v3490
    %3668 = vmatprep.subr.mxu0 0.0
    %3669 = vmatpush1.msra.mxu0 %v3491
    %3670 = vmatprep.subr.mxu0 0.0
    %3671 = vmatpush1.msra.mxu0 %v3492
    %3672 = vmatprep.subr.mxu0 0.0
    %3673 = vmatpush1.msra.mxu0 %v3493
    %3674 = vmatprep.subr.mxu0 0.0
    %3675 = vmatpush1.msra.mxu0 %v3494
    %3676 = vmatprep.subr.mxu0 0.0
    %3677 = vmatpush1.msra.mxu0 %v3495
    %3678 = vmatprep.subr.mxu0 0.0
    %3679 = vmatpush1.msra.mxu0 %v3496
    %3680 = vmatprep.subr.mxu0 0.0
    %3681 = vmatpush1.msra.mxu0 %v3497
    %3682 = vmatprep.subr.mxu0 0.0
    %3683 = vmatpush1.msra.mxu0 %v3498
    %3684 = vmatprep.subr.mxu0 0.0
    %3685 = vmatpush1.msra.mxu0 %v3499
    %3686 = vmatprep.subr.mxu0 0.0
    %3687 = vmatpush1.msra.mxu0 %v3500
    %3688 = vmatprep.subr.mxu0 0.0
    %3689 = vmatpush1.msra.mxu0 %v3501
    %3690 = vmatprep.subr.mxu0 0.0
    %3691 = vmatpush1.msra.mxu0 %v3502
    %3692 = vmatprep.subr.mxu0 0.0
    %3693 = vmatpush1.msra.mxu0 %v3503
    %3694 = vmatprep.subr.mxu0 0.0
    %3695 = vmatpush1.msra.mxu0 %v3504
    %3696 = vmatprep.subr.mxu0 0.0
    %3697 = vmatpush1.msra.mxu0 %v3505
    %3698 = vmatprep.subr.mxu0 0.0
    %3699 = vmatpush1.msra.mxu0 %v3506
    %3700 = vmatprep.subr.mxu0 0.0
    %3701 = vmatpush1.msra.mxu0 %v3507
    %3702 = vmatprep.subr.mxu0 0.0
    %3703 = vmatpush1.msra.mxu0 %v3508
    %3704 = vmatprep.subr.mxu0 0.0
    %3705 = vmatpush1.msra.mxu0 %v3509
    %3706 = vmatprep.subr.mxu0 0.0
    %3707 = vmatpush1.msra.mxu0 %v3510
    %3708 = vmatprep.subr.mxu0 0.0
    %3709 = vmatpush1.msra.mxu0 %v3511
    %3710 = vmatprep.subr.mxu0 0.0
    %3711 = vmatpush1.msra.mxu0 %v3512
    %3712 = vmatprep.mubr.f32.mxu0 %v3178
    %3713 = vmatmul.mubr.f32.gmra.mrb[0].mxu0 %v3177
    %v3714 = vpop.f32.mrb[0].mxu0
    %v3715 = vadd.f32 %v3646, %v3714
    %v3716 = vpop.f32.mrb[0].mxu0
    %3717 = vdwg.mxu0
    %3718 = vmatprep.subr.mxu0 0.0
    %3719 = vmatpush1.msra.mxu0 %v3513
    %3720 = vmatprep.subr.mxu0 0.0
    %3721 = vmatpush1.msra.mxu0 %v3514
    %3722 = vmatprep.subr.mxu0 0.0
    %3723 = vmatpush1.msra.mxu0 %v3515
    %3724 = vmatprep.subr.mxu0 0.0
    %3725 = vmatpush1.msra.mxu0 %v3516
    %3726 = vmatprep.subr.mxu0 0.0
    %3727 = vmatpush1.msra.mxu0 %v3517
    %3728 = vmatprep.subr.mxu0 0.0
    %3729 = vmatpush1.msra.mxu0 %v3518
    %3730 = vmatprep.subr.mxu0 0.0
    %3731 = vmatpush1.msra.mxu0 %v3519
    %3732 = vmatprep.subr.mxu0 0.0
    %3733 = vmatpush1.msra.mxu0 %v3520
    %3734 = vmatprep.subr.mxu0 0.0
    %3735 = vmatpush1.msra.mxu0 %v3521
    %3736 = vmatprep.subr.mxu0 0.0
    %3737 = vmatpush1.msra.mxu0 %v3522
    %3738 = vmatprep.subr.mxu0 0.0
    %3739 = vmatpush1.msra.mxu0 %v3523
    %3740 = vmatprep.subr.mxu0 0.0
    %3741 = vmatpush1.msra.mxu0 %v3524
    %3742 = vmatprep.subr.mxu0 0.0
    %3743 = vmatpush1.msra.mxu0 %v3525
    %3744 = vmatprep.subr.mxu0 0.0
    %3745 = vmatpush1.msra.mxu0 %v3526
    %3746 = vmatprep.subr.mxu0 0.0
    %3747 = vmatpush1.msra.mxu0 %v3527
    %3748 = vmatprep.subr.mxu0 0.0
    %3749 = vmatpush1.msra.mxu0 %v3528
    %3750 = vmatprep.subr.mxu0 0.0
    %3751 = vmatpush1.msra.mxu0 %v3529
    %3752 = vmatprep.subr.mxu0 0.0
    %3753 = vmatpush1.msra.mxu0 %v3530
    %3754 = vmatprep.subr.mxu0 0.0
    %3755 = vmatpush1.msra.mxu0 %v3531
    %3756 = vmatprep.subr.mxu0 0.0
    %3757 = vmatpush1.msra.mxu0 %v3532
    %3758 = vmatprep.subr.mxu0 0.0
    %3759 = vmatpush1.msra.mxu0 %v3533
    %3760 = vmatprep.subr.mxu0 0.0
    %3761 = vmatpush1.msra.mxu0 %v3534
    %3762 = vmatprep.subr.mxu0 0.0
    %3763 = vmatpush1.msra.mxu0 %v3535
    %3764 = vmatprep.subr.mxu0 0.0
    %3765 = vmatpush1.msra.mxu0 %v3536
    %3766 = vmatprep.subr.mxu0 0.0
    %3767 = vmatpush1.msra.mxu0 %v3537
    %3768 = vmatprep.subr.mxu0 0.0
    %3769 = vmatpush1.msra.mxu0 %v3538
    %3770 = vmatprep.subr.mxu0 0.0
    %3771 = vmatpush1.msra.mxu0 %v3539
    %3772 = vmatprep.subr.mxu0 0.0
    %3773 = vmatpush1.msra.mxu0 %v3540
    %3774 = vmatprep.subr.mxu0 0.0
    %3775 = vmatpush1.msra.mxu0 %v3541
    %3776 = vmatprep.subr.mxu0 0.0
    %3777 = vmatpush1.msra.mxu0 %v3542
    %3778 = vmatprep.subr.mxu0 0.0
    %3779 = vmatpush1.msra.mxu0 %v3543
    %3780 = vmatprep.subr.mxu0 0.0
    %3781 = vmatpush1.msra.mxu0 %v3544
    %3782 = vmatprep.mubr.f32.mxu0 %v3180
    %3783 = vmatmul.mubr.f32.gmra.mrb[0].mxu0 %v3179
    %v3784 = vpop.f32.mrb[0].mxu0
    %v3785 = vadd.f32 %v3715, %v3784
    %v3786 = vpop.f32.mrb[0].mxu0
    %3787 = vdwg.mxu0
    %3788 = vmatprep.subr.mxu0 0.0
    %3789 = vmatpush1.msra.mxu0 %v3545
    %3790 = vmatprep.subr.mxu0 0.0
    %3791 = vmatpush1.msra.mxu0 %v3546
    %3792 = vmatprep.subr.mxu0 0.0
    %3793 = vmatpush1.msra.mxu0 %v3547
    %3794 = vmatprep.subr.mxu0 0.0
    %3795 = vmatpush1.msra.mxu0 %v3548
    %3796 = vmatprep.subr.mxu0 0.0
    %3797 = vmatpush1.msra.mxu0 %v3549
    %3798 = vmatprep.subr.mxu0 0.0
    %3799 = vmatpush1.msra.mxu0 %v3550
    %3800 = vmatprep.subr.mxu0 0.0
    %3801 = vmatpush1.msra.mxu0 %v3551
    %3802 = vmatprep.subr.mxu0 0.0
    %3803 = vmatpush1.msra.mxu0 %v3552
    %3804 = vmatprep.subr.mxu0 0.0
    %3805 = vmatpush1.msra.mxu0 %v3553
    %3806 = vmatprep.subr.mxu0 0.0
    %3807 = vmatpush1.msra.mxu0 %v3554
    %3808 = vmatprep.subr.mxu0 0.0
    %3809 = vmatpush1.msra.mxu0 %v3555
    %3810 = vmatprep.subr.mxu0 0.0
    %3811 = vmatpush1.msra.mxu0 %v3556
    %3812 = vmatprep.subr.mxu0 0.0
    %3813 = vmatpush1.msra.mxu0 %v3557
    %3814 = vmatprep.subr.mxu0 0.0
    %3815 = vmatpush1.msra.mxu0 %v3558
    %3816 = vmatprep.subr.mxu0 0.0
    %3817 = vmatpush1.msra.mxu0 %v3559
    %3818 = vmatprep.subr.mxu0 0.0
    %3819 = vmatpush1.msra.mxu0 %v3560
    %3820 = vmatprep.subr.mxu0 0.0
    %3821 = vmatpush1.msra.mxu0 %v3561
    %3822 = vmatprep.subr.mxu0 0.0
    %3823 = vmatpush1.msra.mxu0 %v3562
    %3824 = vmatprep.subr.mxu0 0.0
    %3825 = vmatpush1.msra.mxu0 %v3563
    %3826 = vmatprep.subr.mxu0 0.0
    %3827 = vmatpush1.msra.mxu0 %v3564
    %3828 = vmatprep.subr.mxu0 0.0
    %3829 = vmatpush1.msra.mxu0 %v3565
    %3830 = vmatprep.subr.mxu0 0.0
    %3831 = vmatpush1.msra.mxu0 %v3566
    %3832 = vmatprep.subr.mxu0 0.0
    %3833 = vmatpush1.msra.mxu0 %v3567
    %3834 = vmatprep.subr.mxu0 0.0
    %3835 = vmatpush1.msra.mxu0 %v3568
    %3836 = vmatprep.subr.mxu0 0.0
    %3837 = vmatpush1.msra.mxu0 %v3569
    %3838 = vmatprep.subr.mxu0 0.0
    %3839 = vmatpush1.msra.mxu0 %v3570
    %3840 = vmatprep.subr.mxu0 0.0
    %3841 = vmatpush1.msra.mxu0 %v3571
    %3842 = vmatprep.subr.mxu0 0.0
    %3843 = vmatpush1.msra.mxu0 %v3572
    %3844 = vmatprep.subr.mxu0 0.0
    %3845 = vmatpush1.msra.mxu0 %v3573
    %3846 = vmatprep.subr.mxu0 0.0
    %3847 = vmatpush1.msra.mxu0 %v3574
    %3848 = vmatprep.subr.mxu0 0.0
    %3849 = vmatpush1.msra.mxu0 %v3575
    %3850 = vmatprep.subr.mxu0 0.0
    %3851 = vmatpush1.msra.mxu0 %v3576
    %3852 = vmatprep.mubr.f32.mxu0 %v3480
    %3853 = vmatmul.mubr.f32.gmra.mrb[0].mxu0 %v3479
    %v3854 = vpop.f32.mrb[0].mxu0
    %v3855 = vadd.f32 %v3785, %v3854
    %v3856 = vpop.f32.mrb[0].mxu0
    %3857 = vdwg.mxu0
    %3858 = vmatprep.subr.mxu0 0.0
    %3859 = vmatpush1.msra.mxu0 %v3577
    %3860 = vmatprep.subr.mxu0 0.0
    %3861 = vmatpush1.msra.mxu0 %v3578
    %3862 = vmatprep.subr.mxu0 0.0
    %3863 = vmatpush1.msra.mxu0 %v3579
    %3864 = vmatprep.subr.mxu0 0.0
    %3865 = vmatpush1.msra.mxu0 %v3580
    %3866 = vmatprep.subr.mxu0 0.0
    %3867 = vmatpush1.msra.mxu0 %v3581
    %3868 = vmatprep.subr.mxu0 0.0
    %3869 = vmatpush1.msra.mxu0 %v3582
    %3870 = vmatprep.subr.mxu0 0.0
    %3871 = vmatpush1.msra.mxu0 %v3583
    %3872 = vmatprep.subr.mxu0 0.0
    %3873 = vmatpush1.msra.mxu0 %v3584
    %3874 = vmatprep.subr.mxu0 0.0
    %3875 = vmatpush1.msra.mxu0 %v3585
    %3876 = vmatprep.subr.mxu0 0.0
    %3877 = vmatpush1.msra.mxu0 %v3586
    %3878 = vmatprep.subr.mxu0 0.0
    %3879 = vmatpush1.msra.mxu0 %v3587
    %3880 = vmatprep.subr.mxu0 0.0
    %3881 = vmatpush1.msra.mxu0 %v3588
    %3882 = vmatprep.subr.mxu0 0.0
    %3883 = vmatpush1.msra.mxu0 %v3589
    %3884 = vmatprep.subr.mxu0 0.0
    %3885 = vmatpush1.msra.mxu0 %v3590
    %3886 = vmatprep.subr.mxu0 0.0
    %3887 = vmatpush1.msra.mxu0 %v3591
    %3888 = vmatprep.subr.mxu0 0.0
    %3889 = vmatpush1.msra.mxu0 %v3592
    %3890 = vmatprep.subr.mxu0 0.0
    %3891 = vmatpush1.msra.mxu0 %v3593
    %3892 = vmatprep.subr.mxu0 0.0
    %3893 = vmatpush1.msra.mxu0 %v3594
    %3894 = vmatprep.subr.mxu0 0.0
    %3895 = vmatpush1.msra.mxu0 %v3595
    %3896 = vmatprep.subr.mxu0 0.0
    %3897 = vmatpush1.msra.mxu0 %v3596
    %3898 = vmatprep.subr.mxu0 0.0
    %3899 = vmatpush1.msra.mxu0 %v3597
    %3900 = vmatprep.subr.mxu0 0.0
    %3901 = vmatpush1.msra.mxu0 %v3598
    %3902 = vmatprep.subr.mxu0 0.0
    %3903 = vmatpush1.msra.mxu0 %v3599
    %3904 = vmatprep.subr.mxu0 0.0
    %3905 = vmatpush1.msra.mxu0 %v3600
    %3906 = vmatprep.subr.mxu0 0.0
    %3907 = vmatpush1.msra.mxu0 %v3601
    %3908 = vmatprep.subr.mxu0 0.0
    %3909 = vmatpush1.msra.mxu0 %v3602
    %3910 = vmatprep.subr.mxu0 0.0
    %3911 = vmatpush1.msra.mxu0 %v3603
    %3912 = vmatprep.subr.mxu0 0.0
    %3913 = vmatpush1.msra.mxu0 %v3604
    %3914 = vmatprep.subr.mxu0 0.0
    %3915 = vmatpush1.msra.mxu0 %v3605
    %3916 = vmatprep.subr.mxu0 0.0
    %3917 = vmatpush1.msra.mxu0 %v3606
    %3918 = vmatprep.subr.mxu0 0.0
    %3919 = vmatpush1.msra.mxu0 %v3607
    %3920 = vmatprep.subr.mxu0 0.0
    %3921 = vmatpush1.msra.mxu0 %v3608
    %3922 = vmatprep.mubr.f32.mxu0 %v2040
    %3923 = vmatmul.mubr.f32.gmra.mrb[0].mxu0 %v2039
    %v3924 = vpop.f32.mrb[0].mxu0
    %v3925 = vadd.f32 %v3855, %v3924
    %v3926 = vpop.f32.mrb[0].mxu0
    %3927 = vdwg.mxu0
    %3928 = vmatprep.subr.mxu0 0.0
    %3929 = vmatpush1.msra.mxu0 %v3609
    %3930 = vmatprep.subr.mxu0 0.0
    %3931 = vmatpush1.msra.mxu0 %v3610
    %3932 = vmatprep.subr.mxu0 0.0
    %3933 = vmatpush1.msra.mxu0 %v3611
    %3934 = vmatprep.subr.mxu0 0.0
    %3935 = vmatpush1.msra.mxu0 %v3612
    %3936 = vmatprep.subr.mxu0 0.0
    %3937 = vmatpush1.msra.mxu0 %v3613
    %3938 = vmatprep.subr.mxu0 0.0
    %3939 = vmatpush1.msra.mxu0 %v3614
    %3940 = vmatprep.subr.mxu0 0.0
    %3941 = vmatpush1.msra.mxu0 %v3615
    %3942 = vmatprep.subr.mxu0 0.0
    %3943 = vmatpush1.msra.mxu0 %v3616
    %3944 = vmatprep.subr.mxu0 0.0
    %3945 = vmatpush1.msra.mxu0 %v3617
    %3946 = vmatprep.subr.mxu0 0.0
    %3947 = vmatpush1.msra.mxu0 %v3618
    %3948 = vmatprep.subr.mxu0 0.0
    %3949 = vmatpush1.msra.mxu0 %v3619
    %3950 = vmatprep.subr.mxu0 0.0
    %3951 = vmatpush1.msra.mxu0 %v3620
    %3952 = vmatprep.subr.mxu0 0.0
    %3953 = vmatpush1.msra.mxu0 %v3621
    %3954 = vmatprep.subr.mxu0 0.0
    %3955 = vmatpush1.msra.mxu0 %v3622
    %3956 = vmatprep.subr.mxu0 0.0
    %3957 = vmatpush1.msra.mxu0 %v3623
    %3958 = vmatprep.subr.mxu0 0.0
    %3959 = vmatpush1.msra.mxu0 %v3624
    %3960 = vmatprep.subr.mxu0 0.0
    %3961 = vmatpush1.msra.mxu0 %v3625
    %3962 = vmatprep.subr.mxu0 0.0
    %3963 = vmatpush1.msra.mxu0 %v3626
    %3964 = vmatprep.subr.mxu0 0.0
    %3965 = vmatpush1.msra.mxu0 %v3627
    %3966 = vmatprep.subr.mxu0 0.0
    %3967 = vmatpush1.msra.mxu0 %v3628
    %3968 = vmatprep.subr.mxu0 0.0
    %3969 = vmatpush1.msra.mxu0 %v3629
    %3970 = vmatprep.subr.mxu0 0.0
    %3971 = vmatpush1.msra.mxu0 %v3630
    %3972 = vmatprep.subr.mxu0 0.0
    %3973 = vmatpush1.msra.mxu0 %v3631
    %3974 = vmatprep.subr.mxu0 0.0
    %3975 = vmatpush1.msra.mxu0 %v3632
    %3976 = vmatprep.subr.mxu0 0.0
    %3977 = vmatpush1.msra.mxu0 %v3633
    %3978 = vmatprep.subr.mxu0 0.0
    %3979 = vmatpush1.msra.mxu0 %v3634
    %3980 = vmatprep.subr.mxu0 0.0
    %3981 = vmatpush1.msra.mxu0 %v3635
    %3982 = vmatprep.subr.mxu0 0.0
    %3983 = vmatpush1.msra.mxu0 %v3636
    %3984 = vmatprep.subr.mxu0 0.0
    %3985 = vmatpush1.msra.mxu0 %v3637
    %3986 = vmatprep.subr.mxu0 0.0
    %3987 = vmatpush1.msra.mxu0 %v3638
    %3988 = vmatprep.subr.mxu0 0.0
    %3989 = vmatpush1.msra.mxu0 %v3639
    %3990 = vmatprep.subr.mxu0 0.0
    %3991 = vmatpush1.msra.mxu0 %v3640
    %3992 = vmatprep.mubr.f32.mxu0 %v2042
    %3993 = vmatmul.mubr.f32.gmra.mrb[0].mxu0 %v2041
    %v3994 = vpop.f32.mrb[0].mxu0
    %v3995 = vadd.f32 %v3925, %v3994
    %v3996 = vpop.f32.mrb[0].mxu0
    %3997 = vdwg.mxu0
    %3998 = vst [vmem:[#allocation20] sm:$0x3] %v3995
    // Predicated region
    $region98: #{tpu_custom_call.1} parent=1 // pred_check
      _
    $region99: #{tpu_custom_call.1} parent=1 // pred_check_branch
      %4000 = sbr.rel (0) target = $region101
    $region100: #{tpu_custom_call.1} parent=1 // pred_region
      %s4002 = ssub.s32 32, 32
      %4003 = vsyncadd [#allocation4], %s4002
      %s4005 = sshll.u32 [#allocation20], 4
      %s4006 = int_to_ptr.vmem [resolvable:$true] %s4005
      %4008 = dma.vmem_to_hbm [thread:$0]  %s4006, 32, %s13, [#allocation4]
    $region101: #{tpu_custom_call.1} parent=1 // pred_fallthru
      _
    // Predicated region
    $region102: #{tpu_custom_call.1} parent=1 // pred_check
      _
    $region103: #{tpu_custom_call.1} parent=1 // pred_check_branch
      %4010 = sbr.rel (0) target = $region105
    $region104: #{tpu_custom_call.1} parent=1 // pred_region
      %4011 = dma.done [#allocation4], 32
    $region105: #{tpu_custom_call.1} parent=1 // pred_fallthru
      _
    %4012 = vsyncpa [#allocation3], 1
    %4013 = vsyncpa [#allocation6], 1
    %4014 = vsyncpa [#allocation9], 1
    %4015 = vsyncpa [#allocation12], 1
    %4016 = vsyncpa [#allocation15], 1
    %4017 = vsyncpa [#allocation18], 1
    %4018 = vsyncpa [#allocation4], 1

// kernel: tpu_custom_call.1
$region0: #{tpu_custom_call.1}
  #allocation0 [shape = 'u32[]', space=smem, size = 0x4, offset = 0x4, fixed_abs, tag = 'smem constant byte address 0x4 - core index']
  #allocation1 [shape = 'u32[144,128]{1,0:T(1,128)}', space=vmem, size = 0x12000, scoped, tag = 'internal scratch']
  %s0 = inlined_call_operand.vmem [shape: f32[2,64,32], index: 0, kind: input, shape index: {}]
  %s1 = inlined_call_operand.vmem [shape: f32[32,4], index: 1, kind: input, shape index: {}]
  %s2 = inlined_call_operand.hbm [shape: f32[4,32], index: 2, kind: input, shape index: {}]
  %s3 = inlined_call_operand.hbm [shape: f32[64,64], index: 3, kind: input, shape index: {}]
  %s4 = inlined_call_operand.hbm [shape: f32[64,64], index: 4, kind: input, shape index: {}]
  %s5 = inlined_call_operand.hbm [shape: f32[32,2048], index: 5, kind: input, shape index: {}]
  %s6 = inlined_call_operand.hbm [shape: f32[1,2048], index: 6, kind: input, shape index: {}]
  %s7 = inlined_call_operand.hbm [shape: f32[1024,512], index: 7, kind: input, shape index: {}]
  %s8 = inlined_call_operand.hbm [shape: f32[1,512], index: 8, kind: input, shape index: {}]
  %s9 = inlined_call_operand.hbm [shape: f32[512,256], index: 9, kind: input, shape index: {}]
  %s10 = inlined_call_operand.hbm [shape: f32[1,256], index: 10, kind: input, shape index: {}]
  %s11 = inlined_call_operand.hbm [shape: f32[1280,128], index: 11, kind: input, shape index: {}]
  %s12 = inlined_call_operand.hbm [shape: f32[1,128], index: 12, kind: input, shape index: {}]
  %s13 = inlined_call_operand.hbm [shape: f32[2,128], index: 13, kind: output, shape index: {}]
  %s14 = sld [smem:[#allocation0]]
  $region106: #{tpu_custom_call.1} parent=0
    _
  %s16 = ssub.s32 1, %s14
  %s17 = scalar_select 0, %s16, %s14
  $region1: #{tpu_custom_call.1} parent=0
    #allocation2 [shape = 'u8[2048]{0}', space=vmem, size = 0x800, scoped, tag = 'input window, operand 2, single buffered']
    #allocation3 [shape = 's32[1]{0}', space=sflag, size = 0x4, scoped, tag = 'scoped memory for tpu_custom_call.1']
    #allocation4 [shape = 's32[1]{0}', space=sflag, size = 0x4, scoped, tag = 'scoped memory for tpu_custom_call.1']
    #allocation5 [shape = 'u8[32768]{0}', space=vmem, size = 0x8000, scoped, tag = 'input window, operand 3, single buffered']
    #allocation6 [shape = 's32[1]{0}', space=sflag, size = 0x4, scoped, tag = 'scoped memory for tpu_custom_call.1']
    #allocation7 [shape = 'u8[32768]{0}', space=vmem, size = 0x8000, scoped, tag = 'input window, operand 4, single buffered']
    #allocation8 [shape = 'u8[262144]{0}', space=vmem, size = 0x40000, scoped, tag = 'input window, operand 5, single buffered']
    #allocation9 [shape = 's32[1]{0}', space=sflag, size = 0x4, scoped, tag = 'scoped memory for tpu_custom_call.1']
    #allocation10 [shape = 'u8[8192]{0}', space=vmem, size = 0x2000, scoped, tag = 'input window, operand 6, single buffered']
    #allocation11 [shape = 'u8[2097152]{0}', space=vmem, size = 0x200000, scoped, tag = 'input window, operand 7, single buffered']
    #allocation12 [shape = 's32[1]{0}', space=sflag, size = 0x4, scoped, tag = 'scoped memory for tpu_custom_call.1']
    #allocation13 [shape = 'u8[2048]{0}', space=vmem, size = 0x800, scoped, tag = 'input window, operand 8, single buffered']
    #allocation14 [shape = 'u8[524288]{0}', space=vmem, size = 0x80000, scoped, tag = 'input window, operand 9, single buffered']
    #allocation15 [shape = 's32[1]{0}', space=sflag, size = 0x4, scoped, tag = 'scoped memory for tpu_custom_call.1']
    #allocation16 [shape = 'u8[1024]{0}', space=vmem, size = 0x400, scoped, tag = 'input window, operand 10, single buffered']
    #allocation17 [shape = 'u8[655360]{0}', space=vmem, size = 0xa0000, scoped, tag = 'input window, operand 11, single buffered']
    #allocation18 [shape = 's32[1]{0}', space=sflag, size = 0x4, scoped, tag = 'scoped memory for tpu_custom_call.1']
    #allocation19 [shape = 'u8[512]{0}', space=vmem, size = 0x400, scoped, tag = 'input window, operand 12, single buffered']
    #allocation20 [shape = 'u8[1024]{0}', space=vmem, size = 0x400, scoped, tag = 'output window, operand 0, single buffered']
    %18 = vsyncpa [#allocation3], 0
    %19 = vsyncpa [#allocation6], 0
    %20 = vsyncpa [#allocation9], 0
    %21 = vsyncpa [#allocation12], 0
    %22 = vsyncpa [#allocation15], 0
    %23 = vsyncpa [#allocation18], 0
    %24 = vsyncpa [#allocation4], 0
    // Predicated region
    $region2: #{tpu_custom_call.1} parent=1 // pred_check
      _
    $region3: #{tpu_custom_call.1} parent=1 // pred_check_branch
      %26 = sbr.rel (0) target = $region5
    $region4: #{tpu_custom_call.1} parent=1 // pred_region
      _
    $region5: #{tpu_custom_call.1} parent=1 // pred_fallthru
      _
    // Predicated region
    $region6: #{tpu_custom_call.1} parent=1 // pred_check
      _
    $region7: #{tpu_custom_call.1} parent=1 // pred_check_branch
      %28 = sbr.rel (0) target = $region9
    $region8: #{tpu_custom_call.1} parent=1 // pred_region
      _
    $region9: #{tpu_custom_call.1} parent=1 // pred_fallthru
      _
    // Predicated region
    $region10: #{tpu_custom_call.1} parent=1 // pred_check
      _
    $region11: #{tpu_custom_call.1} parent=1 // pred_check_branch
      %30 = sbr.rel (0) target = $region13
    $region12: #{tpu_custom_call.1} parent=1 // pred_region
      %s32 = ssub.s32 64, 64
      %33 = vsyncadd [#allocation3], %s32
      %s35 = sshll.u32 [#allocation2], 4
      %s36 = int_to_ptr.vmem [resolvable:$true] %s35
      %38 = dma.hbm_to_vmem [thread:$0]  %s2, 64, %s36, [#allocation3]
    $region13: #{tpu_custom_call.1} parent=1 // pred_fallthru
      _
    // Predicated region
    $region14: #{tpu_custom_call.1} parent=1 // pred_check
      _
    $region15: #{tpu_custom_call.1} parent=1 // pred_check_branch
      %40 = sbr.rel (0) target = $region17
    $region16: #{tpu_custom_call.1} parent=1 // pred_region
      %s42 = ssub.s32 1024, 1024
      %43 = vsyncadd [#allocation6], %s42
      %s44 = sshll.u32 [#allocation5], 4
      %s45 = int_to_ptr.vmem [resolvable:$true] %s44
      %50 = dma.hbm_to_vmem [thread:$0]  %s3, 1024, %s45, [#allocation6], 128, 128, 8
    $region17: #{tpu_custom_call.1} parent=1 // pred_fallthru
      _
    // Predicated region
    $region18: #{tpu_custom_call.1} parent=1 // pred_check
      _
    $region19: #{tpu_custom_call.1} parent=1 // pred_check_branch
      %52 = sbr.rel (0) target = $region21
    $region20: #{tpu_custom_call.1} parent=1 // pred_region
      %s54 = ssub.s32 1024, 1024
      %55 = vsyncadd [#allocation6], %s54
      %s56 = sshll.u32 [#allocation7], 4
      %s57 = int_to_ptr.vmem [resolvable:$true] %s56
      %62 = dma.hbm_to_vmem [thread:$0]  %s4, 1024, %s57, [#allocation6], 128, 128, 8
    $region21: #{tpu_custom_call.1} parent=1 // pred_fallthru
      _
    // Predicated region
    $region22: #{tpu_custom_call.1} parent=1 // pred_check
      _
    $region23: #{tpu_custom_call.1} parent=1 // pred_check_branch
      %64 = sbr.rel (0) target = $region25
    $region24: #{tpu_custom_call.1} parent=1 // pred_region
      %s66 = ssub.s32 8192, 8192
      %67 = vsyncadd [#allocation9], %s66
      %s68 = sshll.u32 [#allocation8], 4
      %s69 = int_to_ptr.vmem [resolvable:$true] %s68
      %74 = dma.hbm_to_vmem [thread:$0]  %s5, 8192, %s69, [#allocation9], 2048, 2048, 128
    $region25: #{tpu_custom_call.1} parent=1 // pred_fallthru
      _
    // Predicated region
    $region26: #{tpu_custom_call.1} parent=1 // pred_check
      _
    $region27: #{tpu_custom_call.1} parent=1 // pred_check_branch
      %76 = sbr.rel (0) target = $region29
    $region28: #{tpu_custom_call.1} parent=1 // pred_region
      %s78 = ssub.s32 256, 256
      %79 = vsyncadd [#allocation9], %s78
      %s81 = sshll.u32 [#allocation10], 4
      %s82 = int_to_ptr.vmem [resolvable:$true] %s81
      %84 = dma.hbm_to_vmem [thread:$0]  %s6, 256, %s82, [#allocation9]
    $region29: #{tpu_custom_call.1} parent=1 // pred_fallthru
      _
    // Predicated region
    $region30: #{tpu_custom_call.1} parent=1 // pred_check
      _
    $region31: #{tpu_custom_call.1} parent=1 // pred_check_branch
      %86 = sbr.rel (0) target = $region33
    $region32: #{tpu_custom_call.1} parent=1 // pred_region
      %s88 = ssub.s32 65536, 65536
      %89 = vsyncadd [#allocation12], %s88
      %s90 = sshll.u32 [#allocation11], 4
      %s91 = int_to_ptr.vmem [resolvable:$true] %s90
      %96 = dma.hbm_to_vmem [thread:$0]  %s7, 65536, %s91, [#allocation12], 512, 512, 32
    $region33: #{tpu_custom_call.1} parent=1 // pred_fallthru
      _
    // Predicated region
    $region34: #{tpu_custom_call.1} parent=1 // pred_check
      _
    $region35: #{tpu_custom_call.1} parent=1 // pred_check_branch
      %98 = sbr.rel (0) target = $region37
    $region36: #{tpu_custom_call.1} parent=1 // pred_region
      %s100 = ssub.s32 64, 64
      %101 = vsyncadd [#allocation12], %s100
      %s103 = sshll.u32 [#allocation13], 4
      %s104 = int_to_ptr.vmem [resolvable:$true] %s103
      %106 = dma.hbm_to_vmem [thread:$0]  %s8, 64, %s104, [#allocation12]
    $region37: #{tpu_custom_call.1} parent=1 // pred_fallthru
      _
    // Predicated region
    $region38: #{tpu_custom_call.1} parent=1 // pred_check
      _
    $region39: #{tpu_custom_call.1} parent=1 // pred_check_branch
      %108 = sbr.rel (0) target = $region41
    $region40: #{tpu_custom_call.1} parent=1 // pred_region
      %s110 = ssub.s32 16384, 16384
      %111 = vsyncadd [#allocation15], %s110
      %s112 = sshll.u32 [#allocation14], 4
      %s113 = int_to_ptr.vmem [resolvable:$true] %s112
      %118 = dma.hbm_to_vmem [thread:$0]  %s9, 16384, %s113, [#allocation15], 256, 256, 16
    $region41: #{tpu_custom_call.1} parent=1 // pred_fallthru
      _
    // Predicated region
    $region42: #{tpu_custom_call.1} parent=1 // pred_check
      _
    $region43: #{tpu_custom_call.1} parent=1 // pred_check_branch
      %120 = sbr.rel (0) target = $region45
    $region44: #{tpu_custom_call.1} parent=1 // pred_region
      %s122 = ssub.s32 32, 32
      %123 = vsyncadd [#allocation15], %s122
      %s125 = sshll.u32 [#allocation16], 4
      %s126 = int_to_ptr.vmem [resolvable:$true] %s125
      %128 = dma.hbm_to_vmem [thread:$0]  %s10, 32, %s126, [#allocation15]
    $region45: #{tpu_custom_call.1} parent=1 // pred_fallthru
      _
    // Predicated region
    $region46: #{tpu_custom_call.1} parent=1 // pred_check
      _
    $region47: #{tpu_custom_call.1} parent=1 // pred_check_branch
      %130 = sbr.rel (0) target = $region49
    $region48: #{tpu_custom_call.1} parent=1 // pred_region
      %s132 = ssub.s32 20480, 20480
      %133 = vsyncadd [#allocation18], %s132
      %s134 = sshll.u32 [#allocation17], 4
      %s135 = int_to_ptr.vmem [resolvable:$true] %s134
      %140 = dma.hbm_to_vmem [thread:$0]  %s11, 20480, %s135, [#allocation18], 128, 128, 8
    $region49: #{tpu_custom_call.1} parent=1 // pred_fallthru
      _
    // Predicated region
    $region50: #{tpu_custom_call.1} parent=1 // pred_check
      _
    $region51: #{tpu_custom_call.1} parent=1 // pred_check_branch
      %142 = sbr.rel (0) target = $region53
    $region52: #{tpu_custom_call.1} parent=1 // pred_region
      %s144 = ssub.s32 16, 16
      %145 = vsyncadd [#allocation18], %s144
      %s147 = sshll.u32 [#allocation19], 4
      %s148 = int_to_ptr.vmem [resolvable:$true] %s147
      %150 = dma.hbm_to_vmem [thread:$0]  %s12, 16, %s148, [#allocation18]
    $region53: #{tpu_custom_call.1} parent=1 // pred_fallthru
      _
    // Predicated region
    $region54: #{tpu_custom_call.1} parent=1 // pred_check
      _
    $region55: #{tpu_custom_call.1} parent=1 // pred_check_branch
      %152 = sbr.rel (0) target = $region57
    $region56: #{tpu_custom_call.1} parent=1 // pred_region
      %153 = dma.done [#allocation3], 64
    $region57: #{tpu_custom_call.1} parent=1 // pred_fallthru
      _
    // Predicated region
    $region58: #{tpu_custom_call.1} parent=1 // pred_check
      _
    $region59: #{tpu_custom_call.1} parent=1 // pred_check_branch
      %155 = sbr.rel (0) target = $region61
    $region60: #{tpu_custom_call.1} parent=1 // pred_region
      %156 = dma.done [#allocation6], 1024
    $region61: #{tpu_custom_call.1} parent=1 // pred_fallthru
      _
    // Predicated region
    $region62: #{tpu_custom_call.1} parent=1 // pred_check
      _
    $region63: #{tpu_custom_call.1} parent=1 // pred_check_branch
      %158 = sbr.rel (0) target = $region65
    $region64: #{tpu_custom_call.1} parent=1 // pred_region
      %159 = dma.done [#allocation6], 1024
    $region65: #{tpu_custom_call.1} parent=1 // pred_fallthru
      _
    // Predicated region
    $region66: #{tpu_custom_call.1} parent=1 // pred_check
      _
    $region67: #{tpu_custom_call.1} parent=1 // pred_check_branch
      %161 = sbr.rel (0) target = $region69
    $region68: #{tpu_custom_call.1} parent=1 // pred_region
      %162 = dma.done [#allocation9], 8192
    $region69: #{tpu_custom_call.1} parent=1 // pred_fallthru
      _
    // Predicated region
    $region70: #{tpu_custom_call.1} parent=1 // pred_check
      _
    $region71: #{tpu_custom_call.1} parent=1 // pred_check_branch
      %164 = sbr.rel (0) target = $region73
    $region72: #{tpu_custom_call.1} parent=1 // pred_region
      %165 = dma.done [#allocation9], 256
    $region73: #{tpu_custom_call.1} parent=1 // pred_fallthru
      _
    // Predicated region
    $region74: #{tpu_custom_call.1} parent=1 // pred_check
      _
    $region75: #{tpu_custom_call.1} parent=1 // pred_check_branch
      %167 = sbr.rel (0) target = $region77
    $region76: #{tpu_custom_call.1} parent=1 // pred_region
      %168 = dma.done [#allocation12], 65536
    $region77: #{tpu_custom_call.1} parent=1 // pred_fallthru
      _
    // Predicated region
    $region78: #{tpu_custom_call.1} parent=1 // pred_check
      _
    $region79: #{tpu_custom_call.1} parent=1 // pred_check_branch
      %170 = sbr.rel (0) target = $region81
    $region80: #{tpu_custom_call.1} parent=1 // pred_region
      %171 = dma.done [#allocation12], 64
    $region81: #{tpu_custom_call.1} parent=1 // pred_fallthru
      _
    // Predicated region
    $region82: #{tpu_custom_call.1} parent=1 // pred_check
      _
    $region83: #{tpu_custom_call.1} parent=1 // pred_check_branch
      %173 = sbr.rel (0) target = $region85
    $region84: #{tpu_custom_call.1} parent=1 // pred_region
      %174 = dma.done [#allocation15], 16384
    $region85: #{tpu_custom_call.1} parent=1 // pred_fallthru
      _
    // Predicated region
    $region86: #{tpu_custom_call.1} parent=1 // pred_check
      _
    $region87: #{tpu_custom_call.1} parent=1 // pred_check_branch
      %176 = sbr.rel (0) target = $region89
    $region88: #{tpu_custom_call.1} parent=1 // pred_region
      %177 = dma.done [#allocation15], 32
    $region89: #{tpu_custom_call.1} parent=1 // pred_fallthru
      _
    // Predicated region
    $region90: #{tpu_custom_call.1} parent=1 // pred_check
      _
    $region91: #{tpu_custom_call.1} parent=1 // pred_check_branch
      %179 = sbr.rel (0) target = $region93
    $region92: #{tpu_custom_call.1} parent=1 // pred_region
      %180 = dma.done [#allocation18], 20480
    $region93: #{tpu_custom_call.1} parent=1 // pred_fallthru
      _
    // Predicated region
    $region94: #{tpu_custom_call.1} parent=1 // pred_check
      _
    $region95: #{tpu_custom_call.1} parent=1 // pred_check_branch
      %182 = sbr.rel (0) target = $region97
    $region96: #{tpu_custom_call.1} parent=1 // pred_region
      %183 = dma.done [#allocation18], 16
    $region97: #{tpu_custom_call.1} parent=1 // pred_fallthru
      _
    %v184 = vld [vmem:[%s0] sm:$0xff]
    %v185 = vld [vmem:[%s0 + $0x8] sm:$0xff]
    %v186 = vld [vmem:[%s0 + $0x10] sm:$0xff]
    %v187 = vld [vmem:[%s0 + $0x18] sm:$0xff]
    %v188 = vld [vmem:[%s0 + $0x20] sm:$0xff]
    %v189 = vld [vmem:[%s0 + $0x28] sm:$0xff]
    %v190 = vld [vmem:[%s0 + $0x30] sm:$0xff]
    %v191 = vld [vmem:[%s0 + $0x38] sm:$0xff]
    %v192 = vld [vmem:[%s0 + $0x40] sm:$0xff]
    %v193 = vld [vmem:[%s0 + $0x48] sm:$0xff]
    %v194 = vld [vmem:[%s0 + $0x50] sm:$0xff]
    %v195 = vld [vmem:[%s0 + $0x58] sm:$0xff]
    %v196 = vld [vmem:[%s0 + $0x60] sm:$0xff]
    %v197 = vld [vmem:[%s0 + $0x68] sm:$0xff]
    %v198 = vld [vmem:[%s0 + $0x70] sm:$0xff]
    %v199 = vld [vmem:[%s0 + $0x78] sm:$0xff]
    %vm200 = vcmask 261120
    %v201 = vsel %vm200, %v184, 0.0
    %v202 = vsel %vm200, %v185, 0.0
    %v203 = vadd.f32 %v201, %v202
    %v204 = vsel %vm200, %v186, 0.0
    %v205 = vadd.f32 %v203, %v204
    %v206 = vsel %vm200, %v187, 0.0
    %v207 = vadd.f32 %v205, %v206
    %v208 = vsel %vm200, %v188, 0.0
    %v209 = vadd.f32 %v207, %v208
    %v210 = vsel %vm200, %v189, 0.0
    %v211 = vadd.f32 %v209, %v210
    %v212 = vsel %vm200, %v190, 0.0
    %v213 = vadd.f32 %v211, %v212
    %v214 = vsel %vm200, %v191, 0.0
    %v215 = vadd.f32 %v213, %v214
    %v216 = vrot.slane %v215, 4
    %v217 = vadd.f32 %v215, %v216
    %v218 = vrot.slane %v217, 2
    %v219 = vadd.f32 %v217, %v218
    %v220 = vrot.slane %v219, 1
    %v221 = vadd.f32 %v219, %v220
    %v222 = vsel %vm200, %v192, 0.0
    %v223 = vsel %vm200, %v193, 0.0
    %v224 = vadd.f32 %v222, %v223
    %v225 = vsel %vm200, %v194, 0.0
    %v226 = vadd.f32 %v224, %v225
    %v227 = vsel %vm200, %v195, 0.0
    %v228 = vadd.f32 %v226, %v227
    %v229 = vsel %vm200, %v196, 0.0
    %v230 = vadd.f32 %v228, %v229
    %v231 = vsel %vm200, %v197, 0.0
    %v232 = vadd.f32 %v230, %v231
    %v233 = vsel %vm200, %v198, 0.0
    %v234 = vadd.f32 %v232, %v233
    %v235 = vsel %vm200, %v199, 0.0
    %v236 = vadd.f32 %v234, %v235
    %v237 = vrot.slane %v236, 4
    %v238 = vadd.f32 %v236, %v237
    %v239 = vrot.slane %v238, 2
    %v240 = vadd.f32 %v238, %v239
    %v241 = vrot.slane %v240, 1
    %v242 = vadd.f32 %v240, %v241
    %v243 = vmul.f32 %v221, 0.015625
    %v244 = vmul.f32 %v242, 0.015625
    %v245 = vsel %vm200, %v184, -inf
    %v246 = vsel %vm200, %v185, -inf
    %v247 = vsel %vm200, %v186, -inf
    %v248 = vmax.f32 %v245, %v247
    %v249 = vsel %vm200, %v187, -inf
    %v250 = vmax.f32 %v246, %v249
    %v251 = vsel %vm200, %v188, -inf
    %v252 = vmax.f32 %v248, %v251
    %v253 = vsel %vm200, %v189, -inf
    %v254 = vmax.f32 %v250, %v253
    %v255 = vsel %vm200, %v190, -inf
    %v256 = vmax.f32 %v252, %v255
    %v257 = vsel %vm200, %v191, -inf
    %v258 = vmax.f32 %v254, %v257
    %v259 = vmax.f32 %v256, %v258
    %v260 = vrot.slane %v259, 4
    %v261 = vmax.f32 %v259, %v260
    %v262 = vrot.slane %v261, 2
    %v263 = vmax.f32 %v261, %v262
    %v264 = vrot.slane %v263, 1
    %v265 = vmax.f32 %v263, %v264
    %v266 = vsel %vm200, %v192, -inf
    %v267 = vsel %vm200, %v193, -inf
    %v268 = vsel %vm200, %v194, -inf
    %v269 = vmax.f32 %v266, %v268
    %v270 = vsel %vm200, %v195, -inf
    %v271 = vmax.f32 %v267, %v270
    %v272 = vsel %vm200, %v196, -inf
    %v273 = vmax.f32 %v269, %v272
    %v274 = vsel %vm200, %v197, -inf
    %v275 = vmax.f32 %v271, %v274
    %v276 = vsel %vm200, %v198, -inf
    %v277 = vmax.f32 %v273, %v276
    %v278 = vsel %vm200, %v199, -inf
    %v279 = vmax.f32 %v275, %v278
    %v280 = vmax.f32 %v277, %v279
    %v281 = vrot.slane %v280, 4
    %v282 = vmax.f32 %v280, %v281
    %v283 = vrot.slane %v282, 2
    %v284 = vmax.f32 %v282, %v283
    %v285 = vrot.slane %v284, 1
    %v286 = vmax.f32 %v284, %v285
    %v287 = vld [vmem:[%s1] sm:$0xff]
    %v288 = vld [vmem:[%s1 + $0x8] sm:$0xff]
    %v289 = vld [vmem:[%s1 + $0x10] sm:$0xff]
    %v290 = vld [vmem:[%s1 + $0x18] sm:$0xff]
    %vm293 = vcmask 1041409
    %v294 = vsel %vm293, %v244, %v243
    %v295 = vsel %vm200, %v294, 0
    %297 = vmatprep.subr.mxu0 0.0
    %298 = vmatpush1.msra.mxu0 %v287
    %299 = vmatprep.subr.mxu0 0.0
    %300 = vmatpush1.msra.mxu0 %v288
    %301 = vmatprep.subr.mxu0 0.0
    %302 = vmatpush1.msra.mxu0 %v289
    %303 = vmatprep.subr.mxu0 0.0
    %304 = vmatpush1.msra.mxu0 %v290
    %305 = vmatprep.subr.mxu0 0.0
    %306 = vmatpush1.msra.mxu0 0.0
    %307 = vmatprep.subr.mxu0 0.0
    %308 = vmatpush1.msra.mxu0 0.0
    %309 = vmatprep.subr.mxu0 0.0
    %310 = vmatpush1.msra.mxu0 0.0
    %311 = vmatprep.subr.mxu0 0.0
    %312 = vmatpush1.msra.mxu0 0.0
    %313 = vmatprep.subr.mxu0 0.0
    %314 = vmatpush1.msra.mxu0 0.0
    %315 = vmatprep.subr.mxu0 0.0
    %316 = vmatpush1.msra.mxu0 0.0
    %317 = vmatprep.subr.mxu0 0.0
    %318 = vmatpush1.msra.mxu0 0.0
    %319 = vmatprep.subr.mxu0 0.0
    %320 = vmatpush1.msra.mxu0 0.0
    %321 = vmatprep.subr.mxu0 0.0
    %322 = vmatpush1.msra.mxu0 0.0
    %323 = vmatprep.subr.mxu0 0.0
    %324 = vmatpush1.msra.mxu0 0.0
    %325 = vmatprep.subr.mxu0 0.0
    %326 = vmatpush1.msra.mxu0 0.0
    %327 = vmatprep.subr.mxu0 0.0
    %328 = vmatpush1.msra.mxu0 0.0
    %329 = vmatprep.subr.mxu0 0.0
    %330 = vmatpush1.msra.mxu0 0.0
    %331 = vmatprep.subr.mxu0 0.0
    %332 = vmatpush1.msra.mxu0 0.0
    %333 = vmatprep.subr.mxu0 0.0
    %334 = vmatpush1.msra.mxu0 0.0
    %335 = vmatprep.subr.mxu0 0.0
    %336 = vmatpush1.msra.mxu0 0.0
    %337 = vmatprep.subr.mxu0 0.0
    %338 = vmatpush1.msra.mxu0 0.0
    %339 = vmatprep.subr.mxu0 0.0
    %340 = vmatpush1.msra.mxu0 0.0
    %341 = vmatprep.subr.mxu0 0.0
    %342 = vmatpush1.msra.mxu0 0.0
    %343 = vmatprep.subr.mxu0 0.0
    %344 = vmatpush1.msra.mxu0 0.0
    %345 = vmatprep.subr.mxu0 0.0
    %346 = vmatpush1.msra.mxu0 0.0
    %347 = vmatprep.subr.mxu0 0.0
    %348 = vmatpush1.msra.mxu0 0.0
    %349 = vmatprep.subr.mxu0 0.0
    %350 = vmatpush1.msra.mxu0 0.0
    %351 = vmatprep.subr.mxu0 0.0
    %352 = vmatpush1.msra.mxu0 0.0
    %353 = vmatprep.subr.mxu0 0.0
    %354 = vmatpush1.msra.mxu0 0.0
    %355 = vmatprep.subr.mxu0 0.0
    %356 = vmatpush1.msra.mxu0 0.0
    %357 = vmatprep.subr.mxu0 0.0
    %358 = vmatpush1.msra.mxu0 0.0
    %359 = vmatprep.subr.mxu0 0.0
    %360 = vmatpush1.msra.mxu0 0.0
    %361 = vmatprep.mubr.f32.mxu0 0.0
    %362 = vmatmul.mubr.f32.gmra.mrb[0].mxu0 %v295
    %v363 = vpop.f32.mrb[0].mxu0
    %v364 = vadd.f32 0.0, %v363
    %v365 = vpop.f32.mrb[0].mxu0
    %366 = vdwg.mxu0
    %v367 = vmax.f32 %v364, 0.0
    %v370 = vsel %vm293, %v286, %v265
    %v371 = vsel %vm200, %v370, 0
    %373 = vmatprep.subr.mxu0 0.0
    %374 = vmatpush1.msra.mxu0 %v287
    %375 = vmatprep.subr.mxu0 0.0
    %376 = vmatpush1.msra.mxu0 %v288
    %377 = vmatprep.subr.mxu0 0.0
    %378 = vmatpush1.msra.mxu0 %v289
    %379 = vmatprep.subr.mxu0 0.0
    %380 = vmatpush1.msra.mxu0 %v290
    %381 = vmatprep.subr.mxu0 0.0
    %382 = vmatpush1.msra.mxu0 0.0
    %383 = vmatprep.subr.mxu0 0.0
    %384 = vmatpush1.msra.mxu0 0.0
    %385 = vmatprep.subr.mxu0 0.0
    %386 = vmatpush1.msra.mxu0 0.0
    %387 = vmatprep.subr.mxu0 0.0
    %388 = vmatpush1.msra.mxu0 0.0
    %389 = vmatprep.subr.mxu0 0.0
    %390 = vmatpush1.msra.mxu0 0.0
    %391 = vmatprep.subr.mxu0 0.0
    %392 = vmatpush1.msra.mxu0 0.0
    %393 = vmatprep.subr.mxu0 0.0
    %394 = vmatpush1.msra.mxu0 0.0
    %395 = vmatprep.subr.mxu0 0.0
    %396 = vmatpush1.msra.mxu0 0.0
    %397 = vmatprep.subr.mxu0 0.0
    %398 = vmatpush1.msra.mxu0 0.0
    %399 = vmatprep.subr.mxu0 0.0
    %400 = vmatpush1.msra.mxu0 0.0
    %401 = vmatprep.subr.mxu0 0.0
    %402 = vmatpush1.msra.mxu0 0.0
    %403 = vmatprep.subr.mxu0 0.0
    %404 = vmatpush1.msra.mxu0 0.0
    %405 = vmatprep.subr.mxu0 0.0
    %406 = vmatpush1.msra.mxu0 0.0
    %407 = vmatprep.subr.mxu0 0.0
    %408 = vmatpush1.msra.mxu0 0.0
    %409 = vmatprep.subr.mxu0 0.0
    %410 = vmatpush1.msra.mxu0 0.0
    %411 = vmatprep.subr.mxu0 0.0
    %412 = vmatpush1.msra.mxu0 0.0
    %413 = vmatprep.subr.mxu0 0.0
    %414 = vmatpush1.msra.mxu0 0.0
    %415 = vmatprep.subr.mxu0 0.0
    %416 = vmatpush1.msra.mxu0 0.0
    %417 = vmatprep.subr.mxu0 0.0
    %418 = vmatpush1.msra.mxu0 0.0
    %419 = vmatprep.subr.mxu0 0.0
    %420 = vmatpush1.msra.mxu0 0.0
    %421 = vmatprep.subr.mxu0 0.0
    %422 = vmatpush1.msra.mxu0 0.0
    %423 = vmatprep.subr.mxu0 0.0
    %424 = vmatpush1.msra.mxu0 0.0
    %425 = vmatprep.subr.mxu0 0.0
    %426 = vmatpush1.msra.mxu0 0.0
    %427 = vmatprep.subr.mxu0 0.0
    %428 = vmatpush1.msra.mxu0 0.0
    %429 = vmatprep.subr.mxu0 0.0
    %430 = vmatpush1.msra.mxu0 0.0
    %431 = vmatprep.subr.mxu0 0.0
    %432 = vmatpush1.msra.mxu0 0.0
    %433 = vmatprep.subr.mxu0 0.0
    %434 = vmatpush1.msra.mxu0 0.0
    %435 = vmatprep.subr.mxu0 0.0
    %436 = vmatpush1.msra.mxu0 0.0
    %437 = vmatprep.mubr.f32.mxu0 0.0
    %438 = vmatmul.mubr.f32.gmra.mrb[0].mxu0 %v371
    %v439 = vpop.f32.mrb[0].mxu0
    %v440 = vadd.f32 0.0, %v439
    %v441 = vpop.f32.mrb[0].mxu0
    %442 = vdwg.mxu0
    %v443 = vmax.f32 %v440, 0.0
    %v444 = vadd.f32 %v367, %v443
    %v445 = vld [vmem:[#allocation2] sm:$0xf]
    %vm446 = vcmask 31744
    %v448 = vsel %vm446, %v444, 0
    %vm450 = vcmask 1043456
    %v452 = vsel %vm450, %v445, 0
    %454 = vmatprep.subr.mxu0 0.0
    %455 = vmatpush1.msra.mxu0 %v452
    %456 = vmatprep.subr.mxu0 0.0
    %457 = vmatpush1.msra.mxu0 0.0
    %458 = vmatprep.subr.mxu0 0.0
    %459 = vmatpush1.msra.mxu0 0.0
    %460 = vmatprep.subr.mxu0 0.0
    %461 = vmatpush1.msra.mxu0 0.0
    %462 = vmatprep.subr.mxu0 0.0
    %463 = vmatpush1.msra.mxu0 0.0
    %464 = vmatprep.subr.mxu0 0.0
    %465 = vmatpush1.msra.mxu0 0.0
    %466 = vmatprep.subr.mxu0 0.0
    %467 = vmatpush1.msra.mxu0 0.0
    %468 = vmatprep.subr.mxu0 0.0
    %469 = vmatpush1.msra.mxu0 0.0
    %470 = vmatprep.subr.mxu0 0.0
    %471 = vmatpush1.msra.mxu0 0.0
    %472 = vmatprep.subr.mxu0 0.0
    %473 = vmatpush1.msra.mxu0 0.0
    %474 = vmatprep.subr.mxu0 0.0
    %475 = vmatpush1.msra.mxu0 0.0
    %476 = vmatprep.subr.mxu0 0.0
    %477 = vmatpush1.msra.mxu0 0.0
    %478 = vmatprep.subr.mxu0 0.0
    %479 = vmatpush1.msra.mxu0 0.0
    %480 = vmatprep.subr.mxu0 0.0
    %481 = vmatpush1.msra.mxu0 0.0
    %482 = vmatprep.subr.mxu0 0.0
    %483 = vmatpush1.msra.mxu0 0.0
    %484 = vmatprep.subr.mxu0 0.0
    %485 = vmatpush1.msra.mxu0 0.0
    %486 = vmatprep.subr.mxu0 0.0
    %487 = vmatpush1.msra.mxu0 0.0
    %488 = vmatprep.subr.mxu0 0.0
    %489 = vmatpush1.msra.mxu0 0.0
    %490 = vmatprep.subr.mxu0 0.0
    %491 = vmatpush1.msra.mxu0 0.0
    %492 = vmatprep.subr.mxu0 0.0
    %493 = vmatpush1.msra.mxu0 0.0
    %494 = vmatprep.subr.mxu0 0.0
    %495 = vmatpush1.msra.mxu0 0.0
    %496 = vmatprep.subr.mxu0 0.0
    %497 = vmatpush1.msra.mxu0 0.0
    %498 = vmatprep.subr.mxu0 0.0
    %499 = vmatpush1.msra.mxu0 0.0
    %500 = vmatprep.subr.mxu0 0.0
    %501 = vmatpush1.msra.mxu0 0.0
    %502 = vmatprep.subr.mxu0 0.0
    %503 = vmatpush1.msra.mxu0 0.0
    %504 = vmatprep.subr.mxu0 0.0
    %505 = vmatpush1.msra.mxu0 0.0
    %506 = vmatprep.subr.mxu0 0.0
    %507 = vmatpush1.msra.mxu0 0.0
    %508 = vmatprep.subr.mxu0 0.0
    %509 = vmatpush1.msra.mxu0 0.0
    %510 = vmatprep.subr.mxu0 0.0
    %511 = vmatpush1.msra.mxu0 0.0
    %512 = vmatprep.subr.mxu0 0.0
    %513 = vmatpush1.msra.mxu0 0.0
    %514 = vmatprep.subr.mxu0 0.0
    %515 = vmatpush1.msra.mxu0 0.0
    %516 = vmatprep.subr.mxu0 0.0
    %517 = vmatpush1.msra.mxu0 0.0
    %518 = vmatprep.mubr.f32.mxu0 0.0
    %519 = vmatmul.mubr.f32.gmra.mrb[0].mxu0 %v448
    %v520 = vpop.f32.mrb[0].mxu0
    %v521 = vadd.f32 0.0, %v520
    %v522 = vpop.f32.mrb[0].mxu0
    %523 = vdwg.mxu0
    %v524 = vsub.f32 0.0, %v521
    %v525 = vmul.f32 %v524, 1.442695
    %v526 = vpow.pop %v525
    %v527 = vadd.f32 %v526, 1.0
    %v528 = vrcp.pop %v527
    %v529 = vmul.f32 1.0, %v528
    %v532 = vunpack.c.l.s4 1966171168
    %v533 = vunpack.c.0.s8 %v532
    %v534 = vlaneseq
    %v535 = vshrl.u32 %v534, 7
    %v536 = vsub.s32 %v533, %v535
    %v537 = vrot.slane %v529, %v536
    %v538 = vcombine.high %v537, %v537
    %v540 = vunpack.c.l.s4 1966171168
    %v541 = vunpack.c.0.s8 %v540
    %v542 = vlaneseq
    %v543 = vshrl.u32 %v542, 7
    %v544 = vsub.s32 %v541, %v543
    %v545 = vrot.slane %v537, %v544
    %v547 = vunpack.c.l.s4 1966171168
    %v548 = vunpack.c.0.s8 %v547
    %v549 = vlaneseq
    %v550 = vshrl.u32 %v549, 7
    %v551 = vsub.s32 %v548, %v550
    %v552 = vrot.slane %v538, %v551
    %v553 = vlaneseq
    %v554 = vshrl.u32 %v553, 7
    %v555 = vsub.s32 0, %v554
    %v556 = vrot.slane %v545, %v555
    %v557 = vlaneseq
    %v558 = vshrl.u32 %v557, 7
    %v559 = vsub.s32 0, %v558
    %v560 = vrot.slane %v552, %v559
    %v563 = vmul.f32 %v184, %v556
    %v564 = vmul.f32 %v185, %v556
    %v565 = vmul.f32 %v186, %v556
    %v566 = vmul.f32 %v187, %v556
    %v567 = vmul.f32 %v188, %v556
    %v568 = vmul.f32 %v189, %v556
    %v569 = vmul.f32 %v190, %v556
    %v570 = vmul.f32 %v191, %v556
    %v571 = vmul.f32 %v192, %v560
    %v572 = vmul.f32 %v193, %v560
    %v573 = vmul.f32 %v194, %v560
    %v574 = vmul.f32 %v195, %v560
    %v575 = vmul.f32 %v196, %v560
    %v576 = vmul.f32 %v197, %v560
    %v577 = vmul.f32 %v198, %v560
    %v578 = vmul.f32 %v199, %v560
    %v579 = vsel %vm200, %v563, 0.0
    %580 = vadd.xlane.f32.xlu0 %v579
    %v581 = vpop.xlane.xlu0 %580
    %v582 = vsel %vm200, %v564, 0.0
    %583 = vadd.xlane.f32.xlu0 %v582
    %v584 = vpop.xlane.xlu0 %583
    %v585 = vsel %vm200, %v565, 0.0
    %586 = vadd.xlane.f32.xlu0 %v585
    %v587 = vpop.xlane.xlu0 %586
    %v588 = vsel %vm200, %v566, 0.0
    %589 = vadd.xlane.f32.xlu0 %v588
    %v590 = vpop.xlane.xlu0 %589
    %v591 = vsel %vm200, %v567, 0.0
    %592 = vadd.xlane.f32.xlu0 %v591
    %v593 = vpop.xlane.xlu0 %592
    %v594 = vsel %vm200, %v568, 0.0
    %595 = vadd.xlane.f32.xlu0 %v594
    %v596 = vpop.xlane.xlu0 %595
    %v597 = vsel %vm200, %v569, 0.0
    %598 = vadd.xlane.f32.xlu0 %v597
    %v599 = vpop.xlane.xlu0 %598
    %v600 = vsel %vm200, %v570, 0.0
    %601 = vadd.xlane.f32.xlu0 %v600
    %v602 = vpop.xlane.xlu0 %601
    %v603 = vsel %vm200, %v571, 0.0
    %604 = vadd.xlane.f32.xlu0 %v603
    %v605 = vpop.xlane.xlu0 %604
    %v606 = vsel %vm200, %v572, 0.0
    %607 = vadd.xlane.f32.xlu0 %v606
    %v608 = vpop.xlane.xlu0 %607
    %v609 = vsel %vm200, %v573, 0.0
    %610 = vadd.xlane.f32.xlu0 %v609
    %v611 = vpop.xlane.xlu0 %610
    %v612 = vsel %vm200, %v574, 0.0
    %613 = vadd.xlane.f32.xlu0 %v612
    %v614 = vpop.xlane.xlu0 %613
    %v615 = vsel %vm200, %v575, 0.0
    %616 = vadd.xlane.f32.xlu0 %v615
    %v617 = vpop.xlane.xlu0 %616
    %v618 = vsel %vm200, %v576, 0.0
    %619 = vadd.xlane.f32.xlu0 %v618
    %v620 = vpop.xlane.xlu0 %619
    %v621 = vsel %vm200, %v577, 0.0
    %622 = vadd.xlane.f32.xlu0 %v621
    %v623 = vpop.xlane.xlu0 %622
    %v624 = vsel %vm200, %v578, 0.0
    %625 = vadd.xlane.f32.xlu0 %v624
    %v626 = vpop.xlane.xlu0 %625
    %v627 = vmul.f32 %v581, 0.03125
    %v628 = vmul.f32 %v584, 0.03125
    %v629 = vmul.f32 %v587, 0.03125
    %v630 = vmul.f32 %v590, 0.03125
    %v631 = vmul.f32 %v593, 0.03125
    %v632 = vmul.f32 %v596, 0.03125
    %v633 = vmul.f32 %v599, 0.03125
    %v634 = vmul.f32 %v602, 0.03125
    %v635 = vmul.f32 %v605, 0.03125
    %v636 = vmul.f32 %v608, 0.03125
    %v637 = vmul.f32 %v611, 0.03125
    %v638 = vmul.f32 %v614, 0.03125
    %v639 = vmul.f32 %v617, 0.03125
    %v640 = vmul.f32 %v620, 0.03125
    %v641 = vmul.f32 %v623, 0.03125
    %v642 = vmul.f32 %v626, 0.03125
    %v643 = vsel %vm200, %v563, -inf
    %644 = vmax.xlane.f32.xlu0 %v643
    %v645 = vpop.xlane.xlu0 %644
    %v646 = vsel %vm200, %v564, -inf
    %647 = vmax.xlane.f32.xlu0 %v646
    %v648 = vpop.xlane.xlu0 %647
    %v649 = vsel %vm200, %v565, -inf
    %650 = vmax.xlane.f32.xlu0 %v649
    %v651 = vpop.xlane.xlu0 %650
    %v652 = vsel %vm200, %v566, -inf
    %653 = vmax.xlane.f32.xlu0 %v652
    %v654 = vpop.xlane.xlu0 %653
    %v655 = vsel %vm200, %v567, -inf
    %656 = vmax.xlane.f32.xlu0 %v655
    %v657 = vpop.xlane.xlu0 %656
    %v658 = vsel %vm200, %v568, -inf
    %659 = vmax.xlane.f32.xlu0 %v658
    %v660 = vpop.xlane.xlu0 %659
    %v661 = vsel %vm200, %v569, -inf
    %662 = vmax.xlane.f32.xlu0 %v661
    %v663 = vpop.xlane.xlu0 %662
    %v664 = vsel %vm200, %v570, -inf
    %665 = vmax.xlane.f32.xlu0 %v664
    %v666 = vpop.xlane.xlu0 %665
    %v667 = vsel %vm200, %v571, -inf
    %668 = vmax.xlane.f32.xlu0 %v667
    %v669 = vpop.xlane.xlu0 %668
    %v670 = vsel %vm200, %v572, -inf
    %671 = vmax.xlane.f32.xlu0 %v670
    %v672 = vpop.xlane.xlu0 %671
    %v673 = vsel %vm200, %v573, -inf
    %674 = vmax.xlane.f32.xlu0 %v673
    %v675 = vpop.xlane.xlu0 %674
    %v676 = vsel %vm200, %v574, -inf
    %677 = vmax.xlane.f32.xlu0 %v676
    %v678 = vpop.xlane.xlu0 %677
    %v679 = vsel %vm200, %v575, -inf
    %680 = vmax.xlane.f32.xlu0 %v679
    %v681 = vpop.xlane.xlu0 %680
    %v682 = vsel %vm200, %v576, -inf
    %683 = vmax.xlane.f32.xlu0 %v682
    %v684 = vpop.xlane.xlu0 %683
    %v685 = vsel %vm200, %v577, -inf
    %686 = vmax.xlane.f32.xlu0 %v685
    %v687 = vpop.xlane.xlu0 %686
    %v688 = vsel %vm200, %v578, -inf
    %689 = vmax.xlane.f32.xlu0 %v688
    %v690 = vpop.xlane.xlu0 %689
    %v691 = vld [vmem:[#allocation5] sm:$0xff]
    %v692 = vld [vmem:[#allocation5 + $0x8] sm:$0xff]
    %v693 = vld [vmem:[#allocation5 + $0x10] sm:$0xff]
    %v694 = vld [vmem:[#allocation5 + $0x18] sm:$0xff]
    %v695 = vld [vmem:[#allocation5 + $0x20] sm:$0xff]
    %v696 = vld [vmem:[#allocation5 + $0x28] sm:$0xff]
    %v697 = vld [vmem:[#allocation5 + $0x30] sm:$0xff]
    %v698 = vld [vmem:[#allocation5 + $0x38] sm:$0xff]
    %v699 = vld [vmem:[#allocation7] sm:$0xff]
    %v700 = vld [vmem:[#allocation7 + $0x8] sm:$0xff]
    %v701 = vld [vmem:[#allocation7 + $0x10] sm:$0xff]
    %v702 = vld [vmem:[#allocation7 + $0x18] sm:$0xff]
    %v703 = vld [vmem:[#allocation7 + $0x20] sm:$0xff]
    %v704 = vld [vmem:[#allocation7 + $0x28] sm:$0xff]
    %v705 = vld [vmem:[#allocation7 + $0x30] sm:$0xff]
    %v706 = vld [vmem:[#allocation7 + $0x38] sm:$0xff]
    %v723 = vlaneseq
    %v724 = vand.u32 %v723, 127
    %v725 = vlaneseq
    %v726 = vshrl.u32 %v725, 7
    %v727 = vsub.s32 %v724, %v726
    %v728 = vrot.slane %v645, %v727
    %v729 = vadd.s32 %v724, 4294967288
    %v730 = vlaneseq
    %v731 = vshrl.u32 %v730, 7
    %v732 = vsub.s32 %v729, %v731
    %v733 = vrot.slane %v648, %v732
    %vm734 = vcmask 130112
    %v735 = vsel %vm734, %v733, %v728
    %v736 = vadd.s32 %v724, 4294967280
    %v737 = vlaneseq
    %v738 = vshrl.u32 %v737, 7
    %v739 = vsub.s32 %v736, %v738
    %v740 = vrot.slane %v651, %v739
    %vm741 = vcmask 195712
    %v742 = vsel %vm741, %v740, %v735
    %v743 = vadd.s32 %v724, 4294967272
    %v744 = vlaneseq
    %v745 = vshrl.u32 %v744, 7
    %v746 = vsub.s32 %v743, %v745
    %v747 = vrot.slane %v654, %v746
    %vm748 = vcmask 261312
    %v749 = vsel %vm748, %v747, %v742
    %v750 = vadd.s32 %v724, 4294967264
    %v751 = vlaneseq
    %v752 = vshrl.u32 %v751, 7
    %v753 = vsub.s32 %v750, %v752
    %v754 = vrot.slane %v657, %v753
    %vm755 = vcmask 326912
    %v756 = vsel %vm755, %v754, %v749
    %v757 = vadd.s32 %v724, 4294967256
    %v758 = vlaneseq
    %v759 = vshrl.u32 %v758, 7
    %v760 = vsub.s32 %v757, %v759
    %v761 = vrot.slane %v660, %v760
    %vm762 = vcmask 392512
    %v763 = vsel %vm762, %v761, %v756
    %v764 = vadd.s32 %v724, 4294967248
    %v765 = vlaneseq
    %v766 = vshrl.u32 %v765, 7
    %v767 = vsub.s32 %v764, %v766
    %v768 = vrot.slane %v663, %v767
    %vm769 = vcmask 458112
    %v770 = vsel %vm769, %v768, %v763
    %v771 = vadd.s32 %v724, 4294967240
    %v772 = vlaneseq
    %v773 = vshrl.u32 %v772, 7
    %v774 = vsub.s32 %v771, %v773
    %v775 = vrot.slane %v666, %v774
    %vm776 = vcmask 523712
    %v777 = vsel %vm776, %v775, %v770
    %v778 = vlaneseq
    %v779 = vshrl.u32 %v778, 7
    %v780 = vsub.s32 %v724, %v779
    %v781 = vrot.slane %v669, %v780
    %v782 = vlaneseq
    %v783 = vshrl.u32 %v782, 7
    %v784 = vsub.s32 %v729, %v783
    %v785 = vrot.slane %v672, %v784
    %v786 = vsel %vm734, %v785, %v781
    %v787 = vlaneseq
    %v788 = vshrl.u32 %v787, 7
    %v789 = vsub.s32 %v736, %v788
    %v790 = vrot.slane %v675, %v789
    %v791 = vsel %vm741, %v790, %v786
    %v792 = vlaneseq
    %v793 = vshrl.u32 %v792, 7
    %v794 = vsub.s32 %v743, %v793
    %v795 = vrot.slane %v678, %v794
    %v796 = vsel %vm748, %v795, %v791
    %v797 = vlaneseq
    %v798 = vshrl.u32 %v797, 7
    %v799 = vsub.s32 %v750, %v798
    %v800 = vrot.slane %v681, %v799
    %v801 = vsel %vm755, %v800, %v796
    %v802 = vlaneseq
    %v803 = vshrl.u32 %v802, 7
    %v804 = vsub.s32 %v757, %v803
    %v805 = vrot.slane %v684, %v804
    %v806 = vsel %vm762, %v805, %v801
    %v807 = vlaneseq
    %v808 = vshrl.u32 %v807, 7
    %v809 = vsub.s32 %v764, %v808
    %v810 = vrot.slane %v687, %v809
    %v811 = vsel %vm769, %v810, %v806
    %v812 = vlaneseq
    %v813 = vshrl.u32 %v812, 7
    %v814 = vsub.s32 %v771, %v813
    %v815 = vrot.slane %v690, %v814
    %v816 = vsel %vm776, %v815, %v811
    %v817 = vsel %vm293, %v816, %v777
    %vm818 = vcmask 523264
    %v819 = vsel %vm818, %v817, 0
    %821 = vmatprep.subr.mxu0 0.0
    %822 = vmatpush1.msra.mxu0 %v699
    %823 = vmatprep.subr.mxu0 0.0
    %824 = vmatpush1.msra.mxu0 %v700
    %825 = vmatprep.subr.mxu0 0.0
    %826 = vmatpush1.msra.mxu0 %v701
    %827 = vmatprep.subr.mxu0 0.0
    %828 = vmatpush1.msra.mxu0 %v702
    %829 = vmatprep.subr.mxu0 0.0
    %830 = vmatpush1.msra.mxu0 %v703
    %831 = vmatprep.subr.mxu0 0.0
    %832 = vmatpush1.msra.mxu0 %v704
    %833 = vmatprep.subr.mxu0 0.0
    %834 = vmatpush1.msra.mxu0 %v705
    %835 = vmatprep.subr.mxu0 0.0
    %836 = vmatpush1.msra.mxu0 %v706
    %837 = vmatprep.subr.mxu0 0.0
    %838 = vmatpush1.msra.mxu0 0.0
    %839 = vmatprep.subr.mxu0 0.0
    %840 = vmatpush1.msra.mxu0 0.0
    %841 = vmatprep.subr.mxu0 0.0
    %842 = vmatpush1.msra.mxu0 0.0
    %843 = vmatprep.subr.mxu0 0.0
    %844 = vmatpush1.msra.mxu0 0.0
    %845 = vmatprep.subr.mxu0 0.0
    %846 = vmatpush1.msra.mxu0 0.0
    %847 = vmatprep.subr.mxu0 0.0
    %848 = vmatpush1.msra.mxu0 0.0
    %849 = vmatprep.subr.mxu0 0.0
    %850 = vmatpush1.msra.mxu0 0.0
    %851 = vmatprep.subr.mxu0 0.0
    %852 = vmatpush1.msra.mxu0 0.0
    %853 = vmatprep.subr.mxu0 0.0
    %854 = vmatpush1.msra.mxu0 0.0
    %855 = vmatprep.subr.mxu0 0.0
    %856 = vmatpush1.msra.mxu0 0.0
    %857 = vmatprep.subr.mxu0 0.0
    %858 = vmatpush1.msra.mxu0 0.0
    %859 = vmatprep.subr.mxu0 0.0
    %860 = vmatpush1.msra.mxu0 0.0
    %861 = vmatprep.subr.mxu0 0.0
    %862 = vmatpush1.msra.mxu0 0.0
    %863 = vmatprep.subr.mxu0 0.0
    %864 = vmatpush1.msra.mxu0 0.0
    %865 = vmatprep.subr.mxu0 0.0
    %866 = vmatpush1.msra.mxu0 0.0
    %867 = vmatprep.subr.mxu0 0.0
    %868 = vmatpush1.msra.mxu0 0.0
    %869 = vmatprep.subr.mxu0 0.0
    %870 = vmatpush1.msra.mxu0 0.0
    %871 = vmatprep.subr.mxu0 0.0
    %872 = vmatpush1.msra.mxu0 0.0
    %873 = vmatprep.subr.mxu0 0.0
    %874 = vmatpush1.msra.mxu0 0.0
    %875 = vmatprep.subr.mxu0 0.0
    %876 = vmatpush1.msra.mxu0 0.0
    %877 = vmatprep.subr.mxu0 0.0
    %878 = vmatpush1.msra.mxu0 0.0
    %879 = vmatprep.subr.mxu0 0.0
    %880 = vmatpush1.msra.mxu0 0.0
    %881 = vmatprep.subr.mxu0 0.0
    %882 = vmatpush1.msra.mxu0 0.0
    %883 = vmatprep.subr.mxu0 0.0
    %884 = vmatpush1.msra.mxu0 0.0
    %885 = vmatprep.mubr.f32.mxu0 0.0
    %886 = vmatmul.mubr.f32.gmra.mrb[0].mxu0 %v819
    %v887 = vpop.f32.mrb[0].mxu0
    %v888 = vadd.f32 0.0, %v887
    %v889 = vpop.f32.mrb[0].mxu0
    %890 = vdwg.mxu0
    %v907 = vlaneseq
    %v908 = vshrl.u32 %v907, 7
    %v909 = vsub.s32 %v724, %v908
    %v910 = vrot.slane %v627, %v909
    %v911 = vlaneseq
    %v912 = vshrl.u32 %v911, 7
    %v913 = vsub.s32 %v729, %v912
    %v914 = vrot.slane %v628, %v913
    %v915 = vsel %vm734, %v914, %v910
    %v916 = vlaneseq
    %v917 = vshrl.u32 %v916, 7
    %v918 = vsub.s32 %v736, %v917
    %v919 = vrot.slane %v629, %v918
    %v920 = vsel %vm741, %v919, %v915
    %v921 = vlaneseq
    %v922 = vshrl.u32 %v921, 7
    %v923 = vsub.s32 %v743, %v922
    %v924 = vrot.slane %v630, %v923
    %v925 = vsel %vm748, %v924, %v920
    %v926 = vlaneseq
    %v927 = vshrl.u32 %v926, 7
    %v928 = vsub.s32 %v750, %v927
    %v929 = vrot.slane %v631, %v928
    %v930 = vsel %vm755, %v929, %v925
    %v931 = vlaneseq
    %v932 = vshrl.u32 %v931, 7
    %v933 = vsub.s32 %v757, %v932
    %v934 = vrot.slane %v632, %v933
    %v935 = vsel %vm762, %v934, %v930
    %v936 = vlaneseq
    %v937 = vshrl.u32 %v936, 7
    %v938 = vsub.s32 %v764, %v937
    %v939 = vrot.slane %v633, %v938
    %v940 = vsel %vm769, %v939, %v935
    %v941 = vlaneseq
    %v942 = vshrl.u32 %v941, 7
    %v943 = vsub.s32 %v771, %v942
    %v944 = vrot.slane %v634, %v943
    %v945 = vsel %vm776, %v944, %v940
    %v946 = vlaneseq
    %v947 = vshrl.u32 %v946, 7
    %v948 = vsub.s32 %v724, %v947
    %v949 = vrot.slane %v635, %v948
    %v950 = vlaneseq
    %v951 = vshrl.u32 %v950, 7
    %v952 = vsub.s32 %v729, %v951
    %v953 = vrot.slane %v636, %v952
    %v954 = vsel %vm734, %v953, %v949
    %v955 = vlaneseq
    %v956 = vshrl.u32 %v955, 7
    %v957 = vsub.s32 %v736, %v956
    %v958 = vrot.slane %v637, %v957
    %v959 = vsel %vm741, %v958, %v954
    %v960 = vlaneseq
    %v961 = vshrl.u32 %v960, 7
    %v962 = vsub.s32 %v743, %v961
    %v963 = vrot.slane %v638, %v962
    %v964 = vsel %vm748, %v963, %v959
    %v965 = vlaneseq
    %v966 = vshrl.u32 %v965, 7
    %v967 = vsub.s32 %v750, %v966
    %v968 = vrot.slane %v639, %v967
    %v969 = vsel %vm755, %v968, %v964
    %v970 = vlaneseq
    %v971 = vshrl.u32 %v970, 7
    %v972 = vsub.s32 %v757, %v971
    %v973 = vrot.slane %v640, %v972
    %v974 = vsel %vm762, %v973, %v969
    %v975 = vlaneseq
    %v976 = vshrl.u32 %v975, 7
    %v977 = vsub.s32 %v764, %v976
    %v978 = vrot.slane %v641, %v977
    %v979 = vsel %vm769, %v978, %v974
    %v980 = vlaneseq
    %v981 = vshrl.u32 %v980, 7
    %v982 = vsub.s32 %v771, %v981
    %v983 = vrot.slane %v642, %v982
    %v984 = vsel %vm776, %v983, %v979
    %v985 = vsel %vm293, %v984, %v945
    %v986 = vsel %vm818, %v985, 0
    %988 = vmatprep.subr.mxu0 0.0
    %989 = vmatpush1.msra.mxu0 %v691
    %990 = vmatprep.subr.mxu0 0.0
    %991 = vmatpush1.msra.mxu0 %v692
    %992 = vmatprep.subr.mxu0 0.0
    %993 = vmatpush1.msra.mxu0 %v693
    %994 = vmatprep.subr.mxu0 0.0
    %995 = vmatpush1.msra.mxu0 %v694
    %996 = vmatprep.subr.mxu0 0.0
    %997 = vmatpush1.msra.mxu0 %v695
    %998 = vmatprep.subr.mxu0 0.0
    %999 = vmatpush1.msra.mxu0 %v696
    %1000 = vmatprep.subr.mxu0 0.0
    %1001 = vmatpush1.msra.mxu0 %v697
    %1002 = vmatprep.subr.mxu0 0.0
    %1003 = vmatpush1.msra.mxu0 %v698
    %1004 = vmatprep.subr.mxu0 0.0
    %1005 = vmatpush1.msra.mxu0 0.0
    %1006 = vmatprep.subr.mxu0 0.0
    %1007 = vmatpush1.msra.mxu0 0.0
    %1008 = vmatprep.subr.mxu0 0.0
    %1009 = vmatpush1.msra.mxu0 0.0
    %1010 = vmatprep.subr.mxu0 0.0
    %1011 = vmatpush1.msra.mxu0 0.0
    %1012 = vmatprep.subr.mxu0 0.0
    %1013 = vmatpush1.msra.mxu0 0.0
    %1014 = vmatprep.subr.mxu0 0.0
    %1015 = vmatpush1.msra.mxu0 0.0
    %1016 = vmatprep.subr.mxu0 0.0
    %1017 = vmatpush1.msra.mxu0 0.0
    %1018 = vmatprep.subr.mxu0 0.0
    %1019 = vmatpush1.msra.mxu0 0.0
    %1020 = vmatprep.subr.mxu0 0.0
    %1021 = vmatpush1.msra.mxu0 0.0
    %1022 = vmatprep.subr.mxu0 0.0
    %1023 = vmatpush1.msra.mxu0 0.0
    %1024 = vmatprep.subr.mxu0 0.0
    %1025 = vmatpush1.msra.mxu0 0.0
    %1026 = vmatprep.subr.mxu0 0.0
    %1027 = vmatpush1.msra.mxu0 0.0
    %1028 = vmatprep.subr.mxu0 0.0
    %1029 = vmatpush1.msra.mxu0 0.0
    %1030 = vmatprep.subr.mxu0 0.0
    %1031 = vmatpush1.msra.mxu0 0.0
    %1032 = vmatprep.subr.mxu0 0.0
    %1033 = vmatpush1.msra.mxu0 0.0
    %1034 = vmatprep.subr.mxu0 0.0
    %1035 = vmatpush1.msra.mxu0 0.0
    %1036 = vmatprep.subr.mxu0 0.0
    %1037 = vmatpush1.msra.mxu0 0.0
    %1038 = vmatprep.subr.mxu0 0.0
    %1039 = vmatpush1.msra.mxu0 0.0
    %1040 = vmatprep.subr.mxu0 0.0
    %1041 = vmatpush1.msra.mxu0 0.0
    %1042 = vmatprep.subr.mxu0 0.0
    %1043 = vmatpush1.msra.mxu0 0.0
    %1044 = vmatprep.subr.mxu0 0.0
    %1045 = vmatpush1.msra.mxu0 0.0
    %1046 = vmatprep.subr.mxu0 0.0
    %1047 = vmatpush1.msra.mxu0 0.0
    %1048 = vmatprep.subr.mxu0 0.0
    %1049 = vmatpush1.msra.mxu0 0.0
    %1050 = vmatprep.subr.mxu0 0.0
    %1051 = vmatpush1.msra.mxu0 0.0
    %1052 = vmatprep.mubr.f32.mxu0 0.0
    %1053 = vmatmul.mubr.f32.gmra.mrb[0].mxu0 %v986
    %v1054 = vpop.f32.mrb[0].mxu0
    %v1055 = vadd.f32 %v888, %v1054
    %v1056 = vpop.f32.mrb[0].mxu0
    %1057 = vdwg.mxu0
    %v1058 = vsub.f32 0.0, %v1055
    %v1059 = vmul.f32 %v1058, 1.442695
    %v1060 = vpow.pop %v1059
    %v1061 = vadd.f32 %v1060, 1.0
    %v1062 = vrcp.pop %v1061
    %v1063 = vmul.f32 1.0, %v1062
    %v1064 = vlaneseq
    %v1065 = vshrl.u32 %v1064, 7
    %v1066 = vsub.s32 0, %v1065
    %v1067 = vrot.slane %v1063, %v1066
    %1069 = vbcast.lane.b32.xlu0 %v1067, 256
    %v1070 = vpop.permute.xlu0 %1069
    %s1072 = sor.u32 256, 8
    %1073 = vbcast.lane.b32.xlu0 %v1067, %s1072
    %v1074 = vpop.permute.xlu0 %1073
    %s1076 = sor.u32 256, 16
    %1077 = vbcast.lane.b32.xlu0 %v1067, %s1076
    %v1078 = vpop.permute.xlu0 %1077
    %s1080 = sor.u32 256, 24
    %1081 = vbcast.lane.b32.xlu0 %v1067, %s1080
    %v1082 = vpop.permute.xlu0 %1081
    %s1084 = sor.u32 256, 32
    %1085 = vbcast.lane.b32.xlu0 %v1067, %s1084
    %v1086 = vpop.permute.xlu0 %1085
    %s1088 = sor.u32 256, 40
    %1089 = vbcast.lane.b32.xlu0 %v1067, %s1088
    %v1090 = vpop.permute.xlu0 %1089
    %s1092 = sor.u32 256, 48
    %1093 = vbcast.lane.b32.xlu0 %v1067, %s1092
    %v1094 = vpop.permute.xlu0 %1093
    %s1096 = sor.u32 256, 56
    %1097 = vbcast.lane.b32.xlu0 %v1067, %s1096
    %v1098 = vpop.permute.xlu0 %1097
    %v1099 = vlaneseq
    %v1100 = vshrl.u32 %v1099, 7
    %v1101 = vsub.s32 1, %v1100
    %v1102 = vrot.slane %v1063, %v1101
    %1104 = vbcast.lane.b32.xlu0 %v1102, 256
    %v1105 = vpop.permute.xlu0 %1104
    %s1107 = sor.u32 256, 8
    %1108 = vbcast.lane.b32.xlu0 %v1102, %s1107
    %v1109 = vpop.permute.xlu0 %1108
    %s1111 = sor.u32 256, 16
    %1112 = vbcast.lane.b32.xlu0 %v1102, %s1111
    %v1113 = vpop.permute.xlu0 %1112
    %s1115 = sor.u32 256, 24
    %1116 = vbcast.lane.b32.xlu0 %v1102, %s1115
    %v1117 = vpop.permute.xlu0 %1116
    %s1119 = sor.u32 256, 32
    %1120 = vbcast.lane.b32.xlu0 %v1102, %s1119
    %v1121 = vpop.permute.xlu0 %1120
    %s1123 = sor.u32 256, 40
    %1124 = vbcast.lane.b32.xlu0 %v1102, %s1123
    %v1125 = vpop.permute.xlu0 %1124
    %s1127 = sor.u32 256, 48
    %1128 = vbcast.lane.b32.xlu0 %v1102, %s1127
    %v1129 = vpop.permute.xlu0 %1128
    %s1131 = sor.u32 256, 56
    %1132 = vbcast.lane.b32.xlu0 %v1102, %s1131
    %v1133 = vpop.permute.xlu0 %1132
    %v1134 = vmul.f32 %v563, %v1070
    %v1135 = vmul.f32 %v564, %v1074
    %v1136 = vmul.f32 %v565, %v1078
    %v1137 = vmul.f32 %v566, %v1082
    %v1138 = vmul.f32 %v567, %v1086
    %v1139 = vmul.f32 %v568, %v1090
    %v1140 = vmul.f32 %v569, %v1094
    %v1141 = vmul.f32 %v570, %v1098
    %v1142 = vmul.f32 %v571, %v1105
    %v1143 = vmul.f32 %v572, %v1109
    %v1144 = vmul.f32 %v573, %v1113
    %v1145 = vmul.f32 %v574, %v1117
    %v1146 = vmul.f32 %v575, %v1121
    %v1147 = vmul.f32 %v576, %v1125
    %v1148 = vmul.f32 %v577, %v1129
    %v1149 = vmul.f32 %v578, %v1133
    %v1150 = vsel %vm200, %v1134, 0.0
    %v1151 = vsel %vm200, %v1135, 0.0
    %v1152 = vadd.f32 %v1150, %v1151
    %v1153 = vsel %vm200, %v1136, 0.0
    %v1154 = vadd.f32 %v1152, %v1153
    %v1155 = vsel %vm200, %v1137, 0.0
    %v1156 = vadd.f32 %v1154, %v1155
    %v1157 = vsel %vm200, %v1138, 0.0
    %v1158 = vadd.f32 %v1156, %v1157
    %v1159 = vsel %vm200, %v1139, 0.0
    %v1160 = vadd.f32 %v1158, %v1159
    %v1161 = vsel %vm200, %v1140, 0.0
    %v1162 = vadd.f32 %v1160, %v1161
    %v1163 = vsel %vm200, %v1141, 0.0
    %v1164 = vadd.f32 %v1162, %v1163
    %v1165 = vrot.slane %v1164, 4
    %v1166 = vadd.f32 %v1164, %v1165
    %v1167 = vrot.slane %v1166, 2
    %v1168 = vadd.f32 %v1166, %v1167
    %v1169 = vrot.slane %v1168, 1
    %v1170 = vadd.f32 %v1168, %v1169
    %v1171 = vsel %vm200, %v1142, 0.0
    %v1172 = vsel %vm200, %v1143, 0.0
    %v1173 = vadd.f32 %v1171, %v1172
    %v1174 = vsel %vm200, %v1144, 0.0
    %v1175 = vadd.f32 %v1173, %v1174
    %v1176 = vsel %vm200, %v1145, 0.0
    %v1177 = vadd.f32 %v1175, %v1176
    %v1178 = vsel %vm200, %v1146, 0.0
    %v1179 = vadd.f32 %v1177, %v1178
    %v1180 = vsel %vm200, %v1147, 0.0
    %v1181 = vadd.f32 %v1179, %v1180
    %v1182 = vsel %vm200, %v1148, 0.0
    %v1183 = vadd.f32 %v1181, %v1182
    %v1184 = vsel %vm200, %v1149, 0.0
    %v1185 = vadd.f32 %v1183, %v1184
    %v1186 = vrot.slane %v1185, 4
    %v1187 = vadd.f32 %v1185, %v1186
    %v1188 = vrot.slane %v1187, 2
    %v1189 = vadd.f32 %v1187, %v1188
    %v1190 = vrot.slane %v1189, 1
    %v1191 = vadd.f32 %v1189, %v1190
    %v1192 = vmul.f32 %v1170, 0.015625
    %v1193 = vmul.f32 %v1191, 0.015625
    %v1194 = vld [vmem:[#allocation8] sm:$0xff]
    %v1195 = vld [vmem:[#allocation8 + $0x8] sm:$0xff]
    %v1196 = vld [vmem:[#allocation8 + $0x10] sm:$0xff]
    %v1197 = vld [vmem:[#allocation8 + $0x18] sm:$0xff]
    %v1198 = vld [vmem:[#allocation8 + $0x20] sm:$0xff]
    %v1199 = vld [vmem:[#allocation8 + $0x28] sm:$0xff]
    %v1200 = vld [vmem:[#allocation8 + $0x30] sm:$0xff]
    %v1201 = vld [vmem:[#allocation8 + $0x38] sm:$0xff]
    %v1202 = vld [vmem:[#allocation8 + $0x40] sm:$0xff]
    %v1203 = vld [vmem:[#allocation8 + $0x48] sm:$0xff]
    %v1204 = vld [vmem:[#allocation8 + $0x50] sm:$0xff]
    %v1205 = vld [vmem:[#allocation8 + $0x58] sm:$0xff]
    %v1206 = vld [vmem:[#allocation8 + $0x60] sm:$0xff]
    %v1207 = vld [vmem:[#allocation8 + $0x68] sm:$0xff]
    %v1208 = vld [vmem:[#allocation8 + $0x70] sm:$0xff]
    %v1209 = vld [vmem:[#allocation8 + $0x78] sm:$0xff]
    %v1210 = vld [vmem:[#allocation8 + $0x80] sm:$0xff]
    %v1211 = vld [vmem:[#allocation8 + $0x88] sm:$0xff]
    %v1212 = vld [vmem:[#allocation8 + $0x90] sm:$0xff]
    %v1213 = vld [vmem:[#allocation8 + $0x98] sm:$0xff]
    %v1214 = vld [vmem:[#allocation8 + $0xa0] sm:$0xff]
    %v1215 = vld [vmem:[#allocation8 + $0xa8] sm:$0xff]
    %v1216 = vld [vmem:[#allocation8 + $0xb0] sm:$0xff]
    %v1217 = vld [vmem:[#allocation8 + $0xb8] sm:$0xff]
    %v1218 = vld [vmem:[#allocation8 + $0xc0] sm:$0xff]
    %v1219 = vld [vmem:[#allocation8 + $0xc8] sm:$0xff]
    %v1220 = vld [vmem:[#allocation8 + $0xd0] sm:$0xff]
    %v1221 = vld [vmem:[#allocation8 + $0xd8] sm:$0xff]
    %v1222 = vld [vmem:[#allocation8 + $0xe0] sm:$0xff]
    %v1223 = vld [vmem:[#allocation8 + $0xe8] sm:$0xff]
    %v1224 = vld [vmem:[#allocation8 + $0xf0] sm:$0xff]
    %v1225 = vld [vmem:[#allocation8 + $0xf8] sm:$0xff]
    %v1226 = vld [vmem:[#allocation8 + $0x100] sm:$0xff]
    %v1227 = vld [vmem:[#allocation8 + $0x108] sm:$0xff]
    %v1228 = vld [vmem:[#allocation8 + $0x110] sm:$0xff]
    %v1229 = vld [vmem:[#allocation8 + $0x118] sm:$0xff]
    %v1230 = vld [vmem:[#allocation8 + $0x120] sm:$0xff]
    %v1231 = vld [vmem:[#allocation8 + $0x128] sm:$0xff]
    %v1232 = vld [vmem:[#allocation8 + $0x130] sm:$0xff]
    %v1233 = vld [vmem:[#allocation8 + $0x138] sm:$0xff]
    %v1234 = vld [vmem:[#allocation8 + $0x140] sm:$0xff]
    %v1235 = vld [vmem:[#allocation8 + $0x148] sm:$0xff]
    %v1236 = vld [vmem:[#allocation8 + $0x150] sm:$0xff]
    %v1237 = vld [vmem:[#allocation8 + $0x158] sm:$0xff]
    %v1238 = vld [vmem:[#allocation8 + $0x160] sm:$0xff]
    %v1239 = vld [vmem:[#allocation8 + $0x168] sm:$0xff]
    %v1240 = vld [vmem:[#allocation8 + $0x170] sm:$0xff]
    %v1241 = vld [vmem:[#allocation8 + $0x178] sm:$0xff]
    %v1242 = vld [vmem:[#allocation8 + $0x180] sm:$0xff]
    %v1243 = vld [vmem:[#allocation8 + $0x188] sm:$0xff]
    %v1244 = vld [vmem:[#allocation8 + $0x190] sm:$0xff]
    %v1245 = vld [vmem:[#allocation8 + $0x198] sm:$0xff]
    %v1246 = vld [vmem:[#allocation8 + $0x1a0] sm:$0xff]
    %v1247 = vld [vmem:[#allocation8 + $0x1a8] sm:$0xff]
    %v1248 = vld [vmem:[#allocation8 + $0x1b0] sm:$0xff]
    %v1249 = vld [vmem:[#allocation8 + $0x1b8] sm:$0xff]
    %v1250 = vld [vmem:[#allocation8 + $0x1c0] sm:$0xff]
    %v1251 = vld [vmem:[#allocation8 + $0x1c8] sm:$0xff]
    %v1252 = vld [vmem:[#allocation8 + $0x1d0] sm:$0xff]
    %v1253 = vld [vmem:[#allocation8 + $0x1d8] sm:$0xff]
    %v1254 = vld [vmem:[#allocation8 + $0x1e0] sm:$0xff]
    %v1255 = vld [vmem:[#allocation8 + $0x1e8] sm:$0xff]
    %v1256 = vld [vmem:[#allocation8 + $0x1f0] sm:$0xff]
    %v1257 = vld [vmem:[#allocation8 + $0x1f8] sm:$0xff]
    %v1258 = vld [vmem:[#allocation10] sm:$0xff]
    %v1259 = vld [vmem:[#allocation10 + $0x8] sm:$0xff]
    %v1262 = vlaneseq
    %v1263 = vshrl.u32 %v1262, 7
    %v1264 = vsub.s32 0, %v1263
    %v1265 = vrot.slane %v1258, %v1264
    %v1266 = vlaneseq
    %v1267 = vshrl.u32 %v1266, 7
    %v1268 = vsub.s32 1, %v1267
    %v1269 = vrot.slane %v1258, %v1268
    %v1270 = vlaneseq
    %v1271 = vshrl.u32 %v1270, 7
    %v1272 = vsub.s32 2, %v1271
    %v1273 = vrot.slane %v1258, %v1272
    %v1274 = vlaneseq
    %v1275 = vshrl.u32 %v1274, 7
    %v1276 = vsub.s32 3, %v1275
    %v1277 = vrot.slane %v1258, %v1276
    %v1278 = vlaneseq
    %v1279 = vshrl.u32 %v1278, 7
    %v1280 = vsub.s32 4, %v1279
    %v1281 = vrot.slane %v1258, %v1280
    %v1282 = vlaneseq
    %v1283 = vshrl.u32 %v1282, 7
    %v1284 = vsub.s32 5, %v1283
    %v1285 = vrot.slane %v1258, %v1284
    %v1286 = vlaneseq
    %v1287 = vshrl.u32 %v1286, 7
    %v1288 = vsub.s32 6, %v1287
    %v1289 = vrot.slane %v1258, %v1288
    %v1290 = vlaneseq
    %v1291 = vshrl.u32 %v1290, 7
    %v1292 = vsub.s32 7, %v1291
    %v1293 = vrot.slane %v1258, %v1292
    %v1294 = vlaneseq
    %v1295 = vshrl.u32 %v1294, 7
    %v1296 = vsub.s32 0, %v1295
    %v1297 = vrot.slane %v1259, %v1296
    %v1298 = vlaneseq
    %v1299 = vshrl.u32 %v1298, 7
    %v1300 = vsub.s32 1, %v1299
    %v1301 = vrot.slane %v1259, %v1300
    %v1302 = vlaneseq
    %v1303 = vshrl.u32 %v1302, 7
    %v1304 = vsub.s32 2, %v1303
    %v1305 = vrot.slane %v1259, %v1304
    %v1306 = vlaneseq
    %v1307 = vshrl.u32 %v1306, 7
    %v1308 = vsub.s32 3, %v1307
    %v1309 = vrot.slane %v1259, %v1308
    %v1310 = vlaneseq
    %v1311 = vshrl.u32 %v1310, 7
    %v1312 = vsub.s32 4, %v1311
    %v1313 = vrot.slane %v1259, %v1312
    %v1314 = vlaneseq
    %v1315 = vshrl.u32 %v1314, 7
    %v1316 = vsub.s32 5, %v1315
    %v1317 = vrot.slane %v1259, %v1316
    %v1318 = vlaneseq
    %v1319 = vshrl.u32 %v1318, 7
    %v1320 = vsub.s32 6, %v1319
    %v1321 = vrot.slane %v1259, %v1320
    %v1322 = vlaneseq
    %v1323 = vshrl.u32 %v1322, 7
    %v1324 = vsub.s32 7, %v1323
    %v1325 = vrot.slane %v1259, %v1324
    %v1344 = vsel %vm293, %v1193, %v1192
    %v1345 = vsel %vm200, %v1344, 0
    %1347 = vmatprep.subr.mxu0 %v1195
    %1348 = vmatpush1.msra.mxu0 %v1194
    %1349 = vmatprep.subr.mxu0 %v1211
    %1350 = vmatpush1.msra.mxu0 %v1210
    %1351 = vmatprep.subr.mxu0 %v1227
    %1352 = vmatpush1.msra.mxu0 %v1226
    %1353 = vmatprep.subr.mxu0 %v1243
    %1354 = vmatpush1.msra.mxu0 %v1242
    %1355 = vmatprep.subr.mxu0 0.0
    %1356 = vmatpush1.msra.mxu0 0.0
    %1357 = vmatprep.subr.mxu0 0.0
    %1358 = vmatpush1.msra.mxu0 0.0
    %1359 = vmatprep.subr.mxu0 0.0
    %1360 = vmatpush1.msra.mxu0 0.0
    %1361 = vmatprep.subr.mxu0 0.0
    %1362 = vmatpush1.msra.mxu0 0.0
    %1363 = vmatprep.subr.mxu0 0.0
    %1364 = vmatpush1.msra.mxu0 0.0
    %1365 = vmatprep.subr.mxu0 0.0
    %1366 = vmatpush1.msra.mxu0 0.0
    %1367 = vmatprep.subr.mxu0 0.0
    %1368 = vmatpush1.msra.mxu0 0.0
    %1369 = vmatprep.subr.mxu0 0.0
    %1370 = vmatpush1.msra.mxu0 0.0
    %1371 = vmatprep.subr.mxu0 0.0
    %1372 = vmatpush1.msra.mxu0 0.0
    %1373 = vmatprep.subr.mxu0 0.0
    %1374 = vmatpush1.msra.mxu0 0.0
    %1375 = vmatprep.subr.mxu0 0.0
    %1376 = vmatpush1.msra.mxu0 0.0
    %1377 = vmatprep.subr.mxu0 0.0
    %1378 = vmatpush1.msra.mxu0 0.0
    %1379 = vmatprep.subr.mxu0 0.0
    %1380 = vmatpush1.msra.mxu0 0.0
    %1381 = vmatprep.subr.mxu0 0.0
    %1382 = vmatpush1.msra.mxu0 0.0
    %1383 = vmatprep.subr.mxu0 0.0
    %1384 = vmatpush1.msra.mxu0 0.0
    %1385 = vmatprep.subr.mxu0 0.0
    %1386 = vmatpush1.msra.mxu0 0.0
    %1387 = vmatprep.subr.mxu0 0.0
    %1388 = vmatpush1.msra.mxu0 0.0
    %1389 = vmatprep.subr.mxu0 0.0
    %1390 = vmatpush1.msra.mxu0 0.0
    %1391 = vmatprep.subr.mxu0 0.0
    %1392 = vmatpush1.msra.mxu0 0.0
    %1393 = vmatprep.subr.mxu0 0.0
    %1394 = vmatpush1.msra.mxu0 0.0
    %1395 = vmatprep.subr.mxu0 0.0
    %1396 = vmatpush1.msra.mxu0 0.0
    %1397 = vmatprep.subr.mxu0 0.0
    %1398 = vmatpush1.msra.mxu0 0.0
    %1399 = vmatprep.subr.mxu0 0.0
    %1400 = vmatpush1.msra.mxu0 0.0
    %1401 = vmatprep.subr.mxu0 0.0
    %1402 = vmatpush1.msra.mxu0 0.0
    %1403 = vmatprep.subr.mxu0 0.0
    %1404 = vmatpush1.msra.mxu0 0.0
    %1405 = vmatprep.subr.mxu0 0.0
    %1406 = vmatpush1.msra.mxu0 0.0
    %1407 = vmatprep.subr.mxu0 0.0
    %1408 = vmatpush1.msra.mxu0 0.0
    %1409 = vmatprep.subr.mxu0 0.0
    %1410 = vmatpush1.msra.mxu0 0.0
    %1411 = vmatprep.mubr.f32.mxu0 0.0
    %1412 = vmatmul.mubr.f32.gmra.mrb[0].mxu0 %v1345
    %v1413 = vpop.f32.mrb[0].mxu0
    %v1414 = vadd.f32 %v1265, %v1413
    %v1415 = vpop.f32.mrb[0].mxu0
    %v1416 = vadd.f32 %v1269, %v1415
    %1417 = vdwg.mxu0
    %1418 = vmatprep.subr.mxu0 %v1197
    %1419 = vmatpush1.msra.mxu0 %v1196
    %1420 = vmatprep.subr.mxu0 %v1213
    %1421 = vmatpush1.msra.mxu0 %v1212
    %1422 = vmatprep.subr.mxu0 %v1229
    %1423 = vmatpush1.msra.mxu0 %v1228
    %1424 = vmatprep.subr.mxu0 %v1245
    %1425 = vmatpush1.msra.mxu0 %v1244
    %1426 = vmatprep.subr.mxu0 0.0
    %1427 = vmatpush1.msra.mxu0 0.0
    %1428 = vmatprep.subr.mxu0 0.0
    %1429 = vmatpush1.msra.mxu0 0.0
    %1430 = vmatprep.subr.mxu0 0.0
    %1431 = vmatpush1.msra.mxu0 0.0
    %1432 = vmatprep.subr.mxu0 0.0
    %1433 = vmatpush1.msra.mxu0 0.0
    %1434 = vmatprep.subr.mxu0 0.0
    %1435 = vmatpush1.msra.mxu0 0.0
    %1436 = vmatprep.subr.mxu0 0.0
    %1437 = vmatpush1.msra.mxu0 0.0
    %1438 = vmatprep.subr.mxu0 0.0
    %1439 = vmatpush1.msra.mxu0 0.0
    %1440 = vmatprep.subr.mxu0 0.0
    %1441 = vmatpush1.msra.mxu0 0.0
    %1442 = vmatprep.subr.mxu0 0.0
    %1443 = vmatpush1.msra.mxu0 0.0
    %1444 = vmatprep.subr.mxu0 0.0
    %1445 = vmatpush1.msra.mxu0 0.0
    %1446 = vmatprep.subr.mxu0 0.0
    %1447 = vmatpush1.msra.mxu0 0.0
    %1448 = vmatprep.subr.mxu0 0.0
    %1449 = vmatpush1.msra.mxu0 0.0
    %1450 = vmatprep.subr.mxu0 0.0
    %1451 = vmatpush1.msra.mxu0 0.0
    %1452 = vmatprep.subr.mxu0 0.0
    %1453 = vmatpush1.msra.mxu0 0.0
    %1454 = vmatprep.subr.mxu0 0.0
    %1455 = vmatpush1.msra.mxu0 0.0
    %1456 = vmatprep.subr.mxu0 0.0
    %1457 = vmatpush1.msra.mxu0 0.0
    %1458 = vmatprep.subr.mxu0 0.0
    %1459 = vmatpush1.msra.mxu0 0.0
    %1460 = vmatprep.subr.mxu0 0.0
    %1461 = vmatpush1.msra.mxu0 0.0
    %1462 = vmatprep.subr.mxu0 0.0
    %1463 = vmatpush1.msra.mxu0 0.0
    %1464 = vmatprep.subr.mxu0 0.0
    %1465 = vmatpush1.msra.mxu0 0.0
    %1466 = vmatprep.subr.mxu0 0.0
    %1467 = vmatpush1.msra.mxu0 0.0
    %1468 = vmatprep.subr.mxu0 0.0
    %1469 = vmatpush1.msra.mxu0 0.0
    %1470 = vmatprep.subr.mxu0 0.0
    %1471 = vmatpush1.msra.mxu0 0.0
    %1472 = vmatprep.subr.mxu0 0.0
    %1473 = vmatpush1.msra.mxu0 0.0
    %1474 = vmatprep.subr.mxu0 0.0
    %1475 = vmatpush1.msra.mxu0 0.0
    %1476 = vmatprep.subr.mxu0 0.0
    %1477 = vmatpush1.msra.mxu0 0.0
    %1478 = vmatprep.subr.mxu0 0.0
    %1479 = vmatpush1.msra.mxu0 0.0
    %1480 = vmatprep.subr.mxu0 0.0
    %1481 = vmatpush1.msra.mxu0 0.0
    %1482 = vmatprep.mubr.f32.mxu0 0.0
    %1483 = vmatmul.mubr.f32.gmra.mrb[0].mxu0 %v1345
    %v1484 = vpop.f32.mrb[0].mxu0
    %v1485 = vadd.f32 %v1273, %v1484
    %v1486 = vpop.f32.mrb[0].mxu0
    %v1487 = vadd.f32 %v1277, %v1486
    %1488 = vdwg.mxu0
    %1489 = vmatprep.subr.mxu0 %v1199
    %1490 = vmatpush1.msra.mxu0 %v1198
    %1491 = vmatprep.subr.mxu0 %v1215
    %1492 = vmatpush1.msra.mxu0 %v1214
    %1493 = vmatprep.subr.mxu0 %v1231
    %1494 = vmatpush1.msra.mxu0 %v1230
    %1495 = vmatprep.subr.mxu0 %v1247
    %1496 = vmatpush1.msra.mxu0 %v1246
    %1497 = vmatprep.subr.mxu0 0.0
    %1498 = vmatpush1.msra.mxu0 0.0
    %1499 = vmatprep.subr.mxu0 0.0
    %1500 = vmatpush1.msra.mxu0 0.0
    %1501 = vmatprep.subr.mxu0 0.0
    %1502 = vmatpush1.msra.mxu0 0.0
    %1503 = vmatprep.subr.mxu0 0.0
    %1504 = vmatpush1.msra.mxu0 0.0
    %1505 = vmatprep.subr.mxu0 0.0
    %1506 = vmatpush1.msra.mxu0 0.0
    %1507 = vmatprep.subr.mxu0 0.0
    %1508 = vmatpush1.msra.mxu0 0.0
    %1509 = vmatprep.subr.mxu0 0.0
    %1510 = vmatpush1.msra.mxu0 0.0
    %1511 = vmatprep.subr.mxu0 0.0
    %1512 = vmatpush1.msra.mxu0 0.0
    %1513 = vmatprep.subr.mxu0 0.0
    %1514 = vmatpush1.msra.mxu0 0.0
    %1515 = vmatprep.subr.mxu0 0.0
    %1516 = vmatpush1.msra.mxu0 0.0
    %1517 = vmatprep.subr.mxu0 0.0
    %1518 = vmatpush1.msra.mxu0 0.0
    %1519 = vmatprep.subr.mxu0 0.0
    %1520 = vmatpush1.msra.mxu0 0.0
    %1521 = vmatprep.subr.mxu0 0.0
    %1522 = vmatpush1.msra.mxu0 0.0
    %1523 = vmatprep.subr.mxu0 0.0
    %1524 = vmatpush1.msra.mxu0 0.0
    %1525 = vmatprep.subr.mxu0 0.0
    %1526 = vmatpush1.msra.mxu0 0.0
    %1527 = vmatprep.subr.mxu0 0.0
    %1528 = vmatpush1.msra.mxu0 0.0
    %1529 = vmatprep.subr.mxu0 0.0
    %1530 = vmatpush1.msra.mxu0 0.0
    %1531 = vmatprep.subr.mxu0 0.0
    %1532 = vmatpush1.msra.mxu0 0.0
    %1533 = vmatprep.subr.mxu0 0.0
    %1534 = vmatpush1.msra.mxu0 0.0
    %1535 = vmatprep.subr.mxu0 0.0
    %1536 = vmatpush1.msra.mxu0 0.0
    %1537 = vmatprep.subr.mxu0 0.0
    %1538 = vmatpush1.msra.mxu0 0.0
    %1539 = vmatprep.subr.mxu0 0.0
    %1540 = vmatpush1.msra.mxu0 0.0
    %1541 = vmatprep.subr.mxu0 0.0
    %1542 = vmatpush1.msra.mxu0 0.0
    %1543 = vmatprep.subr.mxu0 0.0
    %1544 = vmatpush1.msra.mxu0 0.0
    %1545 = vmatprep.subr.mxu0 0.0
    %1546 = vmatpush1.msra.mxu0 0.0
    %1547 = vmatprep.subr.mxu0 0.0
    %1548 = vmatpush1.msra.mxu0 0.0
    %1549 = vmatprep.subr.mxu0 0.0
    %1550 = vmatpush1.msra.mxu0 0.0
    %1551 = vmatprep.subr.mxu0 0.0
    %1552 = vmatpush1.msra.mxu0 0.0
    %1553 = vmatprep.mubr.f32.mxu0 0.0
    %1554 = vmatmul.mubr.f32.gmra.mrb[0].mxu0 %v1345
    %v1555 = vpop.f32.mrb[0].mxu0
    %v1556 = vadd.f32 %v1281, %v1555
    %v1557 = vpop.f32.mrb[0].mxu0
    %v1558 = vadd.f32 %v1285, %v1557
    %1559 = vdwg.mxu0
    %1560 = vmatprep.subr.mxu0 %v1201
    %1561 = vmatpush1.msra.mxu0 %v1200
    %1562 = vmatprep.subr.mxu0 %v1217
    %1563 = vmatpush1.msra.mxu0 %v1216
    %1564 = vmatprep.subr.mxu0 %v1233
    %1565 = vmatpush1.msra.mxu0 %v1232
    %1566 = vmatprep.subr.mxu0 %v1249
    %1567 = vmatpush1.msra.mxu0 %v1248
    %1568 = vmatprep.subr.mxu0 0.0
    %1569 = vmatpush1.msra.mxu0 0.0
    %1570 = vmatprep.subr.mxu0 0.0
    %1571 = vmatpush1.msra.mxu0 0.0
    %1572 = vmatprep.subr.mxu0 0.0
    %1573 = vmatpush1.msra.mxu0 0.0
    %1574 = vmatprep.subr.mxu0 0.0
    %1575 = vmatpush1.msra.mxu0 0.0
    %1576 = vmatprep.subr.mxu0 0.0
    %1577 = vmatpush1.msra.mxu0 0.0
    %1578 = vmatprep.subr.mxu0 0.0
    %1579 = vmatpush1.msra.mxu0 0.0
    %1580 = vmatprep.subr.mxu0 0.0
    %1581 = vmatpush1.msra.mxu0 0.0
    %1582 = vmatprep.subr.mxu0 0.0
    %1583 = vmatpush1.msra.mxu0 0.0
    %1584 = vmatprep.subr.mxu0 0.0
    %1585 = vmatpush1.msra.mxu0 0.0
    %1586 = vmatprep.subr.mxu0 0.0
    %1587 = vmatpush1.msra.mxu0 0.0
    %1588 = vmatprep.subr.mxu0 0.0
    %1589 = vmatpush1.msra.mxu0 0.0
    %1590 = vmatprep.subr.mxu0 0.0
    %1591 = vmatpush1.msra.mxu0 0.0
    %1592 = vmatprep.subr.mxu0 0.0
    %1593 = vmatpush1.msra.mxu0 0.0
    %1594 = vmatprep.subr.mxu0 0.0
    %1595 = vmatpush1.msra.mxu0 0.0
    %1596 = vmatprep.subr.mxu0 0.0
    %1597 = vmatpush1.msra.mxu0 0.0
    %1598 = vmatprep.subr.mxu0 0.0
    %1599 = vmatpush1.msra.mxu0 0.0
    %1600 = vmatprep.subr.mxu0 0.0
    %1601 = vmatpush1.msra.mxu0 0.0
    %1602 = vmatprep.subr.mxu0 0.0
    %1603 = vmatpush1.msra.mxu0 0.0
    %1604 = vmatprep.subr.mxu0 0.0
    %1605 = vmatpush1.msra.mxu0 0.0
    %1606 = vmatprep.subr.mxu0 0.0
    %1607 = vmatpush1.msra.mxu0 0.0
    %1608 = vmatprep.subr.mxu0 0.0
    %1609 = vmatpush1.msra.mxu0 0.0
    %1610 = vmatprep.subr.mxu0 0.0
    %1611 = vmatpush1.msra.mxu0 0.0
    %1612 = vmatprep.subr.mxu0 0.0
    %1613 = vmatpush1.msra.mxu0 0.0
    %1614 = vmatprep.subr.mxu0 0.0
    %1615 = vmatpush1.msra.mxu0 0.0
    %1616 = vmatprep.subr.mxu0 0.0
    %1617 = vmatpush1.msra.mxu0 0.0
    %1618 = vmatprep.subr.mxu0 0.0
    %1619 = vmatpush1.msra.mxu0 0.0
    %1620 = vmatprep.subr.mxu0 0.0
    %1621 = vmatpush1.msra.mxu0 0.0
    %1622 = vmatprep.subr.mxu0 0.0
    %1623 = vmatpush1.msra.mxu0 0.0
    %1624 = vmatprep.mubr.f32.mxu0 0.0
    %1625 = vmatmul.mubr.f32.gmra.mrb[0].mxu0 %v1345
    %v1626 = vpop.f32.mrb[0].mxu0
    %v1627 = vadd.f32 %v1289, %v1626
    %v1628 = vpop.f32.mrb[0].mxu0
    %v1629 = vadd.f32 %v1293, %v1628
    %1630 = vdwg.mxu0
    %1631 = vmatprep.subr.mxu0 %v1203
    %1632 = vmatpush1.msra.mxu0 %v1202
    %1633 = vmatprep.subr.mxu0 %v1219
    %1634 = vmatpush1.msra.mxu0 %v1218
    %1635 = vmatprep.subr.mxu0 %v1235
    %1636 = vmatpush1.msra.mxu0 %v1234
    %1637 = vmatprep.subr.mxu0 %v1251
    %1638 = vmatpush1.msra.mxu0 %v1250
    %1639 = vmatprep.subr.mxu0 0.0
    %1640 = vmatpush1.msra.mxu0 0.0
    %1641 = vmatprep.subr.mxu0 0.0
    %1642 = vmatpush1.msra.mxu0 0.0
    %1643 = vmatprep.subr.mxu0 0.0
    %1644 = vmatpush1.msra.mxu0 0.0
    %1645 = vmatprep.subr.mxu0 0.0
    %1646 = vmatpush1.msra.mxu0 0.0
    %1647 = vmatprep.subr.mxu0 0.0
    %1648 = vmatpush1.msra.mxu0 0.0
    %1649 = vmatprep.subr.mxu0 0.0
    %1650 = vmatpush1.msra.mxu0 0.0
    %1651 = vmatprep.subr.mxu0 0.0
    %1652 = vmatpush1.msra.mxu0 0.0
    %1653 = vmatprep.subr.mxu0 0.0
    %1654 = vmatpush1.msra.mxu0 0.0
    %1655 = vmatprep.subr.mxu0 0.0
    %1656 = vmatpush1.msra.mxu0 0.0
    %1657 = vmatprep.subr.mxu0 0.0
    %1658 = vmatpush1.msra.mxu0 0.0
    %1659 = vmatprep.subr.mxu0 0.0
    %1660 = vmatpush1.msra.mxu0 0.0
    %1661 = vmatprep.subr.mxu0 0.0
    %1662 = vmatpush1.msra.mxu0 0.0
    %1663 = vmatprep.subr.mxu0 0.0
    %1664 = vmatpush1.msra.mxu0 0.0
    %1665 = vmatprep.subr.mxu0 0.0
    %1666 = vmatpush1.msra.mxu0 0.0
    %1667 = vmatprep.subr.mxu0 0.0
    %1668 = vmatpush1.msra.mxu0 0.0
    %1669 = vmatprep.subr.mxu0 0.0
    %1670 = vmatpush1.msra.mxu0 0.0
    %1671 = vmatprep.subr.mxu0 0.0
    %1672 = vmatpush1.msra.mxu0 0.0
    %1673 = vmatprep.subr.mxu0 0.0
    %1674 = vmatpush1.msra.mxu0 0.0
    %1675 = vmatprep.subr.mxu0 0.0
    %1676 = vmatpush1.msra.mxu0 0.0
    %1677 = vmatprep.subr.mxu0 0.0
    %1678 = vmatpush1.msra.mxu0 0.0
    %1679 = vmatprep.subr.mxu0 0.0
    %1680 = vmatpush1.msra.mxu0 0.0
    %1681 = vmatprep.subr.mxu0 0.0
    %1682 = vmatpush1.msra.mxu0 0.0
    %1683 = vmatprep.subr.mxu0 0.0
    %1684 = vmatpush1.msra.mxu0 0.0
    %1685 = vmatprep.subr.mxu0 0.0
    %1686 = vmatpush1.msra.mxu0 0.0
    %1687 = vmatprep.subr.mxu0 0.0
    %1688 = vmatpush1.msra.mxu0 0.0
    %1689 = vmatprep.subr.mxu0 0.0
    %1690 = vmatpush1.msra.mxu0 0.0
    %1691 = vmatprep.subr.mxu0 0.0
    %1692 = vmatpush1.msra.mxu0 0.0
    %1693 = vmatprep.subr.mxu0 0.0
    %1694 = vmatpush1.msra.mxu0 0.0
    %1695 = vmatprep.mubr.f32.mxu0 0.0
    %1696 = vmatmul.mubr.f32.gmra.mrb[0].mxu0 %v1345
    %v1697 = vpop.f32.mrb[0].mxu0
    %v1698 = vadd.f32 %v1297, %v1697
    %v1699 = vpop.f32.mrb[0].mxu0
    %v1700 = vadd.f32 %v1301, %v1699
    %1701 = vdwg.mxu0
    %1702 = vmatprep.subr.mxu0 %v1205
    %1703 = vmatpush1.msra.mxu0 %v1204
    %1704 = vmatprep.subr.mxu0 %v1221
    %1705 = vmatpush1.msra.mxu0 %v1220
    %1706 = vmatprep.subr.mxu0 %v1237
    %1707 = vmatpush1.msra.mxu0 %v1236
    %1708 = vmatprep.subr.mxu0 %v1253
    %1709 = vmatpush1.msra.mxu0 %v1252
    %1710 = vmatprep.subr.mxu0 0.0
    %1711 = vmatpush1.msra.mxu0 0.0
    %1712 = vmatprep.subr.mxu0 0.0
    %1713 = vmatpush1.msra.mxu0 0.0
    %1714 = vmatprep.subr.mxu0 0.0
    %1715 = vmatpush1.msra.mxu0 0.0
    %1716 = vmatprep.subr.mxu0 0.0
    %1717 = vmatpush1.msra.mxu0 0.0
    %1718 = vmatprep.subr.mxu0 0.0
    %1719 = vmatpush1.msra.mxu0 0.0
    %1720 = vmatprep.subr.mxu0 0.0
    %1721 = vmatpush1.msra.mxu0 0.0
    %1722 = vmatprep.subr.mxu0 0.0
    %1723 = vmatpush1.msra.mxu0 0.0
    %1724 = vmatprep.subr.mxu0 0.0
    %1725 = vmatpush1.msra.mxu0 0.0
    %1726 = vmatprep.subr.mxu0 0.0
    %1727 = vmatpush1.msra.mxu0 0.0
    %1728 = vmatprep.subr.mxu0 0.0
    %1729 = vmatpush1.msra.mxu0 0.0
    %1730 = vmatprep.subr.mxu0 0.0
    %1731 = vmatpush1.msra.mxu0 0.0
    %1732 = vmatprep.subr.mxu0 0.0
    %1733 = vmatpush1.msra.mxu0 0.0
    %1734 = vmatprep.subr.mxu0 0.0
    %1735 = vmatpush1.msra.mxu0 0.0
    %1736 = vmatprep.subr.mxu0 0.0
    %1737 = vmatpush1.msra.mxu0 0.0
    %1738 = vmatprep.subr.mxu0 0.0
    %1739 = vmatpush1.msra.mxu0 0.0
    %1740 = vmatprep.subr.mxu0 0.0
    %1741 = vmatpush1.msra.mxu0 0.0
    %1742 = vmatprep.subr.mxu0 0.0
    %1743 = vmatpush1.msra.mxu0 0.0
    %1744 = vmatprep.subr.mxu0 0.0
    %1745 = vmatpush1.msra.mxu0 0.0
    %1746 = vmatprep.subr.mxu0 0.0
    %1747 = vmatpush1.msra.mxu0 0.0
    %1748 = vmatprep.subr.mxu0 0.0
    %1749 = vmatpush1.msra.mxu0 0.0
    %1750 = vmatprep.subr.mxu0 0.0
    %1751 = vmatpush1.msra.mxu0 0.0
    %1752 = vmatprep.subr.mxu0 0.0
    %1753 = vmatpush1.msra.mxu0 0.0
    %1754 = vmatprep.subr.mxu0 0.0
    %1755 = vmatpush1.msra.mxu0 0.0
    %1756 = vmatprep.subr.mxu0 0.0
    %1757 = vmatpush1.msra.mxu0 0.0
    %1758 = vmatprep.subr.mxu0 0.0
    %1759 = vmatpush1.msra.mxu0 0.0
    %1760 = vmatprep.subr.mxu0 0.0
    %1761 = vmatpush1.msra.mxu0 0.0
    %1762 = vmatprep.subr.mxu0 0.0
    %1763 = vmatpush1.msra.mxu0 0.0
    %1764 = vmatprep.subr.mxu0 0.0
    %1765 = vmatpush1.msra.mxu0 0.0
    %1766 = vmatprep.mubr.f32.mxu0 0.0
    %1767 = vmatmul.mubr.f32.gmra.mrb[0].mxu0 %v1345
    %v1768 = vpop.f32.mrb[0].mxu0
    %v1769 = vadd.f32 %v1305, %v1768
    %v1770 = vpop.f32.mrb[0].mxu0
    %v1771 = vadd.f32 %v1309, %v1770
    %1772 = vdwg.mxu0
    %1773 = vmatprep.subr.mxu0 %v1207
    %1774 = vmatpush1.msra.mxu0 %v1206
    %1775 = vmatprep.subr.mxu0 %v1223
    %1776 = vmatpush1.msra.mxu0 %v1222
    %1777 = vmatprep.subr.mxu0 %v1239
    %1778 = vmatpush1.msra.mxu0 %v1238
    %1779 = vmatprep.subr.mxu0 %v1255
    %1780 = vmatpush1.msra.mxu0 %v1254
    %1781 = vmatprep.subr.mxu0 0.0
    %1782 = vmatpush1.msra.mxu0 0.0
    %1783 = vmatprep.subr.mxu0 0.0
    %1784 = vmatpush1.msra.mxu0 0.0
    %1785 = vmatprep.subr.mxu0 0.0
    %1786 = vmatpush1.msra.mxu0 0.0
    %1787 = vmatprep.subr.mxu0 0.0
    %1788 = vmatpush1.msra.mxu0 0.0
    %1789 = vmatprep.subr.mxu0 0.0
    %1790 = vmatpush1.msra.mxu0 0.0
    %1791 = vmatprep.subr.mxu0 0.0
    %1792 = vmatpush1.msra.mxu0 0.0
    %1793 = vmatprep.subr.mxu0 0.0
    %1794 = vmatpush1.msra.mxu0 0.0
    %1795 = vmatprep.subr.mxu0 0.0
    %1796 = vmatpush1.msra.mxu0 0.0
    %1797 = vmatprep.subr.mxu0 0.0
    %1798 = vmatpush1.msra.mxu0 0.0
    %1799 = vmatprep.subr.mxu0 0.0
    %1800 = vmatpush1.msra.mxu0 0.0
    %1801 = vmatprep.subr.mxu0 0.0
    %1802 = vmatpush1.msra.mxu0 0.0
    %1803 = vmatprep.subr.mxu0 0.0
    %1804 = vmatpush1.msra.mxu0 0.0
    %1805 = vmatprep.subr.mxu0 0.0
    %1806 = vmatpush1.msra.mxu0 0.0
    %1807 = vmatprep.subr.mxu0 0.0
    %1808 = vmatpush1.msra.mxu0 0.0
    %1809 = vmatprep.subr.mxu0 0.0
    %1810 = vmatpush1.msra.mxu0 0.0
    %1811 = vmatprep.subr.mxu0 0.0
    %1812 = vmatpush1.msra.mxu0 0.0
    %1813 = vmatprep.subr.mxu0 0.0
    %1814 = vmatpush1.msra.mxu0 0.0
    %1815 = vmatprep.subr.mxu0 0.0
    %1816 = vmatpush1.msra.mxu0 0.0
    %1817 = vmatprep.subr.mxu0 0.0
    %1818 = vmatpush1.msra.mxu0 0.0
    %1819 = vmatprep.subr.mxu0 0.0
    %1820 = vmatpush1.msra.mxu0 0.0
    %1821 = vmatprep.subr.mxu0 0.0
    %1822 = vmatpush1.msra.mxu0 0.0
    %1823 = vmatprep.subr.mxu0 0.0
    %1824 = vmatpush1.msra.mxu0 0.0
    %1825 = vmatprep.subr.mxu0 0.0
    %1826 = vmatpush1.msra.mxu0 0.0
    %1827 = vmatprep.subr.mxu0 0.0
    %1828 = vmatpush1.msra.mxu0 0.0
    %1829 = vmatprep.subr.mxu0 0.0
    %1830 = vmatpush1.msra.mxu0 0.0
    %1831 = vmatprep.subr.mxu0 0.0
    %1832 = vmatpush1.msra.mxu0 0.0
    %1833 = vmatprep.subr.mxu0 0.0
    %1834 = vmatpush1.msra.mxu0 0.0
    %1835 = vmatprep.subr.mxu0 0.0
    %1836 = vmatpush1.msra.mxu0 0.0
    %1837 = vmatprep.mubr.f32.mxu0 0.0
    %1838 = vmatmul.mubr.f32.gmra.mrb[0].mxu0 %v1345
    %v1839 = vpop.f32.mrb[0].mxu0
    %v1840 = vadd.f32 %v1313, %v1839
    %v1841 = vpop.f32.mrb[0].mxu0
    %v1842 = vadd.f32 %v1317, %v1841
    %1843 = vdwg.mxu0
    %1844 = vmatprep.subr.mxu0 %v1209
    %1845 = vmatpush1.msra.mxu0 %v1208
    %1846 = vmatprep.subr.mxu0 %v1225
    %1847 = vmatpush1.msra.mxu0 %v1224
    %1848 = vmatprep.subr.mxu0 %v1241
    %1849 = vmatpush1.msra.mxu0 %v1240
    %1850 = vmatprep.subr.mxu0 %v1257
    %1851 = vmatpush1.msra.mxu0 %v1256
    %1852 = vmatprep.subr.mxu0 0.0
    %1853 = vmatpush1.msra.mxu0 0.0
    %1854 = vmatprep.subr.mxu0 0.0
    %1855 = vmatpush1.msra.mxu0 0.0
    %1856 = vmatprep.subr.mxu0 0.0
    %1857 = vmatpush1.msra.mxu0 0.0
    %1858 = vmatprep.subr.mxu0 0.0
    %1859 = vmatpush1.msra.mxu0 0.0
    %1860 = vmatprep.subr.mxu0 0.0
    %1861 = vmatpush1.msra.mxu0 0.0
    %1862 = vmatprep.subr.mxu0 0.0
    %1863 = vmatpush1.msra.mxu0 0.0
    %1864 = vmatprep.subr.mxu0 0.0
    %1865 = vmatpush1.msra.mxu0 0.0
    %1866 = vmatprep.subr.mxu0 0.0
    %1867 = vmatpush1.msra.mxu0 0.0
    %1868 = vmatprep.subr.mxu0 0.0
    %1869 = vmatpush1.msra.mxu0 0.0
    %1870 = vmatprep.subr.mxu0 0.0
    %1871 = vmatpush1.msra.mxu0 0.0
    %1872 = vmatprep.subr.mxu0 0.0
    %1873 = vmatpush1.msra.mxu0 0.0
    %1874 = vmatprep.subr.mxu0 0.0
    %1875 = vmatpush1.msra.mxu0 0.0
    %1876 = vmatprep.subr.mxu0 0.0
    %1877 = vmatpush1.msra.mxu0 0.0
    %1878 = vmatprep.subr.mxu0 0.0
    %1879 = vmatpush1.msra.mxu0 0.0
    %1880 = vmatprep.subr.mxu0 0.0
    %1881 = vmatpush1.msra.mxu0 0.0
    %1882 = vmatprep.subr.mxu0 0.0
    %1883 = vmatpush1.msra.mxu0 0.0
    %1884 = vmatprep.subr.mxu0 0.0
    %1885 = vmatpush1.msra.mxu0 0.0
    %1886 = vmatprep.subr.mxu0 0.0
    %1887 = vmatpush1.msra.mxu0 0.0
    %1888 = vmatprep.subr.mxu0 0.0
    %1889 = vmatpush1.msra.mxu0 0.0
    %1890 = vmatprep.subr.mxu0 0.0
    %1891 = vmatpush1.msra.mxu0 0.0
    %1892 = vmatprep.subr.mxu0 0.0
    %1893 = vmatpush1.msra.mxu0 0.0
    %1894 = vmatprep.subr.mxu0 0.0
    %1895 = vmatpush1.msra.mxu0 0.0
    %1896 = vmatprep.subr.mxu0 0.0
    %1897 = vmatpush1.msra.mxu0 0.0
    %1898 = vmatprep.subr.mxu0 0.0
    %1899 = vmatpush1.msra.mxu0 0.0
    %1900 = vmatprep.subr.mxu0 0.0
    %1901 = vmatpush1.msra.mxu0 0.0
    %1902 = vmatprep.subr.mxu0 0.0
    %1903 = vmatpush1.msra.mxu0 0.0
    %1904 = vmatprep.subr.mxu0 0.0
    %1905 = vmatpush1.msra.mxu0 0.0
    %1906 = vmatprep.subr.mxu0 0.0
    %1907 = vmatpush1.msra.mxu0 0.0
    %1908 = vmatprep.mubr.f32.mxu0 0.0
    %1909 = vmatmul.mubr.f32.gmra.mrb[0].mxu0 %v1345
    %v1910 = vpop.f32.mrb[0].mxu0
    %v1911 = vadd.f32 %v1321, %v1910
    %v1912 = vpop.f32.mrb[0].mxu0
    %v1913 = vadd.f32 %v1325, %v1912
    %1914 = vdwg.mxu0
    %v1915 = vmul.f32 %v1414, 0.5
    %v1916 = vmul.f32 %v1416, 0.5
    %v1917 = vmul.f32 %v1485, 0.5
    %v1918 = vmul.f32 %v1487, 0.5
    %v1919 = vmul.f32 %v1556, 0.5
    %v1920 = vmul.f32 %v1558, 0.5
    %v1921 = vmul.f32 %v1627, 0.5
    %v1922 = vmul.f32 %v1629, 0.5
    %v1923 = vmul.f32 %v1414, 0.044715
    %v1924 = vmul.f32 %v1416, 0.044715
    %v1925 = vmul.f32 %v1485, 0.044715
    %v1926 = vmul.f32 %v1487, 0.044715
    %v1927 = vmul.f32 %v1556, 0.044715
    %v1928 = vmul.f32 %v1558, 0.044715
    %v1929 = vmul.f32 %v1627, 0.044715
    %v1930 = vmul.f32 %v1629, 0.044715
    %v1931 = vmul.f32 %v1923, %v1414
    %v1932 = vmul.f32 %v1924, %v1416
    %v1933 = vmul.f32 %v1925, %v1485
    %v1934 = vmul.f32 %v1926, %v1487
    %v1935 = vmul.f32 %v1927, %v1556
    %v1936 = vmul.f32 %v1928, %v1558
    %v1937 = vmul.f32 %v1929, %v1627
    %v1938 = vmul.f32 %v1930, %v1629
    %v1939 = vmul.f32 %v1931, %v1414
    %v1940 = vmul.f32 %v1932, %v1416
    %v1941 = vmul.f32 %v1933, %v1485
    %v1942 = vmul.f32 %v1934, %v1487
    %v1943 = vmul.f32 %v1935, %v1556
    %v1944 = vmul.f32 %v1936, %v1558
    %v1945 = vmul.f32 %v1937, %v1627
    %v1946 = vmul.f32 %v1938, %v1629
    %v1947 = vadd.f32 %v1414, %v1939
    %v1948 = vadd.f32 %v1416, %v1940
    %v1949 = vadd.f32 %v1485, %v1941
    %v1950 = vadd.f32 %v1487, %v1942
    %v1951 = vadd.f32 %v1556, %v1943
    %v1952 = vadd.f32 %v1558, %v1944
    %v1953 = vadd.f32 %v1627, %v1945
    %v1954 = vadd.f32 %v1629, %v1946
    %v1955 = vmul.f32 %v1947, 0.7978846
    %v1956 = vmul.f32 %v1948, 0.7978846
    %v1957 = vmul.f32 %v1949, 0.7978846
    %v1958 = vmul.f32 %v1950, 0.7978846
    %v1959 = vmul.f32 %v1951, 0.7978846
    %v1960 = vmul.f32 %v1952, 0.7978846
    %v1961 = vmul.f32 %v1953, 0.7978846
    %v1962 = vmul.f32 %v1954, 0.7978846
    %v1963 = vtanh.pop %v1955
    %v1964 = vtanh.pop %v1956
    %v1965 = vtanh.pop %v1957
    %v1966 = vtanh.pop %v1958
    %v1967 = vtanh.pop %v1959
    %v1968 = vtanh.pop %v1960
    %v1969 = vtanh.pop %v1961
    %v1970 = vtanh.pop %v1962
    %v1971 = vadd.f32 %v1963, 1.0
    %v1972 = vadd.f32 %v1964, 1.0
    %v1973 = vadd.f32 %v1965, 1.0
    %v1974 = vadd.f32 %v1966, 1.0
    %v1975 = vadd.f32 %v1967, 1.0
    %v1976 = vadd.f32 %v1968, 1.0
    %v1977 = vadd.f32 %v1969, 1.0
    %v1978 = vadd.f32 %v1970, 1.0
    %v1979 = vmul.f32 %v1915, %v1971
    %v1980 = vmul.f32 %v1916, %v1972
    %v1981 = vmul.f32 %v1917, %v1973
    %v1982 = vmul.f32 %v1918, %v1974
    %v1983 = vmul.f32 %v1919, %v1975
    %v1984 = vmul.f32 %v1920, %v1976
    %v1985 = vmul.f32 %v1921, %v1977
    %v1986 = vmul.f32 %v1922, %v1978
    %v1987 = vmul.f32 %v1698, 0.5
    %v1988 = vmul.f32 %v1700, 0.5
    %v1989 = vmul.f32 %v1769, 0.5
    %v1990 = vmul.f32 %v1771, 0.5
    %v1991 = vmul.f32 %v1698, 0.044715
    %v1992 = vmul.f32 %v1700, 0.044715
    %v1993 = vmul.f32 %v1769, 0.044715
    %v1994 = vmul.f32 %v1771, 0.044715
    %v1995 = vmul.f32 %v1991, %v1698
    %v1996 = vmul.f32 %v1992, %v1700
    %v1997 = vmul.f32 %v1993, %v1769
    %v1998 = vmul.f32 %v1994, %v1771
    %v1999 = vmul.f32 %v1995, %v1698
    %v2000 = vmul.f32 %v1996, %v1700
    %v2001 = vmul.f32 %v1997, %v1769
    %v2002 = vmul.f32 %v1998, %v1771
    %v2003 = vadd.f32 %v1698, %v1999
    %v2004 = vadd.f32 %v1700, %v2000
    %v2005 = vadd.f32 %v1769, %v2001
    %v2006 = vadd.f32 %v1771, %v2002
    %v2007 = vmul.f32 %v2003, 0.7978846
    %v2008 = vmul.f32 %v2004, 0.7978846
    %v2009 = vmul.f32 %v2005, 0.7978846
    %v2010 = vmul.f32 %v2006, 0.7978846
    %v2011 = vtanh.pop %v2007
    %v2012 = vtanh.pop %v2008
    %v2013 = vtanh.pop %v2009
    %v2014 = vtanh.pop %v2010
    %v2015 = vadd.f32 %v2011, 1.0
    %v2016 = vadd.f32 %v2012, 1.0
    %v2017 = vadd.f32 %v2013, 1.0
    %v2018 = vadd.f32 %v2014, 1.0
    %v2019 = vmul.f32 %v1987, %v2015
    %v2020 = vmul.f32 %v1988, %v2016
    %v2021 = vmul.f32 %v1989, %v2017
    %v2022 = vmul.f32 %v1990, %v2018
    %v2023 = vmul.f32 %v1840, 0.5
    %v2024 = vmul.f32 %v1842, 0.5
    %v2025 = vmul.f32 %v1840, 0.044715
    %v2026 = vmul.f32 %v1842, 0.044715
    %v2027 = vmul.f32 %v2025, %v1840
    %v2028 = vmul.f32 %v2026, %v1842
    %v2029 = vmul.f32 %v2027, %v1840
    %v2030 = vmul.f32 %v2028, %v1842
    %v2031 = vadd.f32 %v1840, %v2029
    %v2032 = vadd.f32 %v1842, %v2030
    %v2033 = vmul.f32 %v2031, 0.7978846
    %v2034 = vmul.f32 %v2032, 0.7978846
    %v2035 = vtanh.pop %v2033
    %v2036 = vtanh.pop %v2034
    %v2037 = vadd.f32 %v2035, 1.0
    %v2038 = vadd.f32 %v2036, 1.0
    %v2039 = vmul.f32 %v2023, %v2037
    %v2040 = vmul.f32 %v2024, %v2038
    %v2041 = vmax.f32 %v1911, 0.0
    %v2042 = vmax.f32 %v1913, 0.0
    %v2043 = vld [vmem:[#allocation11] sm:$0xff]
    %v2044 = vld [vmem:[#allocation11 + $0x8] sm:$0xff]
    %v2045 = vld [vmem:[#allocation11 + $0x10] sm:$0xff]
    %v2046 = vld [vmem:[#allocation11 + $0x18] sm:$0xff]
    %v2047 = vld [vmem:[#allocation11 + $0x20] sm:$0xff]
    %v2048 = vld [vmem:[#allocation11 + $0x28] sm:$0xff]
    %v2049 = vld [vmem:[#allocation11 + $0x30] sm:$0xff]
    %v2050 = vld [vmem:[#allocation11 + $0x38] sm:$0xff]
    %v2051 = vld [vmem:[#allocation11 + $0x40] sm:$0xff]
    %v2052 = vld [vmem:[#allocation11 + $0x48] sm:$0xff]
    %v2053 = vld [vmem:[#allocation11 + $0x50] sm:$0xff]
    %v2054 = vld [vmem:[#allocation11 + $0x58] sm:$0xff]
    %v2055 = vld [vmem:[#allocation11 + $0x60] sm:$0xff]
    %v2056 = vld [vmem:[#allocation11 + $0x68] sm:$0xff]
    %v2057 = vld [vmem:[#allocation11 + $0x70] sm:$0xff]
    %v2058 = vld [vmem:[#allocation11 + $0x78] sm:$0xff]
    %v2059 = vld [vmem:[#allocation11 + $0x80] sm:$0xff]
    %v2060 = vld [vmem:[#allocation11 + $0x88] sm:$0xff]
    %v2061 = vld [vmem:[#allocation11 + $0x90] sm:$0xff]
    %v2062 = vld [vmem:[#allocation11 + $0x98] sm:$0xff]
    %v2063 = vld [vmem:[#allocation11 + $0xa0] sm:$0xff]
    %v2064 = vld [vmem:[#allocation11 + $0xa8] sm:$0xff]
    %v2065 = vld [vmem:[#allocation11 + $0xb0] sm:$0xff]
    %v2066 = vld [vmem:[#allocation11 + $0xb8] sm:$0xff]
    %v2067 = vld [vmem:[#allocation11 + $0xc0] sm:$0xff]
    %v2068 = vld [vmem:[#allocation11 + $0xc8] sm:$0xff]
    %v2069 = vld [vmem:[#allocation11 + $0xd0] sm:$0xff]
    %v2070 = vld [vmem:[#allocation11 + $0xd8] sm:$0xff]
    %v2071 = vld [vmem:[#allocation11 + $0xe0] sm:$0xff]
    %v2072 = vld [vmem:[#allocation11 + $0xe8] sm:$0xff]
    %v2073 = vld [vmem:[#allocation11 + $0xf0] sm:$0xff]
    %v2074 = vld [vmem:[#allocation11 + $0xf8] sm:$0xff]
    %v2075 = vld [vmem:[#allocation11 + $0x100] sm:$0xff]
    %v2076 = vld [vmem:[#allocation11 + $0x108] sm:$0xff]
    %v2077 = vld [vmem:[#allocation11 + $0x110] sm:$0xff]
    %v2078 = vld [vmem:[#allocation11 + $0x118] sm:$0xff]
    %v2079 = vld [vmem:[#allocation11 + $0x120] sm:$0xff]
    %v2080 = vld [vmem:[#allocation11 + $0x128] sm:$0xff]
    %v2081 = vld [vmem:[#allocation11 + $0x130] sm:$0xff]
    %v2082 = vld [vmem:[#allocation11 + $0x138] sm:$0xff]
    %v2083 = vld [vmem:[#allocation11 + $0x140] sm:$0xff]
    %v2084 = vld [vmem:[#allocation11 + $0x148] sm:$0xff]
    %v2085 = vld [vmem:[#allocation11 + $0x150] sm:$0xff]
    %v2086 = vld [vmem:[#allocation11 + $0x158] sm:$0xff]
    %v2087 = vld [vmem:[#allocation11 + $0x160] sm:$0xff]
    %v2088 = vld [vmem:[#allocation11 + $0x168] sm:$0xff]
    %v2089 = vld [vmem:[#allocation11 + $0x170] sm:$0xff]
    %v2090 = vld [vmem:[#allocation11 + $0x178] sm:$0xff]
    %v2091 = vld [vmem:[#allocation11 + $0x180] sm:$0xff]
    %v2092 = vld [vmem:[#allocation11 + $0x188] sm:$0xff]
    %v2093 = vld [vmem:[#allocation11 + $0x190] sm:$0xff]
    %v2094 = vld [vmem:[#allocation11 + $0x198] sm:$0xff]
    %v2095 = vld [vmem:[#allocation11 + $0x1a0] sm:$0xff]
    %v2096 = vld [vmem:[#allocation11 + $0x1a8] sm:$0xff]
    %v2097 = vld [vmem:[#allocation11 + $0x1b0] sm:$0xff]
    %v2098 = vld [vmem:[#allocation11 + $0x1b8] sm:$0xff]
    %v2099 = vld [vmem:[#allocation11 + $0x1c0] sm:$0xff]
    %v2100 = vld [vmem:[#allocation11 + $0x1c8] sm:$0xff]
    %v2101 = vld [vmem:[#allocation11 + $0x1d0] sm:$0xff]
    %v2102 = vld [vmem:[#allocation11 + $0x1d8] sm:$0xff]
    %v2103 = vld [vmem:[#allocation11 + $0x1e0] sm:$0xff]
    %v2104 = vld [vmem:[#allocation11 + $0x1e8] sm:$0xff]
    %v2105 = vld [vmem:[#allocation11 + $0x1f0] sm:$0xff]
    %v2106 = vld [vmem:[#allocation11 + $0x1f8] sm:$0xff]
    %v2107 = vld [vmem:[#allocation11 + $0x200] sm:$0xff]
    %v2108 = vld [vmem:[#allocation11 + $0x208] sm:$0xff]
    %v2109 = vld [vmem:[#allocation11 + $0x210] sm:$0xff]
    %v2110 = vld [vmem:[#allocation11 + $0x218] sm:$0xff]
    %v2111 = vld [vmem:[#allocation11 + $0x220] sm:$0xff]
    %v2112 = vld [vmem:[#allocation11 + $0x228] sm:$0xff]
    %v2113 = vld [vmem:[#allocation11 + $0x230] sm:$0xff]
    %v2114 = vld [vmem:[#allocation11 + $0x238] sm:$0xff]
    %v2115 = vld [vmem:[#allocation11 + $0x240] sm:$0xff]
    %v2116 = vld [vmem:[#allocation11 + $0x248] sm:$0xff]
    %v2117 = vld [vmem:[#allocation11 + $0x250] sm:$0xff]
    %v2118 = vld [vmem:[#allocation11 + $0x258] sm:$0xff]
    %v2119 = vld [vmem:[#allocation11 + $0x260] sm:$0xff]
    %v2120 = vld [vmem:[#allocation11 + $0x268] sm:$0xff]
    %v2121 = vld [vmem:[#allocation11 + $0x270] sm:$0xff]
    %v2122 = vld [vmem:[#allocation11 + $0x278] sm:$0xff]
    %v2123 = vld [vmem:[#allocation11 + $0x280] sm:$0xff]
    %v2124 = vld [vmem:[#allocation11 + $0x288] sm:$0xff]
    %v2125 = vld [vmem:[#allocation11 + $0x290] sm:$0xff]
    %v2126 = vld [vmem:[#allocation11 + $0x298] sm:$0xff]
    %v2127 = vld [vmem:[#allocation11 + $0x2a0] sm:$0xff]
    %v2128 = vld [vmem:[#allocation11 + $0x2a8] sm:$0xff]
    %v2129 = vld [vmem:[#allocation11 + $0x2b0] sm:$0xff]
    %v2130 = vld [vmem:[#allocation11 + $0x2b8] sm:$0xff]
    %v2131 = vld [vmem:[#allocation11 + $0x2c0] sm:$0xff]
    %v2132 = vld [vmem:[#allocation11 + $0x2c8] sm:$0xff]
    %v2133 = vld [vmem:[#allocation11 + $0x2d0] sm:$0xff]
    %v2134 = vld [vmem:[#allocation11 + $0x2d8] sm:$0xff]
    %v2135 = vld [vmem:[#allocation11 + $0x2e0] sm:$0xff]
    %v2136 = vld [vmem:[#allocation11 + $0x2e8] sm:$0xff]
    %v2137 = vld [vmem:[#allocation11 + $0x2f0] sm:$0xff]
    %v2138 = vld [vmem:[#allocation11 + $0x2f8] sm:$0xff]
    %v2139 = vld [vmem:[#allocation11 + $0x300] sm:$0xff]
    %v2140 = vld [vmem:[#allocation11 + $0x308] sm:$0xff]
    %v2141 = vld [vmem:[#allocation11 + $0x310] sm:$0xff]
    %v2142 = vld [vmem:[#allocation11 + $0x318] sm:$0xff]
    %v2143 = vld [vmem:[#allocation11 + $0x320] sm:$0xff]
    %v2144 = vld [vmem:[#allocation11 + $0x328] sm:$0xff]
    %v2145 = vld [vmem:[#allocation11 + $0x330] sm:$0xff]
    %v2146 = vld [vmem:[#allocation11 + $0x338] sm:$0xff]
    %v2147 = vld [vmem:[#allocation11 + $0x340] sm:$0xff]
    %v2148 = vld [vmem:[#allocation11 + $0x348] sm:$0xff]
    %v2149 = vld [vmem:[#allocation11 + $0x350] sm:$0xff]
    %v2150 = vld [vmem:[#allocation11 + $0x358] sm:$0xff]
    %v2151 = vld [vmem:[#allocation11 + $0x360] sm:$0xff]
    %v2152 = vld [vmem:[#allocation11 + $0x368] sm:$0xff]
    %v2153 = vld [vmem:[#allocation11 + $0x370] sm:$0xff]
    %v2154 = vld [vmem:[#allocation11 + $0x378] sm:$0xff]
    %v2155 = vld [vmem:[#allocation11 + $0x380] sm:$0xff]
    %v2156 = vld [vmem:[#allocation11 + $0x388] sm:$0xff]
    %v2157 = vld [vmem:[#allocation11 + $0x390] sm:$0xff]
    %v2158 = vld [vmem:[#allocation11 + $0x398] sm:$0xff]
    %v2159 = vld [vmem:[#allocation11 + $0x3a0] sm:$0xff]
    %v2160 = vld [vmem:[#allocation11 + $0x3a8] sm:$0xff]
    %v2161 = vld [vmem:[#allocation11 + $0x3b0] sm:$0xff]
    %v2162 = vld [vmem:[#allocation11 + $0x3b8] sm:$0xff]
    %v2163 = vld [vmem:[#allocation11 + $0x3c0] sm:$0xff]
    %v2164 = vld [vmem:[#allocation11 + $0x3c8] sm:$0xff]
    %v2165 = vld [vmem:[#allocation11 + $0x3d0] sm:$0xff]
    %v2166 = vld [vmem:[#allocation11 + $0x3d8] sm:$0xff]
    %v2167 = vld [vmem:[#allocation11 + $0x3e0] sm:$0xff]
    %v2168 = vld [vmem:[#allocation11 + $0x3e8] sm:$0xff]
    %v2169 = vld [vmem:[#allocation11 + $0x3f0] sm:$0xff]
    %v2170 = vld [vmem:[#allocation11 + $0x3f8] sm:$0xff]
    %v2171 = vld [vmem:[#allocation11 + $0x400] sm:$0xff]
    %v2172 = vld [vmem:[#allocation11 + $0x408] sm:$0xff]
    %v2173 = vld [vmem:[#allocation11 + $0x410] sm:$0xff]
    %v2174 = vld [vmem:[#allocation11 + $0x418] sm:$0xff]
    %v2175 = vld [vmem:[#allocation11 + $0x420] sm:$0xff]
    %v2176 = vld [vmem:[#allocation11 + $0x428] sm:$0xff]
    %v2177 = vld [vmem:[#allocation11 + $0x430] sm:$0xff]
    %v2178 = vld [vmem:[#allocation11 + $0x438] sm:$0xff]
    %v2179 = vld [vmem:[#allocation11 + $0x440] sm:$0xff]
    %v2180 = vld [vmem:[#allocation11 + $0x448] sm:$0xff]
    %v2181 = vld [vmem:[#allocation11 + $0x450] sm:$0xff]
    %v2182 = vld [vmem:[#allocation11 + $0x458] sm:$0xff]
    %v2183 = vld [vmem:[#allocation11 + $0x460] sm:$0xff]
    %v2184 = vld [vmem:[#allocation11 + $0x468] sm:$0xff]
    %v2185 = vld [vmem:[#allocation11 + $0x470] sm:$0xff]
    %v2186 = vld [vmem:[#allocation11 + $0x478] sm:$0xff]
    %v2187 = vld [vmem:[#allocation11 + $0x480] sm:$0xff]
    %v2188 = vld [vmem:[#allocation11 + $0x488] sm:$0xff]
    %v2189 = vld [vmem:[#allocation11 + $0x490] sm:$0xff]
    %v2190 = vld [vmem:[#allocation11 + $0x498] sm:$0xff]
    %v2191 = vld [vmem:[#allocation11 + $0x4a0] sm:$0xff]
    %v2192 = vld [vmem:[#allocation11 + $0x4a8] sm:$0xff]
    %v2193 = vld [vmem:[#allocation11 + $0x4b0] sm:$0xff]
    %v2194 = vld [vmem:[#allocation11 + $0x4b8] sm:$0xff]
    %v2195 = vld [vmem:[#allocation11 + $0x4c0] sm:$0xff]
    %v2196 = vld [vmem:[#allocation11 + $0x4c8] sm:$0xff]
    %v2197 = vld [vmem:[#allocation11 + $0x4d0] sm:$0xff]
    %v2198 = vld [vmem:[#allocation11 + $0x4d8] sm:$0xff]
    %v2199 = vld [vmem:[#allocation11 + $0x4e0] sm:$0xff]
    %v2200 = vld [vmem:[#allocation11 + $0x4e8] sm:$0xff]
    %v2201 = vld [vmem:[#allocation11 + $0x4f0] sm:$0xff]
    %v2202 = vld [vmem:[#allocation11 + $0x4f8] sm:$0xff]
    %v2203 = vld [vmem:[#allocation11 + $0x500] sm:$0xff]
    %v2204 = vld [vmem:[#allocation11 + $0x508] sm:$0xff]
    %v2205 = vld [vmem:[#allocation11 + $0x510] sm:$0xff]
    %v2206 = vld [vmem:[#allocation11 + $0x518] sm:$0xff]
    %v2207 = vld [vmem:[#allocation11 + $0x520] sm:$0xff]
    %v2208 = vld [vmem:[#allocation11 + $0x528] sm:$0xff]
    %v2209 = vld [vmem:[#allocation11 + $0x530] sm:$0xff]
    %v2210 = vld [vmem:[#allocation11 + $0x538] sm:$0xff]
    %v2211 = vld [vmem:[#allocation11 + $0x540] sm:$0xff]
    %v2212 = vld [vmem:[#allocation11 + $0x548] sm:$0xff]
    %v2213 = vld [vmem:[#allocation11 + $0x550] sm:$0xff]
    %v2214 = vld [vmem:[#allocation11 + $0x558] sm:$0xff]
    %v2215 = vld [vmem:[#allocation11 + $0x560] sm:$0xff]
    %v2216 = vld [vmem:[#allocation11 + $0x568] sm:$0xff]
    %v2217 = vld [vmem:[#allocation11 + $0x570] sm:$0xff]
    %v2218 = vld [vmem:[#allocation11 + $0x578] sm:$0xff]
    %v2219 = vld [vmem:[#allocation11 + $0x580] sm:$0xff]
    %v2220 = vld [vmem:[#allocation11 + $0x588] sm:$0xff]
    %v2221 = vld [vmem:[#allocation11 + $0x590] sm:$0xff]
    %v2222 = vld [vmem:[#allocation11 + $0x598] sm:$0xff]
    %v2223 = vld [vmem:[#allocation11 + $0x5a0] sm:$0xff]
    %v2224 = vld [vmem:[#allocation11 + $0x5a8] sm:$0xff]
    %v2225 = vld [vmem:[#allocation11 + $0x5b0] sm:$0xff]
    %v2226 = vld [vmem:[#allocation11 + $0x5b8] sm:$0xff]
    %v2227 = vld [vmem:[#allocation11 + $0x5c0] sm:$0xff]
    %v2228 = vld [vmem:[#allocation11 + $0x5c8] sm:$0xff]
    %v2229 = vld [vmem:[#allocation11 + $0x5d0] sm:$0xff]
    %v2230 = vld [vmem:[#allocation11 + $0x5d8] sm:$0xff]
    %v2231 = vld [vmem:[#allocation11 + $0x5e0] sm:$0xff]
    %v2232 = vld [vmem:[#allocation11 + $0x5e8] sm:$0xff]
    %v2233 = vld [vmem:[#allocation11 + $0x5f0] sm:$0xff]
    %v2234 = vld [vmem:[#allocation11 + $0x5f8] sm:$0xff]
    %v2235 = vld [vmem:[#allocation11 + $0x600] sm:$0xff]
    %v2236 = vld [vmem:[#allocation11 + $0x608] sm:$0xff]
    %v2237 = vld [vmem:[#allocation11 + $0x610] sm:$0xff]
    %v2238 = vld [vmem:[#allocation11 + $0x618] sm:$0xff]
    %v2239 = vld [vmem:[#allocation11 + $0x620] sm:$0xff]
    %v2240 = vld [vmem:[#allocation11 + $0x628] sm:$0xff]
    %v2241 = vld [vmem:[#allocation11 + $0x630] sm:$0xff]
    %v2242 = vld [vmem:[#allocation11 + $0x638] sm:$0xff]
    %v2243 = vld [vmem:[#allocation11 + $0x640] sm:$0xff]
    %v2244 = vld [vmem:[#allocation11 + $0x648] sm:$0xff]
    %v2245 = vld [vmem:[#allocation11 + $0x650] sm:$0xff]
    %v2246 = vld [vmem:[#allocation11 + $0x658] sm:$0xff]
    %v2247 = vld [vmem:[#allocation11 + $0x660] sm:$0xff]
    %v2248 = vld [vmem:[#allocation11 + $0x668] sm:$0xff]
    %v2249 = vld [vmem:[#allocation11 + $0x670] sm:$0xff]
    %v2250 = vld [vmem:[#allocation11 + $0x678] sm:$0xff]
    %v2251 = vld [vmem:[#allocation11 + $0x680] sm:$0xff]
    %v2252 = vld [vmem:[#allocation11 + $0x688] sm:$0xff]
    %v2253 = vld [vmem:[#allocation11 + $0x690] sm:$0xff]
    %v2254 = vld [vmem:[#allocation11 + $0x698] sm:$0xff]
    %v2255 = vld [vmem:[#allocation11 + $0x6a0] sm:$0xff]
    %v2256 = vld [vmem:[#allocation11 + $0x6a8] sm:$0xff]
    %v2257 = vld [vmem:[#allocation11 + $0x6b0] sm:$0xff]
    %v2258 = vld [vmem:[#allocation11 + $0x6b8] sm:$0xff]
    %v2259 = vld [vmem:[#allocation11 + $0x6c0] sm:$0xff]
    %v2260 = vld [vmem:[#allocation11 + $0x6c8] sm:$0xff]
    %v2261 = vld [vmem:[#allocation11 + $0x6d0] sm:$0xff]
    %v2262 = vld [vmem:[#allocation11 + $0x6d8] sm:$0xff]
    %v2263 = vld [vmem:[#allocation11 + $0x6e0] sm:$0xff]
    %v2264 = vld [vmem:[#allocation11 + $0x6e8] sm:$0xff]
    %v2265 = vld [vmem:[#allocation11 + $0x6f0] sm:$0xff]
    %v2266 = vld [vmem:[#allocation11 + $0x6f8] sm:$0xff]
    %v2267 = vld [vmem:[#allocation11 + $0x700] sm:$0xff]
    %v2268 = vld [vmem:[#allocation11 + $0x708] sm:$0xff]
    %v2269 = vld [vmem:[#allocation11 + $0x710] sm:$0xff]
    %v2270 = vld [vmem:[#allocation11 + $0x718] sm:$0xff]
    %v2271 = vld [vmem:[#allocation11 + $0x720] sm:$0xff]
    %v2272 = vld [vmem:[#allocation11 + $0x728] sm:$0xff]
    %v2273 = vld [vmem:[#allocation11 + $0x730] sm:$0xff]
    %v2274 = vld [vmem:[#allocation11 + $0x738] sm:$0xff]
    %v2275 = vld [vmem:[#allocation11 + $0x740] sm:$0xff]
    %v2276 = vld [vmem:[#allocation11 + $0x748] sm:$0xff]
    %v2277 = vld [vmem:[#allocation11 + $0x750] sm:$0xff]
    %v2278 = vld [vmem:[#allocation11 + $0x758] sm:$0xff]
    %v2279 = vld [vmem:[#allocation11 + $0x760] sm:$0xff]
    %v2280 = vld [vmem:[#allocation11 + $0x768] sm:$0xff]
    %v2281 = vld [vmem:[#allocation11 + $0x770] sm:$0xff]
    %v2282 = vld [vmem:[#allocation11 + $0x778] sm:$0xff]
    %v2283 = vld [vmem:[#allocation11 + $0x780] sm:$0xff]
    %v2284 = vld [vmem:[#allocation11 + $0x788] sm:$0xff]
    %v2285 = vld [vmem:[#allocation11 + $0x790] sm:$0xff]
    %v2286 = vld [vmem:[#allocation11 + $0x798] sm:$0xff]
    %v2287 = vld [vmem:[#allocation11 + $0x7a0] sm:$0xff]
    %v2288 = vld [vmem:[#allocation11 + $0x7a8] sm:$0xff]
    %v2289 = vld [vmem:[#allocation11 + $0x7b0] sm:$0xff]
    %v2290 = vld [vmem:[#allocation11 + $0x7b8] sm:$0xff]
    %v2291 = vld [vmem:[#allocation11 + $0x7c0] sm:$0xff]
    %v2292 = vld [vmem:[#allocation11 + $0x7c8] sm:$0xff]
    %v2293 = vld [vmem:[#allocation11 + $0x7d0] sm:$0xff]
    %v2294 = vld [vmem:[#allocation11 + $0x7d8] sm:$0xff]
    %v2295 = vld [vmem:[#allocation11 + $0x7e0] sm:$0xff]
    %v2296 = vld [vmem:[#allocation11 + $0x7e8] sm:$0xff]
    %v2297 = vld [vmem:[#allocation11 + $0x7f0] sm:$0xff]
    %v2298 = vld [vmem:[#allocation11 + $0x7f8] sm:$0xff]
    %v2299 = vld [vmem:[#allocation11 + $0x800] sm:$0xff]
    %v2300 = vld [vmem:[#allocation11 + $0x808] sm:$0xff]
    %v2301 = vld [vmem:[#allocation11 + $0x810] sm:$0xff]
    %v2302 = vld [vmem:[#allocation11 + $0x818] sm:$0xff]
    %v2303 = vld [vmem:[#allocation11 + $0x820] sm:$0xff]
    %v2304 = vld [vmem:[#allocation11 + $0x828] sm:$0xff]
    %v2305 = vld [vmem:[#allocation11 + $0x830] sm:$0xff]
    %v2306 = vld [vmem:[#allocation11 + $0x838] sm:$0xff]
    %v2307 = vld [vmem:[#allocation11 + $0x840] sm:$0xff]
    %v2308 = vld [vmem:[#allocation11 + $0x848] sm:$0xff]
    %v2309 = vld [vmem:[#allocation11 + $0x850] sm:$0xff]
    %v2310 = vld [vmem:[#allocation11 + $0x858] sm:$0xff]
    %v2311 = vld [vmem:[#allocation11 + $0x860] sm:$0xff]
    %v2312 = vld [vmem:[#allocation11 + $0x868] sm:$0xff]
    %v2313 = vld [vmem:[#allocation11 + $0x870] sm:$0xff]
    %v2314 = vld [vmem:[#allocation11 + $0x878] sm:$0xff]
    %v2315 = vld [vmem:[#allocation11 + $0x880] sm:$0xff]
    %v2316 = vld [vmem:[#allocation11 + $0x888] sm:$0xff]
    %v2317 = vld [vmem:[#allocation11 + $0x890] sm:$0xff]
    %v2318 = vld [vmem:[#allocation11 + $0x898] sm:$0xff]
    %v2319 = vld [vmem:[#allocation11 + $0x8a0] sm:$0xff]
    %v2320 = vld [vmem:[#allocation11 + $0x8a8] sm:$0xff]
    %v2321 = vld [vmem:[#allocation11 + $0x8b0] sm:$0xff]
    %v2322 = vld [vmem:[#allocation11 + $0x8b8] sm:$0xff]
    %v2323 = vld [vmem:[#allocation11 + $0x8c0] sm:$0xff]
    %v2324 = vld [vmem:[#allocation11 + $0x8c8] sm:$0xff]
    %v2325 = vld [vmem:[#allocation11 + $0x8d0] sm:$0xff]
    %v2326 = vld [vmem:[#allocation11 + $0x8d8] sm:$0xff]
    %v2327 = vld [vmem:[#allocation11 + $0x8e0] sm:$0xff]
    %v2328 = vld [vmem:[#allocation11 + $0x8e8] sm:$0xff]
    %v2329 = vld [vmem:[#allocation11 + $0x8f0] sm:$0xff]
    %v2330 = vld [vmem:[#allocation11 + $0x8f8] sm:$0xff]
    %v2331 = vld [vmem:[#allocation11 + $0x900] sm:$0xff]
    %v2332 = vld [vmem:[#allocation11 + $0x908] sm:$0xff]
    %v2333 = vld [vmem:[#allocation11 + $0x910] sm:$0xff]
    %v2334 = vld [vmem:[#allocation11 + $0x918] sm:$0xff]
    %v2335 = vld [vmem:[#allocation11 + $0x920] sm:$0xff]
    %v2336 = vld [vmem:[#allocation11 + $0x928] sm:$0xff]
    %v2337 = vld [vmem:[#allocation11 + $0x930] sm:$0xff]
    %v2338 = vld [vmem:[#allocation11 + $0x938] sm:$0xff]
    %v2339 = vld [vmem:[#allocation11 + $0x940] sm:$0xff]
    %v2340 = vld [vmem:[#allocation11 + $0x948] sm:$0xff]
    %v2341 = vld [vmem:[#allocation11 + $0x950] sm:$0xff]
    %v2342 = vld [vmem:[#allocation11 + $0x958] sm:$0xff]
    %v2343 = vld [vmem:[#allocation11 + $0x960] sm:$0xff]
    %v2344 = vld [vmem:[#allocation11 + $0x968] sm:$0xff]
    %v2345 = vld [vmem:[#allocation11 + $0x970] sm:$0xff]
    %v2346 = vld [vmem:[#allocation11 + $0x978] sm:$0xff]
    %v2347 = vld [vmem:[#allocation11 + $0x980] sm:$0xff]
    %v2348 = vld [vmem:[#allocation11 + $0x988] sm:$0xff]
    %v2349 = vld [vmem:[#allocation11 + $0x990] sm:$0xff]
    %v2350 = vld [vmem:[#allocation11 + $0x998] sm:$0xff]
    %v2351 = vld [vmem:[#allocation11 + $0x9a0] sm:$0xff]
    %v2352 = vld [vmem:[#allocation11 + $0x9a8] sm:$0xff]
    %v2353 = vld [vmem:[#allocation11 + $0x9b0] sm:$0xff]
    %v2354 = vld [vmem:[#allocation11 + $0x9b8] sm:$0xff]
    %v2355 = vld [vmem:[#allocation11 + $0x9c0] sm:$0xff]
    %v2356 = vld [vmem:[#allocation11 + $0x9c8] sm:$0xff]
    %v2357 = vld [vmem:[#allocation11 + $0x9d0] sm:$0xff]
    %v2358 = vld [vmem:[#allocation11 + $0x9d8] sm:$0xff]
    %v2359 = vld [vmem:[#allocation11 + $0x9e0] sm:$0xff]
    %v2360 = vld [vmem:[#allocation11 + $0x9e8] sm:$0xff]
    %v2361 = vld [vmem:[#allocation11 + $0x9f0] sm:$0xff]
    %v2362 = vld [vmem:[#allocation11 + $0x9f8] sm:$0xff]
    %v2363 = vld [vmem:[#allocation11 + $0xa00] sm:$0xff]
    %v2364 = vld [vmem:[#allocation11 + $0xa08] sm:$0xff]
    %v2365 = vld [vmem:[#allocation11 + $0xa10] sm:$0xff]
    %v2366 = vld [vmem:[#allocation11 + $0xa18] sm:$0xff]
    %v2367 = vld [vmem:[#allocation11 + $0xa20] sm:$0xff]
    %v2368 = vld [vmem:[#allocation11 + $0xa28] sm:$0xff]
    %v2369 = vld [vmem:[#allocation11 + $0xa30] sm:$0xff]
    %v2370 = vld [vmem:[#allocation11 + $0xa38] sm:$0xff]
    %v2371 = vld [vmem:[#allocation11 + $0xa40] sm:$0xff]
    %v2372 = vld [vmem:[#allocation11 + $0xa48] sm:$0xff]
    %v2373 = vld [vmem:[#allocation11 + $0xa50] sm:$0xff]
    %v2374 = vld [vmem:[#allocation11 + $0xa58] sm:$0xff]
    %v2375 = vld [vmem:[#allocation11 + $0xa60] sm:$0xff]
    %v2376 = vld [vmem:[#allocation11 + $0xa68] sm:$0xff]
    %v2377 = vld [vmem:[#allocation11 + $0xa70] sm:$0xff]
    %v2378 = vld [vmem:[#allocation11 + $0xa78] sm:$0xff]
    %v2379 = vld [vmem:[#allocation11 + $0xa80] sm:$0xff]
    %v2380 = vld [vmem:[#allocation11 + $0xa88] sm:$0xff]
    %v2381 = vld [vmem:[#allocation11 + $0xa90] sm:$0xff]
    %v2382 = vld [vmem:[#allocation11 + $0xa98] sm:$0xff]
    %v2383 = vld [vmem:[#allocation11 + $0xaa0] sm:$0xff]
    %v2384 = vld [vmem:[#allocation11 + $0xaa8] sm:$0xff]
    %v2385 = vld [vmem:[#allocation11 + $0xab0] sm:$0xff]
    %v2386 = vld [vmem:[#allocation11 + $0xab8] sm:$0xff]
    %v2387 = vld [vmem:[#allocation11 + $0xac0] sm:$0xff]
    %v2388 = vld [vmem:[#allocation11 + $0xac8] sm:$0xff]
    %v2389 = vld [vmem:[#allocation11 + $0xad0] sm:$0xff]
    %v2390 = vld [vmem:[#allocation11 + $0xad8] sm:$0xff]
    %v2391 = vld [vmem:[#allocation11 + $0xae0] sm:$0xff]
    %v2392 = vld [vmem:[#allocation11 + $0xae8] sm:$0xff]
    %v2393 = vld [vmem:[#allocation11 + $0xaf0] sm:$0xff]
    %v2394 = vld [vmem:[#allocation11 + $0xaf8] sm:$0xff]
    %v2395 = vld [vmem:[#allocation11 + $0xb00] sm:$0xff]
    %v2396 = vld [vmem:[#allocation11 + $0xb08] sm:$0xff]
    %v2397 = vld [vmem:[#allocation11 + $0xb10] sm:$0xff]
    %v2398 = vld [vmem:[#allocation11 + $0xb18] sm:$0xff]
    %v2399 = vld [vmem:[#allocation11 + $0xb20] sm:$0xff]
    %v2400 = vld [vmem:[#allocation11 + $0xb28] sm:$0xff]
    %v2401 = vld [vmem:[#allocation11 + $0xb30] sm:$0xff]
    %v2402 = vld [vmem:[#allocation11 + $0xb38] sm:$0xff]
    %v2403 = vld [vmem:[#allocation11 + $0xb40] sm:$0xff]
    %v2404 = vld [vmem:[#allocation11 + $0xb48] sm:$0xff]
    %v2405 = vld [vmem:[#allocation11 + $0xb50] sm:$0xff]
    %v2406 = vld [vmem:[#allocation11 + $0xb58] sm:$0xff]
    %v2407 = vld [vmem:[#allocation11 + $0xb60] sm:$0xff]
    %v2408 = vld [vmem:[#allocation11 + $0xb68] sm:$0xff]
    %v2409 = vld [vmem:[#allocation11 + $0xb70] sm:$0xff]
    %v2410 = vld [vmem:[#allocation11 + $0xb78] sm:$0xff]
    %v2411 = vld [vmem:[#allocation11 + $0xb80] sm:$0xff]
    %v2412 = vld [vmem:[#allocation11 + $0xb88] sm:$0xff]
    %v2413 = vld [vmem:[#allocation11 + $0xb90] sm:$0xff]
    %v2414 = vld [vmem:[#allocation11 + $0xb98] sm:$0xff]
    %v2415 = vld [vmem:[#allocation11 + $0xba0] sm:$0xff]
    %v2416 = vld [vmem:[#allocation11 + $0xba8] sm:$0xff]
    %v2417 = vld [vmem:[#allocation11 + $0xbb0] sm:$0xff]
    %v2418 = vld [vmem:[#allocation11 + $0xbb8] sm:$0xff]
    %v2419 = vld [vmem:[#allocation11 + $0xbc0] sm:$0xff]
    %v2420 = vld [vmem:[#allocation11 + $0xbc8] sm:$0xff]
    %v2421 = vld [vmem:[#allocation11 + $0xbd0] sm:$0xff]
    %v2422 = vld [vmem:[#allocation11 + $0xbd8] sm:$0xff]
    %v2423 = vld [vmem:[#allocation11 + $0xbe0] sm:$0xff]
    %v2424 = vld [vmem:[#allocation11 + $0xbe8] sm:$0xff]
    %v2425 = vld [vmem:[#allocation11 + $0xbf0] sm:$0xff]
    %v2426 = vld [vmem:[#allocation11 + $0xbf8] sm:$0xff]
    %v2427 = vld [vmem:[#allocation11 + $0xc00] sm:$0xff]
    %v2428 = vld [vmem:[#allocation11 + $0xc08] sm:$0xff]
    %v2429 = vld [vmem:[#allocation11 + $0xc10] sm:$0xff]
    %v2430 = vld [vmem:[#allocation11 + $0xc18] sm:$0xff]
    %v2431 = vld [vmem:[#allocation11 + $0xc20] sm:$0xff]
    %v2432 = vld [vmem:[#allocation11 + $0xc28] sm:$0xff]
    %v2433 = vld [vmem:[#allocation11 + $0xc30] sm:$0xff]
    %v2434 = vld [vmem:[#allocation11 + $0xc38] sm:$0xff]
    %v2435 = vld [vmem:[#allocation11 + $0xc40] sm:$0xff]
    %v2436 = vld [vmem:[#allocation11 + $0xc48] sm:$0xff]
    %v2437 = vld [vmem:[#allocation11 + $0xc50] sm:$0xff]
    %v2438 = vld [vmem:[#allocation11 + $0xc58] sm:$0xff]
    %v2439 = vld [vmem:[#allocation11 + $0xc60] sm:$0xff]
    %v2440 = vld [vmem:[#allocation11 + $0xc68] sm:$0xff]
    %v2441 = vld [vmem:[#allocation11 + $0xc70] sm:$0xff]
    %v2442 = vld [vmem:[#allocation11 + $0xc78] sm:$0xff]
    %v2443 = vld [vmem:[#allocation11 + $0xc80] sm:$0xff]
    %v2444 = vld [vmem:[#allocation11 + $0xc88] sm:$0xff]
    %v2445 = vld [vmem:[#allocation11 + $0xc90] sm:$0xff]
    %v2446 = vld [vmem:[#allocation11 + $0xc98] sm:$0xff]
    %v2447 = vld [vmem:[#allocation11 + $0xca0] sm:$0xff]
    %v2448 = vld [vmem:[#allocation11 + $0xca8] sm:$0xff]
    %v2449 = vld [vmem:[#allocation11 + $0xcb0] sm:$0xff]
    %v2450 = vld [vmem:[#allocation11 + $0xcb8] sm:$0xff]
    %v2451 = vld [vmem:[#allocation11 + $0xcc0] sm:$0xff]
    %v2452 = vld [vmem:[#allocation11 + $0xcc8] sm:$0xff]
    %v2453 = vld [vmem:[#allocation11 + $0xcd0] sm:$0xff]
    %v2454 = vld [vmem:[#allocation11 + $0xcd8] sm:$0xff]
    %v2455 = vld [vmem:[#allocation11 + $0xce0] sm:$0xff]
    %v2456 = vld [vmem:[#allocation11 + $0xce8] sm:$0xff]
    %v2457 = vld [vmem:[#allocation11 + $0xcf0] sm:$0xff]
    %v2458 = vld [vmem:[#allocation11 + $0xcf8] sm:$0xff]
    %v2459 = vld [vmem:[#allocation11 + $0xd00] sm:$0xff]
    %v2460 = vld [vmem:[#allocation11 + $0xd08] sm:$0xff]
    %v2461 = vld [vmem:[#allocation11 + $0xd10] sm:$0xff]
    %v2462 = vld [vmem:[#allocation11 + $0xd18] sm:$0xff]
    %v2463 = vld [vmem:[#allocation11 + $0xd20] sm:$0xff]
    %v2464 = vld [vmem:[#allocation11 + $0xd28] sm:$0xff]
    %v2465 = vld [vmem:[#allocation11 + $0xd30] sm:$0xff]
    %v2466 = vld [vmem:[#allocation11 + $0xd38] sm:$0xff]
    %v2467 = vld [vmem:[#allocation11 + $0xd40] sm:$0xff]
    %v2468 = vld [vmem:[#allocation11 + $0xd48] sm:$0xff]
    %v2469 = vld [vmem:[#allocation11 + $0xd50] sm:$0xff]
    %v2470 = vld [vmem:[#allocation11 + $0xd58] sm:$0xff]
    %v2471 = vld [vmem:[#allocation11 + $0xd60] sm:$0xff]
    %v2472 = vld [vmem:[#allocation11 + $0xd68] sm:$0xff]
    %v2473 = vld [vmem:[#allocation11 + $0xd70] sm:$0xff]
    %v2474 = vld [vmem:[#allocation11 + $0xd78] sm:$0xff]
    %v2475 = vld [vmem:[#allocation11 + $0xd80] sm:$0xff]
    %v2476 = vld [vmem:[#allocation11 + $0xd88] sm:$0xff]
    %v2477 = vld [vmem:[#allocation11 + $0xd90] sm:$0xff]
    %v2478 = vld [vmem:[#allocation11 + $0xd98] sm:$0xff]
    %v2479 = vld [vmem:[#allocation11 + $0xda0] sm:$0xff]
    %v2480 = vld [vmem:[#allocation11 + $0xda8] sm:$0xff]
    %v2481 = vld [vmem:[#allocation11 + $0xdb0] sm:$0xff]
    %v2482 = vld [vmem:[#allocation11 + $0xdb8] sm:$0xff]
    %v2483 = vld [vmem:[#allocation11 + $0xdc0] sm:$0xff]
    %v2484 = vld [vmem:[#allocation11 + $0xdc8] sm:$0xff]
    %v2485 = vld [vmem:[#allocation11 + $0xdd0] sm:$0xff]
    %v2486 = vld [vmem:[#allocation11 + $0xdd8] sm:$0xff]
    %v2487 = vld [vmem:[#allocation11 + $0xde0] sm:$0xff]
    %v2488 = vld [vmem:[#allocation11 + $0xde8] sm:$0xff]
    %v2489 = vld [vmem:[#allocation11 + $0xdf0] sm:$0xff]
    %v2490 = vld [vmem:[#allocation11 + $0xdf8] sm:$0xff]
    %v2491 = vld [vmem:[#allocation11 + $0xe00] sm:$0xff]
    %v2492 = vld [vmem:[#allocation11 + $0xe08] sm:$0xff]
    %v2493 = vld [vmem:[#allocation11 + $0xe10] sm:$0xff]
    %v2494 = vld [vmem:[#allocation11 + $0xe18] sm:$0xff]
    %v2495 = vld [vmem:[#allocation11 + $0xe20] sm:$0xff]
    %v2496 = vld [vmem:[#allocation11 + $0xe28] sm:$0xff]
    %v2497 = vld [vmem:[#allocation11 + $0xe30] sm:$0xff]
    %v2498 = vld [vmem:[#allocation11 + $0xe38] sm:$0xff]
    %v2499 = vld [vmem:[#allocation11 + $0xe40] sm:$0xff]
    %v2500 = vld [vmem:[#allocation11 + $0xe48] sm:$0xff]
    %v2501 = vld [vmem:[#allocation11 + $0xe50] sm:$0xff]
    %v2502 = vld [vmem:[#allocation11 + $0xe58] sm:$0xff]
    %v2503 = vld [vmem:[#allocation11 + $0xe60] sm:$0xff]
    %v2504 = vld [vmem:[#allocation11 + $0xe68] sm:$0xff]
    %v2505 = vld [vmem:[#allocation11 + $0xe70] sm:$0xff]
    %v2506 = vld [vmem:[#allocation11 + $0xe78] sm:$0xff]
    %v2507 = vld [vmem:[#allocation11 + $0xe80] sm:$0xff]
    %v2508 = vld [vmem:[#allocation11 + $0xe88] sm:$0xff]
    %v2509 = vld [vmem:[#allocation11 + $0xe90] sm:$0xff]
    %v2510 = vld [vmem:[#allocation11 + $0xe98] sm:$0xff]
    %v2511 = vld [vmem:[#allocation11 + $0xea0] sm:$0xff]
    %v2512 = vld [vmem:[#allocation11 + $0xea8] sm:$0xff]
    %v2513 = vld [vmem:[#allocation11 + $0xeb0] sm:$0xff]
    %v2514 = vld [vmem:[#allocation11 + $0xeb8] sm:$0xff]
    %v2515 = vld [vmem:[#allocation11 + $0xec0] sm:$0xff]
    %v2516 = vld [vmem:[#allocation11 + $0xec8] sm:$0xff]
    %v2517 = vld [vmem:[#allocation11 + $0xed0] sm:$0xff]
    %v2518 = vld [vmem:[#allocation11 + $0xed8] sm:$0xff]
    %v2519 = vld [vmem:[#allocation11 + $0xee0] sm:$0xff]
    %v2520 = vld [vmem:[#allocation11 + $0xee8] sm:$0xff]
    %v2521 = vld [vmem:[#allocation11 + $0xef0] sm:$0xff]
    %v2522 = vld [vmem:[#allocation11 + $0xef8] sm:$0xff]
    %v2523 = vld [vmem:[#allocation11 + $0xf00] sm:$0xff]
    %v2524 = vld [vmem:[#allocation11 + $0xf08] sm:$0xff]
    %v2525 = vld [vmem:[#allocation11 + $0xf10] sm:$0xff]
    %v2526 = vld [vmem:[#allocation11 + $0xf18] sm:$0xff]
    %v2527 = vld [vmem:[#allocation11 + $0xf20] sm:$0xff]
    %v2528 = vld [vmem:[#allocation11 + $0xf28] sm:$0xff]
    %v2529 = vld [vmem:[#allocation11 + $0xf30] sm:$0xff]
    %v2530 = vld [vmem:[#allocation11 + $0xf38] sm:$0xff]
    %v2531 = vld [vmem:[#allocation11 + $0xf40] sm:$0xff]
    %v2532 = vld [vmem:[#allocation11 + $0xf48] sm:$0xff]
    %v2533 = vld [vmem:[#allocation11 + $0xf50] sm:$0xff]
    %v2534 = vld [vmem:[#allocation11 + $0xf58] sm:$0xff]
    %v2535 = vld [vmem:[#allocation11 + $0xf60] sm:$0xff]
    %v2536 = vld [vmem:[#allocation11 + $0xf68] sm:$0xff]
    %v2537 = vld [vmem:[#allocation11 + $0xf70] sm:$0xff]
    %v2538 = vld [vmem:[#allocation11 + $0xf78] sm:$0xff]
    %v2539 = vld [vmem:[#allocation11 + $0xf80] sm:$0xff]
    %v2540 = vld [vmem:[#allocation11 + $0xf88] sm:$0xff]
    %v2541 = vld [vmem:[#allocation11 + $0xf90] sm:$0xff]
    %v2542 = vld [vmem:[#allocation11 + $0xf98] sm:$0xff]
    %v2543 = vld [vmem:[#allocation11 + $0xfa0] sm:$0xff]
    %v2544 = vld [vmem:[#allocation11 + $0xfa8] sm:$0xff]
    %v2545 = vld [vmem:[#allocation11 + $0xfb0] sm:$0xff]
    %v2546 = vld [vmem:[#allocation11 + $0xfb8] sm:$0xff]
    %v2547 = vld [vmem:[#allocation11 + $0xfc0] sm:$0xff]
    %v2548 = vld [vmem:[#allocation11 + $0xfc8] sm:$0xff]
    %v2549 = vld [vmem:[#allocation11 + $0xfd0] sm:$0xff]
    %v2550 = vld [vmem:[#allocation11 + $0xfd8] sm:$0xff]
    %v2551 = vld [vmem:[#allocation11 + $0xfe0] sm:$0xff]
    %v2552 = vld [vmem:[#allocation11 + $0xfe8] sm:$0xff]
    %v2553 = vld [vmem:[#allocation11 + $0xff0] sm:$0xff]
    %v2554 = vld [vmem:[#allocation11 + $0xff8] sm:$0xff]
    %v2555 = vld [vmem:[#allocation13] sm:$0xf]
    %v2557 = vlaneseq
    %v2558 = vshrl.u32 %v2557, 7
    %v2559 = vsub.s32 0, %v2558
    %v2560 = vrot.slane %v2555, %v2559
    %v2561 = vlaneseq
    %v2562 = vshrl.u32 %v2561, 7
    %v2563 = vsub.s32 1, %v2562
    %v2564 = vrot.slane %v2555, %v2563
    %v2565 = vlaneseq
    %v2566 = vshrl.u32 %v2565, 7
    %v2567 = vsub.s32 2, %v2566
    %v2568 = vrot.slane %v2555, %v2567
    %v2569 = vlaneseq
    %v2570 = vshrl.u32 %v2569, 7
    %v2571 = vsub.s32 3, %v2570
    %v2572 = vrot.slane %v2555, %v2571
    %2577 = vmatprep.subr.mxu0 %v2044
    %2578 = vmatpush1.msra.mxu0 %v2043
    %2579 = vmatprep.subr.mxu0 %v2048
    %2580 = vmatpush1.msra.mxu0 %v2047
    %2581 = vmatprep.subr.mxu0 %v2052
    %2582 = vmatpush1.msra.mxu0 %v2051
    %2583 = vmatprep.subr.mxu0 %v2056
    %2584 = vmatpush1.msra.mxu0 %v2055
    %2585 = vmatprep.subr.mxu0 %v2060
    %2586 = vmatpush1.msra.mxu0 %v2059
    %2587 = vmatprep.subr.mxu0 %v2064
    %2588 = vmatpush1.msra.mxu0 %v2063
    %2589 = vmatprep.subr.mxu0 %v2068
    %2590 = vmatpush1.msra.mxu0 %v2067
    %2591 = vmatprep.subr.mxu0 %v2072
    %2592 = vmatpush1.msra.mxu0 %v2071
    %2593 = vmatprep.subr.mxu0 %v2076
    %2594 = vmatpush1.msra.mxu0 %v2075
    %2595 = vmatprep.subr.mxu0 %v2080
    %2596 = vmatpush1.msra.mxu0 %v2079
    %2597 = vmatprep.subr.mxu0 %v2084
    %2598 = vmatpush1.msra.mxu0 %v2083
    %2599 = vmatprep.subr.mxu0 %v2088
    %2600 = vmatpush1.msra.mxu0 %v2087
    %2601 = vmatprep.subr.mxu0 %v2092
    %2602 = vmatpush1.msra.mxu0 %v2091
    %2603 = vmatprep.subr.mxu0 %v2096
    %2604 = vmatpush1.msra.mxu0 %v2095
    %2605 = vmatprep.subr.mxu0 %v2100
    %2606 = vmatpush1.msra.mxu0 %v2099
    %2607 = vmatprep.subr.mxu0 %v2104
    %2608 = vmatpush1.msra.mxu0 %v2103
    %2609 = vmatprep.subr.mxu0 %v2108
    %2610 = vmatpush1.msra.mxu0 %v2107
    %2611 = vmatprep.subr.mxu0 %v2112
    %2612 = vmatpush1.msra.mxu0 %v2111
    %2613 = vmatprep.subr.mxu0 %v2116
    %2614 = vmatpush1.msra.mxu0 %v2115
    %2615 = vmatprep.subr.mxu0 %v2120
    %2616 = vmatpush1.msra.mxu0 %v2119
    %2617 = vmatprep.subr.mxu0 %v2124
    %2618 = vmatpush1.msra.mxu0 %v2123
    %2619 = vmatprep.subr.mxu0 %v2128
    %2620 = vmatpush1.msra.mxu0 %v2127
    %2621 = vmatprep.subr.mxu0 %v2132
    %2622 = vmatpush1.msra.mxu0 %v2131
    %2623 = vmatprep.subr.mxu0 %v2136
    %2624 = vmatpush1.msra.mxu0 %v2135
    %2625 = vmatprep.subr.mxu0 %v2140
    %2626 = vmatpush1.msra.mxu0 %v2139
    %2627 = vmatprep.subr.mxu0 %v2144
    %2628 = vmatpush1.msra.mxu0 %v2143
    %2629 = vmatprep.subr.mxu0 %v2148
    %2630 = vmatpush1.msra.mxu0 %v2147
    %2631 = vmatprep.subr.mxu0 %v2152
    %2632 = vmatpush1.msra.mxu0 %v2151
    %2633 = vmatprep.subr.mxu0 %v2156
    %2634 = vmatpush1.msra.mxu0 %v2155
    %2635 = vmatprep.subr.mxu0 %v2160
    %2636 = vmatpush1.msra.mxu0 %v2159
    %2637 = vmatprep.subr.mxu0 %v2164
    %2638 = vmatpush1.msra.mxu0 %v2163
    %2639 = vmatprep.subr.mxu0 %v2168
    %2640 = vmatpush1.msra.mxu0 %v2167
    %2641 = vmatprep.mubr.f32.mxu0 %v1980
    %2642 = vmatmul.mubr.f32.gmra.mrb[0].mxu0 %v1979
    %v2643 = vpop.f32.mrb[0].mxu0
    %v2644 = vadd.f32 %v2560, %v2643
    %v2645 = vpop.f32.mrb[0].mxu0
    %v2646 = vadd.f32 %v2564, %v2645
    %2647 = vdwg.mxu0
    %2648 = vmatprep.subr.mxu0 %v2172
    %2649 = vmatpush1.msra.mxu0 %v2171
    %2650 = vmatprep.subr.mxu0 %v2176
    %2651 = vmatpush1.msra.mxu0 %v2175
    %2652 = vmatprep.subr.mxu0 %v2180
    %2653 = vmatpush1.msra.mxu0 %v2179
    %2654 = vmatprep.subr.mxu0 %v2184
    %2655 = vmatpush1.msra.mxu0 %v2183
    %2656 = vmatprep.subr.mxu0 %v2188
    %2657 = vmatpush1.msra.mxu0 %v2187
    %2658 = vmatprep.subr.mxu0 %v2192
    %2659 = vmatpush1.msra.mxu0 %v2191
    %2660 = vmatprep.subr.mxu0 %v2196
    %2661 = vmatpush1.msra.mxu0 %v2195
    %2662 = vmatprep.subr.mxu0 %v2200
    %2663 = vmatpush1.msra.mxu0 %v2199
    %2664 = vmatprep.subr.mxu0 %v2204
    %2665 = vmatpush1.msra.mxu0 %v2203
    %2666 = vmatprep.subr.mxu0 %v2208
    %2667 = vmatpush1.msra.mxu0 %v2207
    %2668 = vmatprep.subr.mxu0 %v2212
    %2669 = vmatpush1.msra.mxu0 %v2211
    %2670 = vmatprep.subr.mxu0 %v2216
    %2671 = vmatpush1.msra.mxu0 %v2215
    %2672 = vmatprep.subr.mxu0 %v2220
    %2673 = vmatpush1.msra.mxu0 %v2219
    %2674 = vmatprep.subr.mxu0 %v2224
    %2675 = vmatpush1.msra.mxu0 %v2223
    %2676 = vmatprep.subr.mxu0 %v2228
    %2677 = vmatpush1.msra.mxu0 %v2227
    %2678 = vmatprep.subr.mxu0 %v2232
    %2679 = vmatpush1.msra.mxu0 %v2231
    %2680 = vmatprep.subr.mxu0 %v2236
    %2681 = vmatpush1.msra.mxu0 %v2235
    %2682 = vmatprep.subr.mxu0 %v2240
    %2683 = vmatpush1.msra.mxu0 %v2239
    %2684 = vmatprep.subr.mxu0 %v2244
    %2685 = vmatpush1.msra.mxu0 %v2243
    %2686 = vmatprep.subr.mxu0 %v2248
    %2687 = vmatpush1.msra.mxu0 %v2247
    %2688 = vmatprep.subr.mxu0 %v2252
    %2689 = vmatpush1.msra.mxu0 %v2251
    %2690 = vmatprep.subr.mxu0 %v2256
    %2691 = vmatpush1.msra.mxu0 %v2255
    %2692 = vmatprep.subr.mxu0 %v2260
    %2693 = vmatpush1.msra.mxu0 %v2259
    %2694 = vmatprep.subr.mxu0 %v2264
    %2695 = vmatpush1.msra.mxu0 %v2263
    %2696 = vmatprep.subr.mxu0 %v2268
    %2697 = vmatpush1.msra.mxu0 %v2267
    %2698 = vmatprep.subr.mxu0 %v2272
    %2699 = vmatpush1.msra.mxu0 %v2271
    %2700 = vmatprep.subr.mxu0 %v2276
    %2701 = vmatpush1.msra.mxu0 %v2275
    %2702 = vmatprep.subr.mxu0 %v2280
    %2703 = vmatpush1.msra.mxu0 %v2279
    %2704 = vmatprep.subr.mxu0 %v2284
    %2705 = vmatpush1.msra.mxu0 %v2283
    %2706 = vmatprep.subr.mxu0 %v2288
    %2707 = vmatpush1.msra.mxu0 %v2287
    %2708 = vmatprep.subr.mxu0 %v2292
    %2709 = vmatpush1.msra.mxu0 %v2291
    %2710 = vmatprep.subr.mxu0 %v2296
    %2711 = vmatpush1.msra.mxu0 %v2295
    %2712 = vmatprep.mubr.f32.mxu0 %v1982
    %2713 = vmatmul.mubr.f32.gmra.mrb[0].mxu0 %v1981
    %v2714 = vpop.f32.mrb[0].mxu0
    %v2715 = vadd.f32 %v2644, %v2714
    %v2716 = vpop.f32.mrb[0].mxu0
    %v2717 = vadd.f32 %v2646, %v2716
    %2718 = vdwg.mxu0
    %2719 = vmatprep.subr.mxu0 %v2300
    %2720 = vmatpush1.msra.mxu0 %v2299
    %2721 = vmatprep.subr.mxu0 %v2304
    %2722 = vmatpush1.msra.mxu0 %v2303
    %2723 = vmatprep.subr.mxu0 %v2308
    %2724 = vmatpush1.msra.mxu0 %v2307
    %2725 = vmatprep.subr.mxu0 %v2312
    %2726 = vmatpush1.msra.mxu0 %v2311
    %2727 = vmatprep.subr.mxu0 %v2316
    %2728 = vmatpush1.msra.mxu0 %v2315
    %2729 = vmatprep.subr.mxu0 %v2320
    %2730 = vmatpush1.msra.mxu0 %v2319
    %2731 = vmatprep.subr.mxu0 %v2324
    %2732 = vmatpush1.msra.mxu0 %v2323
    %2733 = vmatprep.subr.mxu0 %v2328
    %2734 = vmatpush1.msra.mxu0 %v2327
    %2735 = vmatprep.subr.mxu0 %v2332
    %2736 = vmatpush1.msra.mxu0 %v2331
    %2737 = vmatprep.subr.mxu0 %v2336
    %2738 = vmatpush1.msra.mxu0 %v2335
    %2739 = vmatprep.subr.mxu0 %v2340
    %2740 = vmatpush1.msra.mxu0 %v2339
    %2741 = vmatprep.subr.mxu0 %v2344
    %2742 = vmatpush1.msra.mxu0 %v2343
    %2743 = vmatprep.subr.mxu0 %v2348
    %2744 = vmatpush1.msra.mxu0 %v2347
    %2745 = vmatprep.subr.mxu0 %v2352
    %2746 = vmatpush1.msra.mxu0 %v2351
    %2747 = vmatprep.subr.mxu0 %v2356
    %2748 = vmatpush1.msra.mxu0 %v2355
    %2749 = vmatprep.subr.mxu0 %v2360
    %2750 = vmatpush1.msra.mxu0 %v2359
    %2751 = vmatprep.subr.mxu0 %v2364
    %2752 = vmatpush1.msra.mxu0 %v2363
    %2753 = vmatprep.subr.mxu0 %v2368
    %2754 = vmatpush1.msra.mxu0 %v2367
    %2755 = vmatprep.subr.mxu0 %v2372
    %2756 = vmatpush1.msra.mxu0 %v2371
    %2757 = vmatprep.subr.mxu0 %v2376
    %2758 = vmatpush1.msra.mxu0 %v2375
    %2759 = vmatprep.subr.mxu0 %v2380
    %2760 = vmatpush1.msra.mxu0 %v2379
    %2761 = vmatprep.subr.mxu0 %v2384
    %2762 = vmatpush1.msra.mxu0 %v2383
    %2763 = vmatprep.subr.mxu0 %v2388
    %2764 = vmatpush1.msra.mxu0 %v2387
    %2765 = vmatprep.subr.mxu0 %v2392
    %2766 = vmatpush1.msra.mxu0 %v2391
    %2767 = vmatprep.subr.mxu0 %v2396
    %2768 = vmatpush1.msra.mxu0 %v2395
    %2769 = vmatprep.subr.mxu0 %v2400
    %2770 = vmatpush1.msra.mxu0 %v2399
    %2771 = vmatprep.subr.mxu0 %v2404
    %2772 = vmatpush1.msra.mxu0 %v2403
    %2773 = vmatprep.subr.mxu0 %v2408
    %2774 = vmatpush1.msra.mxu0 %v2407
    %2775 = vmatprep.subr.mxu0 %v2412
    %2776 = vmatpush1.msra.mxu0 %v2411
    %2777 = vmatprep.subr.mxu0 %v2416
    %2778 = vmatpush1.msra.mxu0 %v2415
    %2779 = vmatprep.subr.mxu0 %v2420
    %2780 = vmatpush1.msra.mxu0 %v2419
    %2781 = vmatprep.subr.mxu0 %v2424
    %2782 = vmatpush1.msra.mxu0 %v2423
    %2783 = vmatprep.mubr.f32.mxu0 %v1984
    %2784 = vmatmul.mubr.f32.gmra.mrb[0].mxu0 %v1983
    %v2785 = vpop.f32.mrb[0].mxu0
    %v2786 = vadd.f32 %v2715, %v2785
    %v2787 = vpop.f32.mrb[0].mxu0
    %v2788 = vadd.f32 %v2717, %v2787
    %2789 = vdwg.mxu0
    %2790 = vmatprep.subr.mxu0 %v2428
    %2791 = vmatpush1.msra.mxu0 %v2427
    %2792 = vmatprep.subr.mxu0 %v2432
    %2793 = vmatpush1.msra.mxu0 %v2431
    %2794 = vmatprep.subr.mxu0 %v2436
    %2795 = vmatpush1.msra.mxu0 %v2435
    %2796 = vmatprep.subr.mxu0 %v2440
    %2797 = vmatpush1.msra.mxu0 %v2439
    %2798 = vmatprep.subr.mxu0 %v2444
    %2799 = vmatpush1.msra.mxu0 %v2443
    %2800 = vmatprep.subr.mxu0 %v2448
    %2801 = vmatpush1.msra.mxu0 %v2447
    %2802 = vmatprep.subr.mxu0 %v2452
    %2803 = vmatpush1.msra.mxu0 %v2451
    %2804 = vmatprep.subr.mxu0 %v2456
    %2805 = vmatpush1.msra.mxu0 %v2455
    %2806 = vmatprep.subr.mxu0 %v2460
    %2807 = vmatpush1.msra.mxu0 %v2459
    %2808 = vmatprep.subr.mxu0 %v2464
    %2809 = vmatpush1.msra.mxu0 %v2463
    %2810 = vmatprep.subr.mxu0 %v2468
    %2811 = vmatpush1.msra.mxu0 %v2467
    %2812 = vmatprep.subr.mxu0 %v2472
    %2813 = vmatpush1.msra.mxu0 %v2471
    %2814 = vmatprep.subr.mxu0 %v2476
    %2815 = vmatpush1.msra.mxu0 %v2475
    %2816 = vmatprep.subr.mxu0 %v2480
    %2817 = vmatpush1.msra.mxu0 %v2479
    %2818 = vmatprep.subr.mxu0 %v2484
    %2819 = vmatpush1.msra.mxu0 %v2483
    %2820 = vmatprep.subr.mxu0 %v2488
    %2821 = vmatpush1.msra.mxu0 %v2487
    %2822 = vmatprep.subr.mxu0 %v2492
    %2823 = vmatpush1.msra.mxu0 %v2491
    %2824 = vmatprep.subr.mxu0 %v2496
    %2825 = vmatpush1.msra.mxu0 %v2495
    %2826 = vmatprep.subr.mxu0 %v2500
    %2827 = vmatpush1.msra.mxu0 %v2499
    %2828 = vmatprep.subr.mxu0 %v2504
    %2829 = vmatpush1.msra.mxu0 %v2503
    %2830 = vmatprep.subr.mxu0 %v2508
    %2831 = vmatpush1.msra.mxu0 %v2507
    %2832 = vmatprep.subr.mxu0 %v2512
    %2833 = vmatpush1.msra.mxu0 %v2511
    %2834 = vmatprep.subr.mxu0 %v2516
    %2835 = vmatpush1.msra.mxu0 %v2515
    %2836 = vmatprep.subr.mxu0 %v2520
    %2837 = vmatpush1.msra.mxu0 %v2519
    %2838 = vmatprep.subr.mxu0 %v2524
    %2839 = vmatpush1.msra.mxu0 %v2523
    %2840 = vmatprep.subr.mxu0 %v2528
    %2841 = vmatpush1.msra.mxu0 %v2527
    %2842 = vmatprep.subr.mxu0 %v2532
    %2843 = vmatpush1.msra.mxu0 %v2531
    %2844 = vmatprep.subr.mxu0 %v2536
    %2845 = vmatpush1.msra.mxu0 %v2535
    %2846 = vmatprep.subr.mxu0 %v2540
    %2847 = vmatpush1.msra.mxu0 %v2539
    %2848 = vmatprep.subr.mxu0 %v2544
    %2849 = vmatpush1.msra.mxu0 %v2543
    %2850 = vmatprep.subr.mxu0 %v2548
    %2851 = vmatpush1.msra.mxu0 %v2547
    %2852 = vmatprep.subr.mxu0 %v2552
    %2853 = vmatpush1.msra.mxu0 %v2551
    %2854 = vmatprep.mubr.f32.mxu0 %v1986
    %2855 = vmatmul.mubr.f32.gmra.mrb[0].mxu0 %v1985
    %v2856 = vpop.f32.mrb[0].mxu0
    %v2857 = vadd.f32 %v2786, %v2856
    %v2858 = vpop.f32.mrb[0].mxu0
    %v2859 = vadd.f32 %v2788, %v2858
    %2860 = vdwg.mxu0
    %2861 = vmatprep.subr.mxu0 %v2046
    %2862 = vmatpush1.msra.mxu0 %v2045
    %2863 = vmatprep.subr.mxu0 %v2050
    %2864 = vmatpush1.msra.mxu0 %v2049
    %2865 = vmatprep.subr.mxu0 %v2054
    %2866 = vmatpush1.msra.mxu0 %v2053
    %2867 = vmatprep.subr.mxu0 %v2058
    %2868 = vmatpush1.msra.mxu0 %v2057
    %2869 = vmatprep.subr.mxu0 %v2062
    %2870 = vmatpush1.msra.mxu0 %v2061
    %2871 = vmatprep.subr.mxu0 %v2066
    %2872 = vmatpush1.msra.mxu0 %v2065
    %2873 = vmatprep.subr.mxu0 %v2070
    %2874 = vmatpush1.msra.mxu0 %v2069
    %2875 = vmatprep.subr.mxu0 %v2074
    %2876 = vmatpush1.msra.mxu0 %v2073
    %2877 = vmatprep.subr.mxu0 %v2078
    %2878 = vmatpush1.msra.mxu0 %v2077
    %2879 = vmatprep.subr.mxu0 %v2082
    %2880 = vmatpush1.msra.mxu0 %v2081
    %2881 = vmatprep.subr.mxu0 %v2086
    %2882 = vmatpush1.msra.mxu0 %v2085
    %2883 = vmatprep.subr.mxu0 %v2090
    %2884 = vmatpush1.msra.mxu0 %v2089
    %2885 = vmatprep.subr.mxu0 %v2094
    %2886 = vmatpush1.msra.mxu0 %v2093
    %2887 = vmatprep.subr.mxu0 %v2098
    %2888 = vmatpush1.msra.mxu0 %v2097
    %2889 = vmatprep.subr.mxu0 %v2102
    %2890 = vmatpush1.msra.mxu0 %v2101
    %2891 = vmatprep.subr.mxu0 %v2106
    %2892 = vmatpush1.msra.mxu0 %v2105
    %2893 = vmatprep.subr.mxu0 %v2110
    %2894 = vmatpush1.msra.mxu0 %v2109
    %2895 = vmatprep.subr.mxu0 %v2114
    %2896 = vmatpush1.msra.mxu0 %v2113
    %2897 = vmatprep.subr.mxu0 %v2118
    %2898 = vmatpush1.msra.mxu0 %v2117
    %2899 = vmatprep.subr.mxu0 %v2122
    %2900 = vmatpush1.msra.mxu0 %v2121
    %2901 = vmatprep.subr.mxu0 %v2126
    %2902 = vmatpush1.msra.mxu0 %v2125
    %2903 = vmatprep.subr.mxu0 %v2130
    %2904 = vmatpush1.msra.mxu0 %v2129
    %2905 = vmatprep.subr.mxu0 %v2134
    %2906 = vmatpush1.msra.mxu0 %v2133
    %2907 = vmatprep.subr.mxu0 %v2138
    %2908 = vmatpush1.msra.mxu0 %v2137
    %2909 = vmatprep.subr.mxu0 %v2142
    %2910 = vmatpush1.msra.mxu0 %v2141
    %2911 = vmatprep.subr.mxu0 %v2146
    %2912 = vmatpush1.msra.mxu0 %v2145
    %2913 = vmatprep.subr.mxu0 %v2150
    %2914 = vmatpush1.msra.mxu0 %v2149
    %2915 = vmatprep.subr.mxu0 %v2154
    %2916 = vmatpush1.msra.mxu0 %v2153
    %2917 = vmatprep.subr.mxu0 %v2158
    %2918 = vmatpush1.msra.mxu0 %v2157
    %2919 = vmatprep.subr.mxu0 %v2162
    %2920 = vmatpush1.msra.mxu0 %v2161
    %2921 = vmatprep.subr.mxu0 %v2166
    %2922 = vmatpush1.msra.mxu0 %v2165
    %2923 = vmatprep.subr.mxu0 %v2170
    %2924 = vmatpush1.msra.mxu0 %v2169
    %2925 = vmatprep.mubr.f32.mxu0 %v1980
    %2926 = vmatmul.mubr.f32.gmra.mrb[0].mxu0 %v1979
    %v2927 = vpop.f32.mrb[0].mxu0
    %v2928 = vadd.f32 %v2568, %v2927
    %v2929 = vpop.f32.mrb[0].mxu0
    %v2930 = vadd.f32 %v2572, %v2929
    %2931 = vdwg.mxu0
    %2932 = vmatprep.subr.mxu0 %v2174
    %2933 = vmatpush1.msra.mxu0 %v2173
    %2934 = vmatprep.subr.mxu0 %v2178
    %2935 = vmatpush1.msra.mxu0 %v2177
    %2936 = vmatprep.subr.mxu0 %v2182
    %2937 = vmatpush1.msra.mxu0 %v2181
    %2938 = vmatprep.subr.mxu0 %v2186
    %2939 = vmatpush1.msra.mxu0 %v2185
    %2940 = vmatprep.subr.mxu0 %v2190
    %2941 = vmatpush1.msra.mxu0 %v2189
    %2942 = vmatprep.subr.mxu0 %v2194
    %2943 = vmatpush1.msra.mxu0 %v2193
    %2944 = vmatprep.subr.mxu0 %v2198
    %2945 = vmatpush1.msra.mxu0 %v2197
    %2946 = vmatprep.subr.mxu0 %v2202
    %2947 = vmatpush1.msra.mxu0 %v2201
    %2948 = vmatprep.subr.mxu0 %v2206
    %2949 = vmatpush1.msra.mxu0 %v2205
    %2950 = vmatprep.subr.mxu0 %v2210
    %2951 = vmatpush1.msra.mxu0 %v2209
    %2952 = vmatprep.subr.mxu0 %v2214
    %2953 = vmatpush1.msra.mxu0 %v2213
    %2954 = vmatprep.subr.mxu0 %v2218
    %2955 = vmatpush1.msra.mxu0 %v2217
    %2956 = vmatprep.subr.mxu0 %v2222
    %2957 = vmatpush1.msra.mxu0 %v2221
    %2958 = vmatprep.subr.mxu0 %v2226
    %2959 = vmatpush1.msra.mxu0 %v2225
    %2960 = vmatprep.subr.mxu0 %v2230
    %2961 = vmatpush1.msra.mxu0 %v2229
    %2962 = vmatprep.subr.mxu0 %v2234
    %2963 = vmatpush1.msra.mxu0 %v2233
    %2964 = vmatprep.subr.mxu0 %v2238
    %2965 = vmatpush1.msra.mxu0 %v2237
    %2966 = vmatprep.subr.mxu0 %v2242
    %2967 = vmatpush1.msra.mxu0 %v2241
    %2968 = vmatprep.subr.mxu0 %v2246
    %2969 = vmatpush1.msra.mxu0 %v2245
    %2970 = vmatprep.subr.mxu0 %v2250
    %2971 = vmatpush1.msra.mxu0 %v2249
    %2972 = vmatprep.subr.mxu0 %v2254
    %2973 = vmatpush1.msra.mxu0 %v2253
    %2974 = vmatprep.subr.mxu0 %v2258
    %2975 = vmatpush1.msra.mxu0 %v2257
    %2976 = vmatprep.subr.mxu0 %v2262
    %2977 = vmatpush1.msra.mxu0 %v2261
    %2978 = vmatprep.subr.mxu0 %v2266
    %2979 = vmatpush1.msra.mxu0 %v2265
    %2980 = vmatprep.subr.mxu0 %v2270
    %2981 = vmatpush1.msra.mxu0 %v2269
    %2982 = vmatprep.subr.mxu0 %v2274
    %2983 = vmatpush1.msra.mxu0 %v2273
    %2984 = vmatprep.subr.mxu0 %v2278
    %2985 = vmatpush1.msra.mxu0 %v2277
    %2986 = vmatprep.subr.mxu0 %v2282
    %2987 = vmatpush1.msra.mxu0 %v2281
    %2988 = vmatprep.subr.mxu0 %v2286
    %2989 = vmatpush1.msra.mxu0 %v2285
    %2990 = vmatprep.subr.mxu0 %v2290
    %2991 = vmatpush1.msra.mxu0 %v2289
    %2992 = vmatprep.subr.mxu0 %v2294
    %2993 = vmatpush1.msra.mxu0 %v2293
    %2994 = vmatprep.subr.mxu0 %v2298
    %2995 = vmatpush1.msra.mxu0 %v2297
    %2996 = vmatprep.mubr.f32.mxu0 %v1982
    %2997 = vmatmul.mubr.f32.gmra.mrb[0].mxu0 %v1981
    %v2998 = vpop.f32.mrb[0].mxu0
    %v2999 = vadd.f32 %v2928, %v2998
    %v3000 = vpop.f32.mrb[0].mxu0
    %v3001 = vadd.f32 %v2930, %v3000
    %3002 = vdwg.mxu0
    %3003 = vmatprep.subr.mxu0 %v2302
    %3004 = vmatpush1.msra.mxu0 %v2301
    %3005 = vmatprep.subr.mxu0 %v2306
    %3006 = vmatpush1.msra.mxu0 %v2305
    %3007 = vmatprep.subr.mxu0 %v2310
    %3008 = vmatpush1.msra.mxu0 %v2309
    %3009 = vmatprep.subr.mxu0 %v2314
    %3010 = vmatpush1.msra.mxu0 %v2313
    %3011 = vmatprep.subr.mxu0 %v2318
    %3012 = vmatpush1.msra.mxu0 %v2317
    %3013 = vmatprep.subr.mxu0 %v2322
    %3014 = vmatpush1.msra.mxu0 %v2321
    %3015 = vmatprep.subr.mxu0 %v2326
    %3016 = vmatpush1.msra.mxu0 %v2325
    %3017 = vmatprep.subr.mxu0 %v2330
    %3018 = vmatpush1.msra.mxu0 %v2329
    %3019 = vmatprep.subr.mxu0 %v2334
    %3020 = vmatpush1.msra.mxu0 %v2333
    %3021 = vmatprep.subr.mxu0 %v2338
    %3022 = vmatpush1.msra.mxu0 %v2337
    %3023 = vmatprep.subr.mxu0 %v2342
    %3024 = vmatpush1.msra.mxu0 %v2341
    %3025 = vmatprep.subr.mxu0 %v2346
    %3026 = vmatpush1.msra.mxu0 %v2345
    %3027 = vmatprep.subr.mxu0 %v2350
    %3028 = vmatpush1.msra.mxu0 %v2349
    %3029 = vmatprep.subr.mxu0 %v2354
    %3030 = vmatpush1.msra.mxu0 %v2353
    %3031 = vmatprep.subr.mxu0 %v2358
    %3032 = vmatpush1.msra.mxu0 %v2357
    %3033 = vmatprep.subr.mxu0 %v2362
    %3034 = vmatpush1.msra.mxu0 %v2361
    %3035 = vmatprep.subr.mxu0 %v2366
    %3036 = vmatpush1.msra.mxu0 %v2365
    %3037 = vmatprep.subr.mxu0 %v2370
    %3038 = vmatpush1.msra.mxu0 %v2369
    %3039 = vmatprep.subr.mxu0 %v2374
    %3040 = vmatpush1.msra.mxu0 %v2373
    %3041 = vmatprep.subr.mxu0 %v2378
    %3042 = vmatpush1.msra.mxu0 %v2377
    %3043 = vmatprep.subr.mxu0 %v2382
    %3044 = vmatpush1.msra.mxu0 %v2381
    %3045 = vmatprep.subr.mxu0 %v2386
    %3046 = vmatpush1.msra.mxu0 %v2385
    %3047 = vmatprep.subr.mxu0 %v2390
    %3048 = vmatpush1.msra.mxu0 %v2389
    %3049 = vmatprep.subr.mxu0 %v2394
    %3050 = vmatpush1.msra.mxu0 %v2393
    %3051 = vmatprep.subr.mxu0 %v2398
    %3052 = vmatpush1.msra.mxu0 %v2397
    %3053 = vmatprep.subr.mxu0 %v2402
    %3054 = vmatpush1.msra.mxu0 %v2401
    %3055 = vmatprep.subr.mxu0 %v2406
    %3056 = vmatpush1.msra.mxu0 %v2405
    %3057 = vmatprep.subr.mxu0 %v2410
    %3058 = vmatpush1.msra.mxu0 %v2409
    %3059 = vmatprep.subr.mxu0 %v2414
    %3060 = vmatpush1.msra.mxu0 %v2413
    %3061 = vmatprep.subr.mxu0 %v2418
    %3062 = vmatpush1.msra.mxu0 %v2417
    %3063 = vmatprep.subr.mxu0 %v2422
    %3064 = vmatpush1.msra.mxu0 %v2421
    %3065 = vmatprep.subr.mxu0 %v2426
    %3066 = vmatpush1.msra.mxu0 %v2425
    %3067 = vmatprep.mubr.f32.mxu0 %v1984
    %3068 = vmatmul.mubr.f32.gmra.mrb[0].mxu0 %v1983
    %v3069 = vpop.f32.mrb[0].mxu0
    %v3070 = vadd.f32 %v2999, %v3069
    %v3071 = vpop.f32.mrb[0].mxu0
    %v3072 = vadd.f32 %v3001, %v3071
    %3073 = vdwg.mxu0
    %3074 = vmatprep.subr.mxu0 %v2430
    %3075 = vmatpush1.msra.mxu0 %v2429
    %3076 = vmatprep.subr.mxu0 %v2434
    %3077 = vmatpush1.msra.mxu0 %v2433
    %3078 = vmatprep.subr.mxu0 %v2438
    %3079 = vmatpush1.msra.mxu0 %v2437
    %3080 = vmatprep.subr.mxu0 %v2442
    %3081 = vmatpush1.msra.mxu0 %v2441
    %3082 = vmatprep.subr.mxu0 %v2446
    %3083 = vmatpush1.msra.mxu0 %v2445
    %3084 = vmatprep.subr.mxu0 %v2450
    %3085 = vmatpush1.msra.mxu0 %v2449
    %3086 = vmatprep.subr.mxu0 %v2454
    %3087 = vmatpush1.msra.mxu0 %v2453
    %3088 = vmatprep.subr.mxu0 %v2458
    %3089 = vmatpush1.msra.mxu0 %v2457
    %3090 = vmatprep.subr.mxu0 %v2462
    %3091 = vmatpush1.msra.mxu0 %v2461
    %3092 = vmatprep.subr.mxu0 %v2466
    %3093 = vmatpush1.msra.mxu0 %v2465
    %3094 = vmatprep.subr.mxu0 %v2470
    %3095 = vmatpush1.msra.mxu0 %v2469
    %3096 = vmatprep.subr.mxu0 %v2474
    %3097 = vmatpush1.msra.mxu0 %v2473
    %3098 = vmatprep.subr.mxu0 %v2478
    %3099 = vmatpush1.msra.mxu0 %v2477
    %3100 = vmatprep.subr.mxu0 %v2482
    %3101 = vmatpush1.msra.mxu0 %v2481
    %3102 = vmatprep.subr.mxu0 %v2486
    %3103 = vmatpush1.msra.mxu0 %v2485
    %3104 = vmatprep.subr.mxu0 %v2490
    %3105 = vmatpush1.msra.mxu0 %v2489
    %3106 = vmatprep.subr.mxu0 %v2494
    %3107 = vmatpush1.msra.mxu0 %v2493
    %3108 = vmatprep.subr.mxu0 %v2498
    %3109 = vmatpush1.msra.mxu0 %v2497
    %3110 = vmatprep.subr.mxu0 %v2502
    %3111 = vmatpush1.msra.mxu0 %v2501
    %3112 = vmatprep.subr.mxu0 %v2506
    %3113 = vmatpush1.msra.mxu0 %v2505
    %3114 = vmatprep.subr.mxu0 %v2510
    %3115 = vmatpush1.msra.mxu0 %v2509
    %3116 = vmatprep.subr.mxu0 %v2514
    %3117 = vmatpush1.msra.mxu0 %v2513
    %3118 = vmatprep.subr.mxu0 %v2518
    %3119 = vmatpush1.msra.mxu0 %v2517
    %3120 = vmatprep.subr.mxu0 %v2522
    %3121 = vmatpush1.msra.mxu0 %v2521
    %3122 = vmatprep.subr.mxu0 %v2526
    %3123 = vmatpush1.msra.mxu0 %v2525
    %3124 = vmatprep.subr.mxu0 %v2530
    %3125 = vmatpush1.msra.mxu0 %v2529
    %3126 = vmatprep.subr.mxu0 %v2534
    %3127 = vmatpush1.msra.mxu0 %v2533
    %3128 = vmatprep.subr.mxu0 %v2538
    %3129 = vmatpush1.msra.mxu0 %v2537
    %3130 = vmatprep.subr.mxu0 %v2542
    %3131 = vmatpush1.msra.mxu0 %v2541
    %3132 = vmatprep.subr.mxu0 %v2546
    %3133 = vmatpush1.msra.mxu0 %v2545
    %3134 = vmatprep.subr.mxu0 %v2550
    %3135 = vmatpush1.msra.mxu0 %v2549
    %3136 = vmatprep.subr.mxu0 %v2554
    %3137 = vmatpush1.msra.mxu0 %v2553
    %3138 = vmatprep.mubr.f32.mxu0 %v1986
    %3139 = vmatmul.mubr.f32.gmra.mrb[0].mxu0 %v1985
    %v3140 = vpop.f32.mrb[0].mxu0
    %v3141 = vadd.f32 %v3070, %v3140
    %v3142 = vpop.f32.mrb[0].mxu0
    %v3143 = vadd.f32 %v3072, %v3142
    %3144 = vdwg.mxu0
    %v3145 = vmul.f32 %v2857, 0.5
    %v3146 = vmul.f32 %v2859, 0.5
    %v3147 = vmul.f32 %v3141, 0.5
    %v3148 = vmul.f32 %v3143, 0.5
    %v3149 = vmul.f32 %v2857, 0.044715
    %v3150 = vmul.f32 %v2859, 0.044715
    %v3151 = vmul.f32 %v3141, 0.044715
    %v3152 = vmul.f32 %v3143, 0.044715
    %v3153 = vmul.f32 %v3149, %v2857
    %v3154 = vmul.f32 %v3150, %v2859
    %v3155 = vmul.f32 %v3151, %v3141
    %v3156 = vmul.f32 %v3152, %v3143
    %v3157 = vmul.f32 %v3153, %v2857
    %v3158 = vmul.f32 %v3154, %v2859
    %v3159 = vmul.f32 %v3155, %v3141
    %v3160 = vmul.f32 %v3156, %v3143
    %v3161 = vadd.f32 %v2857, %v3157
    %v3162 = vadd.f32 %v2859, %v3158
    %v3163 = vadd.f32 %v3141, %v3159
    %v3164 = vadd.f32 %v3143, %v3160
    %v3165 = vmul.f32 %v3161, 0.7978846
    %v3166 = vmul.f32 %v3162, 0.7978846
    %v3167 = vmul.f32 %v3163, 0.7978846
    %v3168 = vmul.f32 %v3164, 0.7978846
    %v3169 = vtanh.pop %v3165
    %v3170 = vtanh.pop %v3166
    %v3171 = vtanh.pop %v3167
    %v3172 = vtanh.pop %v3168
    %v3173 = vadd.f32 %v3169, 1.0
    %v3174 = vadd.f32 %v3170, 1.0
    %v3175 = vadd.f32 %v3171, 1.0
    %v3176 = vadd.f32 %v3172, 1.0
    %v3177 = vmul.f32 %v3145, %v3173
    %v3178 = vmul.f32 %v3146, %v3174
    %v3179 = vmul.f32 %v3147, %v3175
    %v3180 = vmul.f32 %v3148, %v3176
    %v3181 = vld [vmem:[#allocation14] sm:$0xff]
    %v3182 = vld [vmem:[#allocation14 + $0x8] sm:$0xff]
    %v3183 = vld [vmem:[#allocation14 + $0x10] sm:$0xff]
    %v3184 = vld [vmem:[#allocation14 + $0x18] sm:$0xff]
    %v3185 = vld [vmem:[#allocation14 + $0x20] sm:$0xff]
    %v3186 = vld [vmem:[#allocation14 + $0x28] sm:$0xff]
    %v3187 = vld [vmem:[#allocation14 + $0x30] sm:$0xff]
    %v3188 = vld [vmem:[#allocation14 + $0x38] sm:$0xff]
    %v3189 = vld [vmem:[#allocation14 + $0x40] sm:$0xff]
    %v3190 = vld [vmem:[#allocation14 + $0x48] sm:$0xff]
    %v3191 = vld [vmem:[#allocation14 + $0x50] sm:$0xff]
    %v3192 = vld [vmem:[#allocation14 + $0x58] sm:$0xff]
    %v3193 = vld [vmem:[#allocation14 + $0x60] sm:$0xff]
    %v3194 = vld [vmem:[#allocation14 + $0x68] sm:$0xff]
    %v3195 = vld [vmem:[#allocation14 + $0x70] sm:$0xff]
    %v3196 = vld [vmem:[#allocation14 + $0x78] sm:$0xff]
    %v3197 = vld [vmem:[#allocation14 + $0x80] sm:$0xff]
    %v3198 = vld [vmem:[#allocation14 + $0x88] sm:$0xff]
    %v3199 = vld [vmem:[#allocation14 + $0x90] sm:$0xff]
    %v3200 = vld [vmem:[#allocation14 + $0x98] sm:$0xff]
    %v3201 = vld [vmem:[#allocation14 + $0xa0] sm:$0xff]
    %v3202 = vld [vmem:[#allocation14 + $0xa8] sm:$0xff]
    %v3203 = vld [vmem:[#allocation14 + $0xb0] sm:$0xff]
    %v3204 = vld [vmem:[#allocation14 + $0xb8] sm:$0xff]
    %v3205 = vld [vmem:[#allocation14 + $0xc0] sm:$0xff]
    %v3206 = vld [vmem:[#allocation14 + $0xc8] sm:$0xff]
    %v3207 = vld [vmem:[#allocation14 + $0xd0] sm:$0xff]
    %v3208 = vld [vmem:[#allocation14 + $0xd8] sm:$0xff]
    %v3209 = vld [vmem:[#allocation14 + $0xe0] sm:$0xff]
    %v3210 = vld [vmem:[#allocation14 + $0xe8] sm:$0xff]
    %v3211 = vld [vmem:[#allocation14 + $0xf0] sm:$0xff]
    %v3212 = vld [vmem:[#allocation14 + $0xf8] sm:$0xff]
    %v3213 = vld [vmem:[#allocation14 + $0x100] sm:$0xff]
    %v3214 = vld [vmem:[#allocation14 + $0x108] sm:$0xff]
    %v3215 = vld [vmem:[#allocation14 + $0x110] sm:$0xff]
    %v3216 = vld [vmem:[#allocation14 + $0x118] sm:$0xff]
    %v3217 = vld [vmem:[#allocation14 + $0x120] sm:$0xff]
    %v3218 = vld [vmem:[#allocation14 + $0x128] sm:$0xff]
    %v3219 = vld [vmem:[#allocation14 + $0x130] sm:$0xff]
    %v3220 = vld [vmem:[#allocation14 + $0x138] sm:$0xff]
    %v3221 = vld [vmem:[#allocation14 + $0x140] sm:$0xff]
    %v3222 = vld [vmem:[#allocation14 + $0x148] sm:$0xff]
    %v3223 = vld [vmem:[#allocation14 + $0x150] sm:$0xff]
    %v3224 = vld [vmem:[#allocation14 + $0x158] sm:$0xff]
    %v3225 = vld [vmem:[#allocation14 + $0x160] sm:$0xff]
    %v3226 = vld [vmem:[#allocation14 + $0x168] sm:$0xff]
    %v3227 = vld [vmem:[#allocation14 + $0x170] sm:$0xff]
    %v3228 = vld [vmem:[#allocation14 + $0x178] sm:$0xff]
    %v3229 = vld [vmem:[#allocation14 + $0x180] sm:$0xff]
    %v3230 = vld [vmem:[#allocation14 + $0x188] sm:$0xff]
    %v3231 = vld [vmem:[#allocation14 + $0x190] sm:$0xff]
    %v3232 = vld [vmem:[#allocation14 + $0x198] sm:$0xff]
    %v3233 = vld [vmem:[#allocation14 + $0x1a0] sm:$0xff]
    %v3234 = vld [vmem:[#allocation14 + $0x1a8] sm:$0xff]
    %v3235 = vld [vmem:[#allocation14 + $0x1b0] sm:$0xff]
    %v3236 = vld [vmem:[#allocation14 + $0x1b8] sm:$0xff]
    %v3237 = vld [vmem:[#allocation14 + $0x1c0] sm:$0xff]
    %v3238 = vld [vmem:[#allocation14 + $0x1c8] sm:$0xff]
    %v3239 = vld [vmem:[#allocation14 + $0x1d0] sm:$0xff]
    %v3240 = vld [vmem:[#allocation14 + $0x1d8] sm:$0xff]
    %v3241 = vld [vmem:[#allocation14 + $0x1e0] sm:$0xff]
    %v3242 = vld [vmem:[#allocation14 + $0x1e8] sm:$0xff]
    %v3243 = vld [vmem:[#allocation14 + $0x1f0] sm:$0xff]
    %v3244 = vld [vmem:[#allocation14 + $0x1f8] sm:$0xff]
    %v3245 = vld [vmem:[#allocation14 + $0x200] sm:$0xff]
    %v3246 = vld [vmem:[#allocation14 + $0x208] sm:$0xff]
    %v3247 = vld [vmem:[#allocation14 + $0x210] sm:$0xff]
    %v3248 = vld [vmem:[#allocation14 + $0x218] sm:$0xff]
    %v3249 = vld [vmem:[#allocation14 + $0x220] sm:$0xff]
    %v3250 = vld [vmem:[#allocation14 + $0x228] sm:$0xff]
    %v3251 = vld [vmem:[#allocation14 + $0x230] sm:$0xff]
    %v3252 = vld [vmem:[#allocation14 + $0x238] sm:$0xff]
    %v3253 = vld [vmem:[#allocation14 + $0x240] sm:$0xff]
    %v3254 = vld [vmem:[#allocation14 + $0x248] sm:$0xff]
    %v3255 = vld [vmem:[#allocation14 + $0x250] sm:$0xff]
    %v3256 = vld [vmem:[#allocation14 + $0x258] sm:$0xff]
    %v3257 = vld [vmem:[#allocation14 + $0x260] sm:$0xff]
    %v3258 = vld [vmem:[#allocation14 + $0x268] sm:$0xff]
    %v3259 = vld [vmem:[#allocation14 + $0x270] sm:$0xff]
    %v3260 = vld [vmem:[#allocation14 + $0x278] sm:$0xff]
    %v3261 = vld [vmem:[#allocation14 + $0x280] sm:$0xff]
    %v3262 = vld [vmem:[#allocation14 + $0x288] sm:$0xff]
    %v3263 = vld [vmem:[#allocation14 + $0x290] sm:$0xff]
    %v3264 = vld [vmem:[#allocation14 + $0x298] sm:$0xff]
    %v3265 = vld [vmem:[#allocation14 + $0x2a0] sm:$0xff]
    %v3266 = vld [vmem:[#allocation14 + $0x2a8] sm:$0xff]
    %v3267 = vld [vmem:[#allocation14 + $0x2b0] sm:$0xff]
    %v3268 = vld [vmem:[#allocation14 + $0x2b8] sm:$0xff]
    %v3269 = vld [vmem:[#allocation14 + $0x2c0] sm:$0xff]
    %v3270 = vld [vmem:[#allocation14 + $0x2c8] sm:$0xff]
    %v3271 = vld [vmem:[#allocation14 + $0x2d0] sm:$0xff]
    %v3272 = vld [vmem:[#allocation14 + $0x2d8] sm:$0xff]
    %v3273 = vld [vmem:[#allocation14 + $0x2e0] sm:$0xff]
    %v3274 = vld [vmem:[#allocation14 + $0x2e8] sm:$0xff]
    %v3275 = vld [vmem:[#allocation14 + $0x2f0] sm:$0xff]
    %v3276 = vld [vmem:[#allocation14 + $0x2f8] sm:$0xff]
    %v3277 = vld [vmem:[#allocation14 + $0x300] sm:$0xff]
    %v3278 = vld [vmem:[#allocation14 + $0x308] sm:$0xff]
    %v3279 = vld [vmem:[#allocation14 + $0x310] sm:$0xff]
    %v3280 = vld [vmem:[#allocation14 + $0x318] sm:$0xff]
    %v3281 = vld [vmem:[#allocation14 + $0x320] sm:$0xff]
    %v3282 = vld [vmem:[#allocation14 + $0x328] sm:$0xff]
    %v3283 = vld [vmem:[#allocation14 + $0x330] sm:$0xff]
    %v3284 = vld [vmem:[#allocation14 + $0x338] sm:$0xff]
    %v3285 = vld [vmem:[#allocation14 + $0x340] sm:$0xff]
    %v3286 = vld [vmem:[#allocation14 + $0x348] sm:$0xff]
    %v3287 = vld [vmem:[#allocation14 + $0x350] sm:$0xff]
    %v3288 = vld [vmem:[#allocation14 + $0x358] sm:$0xff]
    %v3289 = vld [vmem:[#allocation14 + $0x360] sm:$0xff]
    %v3290 = vld [vmem:[#allocation14 + $0x368] sm:$0xff]
    %v3291 = vld [vmem:[#allocation14 + $0x370] sm:$0xff]
    %v3292 = vld [vmem:[#allocation14 + $0x378] sm:$0xff]
    %v3293 = vld [vmem:[#allocation14 + $0x380] sm:$0xff]
    %v3294 = vld [vmem:[#allocation14 + $0x388] sm:$0xff]
    %v3295 = vld [vmem:[#allocation14 + $0x390] sm:$0xff]
    %v3296 = vld [vmem:[#allocation14 + $0x398] sm:$0xff]
    %v3297 = vld [vmem:[#allocation14 + $0x3a0] sm:$0xff]
    %v3298 = vld [vmem:[#allocation14 + $0x3a8] sm:$0xff]
    %v3299 = vld [vmem:[#allocation14 + $0x3b0] sm:$0xff]
    %v3300 = vld [vmem:[#allocation14 + $0x3b8] sm:$0xff]
    %v3301 = vld [vmem:[#allocation14 + $0x3c0] sm:$0xff]
    %v3302 = vld [vmem:[#allocation14 + $0x3c8] sm:$0xff]
    %v3303 = vld [vmem:[#allocation14 + $0x3d0] sm:$0xff]
    %v3304 = vld [vmem:[#allocation14 + $0x3d8] sm:$0xff]
    %v3305 = vld [vmem:[#allocation14 + $0x3e0] sm:$0xff]
    %v3306 = vld [vmem:[#allocation14 + $0x3e8] sm:$0xff]
    %v3307 = vld [vmem:[#allocation14 + $0x3f0] sm:$0xff]
    %v3308 = vld [vmem:[#allocation14 + $0x3f8] sm:$0xff]
    %v3309 = vld [vmem:[#allocation16] sm:$0x3]
    %v3311 = vlaneseq
    %v3312 = vshrl.u32 %v3311, 7
    %v3313 = vsub.s32 0, %v3312
    %v3314 = vrot.slane %v3309, %v3313
    %v3315 = vlaneseq
    %v3316 = vshrl.u32 %v3315, 7
    %v3317 = vsub.s32 1, %v3316
    %v3318 = vrot.slane %v3309, %v3317
    %3321 = vmatprep.subr.mxu0 %v3182
    %3322 = vmatpush1.msra.mxu0 %v3181
    %3323 = vmatprep.subr.mxu0 %v3184
    %3324 = vmatpush1.msra.mxu0 %v3183
    %3325 = vmatprep.subr.mxu0 %v3186
    %3326 = vmatpush1.msra.mxu0 %v3185
    %3327 = vmatprep.subr.mxu0 %v3188
    %3328 = vmatpush1.msra.mxu0 %v3187
    %3329 = vmatprep.subr.mxu0 %v3190
    %3330 = vmatpush1.msra.mxu0 %v3189
    %3331 = vmatprep.subr.mxu0 %v3192
    %3332 = vmatpush1.msra.mxu0 %v3191
    %3333 = vmatprep.subr.mxu0 %v3194
    %3334 = vmatpush1.msra.mxu0 %v3193
    %3335 = vmatprep.subr.mxu0 %v3196
    %3336 = vmatpush1.msra.mxu0 %v3195
    %3337 = vmatprep.subr.mxu0 %v3198
    %3338 = vmatpush1.msra.mxu0 %v3197
    %3339 = vmatprep.subr.mxu0 %v3200
    %3340 = vmatpush1.msra.mxu0 %v3199
    %3341 = vmatprep.subr.mxu0 %v3202
    %3342 = vmatpush1.msra.mxu0 %v3201
    %3343 = vmatprep.subr.mxu0 %v3204
    %3344 = vmatpush1.msra.mxu0 %v3203
    %3345 = vmatprep.subr.mxu0 %v3206
    %3346 = vmatpush1.msra.mxu0 %v3205
    %3347 = vmatprep.subr.mxu0 %v3208
    %3348 = vmatpush1.msra.mxu0 %v3207
    %3349 = vmatprep.subr.mxu0 %v3210
    %3350 = vmatpush1.msra.mxu0 %v3209
    %3351 = vmatprep.subr.mxu0 %v3212
    %3352 = vmatpush1.msra.mxu0 %v3211
    %3353 = vmatprep.subr.mxu0 %v3214
    %3354 = vmatpush1.msra.mxu0 %v3213
    %3355 = vmatprep.subr.mxu0 %v3216
    %3356 = vmatpush1.msra.mxu0 %v3215
    %3357 = vmatprep.subr.mxu0 %v3218
    %3358 = vmatpush1.msra.mxu0 %v3217
    %3359 = vmatprep.subr.mxu0 %v3220
    %3360 = vmatpush1.msra.mxu0 %v3219
    %3361 = vmatprep.subr.mxu0 %v3222
    %3362 = vmatpush1.msra.mxu0 %v3221
    %3363 = vmatprep.subr.mxu0 %v3224
    %3364 = vmatpush1.msra.mxu0 %v3223
    %3365 = vmatprep.subr.mxu0 %v3226
    %3366 = vmatpush1.msra.mxu0 %v3225
    %3367 = vmatprep.subr.mxu0 %v3228
    %3368 = vmatpush1.msra.mxu0 %v3227
    %3369 = vmatprep.subr.mxu0 %v3230
    %3370 = vmatpush1.msra.mxu0 %v3229
    %3371 = vmatprep.subr.mxu0 %v3232
    %3372 = vmatpush1.msra.mxu0 %v3231
    %3373 = vmatprep.subr.mxu0 %v3234
    %3374 = vmatpush1.msra.mxu0 %v3233
    %3375 = vmatprep.subr.mxu0 %v3236
    %3376 = vmatpush1.msra.mxu0 %v3235
    %3377 = vmatprep.subr.mxu0 %v3238
    %3378 = vmatpush1.msra.mxu0 %v3237
    %3379 = vmatprep.subr.mxu0 %v3240
    %3380 = vmatpush1.msra.mxu0 %v3239
    %3381 = vmatprep.subr.mxu0 %v3242
    %3382 = vmatpush1.msra.mxu0 %v3241
    %3383 = vmatprep.subr.mxu0 %v3244
    %3384 = vmatpush1.msra.mxu0 %v3243
    %3385 = vmatprep.mubr.f32.mxu0 %v2020
    %3386 = vmatmul.mubr.f32.gmra.mrb[0].mxu0 %v2019
    %v3387 = vpop.f32.mrb[0].mxu0
    %v3388 = vadd.f32 %v3314, %v3387
    %v3389 = vpop.f32.mrb[0].mxu0
    %v3390 = vadd.f32 %v3318, %v3389
    %3391 = vdwg.mxu0
    %3392 = vmatprep.subr.mxu0 %v3246
    %3393 = vmatpush1.msra.mxu0 %v3245
    %3394 = vmatprep.subr.mxu0 %v3248
    %3395 = vmatpush1.msra.mxu0 %v3247
    %3396 = vmatprep.subr.mxu0 %v3250
    %3397 = vmatpush1.msra.mxu0 %v3249
    %3398 = vmatprep.subr.mxu0 %v3252
    %3399 = vmatpush1.msra.mxu0 %v3251
    %3400 = vmatprep.subr.mxu0 %v3254
    %3401 = vmatpush1.msra.mxu0 %v3253
    %3402 = vmatprep.subr.mxu0 %v3256
    %3403 = vmatpush1.msra.mxu0 %v3255
    %3404 = vmatprep.subr.mxu0 %v3258
    %3405 = vmatpush1.msra.mxu0 %v3257
    %3406 = vmatprep.subr.mxu0 %v3260
    %3407 = vmatpush1.msra.mxu0 %v3259
    %3408 = vmatprep.subr.mxu0 %v3262
    %3409 = vmatpush1.msra.mxu0 %v3261
    %3410 = vmatprep.subr.mxu0 %v3264
    %3411 = vmatpush1.msra.mxu0 %v3263
    %3412 = vmatprep.subr.mxu0 %v3266
    %3413 = vmatpush1.msra.mxu0 %v3265
    %3414 = vmatprep.subr.mxu0 %v3268
    %3415 = vmatpush1.msra.mxu0 %v3267
    %3416 = vmatprep.subr.mxu0 %v3270
    %3417 = vmatpush1.msra.mxu0 %v3269
    %3418 = vmatprep.subr.mxu0 %v3272
    %3419 = vmatpush1.msra.mxu0 %v3271
    %3420 = vmatprep.subr.mxu0 %v3274
    %3421 = vmatpush1.msra.mxu0 %v3273
    %3422 = vmatprep.subr.mxu0 %v3276
    %3423 = vmatpush1.msra.mxu0 %v3275
    %3424 = vmatprep.subr.mxu0 %v3278
    %3425 = vmatpush1.msra.mxu0 %v3277
    %3426 = vmatprep.subr.mxu0 %v3280
    %3427 = vmatpush1.msra.mxu0 %v3279
    %3428 = vmatprep.subr.mxu0 %v3282
    %3429 = vmatpush1.msra.mxu0 %v3281
    %3430 = vmatprep.subr.mxu0 %v3284
    %3431 = vmatpush1.msra.mxu0 %v3283
    %3432 = vmatprep.subr.mxu0 %v3286
    %3433 = vmatpush1.msra.mxu0 %v3285
    %3434 = vmatprep.subr.mxu0 %v3288
    %3435 = vmatpush1.msra.mxu0 %v3287
    %3436 = vmatprep.subr.mxu0 %v3290
    %3437 = vmatpush1.msra.mxu0 %v3289
    %3438 = vmatprep.subr.mxu0 %v3292
    %3439 = vmatpush1.msra.mxu0 %v3291
    %3440 = vmatprep.subr.mxu0 %v3294
    %3441 = vmatpush1.msra.mxu0 %v3293
    %3442 = vmatprep.subr.mxu0 %v3296
    %3443 = vmatpush1.msra.mxu0 %v3295
    %3444 = vmatprep.subr.mxu0 %v3298
    %3445 = vmatpush1.msra.mxu0 %v3297
    %3446 = vmatprep.subr.mxu0 %v3300
    %3447 = vmatpush1.msra.mxu0 %v3299
    %3448 = vmatprep.subr.mxu0 %v3302
    %3449 = vmatpush1.msra.mxu0 %v3301
    %3450 = vmatprep.subr.mxu0 %v3304
    %3451 = vmatpush1.msra.mxu0 %v3303
    %3452 = vmatprep.subr.mxu0 %v3306
    %3453 = vmatpush1.msra.mxu0 %v3305
    %3454 = vmatprep.subr.mxu0 %v3308
    %3455 = vmatpush1.msra.mxu0 %v3307
    %3456 = vmatprep.mubr.f32.mxu0 %v2022
    %3457 = vmatmul.mubr.f32.gmra.mrb[0].mxu0 %v2021
    %v3458 = vpop.f32.mrb[0].mxu0
    %v3459 = vadd.f32 %v3388, %v3458
    %v3460 = vpop.f32.mrb[0].mxu0
    %v3461 = vadd.f32 %v3390, %v3460
    %3462 = vdwg.mxu0
    %v3463 = vmul.f32 %v3459, 0.5
    %v3464 = vmul.f32 %v3461, 0.5
    %v3465 = vmul.f32 %v3459, 0.044715
    %v3466 = vmul.f32 %v3461, 0.044715
    %v3467 = vmul.f32 %v3465, %v3459
    %v3468 = vmul.f32 %v3466, %v3461
    %v3469 = vmul.f32 %v3467, %v3459
    %v3470 = vmul.f32 %v3468, %v3461
    %v3471 = vadd.f32 %v3459, %v3469
    %v3472 = vadd.f32 %v3461, %v3470
    %v3473 = vmul.f32 %v3471, 0.7978846
    %v3474 = vmul.f32 %v3472, 0.7978846
    %v3475 = vtanh.pop %v3473
    %v3476 = vtanh.pop %v3474
    %v3477 = vadd.f32 %v3475, 1.0
    %v3478 = vadd.f32 %v3476, 1.0
    %v3479 = vmul.f32 %v3463, %v3477
    %v3480 = vmul.f32 %v3464, %v3478
    %v3481 = vld [vmem:[#allocation17] sm:$0xff]
    %v3482 = vld [vmem:[#allocation17 + $0x8] sm:$0xff]
    %v3483 = vld [vmem:[#allocation17 + $0x10] sm:$0xff]
    %v3484 = vld [vmem:[#allocation17 + $0x18] sm:$0xff]
    %v3485 = vld [vmem:[#allocation17 + $0x20] sm:$0xff]
    %v3486 = vld [vmem:[#allocation17 + $0x28] sm:$0xff]
    %v3487 = vld [vmem:[#allocation17 + $0x30] sm:$0xff]
    %v3488 = vld [vmem:[#allocation17 + $0x38] sm:$0xff]
    %v3489 = vld [vmem:[#allocation17 + $0x40] sm:$0xff]
    %v3490 = vld [vmem:[#allocation17 + $0x48] sm:$0xff]
    %v3491 = vld [vmem:[#allocation17 + $0x50] sm:$0xff]
    %v3492 = vld [vmem:[#allocation17 + $0x58] sm:$0xff]
    %v3493 = vld [vmem:[#allocation17 + $0x60] sm:$0xff]
    %v3494 = vld [vmem:[#allocation17 + $0x68] sm:$0xff]
    %v3495 = vld [vmem:[#allocation17 + $0x70] sm:$0xff]
    %v3496 = vld [vmem:[#allocation17 + $0x78] sm:$0xff]
    %v3497 = vld [vmem:[#allocation17 + $0x80] sm:$0xff]
    %v3498 = vld [vmem:[#allocation17 + $0x88] sm:$0xff]
    %v3499 = vld [vmem:[#allocation17 + $0x90] sm:$0xff]
    %v3500 = vld [vmem:[#allocation17 + $0x98] sm:$0xff]
    %v3501 = vld [vmem:[#allocation17 + $0xa0] sm:$0xff]
    %v3502 = vld [vmem:[#allocation17 + $0xa8] sm:$0xff]
    %v3503 = vld [vmem:[#allocation17 + $0xb0] sm:$0xff]
    %v3504 = vld [vmem:[#allocation17 + $0xb8] sm:$0xff]
    %v3505 = vld [vmem:[#allocation17 + $0xc0] sm:$0xff]
    %v3506 = vld [vmem:[#allocation17 + $0xc8] sm:$0xff]
    %v3507 = vld [vmem:[#allocation17 + $0xd0] sm:$0xff]
    %v3508 = vld [vmem:[#allocation17 + $0xd8] sm:$0xff]
    %v3509 = vld [vmem:[#allocation17 + $0xe0] sm:$0xff]
    %v3510 = vld [vmem:[#allocation17 + $0xe8] sm:$0xff]
    %v3511 = vld [vmem:[#allocation17 + $0xf0] sm:$0xff]
    %v3512 = vld [vmem:[#allocation17 + $0xf8] sm:$0xff]
    %v3513 = vld [vmem:[#allocation17 + $0x100] sm:$0xff]
    %v3514 = vld [vmem:[#allocation17 + $0x108] sm:$0xff]
    %v3515 = vld [vmem:[#allocation17 + $0x110] sm:$0xff]
    %v3516 = vld [vmem:[#allocation17 + $0x118] sm:$0xff]
    %v3517 = vld [vmem:[#allocation17 + $0x120] sm:$0xff]
    %v3518 = vld [vmem:[#allocation17 + $0x128] sm:$0xff]
    %v3519 = vld [vmem:[#allocation17 + $0x130] sm:$0xff]
    %v3520 = vld [vmem:[#allocation17 + $0x138] sm:$0xff]
    %v3521 = vld [vmem:[#allocation17 + $0x140] sm:$0xff]
    %v3522 = vld [vmem:[#allocation17 + $0x148] sm:$0xff]
    %v3523 = vld [vmem:[#allocation17 + $0x150] sm:$0xff]
    %v3524 = vld [vmem:[#allocation17 + $0x158] sm:$0xff]
    %v3525 = vld [vmem:[#allocation17 + $0x160] sm:$0xff]
    %v3526 = vld [vmem:[#allocation17 + $0x168] sm:$0xff]
    %v3527 = vld [vmem:[#allocation17 + $0x170] sm:$0xff]
    %v3528 = vld [vmem:[#allocation17 + $0x178] sm:$0xff]
    %v3529 = vld [vmem:[#allocation17 + $0x180] sm:$0xff]
    %v3530 = vld [vmem:[#allocation17 + $0x188] sm:$0xff]
    %v3531 = vld [vmem:[#allocation17 + $0x190] sm:$0xff]
    %v3532 = vld [vmem:[#allocation17 + $0x198] sm:$0xff]
    %v3533 = vld [vmem:[#allocation17 + $0x1a0] sm:$0xff]
    %v3534 = vld [vmem:[#allocation17 + $0x1a8] sm:$0xff]
    %v3535 = vld [vmem:[#allocation17 + $0x1b0] sm:$0xff]
    %v3536 = vld [vmem:[#allocation17 + $0x1b8] sm:$0xff]
    %v3537 = vld [vmem:[#allocation17 + $0x1c0] sm:$0xff]
    %v3538 = vld [vmem:[#allocation17 + $0x1c8] sm:$0xff]
    %v3539 = vld [vmem:[#allocation17 + $0x1d0] sm:$0xff]
    %v3540 = vld [vmem:[#allocation17 + $0x1d8] sm:$0xff]
    %v3541 = vld [vmem:[#allocation17 + $0x1e0] sm:$0xff]
    %v3542 = vld [vmem:[#allocation17 + $0x1e8] sm:$0xff]
    %v3543 = vld [vmem:[#allocation17 + $0x1f0] sm:$0xff]
    %v3544 = vld [vmem:[#allocation17 + $0x1f8] sm:$0xff]
    %v3545 = vld [vmem:[#allocation17 + $0x200] sm:$0xff]
    %v3546 = vld [vmem:[#allocation17 + $0x208] sm:$0xff]
    %v3547 = vld [vmem:[#allocation17 + $0x210] sm:$0xff]
    %v3548 = vld [vmem:[#allocation17 + $0x218] sm:$0xff]
    %v3549 = vld [vmem:[#allocation17 + $0x220] sm:$0xff]
    %v3550 = vld [vmem:[#allocation17 + $0x228] sm:$0xff]
    %v3551 = vld [vmem:[#allocation17 + $0x230] sm:$0xff]
    %v3552 = vld [vmem:[#allocation17 + $0x238] sm:$0xff]
    %v3553 = vld [vmem:[#allocation17 + $0x240] sm:$0xff]
    %v3554 = vld [vmem:[#allocation17 + $0x248] sm:$0xff]
    %v3555 = vld [vmem:[#allocation17 + $0x250] sm:$0xff]
    %v3556 = vld [vmem:[#allocation17 + $0x258] sm:$0xff]
    %v3557 = vld [vmem:[#allocation17 + $0x260] sm:$0xff]
    %v3558 = vld [vmem:[#allocation17 + $0x268] sm:$0xff]
    %v3559 = vld [vmem:[#allocation17 + $0x270] sm:$0xff]
    %v3560 = vld [vmem:[#allocation17 + $0x278] sm:$0xff]
    %v3561 = vld [vmem:[#allocation17 + $0x280] sm:$0xff]
    %v3562 = vld [vmem:[#allocation17 + $0x288] sm:$0xff]
    %v3563 = vld [vmem:[#allocation17 + $0x290] sm:$0xff]
    %v3564 = vld [vmem:[#allocation17 + $0x298] sm:$0xff]
    %v3565 = vld [vmem:[#allocation17 + $0x2a0] sm:$0xff]
    %v3566 = vld [vmem:[#allocation17 + $0x2a8] sm:$0xff]
    %v3567 = vld [vmem:[#allocation17 + $0x2b0] sm:$0xff]
    %v3568 = vld [vmem:[#allocation17 + $0x2b8] sm:$0xff]
    %v3569 = vld [vmem:[#allocation17 + $0x2c0] sm:$0xff]
    %v3570 = vld [vmem:[#allocation17 + $0x2c8] sm:$0xff]
    %v3571 = vld [vmem:[#allocation17 + $0x2d0] sm:$0xff]
    %v3572 = vld [vmem:[#allocation17 + $0x2d8] sm:$0xff]
    %v3573 = vld [vmem:[#allocation17 + $0x2e0] sm:$0xff]
    %v3574 = vld [vmem:[#allocation17 + $0x2e8] sm:$0xff]
    %v3575 = vld [vmem:[#allocation17 + $0x2f0] sm:$0xff]
    %v3576 = vld [vmem:[#allocation17 + $0x2f8] sm:$0xff]
    %v3577 = vld [vmem:[#allocation17 + $0x300] sm:$0xff]
    %v3578 = vld [vmem:[#allocation17 + $0x308] sm:$0xff]
    %v3579 = vld [vmem:[#allocation17 + $0x310] sm:$0xff]
    %v3580 = vld [vmem:[#allocation17 + $0x318] sm:$0xff]
    %v3581 = vld [vmem:[#allocation17 + $0x320] sm:$0xff]
    %v3582 = vld [vmem:[#allocation17 + $0x328] sm:$0xff]
    %v3583 = vld [vmem:[#allocation17 + $0x330] sm:$0xff]
    %v3584 = vld [vmem:[#allocation17 + $0x338] sm:$0xff]
    %v3585 = vld [vmem:[#allocation17 + $0x340] sm:$0xff]
    %v3586 = vld [vmem:[#allocation17 + $0x348] sm:$0xff]
    %v3587 = vld [vmem:[#allocation17 + $0x350] sm:$0xff]
    %v3588 = vld [vmem:[#allocation17 + $0x358] sm:$0xff]
    %v3589 = vld [vmem:[#allocation17 + $0x360] sm:$0xff]
    %v3590 = vld [vmem:[#allocation17 + $0x368] sm:$0xff]
    %v3591 = vld [vmem:[#allocation17 + $0x370] sm:$0xff]
    %v3592 = vld [vmem:[#allocation17 + $0x378] sm:$0xff]
    %v3593 = vld [vmem:[#allocation17 + $0x380] sm:$0xff]
    %v3594 = vld [vmem:[#allocation17 + $0x388] sm:$0xff]
    %v3595 = vld [vmem:[#allocation17 + $0x390] sm:$0xff]
    %v3596 = vld [vmem:[#allocation17 + $0x398] sm:$0xff]
    %v3597 = vld [vmem:[#allocation17 + $0x3a0] sm:$0xff]
    %v3598 = vld [vmem:[#allocation17 + $0x3a8] sm:$0xff]
    %v3599 = vld [vmem:[#allocation17 + $0x3b0] sm:$0xff]
    %v3600 = vld [vmem:[#allocation17 + $0x3b8] sm:$0xff]
    %v3601 = vld [vmem:[#allocation17 + $0x3c0] sm:$0xff]
    %v3602 = vld [vmem:[#allocation17 + $0x3c8] sm:$0xff]
    %v3603 = vld [vmem:[#allocation17 + $0x3d0] sm:$0xff]
    %v3604 = vld [vmem:[#allocation17 + $0x3d8] sm:$0xff]
    %v3605 = vld [vmem:[#allocation17 + $0x3e0] sm:$0xff]
    %v3606 = vld [vmem:[#allocation17 + $0x3e8] sm:$0xff]
    %v3607 = vld [vmem:[#allocation17 + $0x3f0] sm:$0xff]
    %v3608 = vld [vmem:[#allocation17 + $0x3f8] sm:$0xff]
    %v3609 = vld [vmem:[#allocation17 + $0x400] sm:$0xff]
    %v3610 = vld [vmem:[#allocation17 + $0x408] sm:$0xff]
    %v3611 = vld [vmem:[#allocation17 + $0x410] sm:$0xff]
    %v3612 = vld [vmem:[#allocation17 + $0x418] sm:$0xff]
    %v3613 = vld [vmem:[#allocation17 + $0x420] sm:$0xff]
    %v3614 = vld [vmem:[#allocation17 + $0x428] sm:$0xff]
    %v3615 = vld [vmem:[#allocation17 + $0x430] sm:$0xff]
    %v3616 = vld [vmem:[#allocation17 + $0x438] sm:$0xff]
    %v3617 = vld [vmem:[#allocation17 + $0x440] sm:$0xff]
    %v3618 = vld [vmem:[#allocation17 + $0x448] sm:$0xff]
    %v3619 = vld [vmem:[#allocation17 + $0x450] sm:$0xff]
    %v3620 = vld [vmem:[#allocation17 + $0x458] sm:$0xff]
    %v3621 = vld [vmem:[#allocation17 + $0x460] sm:$0xff]
    %v3622 = vld [vmem:[#allocation17 + $0x468] sm:$0xff]
    %v3623 = vld [vmem:[#allocation17 + $0x470] sm:$0xff]
    %v3624 = vld [vmem:[#allocation17 + $0x478] sm:$0xff]
    %v3625 = vld [vmem:[#allocation17 + $0x480] sm:$0xff]
    %v3626 = vld [vmem:[#allocation17 + $0x488] sm:$0xff]
    %v3627 = vld [vmem:[#allocation17 + $0x490] sm:$0xff]
    %v3628 = vld [vmem:[#allocation17 + $0x498] sm:$0xff]
    %v3629 = vld [vmem:[#allocation17 + $0x4a0] sm:$0xff]
    %v3630 = vld [vmem:[#allocation17 + $0x4a8] sm:$0xff]
    %v3631 = vld [vmem:[#allocation17 + $0x4b0] sm:$0xff]
    %v3632 = vld [vmem:[#allocation17 + $0x4b8] sm:$0xff]
    %v3633 = vld [vmem:[#allocation17 + $0x4c0] sm:$0xff]
    %v3634 = vld [vmem:[#allocation17 + $0x4c8] sm:$0xff]
    %v3635 = vld [vmem:[#allocation17 + $0x4d0] sm:$0xff]
    %v3636 = vld [vmem:[#allocation17 + $0x4d8] sm:$0xff]
    %v3637 = vld [vmem:[#allocation17 + $0x4e0] sm:$0xff]
    %v3638 = vld [vmem:[#allocation17 + $0x4e8] sm:$0xff]
    %v3639 = vld [vmem:[#allocation17 + $0x4f0] sm:$0xff]
    %v3640 = vld [vmem:[#allocation17 + $0x4f8] sm:$0xff]
    %v3641 = vld [vmem:[#allocation19] sm:$0x1]
    %v3643 = vlaneseq
    %v3644 = vshrl.u32 %v3643, 7
    %v3645 = vsub.s32 0, %v3644
    %v3646 = vrot.slane %v3641, %v3645
    %3648 = vmatprep.subr.mxu0 0.0
    %3649 = vmatpush1.msra.mxu0 %v3481
    %3650 = vmatprep.subr.mxu0 0.0
    %3651 = vmatpush1.msra.mxu0 %v3482
    %3652 = vmatprep.subr.mxu0 0.0
    %3653 = vmatpush1.msra.mxu0 %v3483
    %3654 = vmatprep.subr.mxu0 0.0
    %3655 = vmatpush1.msra.mxu0 %v3484
    %3656 = vmatprep.subr.mxu0 0.0
    %3657 = vmatpush1.msra.mxu0 %v3485
    %3658 = vmatprep.subr.mxu0 0.0
    %3659 = vmatpush1.msra.mxu0 %v3486
    %3660 = vmatprep.subr.mxu0 0.0
    %3661 = vmatpush1.msra.mxu0 %v3487
    %3662 = vmatprep.subr.mxu0 0.0
    %3663 = vmatpush1.msra.mxu0 %v3488
    %3664 = vmatprep.subr.mxu0 0.0
    %3665 = vmatpush1.msra.mxu0 %v3489
    %3666 = vmatprep.subr.mxu0 0.0
    %3667 = vmatpush1.msra.mxu0 %v3490
    %3668 = vmatprep.subr.mxu0 0.0
    %3669 = vmatpush1.msra.mxu0 %v3491
    %3670 = vmatprep.subr.mxu0 0.0
    %3671 = vmatpush1.msra.mxu0 %v3492
    %3672 = vmatprep.subr.mxu0 0.0
    %3673 = vmatpush1.msra.mxu0 %v3493
    %3674 = vmatprep.subr.mxu0 0.0
    %3675 = vmatpush1.msra.mxu0 %v3494
    %3676 = vmatprep.subr.mxu0 0.0
    %3677 = vmatpush1.msra.mxu0 %v3495
    %3678 = vmatprep.subr.mxu0 0.0
    %3679 = vmatpush1.msra.mxu0 %v3496
    %3680 = vmatprep.subr.mxu0 0.0
    %3681 = vmatpush1.msra.mxu0 %v3497
    %3682 = vmatprep.subr.mxu0 0.0
    %3683 = vmatpush1.msra.mxu0 %v3498
    %3684 = vmatprep.subr.mxu0 0.0
    %3685 = vmatpush1.msra.mxu0 %v3499
    %3686 = vmatprep.subr.mxu0 0.0
    %3687 = vmatpush1.msra.mxu0 %v3500
    %3688 = vmatprep.subr.mxu0 0.0
    %3689 = vmatpush1.msra.mxu0 %v3501
    %3690 = vmatprep.subr.mxu0 0.0
    %3691 = vmatpush1.msra.mxu0 %v3502
    %3692 = vmatprep.subr.mxu0 0.0
    %3693 = vmatpush1.msra.mxu0 %v3503
    %3694 = vmatprep.subr.mxu0 0.0
    %3695 = vmatpush1.msra.mxu0 %v3504
    %3696 = vmatprep.subr.mxu0 0.0
    %3697 = vmatpush1.msra.mxu0 %v3505
    %3698 = vmatprep.subr.mxu0 0.0
    %3699 = vmatpush1.msra.mxu0 %v3506
    %3700 = vmatprep.subr.mxu0 0.0
    %3701 = vmatpush1.msra.mxu0 %v3507
    %3702 = vmatprep.subr.mxu0 0.0
    %3703 = vmatpush1.msra.mxu0 %v3508
    %3704 = vmatprep.subr.mxu0 0.0
    %3705 = vmatpush1.msra.mxu0 %v3509
    %3706 = vmatprep.subr.mxu0 0.0
    %3707 = vmatpush1.msra.mxu0 %v3510
    %3708 = vmatprep.subr.mxu0 0.0
    %3709 = vmatpush1.msra.mxu0 %v3511
    %3710 = vmatprep.subr.mxu0 0.0
    %3711 = vmatpush1.msra.mxu0 %v3512
    %3712 = vmatprep.mubr.f32.mxu0 %v3178
    %3713 = vmatmul.mubr.f32.gmra.mrb[0].mxu0 %v3177
    %v3714 = vpop.f32.mrb[0].mxu0
    %v3715 = vadd.f32 %v3646, %v3714
    %v3716 = vpop.f32.mrb[0].mxu0
    %3717 = vdwg.mxu0
    %3718 = vmatprep.subr.mxu0 0.0
    %3719 = vmatpush1.msra.mxu0 %v3513
    %3720 = vmatprep.subr.mxu0 0.0
    %3721 = vmatpush1.msra.mxu0 %v3514
    %3722 = vmatprep.subr.mxu0 0.0
    %3723 = vmatpush1.msra.mxu0 %v3515
    %3724 = vmatprep.subr.mxu0 0.0
    %3725 = vmatpush1.msra.mxu0 %v3516
    %3726 = vmatprep.subr.mxu0 0.0
    %3727 = vmatpush1.msra.mxu0 %v3517
    %3728 = vmatprep.subr.mxu0 0.0
    %3729 = vmatpush1.msra.mxu0 %v3518
    %3730 = vmatprep.subr.mxu0 0.0
    %3731 = vmatpush1.msra.mxu0 %v3519
    %3732 = vmatprep.subr.mxu0 0.0
    %3733 = vmatpush1.msra.mxu0 %v3520
    %3734 = vmatprep.subr.mxu0 0.0
    %3735 = vmatpush1.msra.mxu0 %v3521
    %3736 = vmatprep.subr.mxu0 0.0
    %3737 = vmatpush1.msra.mxu0 %v3522
    %3738 = vmatprep.subr.mxu0 0.0
    %3739 = vmatpush1.msra.mxu0 %v3523
    %3740 = vmatprep.subr.mxu0 0.0
    %3741 = vmatpush1.msra.mxu0 %v3524
    %3742 = vmatprep.subr.mxu0 0.0
    %3743 = vmatpush1.msra.mxu0 %v3525
    %3744 = vmatprep.subr.mxu0 0.0
    %3745 = vmatpush1.msra.mxu0 %v3526
    %3746 = vmatprep.subr.mxu0 0.0
    %3747 = vmatpush1.msra.mxu0 %v3527
    %3748 = vmatprep.subr.mxu0 0.0
    %3749 = vmatpush1.msra.mxu0 %v3528
    %3750 = vmatprep.subr.mxu0 0.0
    %3751 = vmatpush1.msra.mxu0 %v3529
    %3752 = vmatprep.subr.mxu0 0.0
    %3753 = vmatpush1.msra.mxu0 %v3530
    %3754 = vmatprep.subr.mxu0 0.0
    %3755 = vmatpush1.msra.mxu0 %v3531
    %3756 = vmatprep.subr.mxu0 0.0
    %3757 = vmatpush1.msra.mxu0 %v3532
    %3758 = vmatprep.subr.mxu0 0.0
    %3759 = vmatpush1.msra.mxu0 %v3533
    %3760 = vmatprep.subr.mxu0 0.0
    %3761 = vmatpush1.msra.mxu0 %v3534
    %3762 = vmatprep.subr.mxu0 0.0
    %3763 = vmatpush1.msra.mxu0 %v3535
    %3764 = vmatprep.subr.mxu0 0.0
    %3765 = vmatpush1.msra.mxu0 %v3536
    %3766 = vmatprep.subr.mxu0 0.0
    %3767 = vmatpush1.msra.mxu0 %v3537
    %3768 = vmatprep.subr.mxu0 0.0
    %3769 = vmatpush1.msra.mxu0 %v3538
    %3770 = vmatprep.subr.mxu0 0.0
    %3771 = vmatpush1.msra.mxu0 %v3539
    %3772 = vmatprep.subr.mxu0 0.0
    %3773 = vmatpush1.msra.mxu0 %v3540
    %3774 = vmatprep.subr.mxu0 0.0
    %3775 = vmatpush1.msra.mxu0 %v3541
    %3776 = vmatprep.subr.mxu0 0.0
    %3777 = vmatpush1.msra.mxu0 %v3542
    %3778 = vmatprep.subr.mxu0 0.0
    %3779 = vmatpush1.msra.mxu0 %v3543
    %3780 = vmatprep.subr.mxu0 0.0
    %3781 = vmatpush1.msra.mxu0 %v3544
    %3782 = vmatprep.mubr.f32.mxu0 %v3180
    %3783 = vmatmul.mubr.f32.gmra.mrb[0].mxu0 %v3179
    %v3784 = vpop.f32.mrb[0].mxu0
    %v3785 = vadd.f32 %v3715, %v3784
    %v3786 = vpop.f32.mrb[0].mxu0
    %3787 = vdwg.mxu0
    %3788 = vmatprep.subr.mxu0 0.0
    %3789 = vmatpush1.msra.mxu0 %v3545
    %3790 = vmatprep.subr.mxu0 0.0
    %3791 = vmatpush1.msra.mxu0 %v3546
    %3792 = vmatprep.subr.mxu0 0.0
    %3793 = vmatpush1.msra.mxu0 %v3547
    %3794 = vmatprep.subr.mxu0 0.0
    %3795 = vmatpush1.msra.mxu0 %v3548
    %3796 = vmatprep.subr.mxu0 0.0
    %3797 = vmatpush1.msra.mxu0 %v3549
    %3798 = vmatprep.subr.mxu0 0.0
    %3799 = vmatpush1.msra.mxu0 %v3550
    %3800 = vmatprep.subr.mxu0 0.0
    %3801 = vmatpush1.msra.mxu0 %v3551
    %3802 = vmatprep.subr.mxu0 0.0
    %3803 = vmatpush1.msra.mxu0 %v3552
    %3804 = vmatprep.subr.mxu0 0.0
    %3805 = vmatpush1.msra.mxu0 %v3553
    %3806 = vmatprep.subr.mxu0 0.0
    %3807 = vmatpush1.msra.mxu0 %v3554
    %3808 = vmatprep.subr.mxu0 0.0
    %3809 = vmatpush1.msra.mxu0 %v3555
    %3810 = vmatprep.subr.mxu0 0.0
    %3811 = vmatpush1.msra.mxu0 %v3556
    %3812 = vmatprep.subr.mxu0 0.0
    %3813 = vmatpush1.msra.mxu0 %v3557
    %3814 = vmatprep.subr.mxu0 0.0
    %3815 = vmatpush1.msra.mxu0 %v3558
    %3816 = vmatprep.subr.mxu0 0.0
    %3817 = vmatpush1.msra.mxu0 %v3559
    %3818 = vmatprep.subr.mxu0 0.0
    %3819 = vmatpush1.msra.mxu0 %v3560
    %3820 = vmatprep.subr.mxu0 0.0
    %3821 = vmatpush1.msra.mxu0 %v3561
    %3822 = vmatprep.subr.mxu0 0.0
    %3823 = vmatpush1.msra.mxu0 %v3562
    %3824 = vmatprep.subr.mxu0 0.0
    %3825 = vmatpush1.msra.mxu0 %v3563
    %3826 = vmatprep.subr.mxu0 0.0
    %3827 = vmatpush1.msra.mxu0 %v3564
    %3828 = vmatprep.subr.mxu0 0.0
    %3829 = vmatpush1.msra.mxu0 %v3565
    %3830 = vmatprep.subr.mxu0 0.0
    %3831 = vmatpush1.msra.mxu0 %v3566
    %3832 = vmatprep.subr.mxu0 0.0
    %3833 = vmatpush1.msra.mxu0 %v3567
    %3834 = vmatprep.subr.mxu0 0.0
    %3835 = vmatpush1.msra.mxu0 %v3568
    %3836 = vmatprep.subr.mxu0 0.0
    %3837 = vmatpush1.msra.mxu0 %v3569
    %3838 = vmatprep.subr.mxu0 0.0
    %3839 = vmatpush1.msra.mxu0 %v3570
    %3840 = vmatprep.subr.mxu0 0.0
    %3841 = vmatpush1.msra.mxu0 %v3571
    %3842 = vmatprep.subr.mxu0 0.0
    %3843 = vmatpush1.msra.mxu0 %v3572
    %3844 = vmatprep.subr.mxu0 0.0
    %3845 = vmatpush1.msra.mxu0 %v3573
    %3846 = vmatprep.subr.mxu0 0.0
    %3847 = vmatpush1.msra.mxu0 %v3574
    %3848 = vmatprep.subr.mxu0 0.0
    %3849 = vmatpush1.msra.mxu0 %v3575
    %3850 = vmatprep.subr.mxu0 0.0
    %3851 = vmatpush1.msra.mxu0 %v3576
    %3852 = vmatprep.mubr.f32.mxu0 %v3480
    %3853 = vmatmul.mubr.f32.gmra.mrb[0].mxu0 %v3479
    %v3854 = vpop.f32.mrb[0].mxu0
    %v3855 = vadd.f32 %v3785, %v3854
    %v3856 = vpop.f32.mrb[0].mxu0
    %3857 = vdwg.mxu0
    %3858 = vmatprep.subr.mxu0 0.0
    %3859 = vmatpush1.msra.mxu0 %v3577
    %3860 = vmatprep.subr.mxu0 0.0
    %3861 = vmatpush1.msra.mxu0 %v3578
    %3862 = vmatprep.subr.mxu0 0.0
    %3863 = vmatpush1.msra.mxu0 %v3579
    %3864 = vmatprep.subr.mxu0 0.0
    %3865 = vmatpush1.msra.mxu0 %v3580
    %3866 = vmatprep.subr.mxu0 0.0
    %3867 = vmatpush1.msra.mxu0 %v3581
    %3868 = vmatprep.subr.mxu0 0.0
    %3869 = vmatpush1.msra.mxu0 %v3582
    %3870 = vmatprep.subr.mxu0 0.0
    %3871 = vmatpush1.msra.mxu0 %v3583
    %3872 = vmatprep.subr.mxu0 0.0
    %3873 = vmatpush1.msra.mxu0 %v3584
    %3874 = vmatprep.subr.mxu0 0.0
    %3875 = vmatpush1.msra.mxu0 %v3585
    %3876 = vmatprep.subr.mxu0 0.0
    %3877 = vmatpush1.msra.mxu0 %v3586
    %3878 = vmatprep.subr.mxu0 0.0
    %3879 = vmatpush1.msra.mxu0 %v3587
    %3880 = vmatprep.subr.mxu0 0.0
    %3881 = vmatpush1.msra.mxu0 %v3588
    %3882 = vmatprep.subr.mxu0 0.0
    %3883 = vmatpush1.msra.mxu0 %v3589
    %3884 = vmatprep.subr.mxu0 0.0
    %3885 = vmatpush1.msra.mxu0 %v3590
    %3886 = vmatprep.subr.mxu0 0.0
    %3887 = vmatpush1.msra.mxu0 %v3591
    %3888 = vmatprep.subr.mxu0 0.0
    %3889 = vmatpush1.msra.mxu0 %v3592
    %3890 = vmatprep.subr.mxu0 0.0
    %3891 = vmatpush1.msra.mxu0 %v3593
    %3892 = vmatprep.subr.mxu0 0.0
    %3893 = vmatpush1.msra.mxu0 %v3594
    %3894 = vmatprep.subr.mxu0 0.0
    %3895 = vmatpush1.msra.mxu0 %v3595
    %3896 = vmatprep.subr.mxu0 0.0
    %3897 = vmatpush1.msra.mxu0 %v3596
    %3898 = vmatprep.subr.mxu0 0.0
    %3899 = vmatpush1.msra.mxu0 %v3597
    %3900 = vmatprep.subr.mxu0 0.0
    %3901 = vmatpush1.msra.mxu0 %v3598
    %3902 = vmatprep.subr.mxu0 0.0
    %3903 = vmatpush1.msra.mxu0 %v3599
    %3904 = vmatprep.subr.mxu0 0.0
    %3905 = vmatpush1.msra.mxu0 %v3600
    %3906 = vmatprep.subr.mxu0 0.0
    %3907 = vmatpush1.msra.mxu0 %v3601
    %3908 = vmatprep.subr.mxu0 0.0
    %3909 = vmatpush1.msra.mxu0 %v3602
    %3910 = vmatprep.subr.mxu0 0.0
    %3911 = vmatpush1.msra.mxu0 %v3603
    %3912 = vmatprep.subr.mxu0 0.0
    %3913 = vmatpush1.msra.mxu0 %v3604
    %3914 = vmatprep.subr.mxu0 0.0
    %3915 = vmatpush1.msra.mxu0 %v3605
    %3916 = vmatprep.subr.mxu0 0.0
    %3917 = vmatpush1.msra.mxu0 %v3606
    %3918 = vmatprep.subr.mxu0 0.0
    %3919 = vmatpush1.msra.mxu0 %v3607
    %3920 = vmatprep.subr.mxu0 0.0
    %3921 = vmatpush1.msra.mxu0 %v3608
    %3922 = vmatprep.mubr.f32.mxu0 %v2040
    %3923 = vmatmul.mubr.f32.gmra.mrb[0].mxu0 %v2039
    %v3924 = vpop.f32.mrb[0].mxu0
    %v3925 = vadd.f32 %v3855, %v3924
    %v3926 = vpop.f32.mrb[0].mxu0
    %3927 = vdwg.mxu0
    %3928 = vmatprep.subr.mxu0 0.0
    %3929 = vmatpush1.msra.mxu0 %v3609
    %3930 = vmatprep.subr.mxu0 0.0
    %3931 = vmatpush1.msra.mxu0 %v3610
    %3932 = vmatprep.subr.mxu0 0.0
    %3933 = vmatpush1.msra.mxu0 %v3611
    %3934 = vmatprep.subr.mxu0 0.0
    %3935 = vmatpush1.msra.mxu0 %v3612
    %3936 = vmatprep.subr.mxu0 0.0
    %3937 = vmatpush1.msra.mxu0 %v3613
    %3938 = vmatprep.subr.mxu0 0.0
    %3939 = vmatpush1.msra.mxu0 %v3614
    %3940 = vmatprep.subr.mxu0 0.0
    %3941 = vmatpush1.msra.mxu0 %v3615
    %3942 = vmatprep.subr.mxu0 0.0
    %3943 = vmatpush1.msra.mxu0 %v3616
    %3944 = vmatprep.subr.mxu0 0.0
    %3945 = vmatpush1.msra.mxu0 %v3617
    %3946 = vmatprep.subr.mxu0 0.0
    %3947 = vmatpush1.msra.mxu0 %v3618
    %3948 = vmatprep.subr.mxu0 0.0
    %3949 = vmatpush1.msra.mxu0 %v3619
    %3950 = vmatprep.subr.mxu0 0.0
    %3951 = vmatpush1.msra.mxu0 %v3620
    %3952 = vmatprep.subr.mxu0 0.0
    %3953 = vmatpush1.msra.mxu0 %v3621
    %3954 = vmatprep.subr.mxu0 0.0
    %3955 = vmatpush1.msra.mxu0 %v3622
    %3956 = vmatprep.subr.mxu0 0.0
    %3957 = vmatpush1.msra.mxu0 %v3623
    %3958 = vmatprep.subr.mxu0 0.0
    %3959 = vmatpush1.msra.mxu0 %v3624
    %3960 = vmatprep.subr.mxu0 0.0
    %3961 = vmatpush1.msra.mxu0 %v3625
    %3962 = vmatprep.subr.mxu0 0.0
    %3963 = vmatpush1.msra.mxu0 %v3626
    %3964 = vmatprep.subr.mxu0 0.0
    %3965 = vmatpush1.msra.mxu0 %v3627
    %3966 = vmatprep.subr.mxu0 0.0
    %3967 = vmatpush1.msra.mxu0 %v3628
    %3968 = vmatprep.subr.mxu0 0.0
    %3969 = vmatpush1.msra.mxu0 %v3629
    %3970 = vmatprep.subr.mxu0 0.0
    %3971 = vmatpush1.msra.mxu0 %v3630
    %3972 = vmatprep.subr.mxu0 0.0
    %3973 = vmatpush1.msra.mxu0 %v3631
    %3974 = vmatprep.subr.mxu0 0.0
    %3975 = vmatpush1.msra.mxu0 %v3632
    %3976 = vmatprep.subr.mxu0 0.0
    %3977 = vmatpush1.msra.mxu0 %v3633
    %3978 = vmatprep.subr.mxu0 0.0
    %3979 = vmatpush1.msra.mxu0 %v3634
    %3980 = vmatprep.subr.mxu0 0.0
    %3981 = vmatpush1.msra.mxu0 %v3635
    %3982 = vmatprep.subr.mxu0 0.0
    %3983 = vmatpush1.msra.mxu0 %v3636
    %3984 = vmatprep.subr.mxu0 0.0
    %3985 = vmatpush1.msra.mxu0 %v3637
    %3986 = vmatprep.subr.mxu0 0.0
    %3987 = vmatpush1.msra.mxu0 %v3638
    %3988 = vmatprep.subr.mxu0 0.0
    %3989 = vmatpush1.msra.mxu0 %v3639
    %3990 = vmatprep.subr.mxu0 0.0
    %3991 = vmatpush1.msra.mxu0 %v3640
    %3992 = vmatprep.mubr.f32.mxu0 %v2042
    %3993 = vmatmul.mubr.f32.gmra.mrb[0].mxu0 %v2041
    %v3994 = vpop.f32.mrb[0].mxu0
    %v3995 = vadd.f32 %v3925, %v3994
    %v3996 = vpop.f32.mrb[0].mxu0
    %3997 = vdwg.mxu0
    %3998 = vst [vmem:[#allocation20] sm:$0x3] %v3995
    // Predicated region
    $region98: #{tpu_custom_call.1} parent=1 // pred_check
      _
    $region99: #{tpu_custom_call.1} parent=1 // pred_check_branch
      %4000 = sbr.rel (0) target = $region101
    $region100: #{tpu_custom_call.1} parent=1 // pred_region
      %s4002 = ssub.s32 32, 32
      %4003 = vsyncadd [#allocation4], %s4002
      %s4005 = sshll.u32 [#allocation20], 4
      %s4006 = int_to_ptr.vmem [resolvable:$true] %s4005
      %4008 = dma.vmem_to_hbm [thread:$0]  %s4006, 32, %s13, [#allocation4]
    $region101: #{tpu_custom_call.1} parent=1 // pred_fallthru
      _
    // Predicated region
    $region102: #{tpu_custom_call.1} parent=1 // pred_check
      _
    $region103: #{tpu_custom_call.1} parent=1 // pred_check_branch
      %4010 = sbr.rel (0) target = $region105
    $region104: #{tpu_custom_call.1} parent=1 // pred_region
      %4011 = dma.done [#allocation4], 32
    $region105: #{tpu_custom_call.1} parent=1 // pred_fallthru
      _
    %4012 = vsyncpa [#allocation3], 1
    %4013 = vsyncpa [#allocation6], 1
    %4014 = vsyncpa [#allocation9], 1
    %4015 = vsyncpa [#allocation12], 1
    %4016 = vsyncpa [#allocation15], 1
    %4017 = vsyncpa [#allocation18], 1
    %4018 = vsyncpa [#allocation4], 1

</llo_original>
